<compile_context>
chip_gen: v7x
topology: tpu7x:2x2x1
jax: 0.10.0
libtpu: 0.0.40
codegen_flags: <defaults>
</compile_context>

<pallas_src>
import math
import numpy as np
import jax
import jax.numpy as jnp
from jax.experimental import pallas as pl
from jax.experimental.pallas import tpu as pltpu


# ---------------------------------------------------------------------------
# Parameter setup (deterministic, mirrors denoiser.dsp)
# ---------------------------------------------------------------------------
def hz_to_mel(f):
    return 2595.0 * np.log10(1.0 + f / 700.0)


def mel_to_hz(m):
    return 700.0 * (10.0 ** (m / 2595.0) - 1.0)


def mel_frequencies(n_mels, fmin, fmax):
    return mel_to_hz(np.linspace(hz_to_mel(fmin), hz_to_mel(fmax), n_mels))


def lowpass_taps(cutoff, width):
    """Windowed-sinc low-pass taps, identical construction to dsp.LowPassFilters."""
    n_taps = 2 * width + 1
    n = np.arange(n_taps, dtype=np.float64)
    window = (0.54 - 0.46 * np.cos(2.0 * np.pi * n / (n_taps - 1))).astype(np.float32)
    t = np.arange(-width, width + 1, dtype=np.float64)
    sinc = np.sinc(2.0 * cutoff * t).astype(np.float32)
    return (2.0 * np.float32(cutoff) * sinc * window).astype(np.float32)


def build_band_matrix(taps_low, taps_high, width, t_tile, halo):
    """Band matrix W with combined = (low - high) taps and the +1 identity folded in.

    Layout: row p of W corresponds to input sample (tile_start - halo + p);
    column u corresponds to output sample (tile_start + u).
    """
    K = 2 * width + 1
    c = (np.asarray(taps_low, np.float32) - np.asarray(taps_high, np.float32)).copy()
    c[width] += 1.0                                    # out = wav + conv(wav, low - high)
    W = np.zeros((t_tile + 2 * halo, t_tile), dtype=np.float32)
    for u in range(t_tile):
        p0 = u + halo - width
        W[p0:p0 + K, u] = c
    return W


# ---------------------------------------------------------------------------
# Pallas kernel: banded-matmul FIR on the MXU
# ---------------------------------------------------------------------------
def make_bandmask_kernel(t_tile, halo):
    def kernel(w_ref, xmid_ref, xprev_ref, xnext_ref, o_ref):
        j = pl.program_id(1)
        nt = pl.num_programs(1)
        hi = jax.lax.Precision.HIGHEST
        # Boundary tiles: the neighbor halo must contribute zeros (== conv1d zero
        # padding).  Scalar 0/1 mask instead of control flow keeps lowering simple.
        left = xprev_ref[...] * (j > 0).astype(jnp.float32)
        right = xnext_ref[...] * (j < nt - 1).astype(jnp.float32)

        acc = jnp.dot(xmid_ref[...], w_ref[halo:halo + t_tile, :],
                      preferred_element_type=jnp.float32, precision=hi)
        acc = acc + jnp.dot(left, w_ref[:halo, :],
                            preferred_element_type=jnp.float32, precision=hi)
        acc = acc + jnp.dot(right, w_ref[halo + t_tile:, :],
                            preferred_element_type=jnp.float32, precision=hi)
        o_ref[...] = acc
    return kernel


def bandmask_pallas(wav, taps_low, taps_high, width):
    B, C, T = wav.shape
    R = B * C

    # Lane-aligned halo (>= width) read from the neighboring time tiles.
    HALO = 128 * max(1, -(-width // 128))
    Rpad = -(-R // 8) * 8
    Tpad = -(-T // HALO) * HALO

    # Output time tile: largest multiple of HALO dividing Tpad, capped (keeps the
    # MXU contraction >= 256 for the common case while staying VMEM-cheap).
    cap = max(4 * HALO, 512)
    Tt = HALO
    for m in range(min(Tpad // HALO, cap // HALO), 0, -1):
        if Tpad % (m * HALO) == 0:
            Tt = m * HALO
            break
    TR = math.gcd(Rpad, 128)                 # row tile (multiple of 8, divides Rpad)

    x = wav.reshape(R, T).astype(jnp.float32)
    if Rpad != R or Tpad != T:
        # TODO(synk): only ragged shapes hit this pad; zero time-padding is exactly
        # conv1d's zero padding, so results on the valid region are unchanged.
        x = jnp.pad(x, ((0, Rpad - R), (0, Tpad - T)))

    W = jnp.asarray(build_band_matrix(taps_low, taps_high, width, Tt, HALO))

    ncol = Tt // HALO                        # halo blocks per output tile
    n_col_blocks = Tpad // HALO

    kernel = make_bandmask_kernel(Tt, HALO)
    out = pl.pallas_call(
        kernel,
        out_shape=jax.ShapeDtypeStruct((Rpad, Tpad), jnp.float32),
        grid=(Rpad // TR, Tpad // Tt),
        in_specs=[
            # Band matrix: constant block, fetched once, stays resident in VMEM.
            pl.BlockSpec((Tt + 2 * HALO, Tt), lambda i, j: (0, 0)),
            # Center time tile.
            pl.BlockSpec((TR, Tt), lambda i, j: (i, j)),
            # 128-wide neighbor halos (clamped at the edges; masked in-kernel).
            pl.BlockSpec((TR, HALO),
                         lambda i, j: (i, jnp.maximum(j * ncol - 1, 0))),
            pl.BlockSpec((TR, HALO),
                         lambda i, j: (i, jnp.minimum((j + 1) * ncol,
                                                      n_col_blocks - 1))),
        ],
        out_specs=pl.BlockSpec((TR, Tt), lambda i, j: (i, j)),
        compiler_params=pltpu.CompilerParams(
            dimension_semantics=("parallel", "parallel"),
            vmem_limit_bytes=32 * 1024 * 1024,
        ),
    )(W, x, x, x)

    return out[:R, :T].reshape(B, C, T).astype(wav.dtype)


# ---------------------------------------------------------------------------
# Driver
# ---------------------------------------------------------------------------
if __name__ == "__main__":
    B, C, T = 2, 4, 2048
    key = jax.random.PRNGKey(0)
    wav = jax.random.normal(key, (B, C, T), dtype=jnp.float32)

    maxwidth, bands, sample_rate = 0.2, 120, 16000
    bandwidth = int(abs(maxwidth) * bands)                 # 24
    mels = mel_frequencies(bands, 40, sample_rate / 2) / sample_rate

    # TODO(synk): module draws (low, high) with host-side random.randrange;
    # replaced with fixed deterministic band indices in the valid range.
    low_idx = 60
    high_idx = min(bands, low_idx + bandwidth) - 9         # = 75, in [low, low+bandwidth)

    cutoffs = [float(mels[low_idx]), float(mels[high_idx])]
    width = int(2.0 / min(cutoffs))                        # dsp.LowPassFilters default width
    taps_low = lowpass_taps(cutoffs[0], width)
    taps_high = lowpass_taps(cutoffs[1], width)

    out = bandmask_pallas(wav, taps_low, taps_high, width)
    out = jax.block_until_ready(out)

    # pure-numpy reference (filters are symmetric, so np.convolve == correlation)
    x_np = np.asarray(wav).reshape(-1, T).astype(np.float32)
    ref_rows = [
        r - np.convolve(r, taps_high, mode="same") + np.convolve(r, taps_low, mode="same")
        for r in x_np
    ]
    ref = np.stack(ref_rows).reshape(B, C, T)
    np.testing.assert_allclose(np.asarray(out), ref, rtol=1e-4, atol=1e-4)

    print("KERNEL_OK")
</pallas_src>

<mosaic_0001>
module attributes {stable_mosaic.version = 11 : i64} {
  func.func @kernel(%arg0: i32, %arg1: i32, %arg2: memref<768x512xf32, #tpu.memory_space<vmem>>, %arg3: memref<8x512xf32, #tpu.memory_space<vmem>>, %arg4: memref<8x128xf32, #tpu.memory_space<vmem>>, %arg5: memref<8x128xf32, #tpu.memory_space<vmem>>, %arg6: memref<8x512xf32, #tpu.memory_space<vmem>>) attributes {dimension_semantics = [#tpu.dimension_semantics<parallel>, #tpu.dimension_semantics<parallel>], iteration_bounds = array<i64: 1, 4>, scalar_prefetch = 0 : i64, scratch_operands = 0 : i64, tpu.core_type = #tpu.core_type<tc>, window_params = [{pipeline_mode = #tpu.pipeline_mode<synchronous>, transform_indices = @transform_0, window_bounds = array<i64: 768, 512>}, {transform_indices = @transform_1, window_bounds = array<i64: 8, 512>}, {transform_indices = @transform_2, window_bounds = array<i64: 8, 128>}, {transform_indices = @transform_3, window_bounds = array<i64: 8, 128>}, {transform_indices = @transform_4, window_bounds = array<i64: 8, 512>}]} {
    %c0 = arith.constant 0 : index
    %c0_0 = arith.constant 0 : index
    %0 = vector.load %arg4[%c0, %c0_0] : memref<8x128xf32, #tpu.memory_space<vmem>>, vector<8x128xf32>
    %c0_i32 = arith.constant 0 : i32
    %1 = arith.cmpi sgt, %arg1, %c0_i32 : i32
    %2 = arith.extui %1 : i1 to i32
    %3 = arith.sitofp %2 : i32 to f32
    %4 = vector.broadcast %3 : f32 to vector<8x128xf32>
    %5 = arith.mulf %0, %4 : vector<8x128xf32>
    %c0_1 = arith.constant 0 : index
    %c0_2 = arith.constant 0 : index
    %6 = vector.load %arg5[%c0_1, %c0_2] : memref<8x128xf32, #tpu.memory_space<vmem>>, vector<8x128xf32>
    %c3_i32 = arith.constant 3 : i32
    %7 = arith.cmpi slt, %arg1, %c3_i32 : i32
    %8 = arith.extui %7 : i1 to i32
    %9 = arith.sitofp %8 : i32 to f32
    %10 = vector.broadcast %9 : f32 to vector<8x128xf32>
    %11 = arith.mulf %6, %10 : vector<8x128xf32>
    %c0_3 = arith.constant 0 : index
    %c0_4 = arith.constant 0 : index
    %12 = vector.load %arg3[%c0_3, %c0_4] : memref<8x512xf32, #tpu.memory_space<vmem>>, vector<8x512xf32>
    %c128 = arith.constant 128 : index
    %c0_5 = arith.constant 0 : index
    %13 = vector.load %arg2[%c128, %c0_5] : memref<768x512xf32, #tpu.memory_space<vmem>>, vector<512x512xf32>
    %cst = arith.constant dense<0.000000e+00> : vector<8x512xf32>
    %14 = tpu.matmul %12, %13, %cst {dimension_numbers = #tpu.dot_dimension_numbers<[1], [0], [0], [1], [0, 0, 1, 1], [], []>, precision = #tpu.contract_precision<fp32>} : vector<8x512xf32>, vector<512x512xf32>, vector<8x512xf32> -> vector<8x512xf32>
    %c0_6 = arith.constant 0 : index
    %c0_7 = arith.constant 0 : index
    %15 = vector.load %arg2[%c0_6, %c0_7] : memref<768x512xf32, #tpu.memory_space<vmem>>, vector<128x512xf32>
    %cst_8 = arith.constant dense<0.000000e+00> : vector<8x512xf32>
    %16 = tpu.matmul %5, %15, %cst_8 {dimension_numbers = #tpu.dot_dimension_numbers<[1], [0], [0], [1], [0, 0, 1, 1], [], []>, precision = #tpu.contract_precision<fp32>} : vector<8x128xf32>, vector<128x512xf32>, vector<8x512xf32> -> vector<8x512xf32>
    %17 = arith.addf %14, %16 : vector<8x512xf32>
    %c640 = arith.constant 640 : index
    %c0_9 = arith.constant 0 : index
    %18 = vector.load %arg2[%c640, %c0_9] : memref<768x512xf32, #tpu.memory_space<vmem>>, vector<128x512xf32>
    %cst_10 = arith.constant dense<0.000000e+00> : vector<8x512xf32>
    %19 = tpu.matmul %11, %18, %cst_10 {dimension_numbers = #tpu.dot_dimension_numbers<[1], [0], [0], [1], [0, 0, 1, 1], [], []>, precision = #tpu.contract_precision<fp32>} : vector<8x128xf32>, vector<128x512xf32>, vector<8x512xf32> -> vector<8x512xf32>
    %20 = arith.addf %17, %19 : vector<8x512xf32>
    %c0_11 = arith.constant 0 : index
    %c0_12 = arith.constant 0 : index
    %21 = vector.load %arg6[%c0_11, %c0_12] : memref<8x512xf32, #tpu.memory_space<vmem>>, vector<8x512xf32>
    tpu.vector_store %arg6[%c0_11, %c0_12], %20 {strides = array<i32>} : memref<8x512xf32, #tpu.memory_space<vmem>>, vector<8x512xf32>,
    return
  }
  func.func @transform_0(%arg0: i32, %arg1: i32) -> (i32, i32) {
    %c0_i32 = arith.constant 0 : i32
    %c0_i32_0 = arith.constant 0 : i32
    %c0_i32_1 = arith.constant 0 : i32
    return %c0_i32, %c0_i32_0 : i32, i32
  }
  func.func @transform_1(%arg0: i32, %arg1: i32) -> (i32, i32) {
    %c0_i32 = arith.constant 0 : i32
    return %arg0, %arg1 : i32, i32
  }
  func.func @transform_2(%arg0: i32, %arg1: i32) -> (i32, i32) {
    %c4_i32 = arith.constant 4 : i32
    %0 = arith.muli %arg1, %c4_i32 : i32
    %c1_i32 = arith.constant 1 : i32
    %1 = arith.subi %0, %c1_i32 : i32
    %c0_i32 = arith.constant 0 : i32
    %2 = arith.maxsi %1, %c0_i32 : i32
    %c0_i32_0 = arith.constant 0 : i32
    return %arg0, %2 : i32, i32
  }
  func.func @transform_3(%arg0: i32, %arg1: i32) -> (i32, i32) {
    %c1_i32 = arith.constant 1 : i32
    %0 = arith.addi %arg1, %c1_i32 : i32
    %c4_i32 = arith.constant 4 : i32
    %1 = arith.muli %0, %c4_i32 : i32
    %c15_i32 = arith.constant 15 : i32
    %2 = arith.minsi %1, %c15_i32 : i32
    %c0_i32 = arith.constant 0 : i32
    return %arg0, %2 : i32, i32
  }
  func.func @transform_4(%arg0: i32, %arg1: i32) -> (i32, i32) {
    %c0_i32 = arith.constant 0 : i32
    return %arg0, %arg1 : i32, i32
  }
}

</mosaic_0001>

<llo_original>
// kernel: tpu_custom_call.1
$region0: #{tpu_custom_call.1}
  #allocation0 [shape = 'u32[]', space=smem, size = 0x4, offset = 0x4, fixed_abs, tag = 'smem constant byte address 0x4 - core index']
  #allocation1 [shape = 'u32[144,128]{1,0:T(1,128)}', space=vmem, size = 0x12000, scoped, tag = 'internal scratch']
  %s0 = inlined_call_operand.hbm [shape: f32[768,512], index: 0, kind: input, shape index: {}]
  %s1 = inlined_call_operand.hbm [shape: f32[8,2048], index: 1, kind: input, shape index: {}]
  %s2 = inlined_call_operand.hbm [shape: f32[8,2048], index: 2, kind: input, shape index: {}]
  %s3 = inlined_call_operand.hbm [shape: f32[8,2048], index: 3, kind: input, shape index: {}]
  %s4 = inlined_call_operand.hbm [shape: f32[8,2048], index: 4, kind: output, shape index: {}]
  %s5 = sld [smem:[#allocation0]]
  $region65: #{tpu_custom_call.1} parent=0
    _
  %s7 = ssub.s32 1, %s5
  %s8 = scalar_select 0, %s7, %s5
  $region1: #{tpu_custom_call.1} parent=0
    #allocation2 [shape = 'u8[1572864]{0}', space=vmem, size = 0x180000, scoped, tag = 'input window, operand 0, single buffered']
    #allocation3 [shape = 's32[2]{0}', space=sflag, size = 0x8, scoped, tag = 'scoped memory for tpu_custom_call.1']
    #allocation4 [shape = 's32[2]{0}', space=sflag, size = 0x8, scoped, tag = 'scoped memory for tpu_custom_call.1']
    #allocation5 [shape = 'u8[32768]{0}', space=vmem, size = 0x8000, scoped, tag = 'input window, operand 1']
    #allocation6 [shape = 's32[2]{0}', space=sflag, size = 0x8, scoped, tag = 'scoped memory for tpu_custom_call.1']
    #allocation7 [shape = 'u8[8192]{0}', space=vmem, size = 0x2000, scoped, tag = 'input window, operand 2']
    #allocation8 [shape = 'u8[8192]{0}', space=vmem, size = 0x2000, scoped, tag = 'input window, operand 3']
    #allocation9 [shape = 's32[2]{0}', space=sflag, size = 0x8, scoped, tag = 'scoped memory for tpu_custom_call.1']
    #allocation10 [shape = 'u8[32768]{0}', space=vmem, size = 0x8000, scoped, tag = 'output window, operand 0']
    %9 = vsyncpa [#allocation3], 0
    %10 = vsyncpa [#allocation6], 0
    %s11 = scalar_lea.sflag [#allocation6], 1
    %12 = vsyncpa %s11, 0
    %13 = vsyncpa [#allocation9], 0
    %s14 = scalar_lea.sflag [#allocation9], 1
    %15 = vsyncpa %s14, 0
    %16 = vsyncpa [#allocation4], 0
    %s17 = scalar_lea.sflag [#allocation4], 1
    %18 = vsyncpa %s17, 0
    loop: start=0, step=1, limit=6
    $region2: #{tpu_custom_call.1} parent=1 // loop_pre_header
      _
    $region3: #{tpu_custom_call.1} parent=1 // loop_header
      %s20 = sphi 0, %s24
      %p21 = scmp.ge.s32.totalorder %s20, 6
      %s27 = sphi 0, %s39
      %s28 = sphi 0, %s35
      %s29 = sphi 0, %s27
      %s30 = sphi 0, %s28
      %s31 = sphi 0, %s29
      %s32 = sphi 0, %s30
      %s40 = sphi 0, %s40
      %s42 = sphi 0, %s40
      %s43 = sphi 0, %s42
      %s57 = sphi 0, %s43
      %s65 = sphi 0, %s67
      %s68 = sphi 0, %s65
      %s69 = sphi 0, %s68
      %s85 = sphi 0, %s69
      %s101 = sphi 0, %s103
      %s104 = sphi 0, %s101
      %s105 = sphi 0, %s104
      %s121 = sphi 0, %s105
      %s137 = sphi 0, %s139
      %s140 = sphi 0, %s137
      %s141 = sphi 0, %s140
      %s157 = sphi 0, %s141
      %s165 = sphi 0, %s167
      %s168 = sphi 0, %s165
      %s169 = sphi 0, %s168
      %s185 = sphi 0, %s169
    $region4: #{tpu_custom_call.1} parent=1 // loop_header_branch
      %23 = sbr.rel (%p21) target = $region8
    $region5: #{tpu_custom_call.1} parent=1 // loop_body
      %s25 = ssub.s32 %s20, 1
      %s26 = ssub.s32 %s20, 2
      %s33 = sadd.s32 1, %s28
      %p34 = scmp.ge.s32.totalorder %s33, 4
      %s35 = scalar_select %p34, 0, %s33
      %s36 = sadd.s32 1, %s27
      %s37 = scalar_select %p34, %s36, %s27
      %p38 = scmp.ge.s32.totalorder %s37, 1
      %s39 = scalar_select %p38, 0, %s37
      %s41 = sadd.s32 %s40, 1
      %p44 = scmp.eq.s32.totalorder %s20, 3
      %p45 = scmp.ne.s32.totalorder %s40, %s42
      %p46 = scmp.eq.s32.totalorder %s20, 0
      %p47 = por %p45, %p46
      %p48 = scmp.ne.s32.totalorder %s40, %s42
      %p49 = scmp.eq.s32.totalorder %s25, 3
      %p50 = por %p48, %p49
      %p51 = scmp.ne.s32.totalorder %s42, %s43
      %p52 = scmp.eq.s32.totalorder %s25, 0
      %p53 = por %p51, %p52
      %p54 = scmp.ne.s32.totalorder %s42, %s43
      %p55 = scmp.eq.s32.totalorder %s26, 3
      %p56 = por %p54, %p55
      %p58 = scmp.ne.s32.totalorder %s43, %s57
      %p59 = scmp.eq.s32.totalorder %s26, 0
      %p60 = por %p58, %p59
      %s61 = ssub.s32 %s27, %s39
      %s62 = ssub.s32 %s28, %s35
      %s63 = sor.u32 %s61, %s62
      %p64 = scmp.eq.s32.totalorder %s63, 0
      %s66 = sadd.s32 %s65, 1
      %s67 = scalar_select %p64, %s65, %s66
      %p70 = pneg %p64
      %p71 = scmp.eq.s32.totalorder %s20, 3
      %p72 = por %p70, %p71
      %p73 = scmp.ne.s32.totalorder %s65, %s68
      %p74 = scmp.eq.s32.totalorder %s20, 0
      %p75 = por %p73, %p74
      %p76 = scmp.ne.s32.totalorder %s65, %s68
      %p77 = scmp.eq.s32.totalorder %s25, 3
      %p78 = por %p76, %p77
      %p79 = scmp.ne.s32.totalorder %s68, %s69
      %p80 = scmp.eq.s32.totalorder %s25, 0
      %p81 = por %p79, %p80
      %p82 = scmp.ne.s32.totalorder %s68, %s69
      %p83 = scmp.eq.s32.totalorder %s26, 3
      %p84 = por %p82, %p83
      %p86 = scmp.ne.s32.totalorder %s69, %s85
      %p87 = scmp.eq.s32.totalorder %s26, 0
      %p88 = por %p86, %p87
      %s89 = smul.u32 %s28, 4
      %s90 = ssub.s32 %s89, 1
      %p91 = scmp.gt.s32.totalorder %s90, 0
      %s92 = scalar_select %p91, %s90, 0
      %s93 = smul.u32 %s35, 4
      %s94 = ssub.s32 %s93, 1
      %p95 = scmp.gt.s32.totalorder %s94, 0
      %s96 = scalar_select %p95, %s94, 0
      %s97 = ssub.s32 %s27, %s39
      %s98 = ssub.s32 %s92, %s96
      %s99 = sor.u32 %s97, %s98
      %p100 = scmp.eq.s32.totalorder %s99, 0
      %s102 = sadd.s32 %s101, 1
      %s103 = scalar_select %p100, %s101, %s102
      %p106 = pneg %p100
      %p107 = scmp.eq.s32.totalorder %s20, 3
      %p108 = por %p106, %p107
      %p109 = scmp.ne.s32.totalorder %s101, %s104
      %p110 = scmp.eq.s32.totalorder %s20, 0
      %p111 = por %p109, %p110
      %p112 = scmp.ne.s32.totalorder %s101, %s104
      %p113 = scmp.eq.s32.totalorder %s25, 3
      %p114 = por %p112, %p113
      %p115 = scmp.ne.s32.totalorder %s104, %s105
      %p116 = scmp.eq.s32.totalorder %s25, 0
      %p117 = por %p115, %p116
      %p118 = scmp.ne.s32.totalorder %s104, %s105
      %p119 = scmp.eq.s32.totalorder %s26, 3
      %p120 = por %p118, %p119
      %p122 = scmp.ne.s32.totalorder %s105, %s121
      %p123 = scmp.eq.s32.totalorder %s26, 0
      %p124 = por %p122, %p123
      %s125 = sadd.s32 %s28, 1
      %s126 = smul.u32 %s125, 4
      %p127 = scmp.lt.s32.totalorder %s126, 15
      %s128 = scalar_select %p127, %s126, 15
      %s129 = sadd.s32 %s35, 1
      %s130 = smul.u32 %s129, 4
      %p131 = scmp.lt.s32.totalorder %s130, 15
      %s132 = scalar_select %p131, %s130, 15
      %s133 = ssub.s32 %s27, %s39
      %s134 = ssub.s32 %s128, %s132
      %s135 = sor.u32 %s133, %s134
      %p136 = scmp.eq.s32.totalorder %s135, 0
      %s138 = sadd.s32 %s137, 1
      %s139 = scalar_select %p136, %s137, %s138
      %p142 = pneg %p136
      %p143 = scmp.eq.s32.totalorder %s20, 3
      %p144 = por %p142, %p143
      %p145 = scmp.ne.s32.totalorder %s137, %s140
      %p146 = scmp.eq.s32.totalorder %s20, 0
      %p147 = por %p145, %p146
      %p148 = scmp.ne.s32.totalorder %s137, %s140
      %p149 = scmp.eq.s32.totalorder %s25, 3
      %p150 = por %p148, %p149
      %p151 = scmp.ne.s32.totalorder %s140, %s141
      %p152 = scmp.eq.s32.totalorder %s25, 0
      %p153 = por %p151, %p152
      %p154 = scmp.ne.s32.totalorder %s140, %s141
      %p155 = scmp.eq.s32.totalorder %s26, 3
      %p156 = por %p154, %p155
      %p158 = scmp.ne.s32.totalorder %s141, %s157
      %p159 = scmp.eq.s32.totalorder %s26, 0
      %p160 = por %p158, %p159
      %s161 = ssub.s32 %s27, %s39
      %s162 = ssub.s32 %s28, %s35
      %s163 = sor.u32 %s161, %s162
      %p164 = scmp.eq.s32.totalorder %s163, 0
      %s166 = sadd.s32 %s165, 1
      %s167 = scalar_select %p164, %s165, %s166
      %p170 = pneg %p164
      %p171 = scmp.eq.s32.totalorder %s20, 3
      %p172 = por %p170, %p171
      %p173 = scmp.ne.s32.totalorder %s165, %s168
      %p174 = scmp.eq.s32.totalorder %s20, 0
      %p175 = por %p173, %p174
      %p176 = scmp.ne.s32.totalorder %s165, %s168
      %p177 = scmp.eq.s32.totalorder %s25, 3
      %p178 = por %p176, %p177
      %p179 = scmp.ne.s32.totalorder %s168, %s169
      %p180 = scmp.eq.s32.totalorder %s25, 0
      %p181 = por %p179, %p180
      %p182 = scmp.ne.s32.totalorder %s168, %s169
      %p183 = scmp.eq.s32.totalorder %s26, 3
      %p184 = por %p182, %p183
      %p186 = scmp.ne.s32.totalorder %s169, %s185
      %p187 = scmp.eq.s32.totalorder %s26, 0
      %p188 = por %p186, %p187
      %p189 = scmp.le.s32.totalorder 1, %s20
      %p190 = scmp.lt.s32.totalorder %s20, 5
      %p191 = pnand %p189, %p190
      %p192 = pneg %p191
      // Predicated region
      $region9: #{tpu_custom_call.1} parent=5 // pred_check
        _
      $region10: #{tpu_custom_call.1} parent=5 // pred_check_branch
        %194 = sbr.rel (%p191) target = $region12
      $region11: #{tpu_custom_call.1} parent=5 // pred_region
        %s195 = ssub.s32 %s20, 1
        // Predicated region
        $region13: #{tpu_custom_call.1} parent=11 // pred_check
          %p196 = pneg %p53
        $region14: #{tpu_custom_call.1} parent=11 // pred_check_branch
          %198 = sbr.rel (%p196) target = $region16
        $region15: #{tpu_custom_call.1} parent=11 // pred_region
          %s200 = ssub.s32 49152, 49152
          %201 = vsyncadd [#allocation3], %s200
          %s202 = sshll.u32 [#allocation2], 4
          %s203 = int_to_ptr.vmem [resolvable:$true] %s202
          %208 = dma.hbm_to_vmem [thread:$0]  %s0, 49152, %s203, [#allocation3], 512, 512, 32
        $region16: #{tpu_custom_call.1} parent=11 // pred_fallthru
          _
      $region12: #{tpu_custom_call.1} parent=5 // pred_fallthru
        _
      %p209 = scmp.lt.s32.totalorder %s20, 4
      // Predicated region
      $region17: #{tpu_custom_call.1} parent=5 // pred_check
        %p210 = pneg %p209
      $region18: #{tpu_custom_call.1} parent=5 // pred_check_branch
        %212 = sbr.rel (%p210) target = $region20
      $region19: #{tpu_custom_call.1} parent=5 // pred_region
        // Predicated region
        $region21: #{tpu_custom_call.1} parent=19 // pred_check
          %p213 = pneg %p75
        $region22: #{tpu_custom_call.1} parent=19 // pred_check_branch
          %215 = sbr.rel (%p213) target = $region24
        $region23: #{tpu_custom_call.1} parent=19 // pred_region
          %s216 = sand.u32 %s20, 1
          %s217 = scalar_lea.sflag [#allocation6], %s216
          %s218 = sand.u32 %s65, 1
          %s219 = smul.addr %s218, 32
          %s220 = scalar_lea.vmem [#allocation5], %s219
          %s221 = smul.u32 4, %s28
          %s223 = ssub.s32 512, 512
          %224 = vsyncadd %s217, %s223
          %s225 = smul.addr %s27, 16
          %s226 = sadd.s32 %s221, %s225
          %s227 = smul.addr %s226, 128
          %s228 = scalar_lea.hbm %s1, %s227
          %s230 = sshll.u32 %s220, 4
          %s231 = int_to_ptr.vmem [resolvable:$true] %s230
          %233 = dma.hbm_to_vmem [thread:$0]  %s228, 512, %s231, %s217
        $region24: #{tpu_custom_call.1} parent=19 // pred_fallthru
          _
        // Predicated region
        $region25: #{tpu_custom_call.1} parent=19 // pred_check
          %p234 = pneg %p111
        $region26: #{tpu_custom_call.1} parent=19 // pred_check_branch
          %236 = sbr.rel (%p234) target = $region28
        $region27: #{tpu_custom_call.1} parent=19 // pred_region
          %s237 = sand.u32 %s20, 1
          %s238 = scalar_lea.sflag [#allocation6], %s237
          %s239 = sand.u32 %s101, 1
          %s240 = smul.addr %s239, 8
          %s241 = scalar_lea.vmem [#allocation7], %s240
          %s242 = smul.u32 %s28, 4
          %s243 = ssub.s32 %s242, 1
          %p244 = scmp.gt.s32.totalorder %s243, 0
          %s245 = scalar_select %p244, %s243, 0
          %s247 = ssub.s32 128, 128
          %248 = vsyncadd %s238, %s247
          %s249 = smul.addr %s27, 16
          %s250 = sadd.s32 %s245, %s249
          %s251 = smul.addr %s250, 128
          %s252 = scalar_lea.hbm %s2, %s251
          %s254 = sshll.u32 %s241, 4
          %s255 = int_to_ptr.vmem [resolvable:$true] %s254
          %257 = dma.hbm_to_vmem [thread:$0]  %s252, 128, %s255, %s238
        $region28: #{tpu_custom_call.1} parent=19 // pred_fallthru
          _
        // Predicated region
        $region29: #{tpu_custom_call.1} parent=19 // pred_check
          %p258 = pneg %p147
        $region30: #{tpu_custom_call.1} parent=19 // pred_check_branch
          %260 = sbr.rel (%p258) target = $region32
        $region31: #{tpu_custom_call.1} parent=19 // pred_region
          %s261 = sand.u32 %s137, 1
          %s262 = scalar_lea.sflag [#allocation9], %s261
          %s263 = sand.u32 %s137, 1
          %s264 = smul.addr %s263, 8
          %s265 = scalar_lea.vmem [#allocation8], %s264
          %s266 = sadd.s32 %s28, 1
          %s267 = smul.u32 %s266, 4
          %p268 = scmp.lt.s32.totalorder %s267, 15
          %s269 = scalar_select %p268, %s267, 15
          %s271 = ssub.s32 128, 128
          %272 = vsyncadd %s262, %s271
          %s273 = smul.addr %s27, 16
          %s274 = sadd.s32 %s269, %s273
          %s275 = smul.addr %s274, 128
          %s276 = scalar_lea.hbm %s3, %s275
          %s278 = sshll.u32 %s265, 4
          %s279 = int_to_ptr.vmem [resolvable:$true] %s278
          %281 = dma.hbm_to_vmem [thread:$0]  %s276, 128, %s279, %s262
        $region32: #{tpu_custom_call.1} parent=19 // pred_fallthru
          _
      $region20: #{tpu_custom_call.1} parent=5 // pred_fallthru
        _
      %p282 = scmp.le.s32.totalorder 1, %s20
      %p283 = scmp.lt.s32.totalorder %s20, 5
      %p284 = pnand %p282, %p283
      %p285 = pneg %p284
      // Predicated region
      $region33: #{tpu_custom_call.1} parent=5 // pred_check
        _
      $region34: #{tpu_custom_call.1} parent=5 // pred_check_branch
        %287 = sbr.rel (%p284) target = $region36
      $region35: #{tpu_custom_call.1} parent=5 // pred_region
        %s288 = ssub.s32 %s20, 1
        // Predicated region
        $region37: #{tpu_custom_call.1} parent=35 // pred_check
          %p289 = pneg %p53
        $region38: #{tpu_custom_call.1} parent=35 // pred_check_branch
          %291 = sbr.rel (%p289) target = $region40
        $region39: #{tpu_custom_call.1} parent=35 // pred_region
          %292 = dma.done [#allocation3], 49152
        $region40: #{tpu_custom_call.1} parent=35 // pred_fallthru
          _
        %s293 = sand.u32 %s25, 1
        %s294 = scalar_lea.sflag [#allocation6], %s293
        %s295 = sand.u32 %s68, 1
        %s296 = smul.addr %s295, 32
        %s297 = scalar_lea.vmem [#allocation5], %s296
        // Predicated region
        $region41: #{tpu_custom_call.1} parent=35 // pred_check
          %p298 = pneg %p81
        $region42: #{tpu_custom_call.1} parent=35 // pred_check_branch
          %300 = sbr.rel (%p298) target = $region44
        $region43: #{tpu_custom_call.1} parent=35 // pred_region
          %301 = dma.done %s294, 512
        $region44: #{tpu_custom_call.1} parent=35 // pred_fallthru
          _
        %s302 = sand.u32 %s25, 1
        %s303 = scalar_lea.sflag [#allocation6], %s302
        %s304 = sand.u32 %s104, 1
        %s305 = smul.addr %s304, 8
        %s306 = scalar_lea.vmem [#allocation7], %s305
        // Predicated region
        $region45: #{tpu_custom_call.1} parent=35 // pred_check
          %p307 = pneg %p117
        $region46: #{tpu_custom_call.1} parent=35 // pred_check_branch
          %309 = sbr.rel (%p307) target = $region48
        $region47: #{tpu_custom_call.1} parent=35 // pred_region
          %310 = dma.done %s303, 128
        $region48: #{tpu_custom_call.1} parent=35 // pred_fallthru
          _
        %s311 = sand.u32 %s140, 1
        %s312 = scalar_lea.sflag [#allocation9], %s311
        %s313 = sand.u32 %s140, 1
        %s314 = smul.addr %s313, 8
        %s315 = scalar_lea.vmem [#allocation8], %s314
        // Predicated region
        $region49: #{tpu_custom_call.1} parent=35 // pred_check
          %p316 = pneg %p153
        $region50: #{tpu_custom_call.1} parent=35 // pred_check_branch
          %318 = sbr.rel (%p316) target = $region52
        $region51: #{tpu_custom_call.1} parent=35 // pred_region
          %319 = dma.done %s312, 128
        $region52: #{tpu_custom_call.1} parent=35 // pred_fallthru
          _
        %p320 = pneg %p53
        %p321 = pneg %p50
        %s322 = sand.u32 %s25, 1
        %s323 = scalar_lea.sflag [#allocation6], %s322
        %s324 = sand.u32 %s68, 1
        %s325 = smul.addr %s324, 32
        %s326 = scalar_lea.vmem [#allocation5], %s325
        %p327 = pneg %p81
        %p328 = pneg %p78
        %s329 = sand.u32 %s25, 1
        %s330 = scalar_lea.sflag [#allocation6], %s329
        %s331 = sand.u32 %s104, 1
        %s332 = smul.addr %s331, 8
        %s333 = scalar_lea.vmem [#allocation7], %s332
        %p334 = pneg %p117
        %p335 = pneg %p114
        %s336 = sand.u32 %s140, 1
        %s337 = scalar_lea.sflag [#allocation9], %s336
        %s338 = sand.u32 %s140, 1
        %s339 = smul.addr %s338, 8
        %s340 = scalar_lea.vmem [#allocation8], %s339
        %p341 = pneg %p153
        %p342 = pneg %p150
        %p343 = pneg %p181
        %p344 = pneg %p178
        %s345 = sand.u32 %s168, 1
        %s346 = scalar_lea.sflag [#allocation4], %s345
        %s347 = sand.u32 %s168, 1
        %s348 = smul.addr %s347, 32
        %s349 = scalar_lea.vmem [#allocation10], %s348
        %s350 = smul.u32 4, %s30
        %s351 = smul.u32 %s30, 4
        %s352 = ssub.s32 %s351, 1
        %p353 = scmp.gt.s32.totalorder %s352, 0
        %s354 = scalar_select %p353, %s352, 0
        %s355 = sadd.s32 %s30, 1
        %s356 = smul.u32 %s355, 4
        %p357 = scmp.lt.s32.totalorder %s356, 15
        %s358 = scalar_select %p357, %s356, 15
        %s359 = smul.u32 4, %s30
        %v360 = vld [vmem:[%s306] sm:$0xff]
        %p361 = scmp.gt.s32.totalorder %s30, 0
        %s362 = scalar_select %p361, 1, 0
        %s363 = scvt.s32.f32 %s362
        %v364 = vstv %s363
        %v365 = vmul.f32 %v360, %v364
        %v366 = vld [vmem:[%s315] sm:$0xff]
        %p367 = scmp.lt.s32.totalorder %s30, 3
        %s368 = scalar_select %p367, 1, 0
        %s369 = scvt.s32.f32 %s368
        %v370 = vstv %s369
        %v371 = vmul.f32 %v366, %v370
        %v372 = vld [vmem:[%s297] sm:$0xff]
        %v373 = vld [vmem:[%s297 + $0x8] sm:$0xff]
        %v374 = vld [vmem:[%s297 + $0x10] sm:$0xff]
        %v375 = vld [vmem:[%s297 + $0x18] sm:$0xff]
        %v376 = vld [vmem:[#allocation2 + $0x200] sm:$0xff]
        %v377 = vld [vmem:[#allocation2 + $0x208] sm:$0xff]
        %v378 = vld [vmem:[#allocation2 + $0x210] sm:$0xff]
        %v379 = vld [vmem:[#allocation2 + $0x218] sm:$0xff]
        %v380 = vld [vmem:[#allocation2 + $0x220] sm:$0xff]
        %v381 = vld [vmem:[#allocation2 + $0x228] sm:$0xff]
        %v382 = vld [vmem:[#allocation2 + $0x230] sm:$0xff]
        %v383 = vld [vmem:[#allocation2 + $0x238] sm:$0xff]
        %v384 = vld [vmem:[#allocation2 + $0x240] sm:$0xff]
        %v385 = vld [vmem:[#allocation2 + $0x248] sm:$0xff]
        %v386 = vld [vmem:[#allocation2 + $0x250] sm:$0xff]
        %v387 = vld [vmem:[#allocation2 + $0x258] sm:$0xff]
        %v388 = vld [vmem:[#allocation2 + $0x260] sm:$0xff]
        %v389 = vld [vmem:[#allocation2 + $0x268] sm:$0xff]
        %v390 = vld [vmem:[#allocation2 + $0x270] sm:$0xff]
        %v391 = vld [vmem:[#allocation2 + $0x278] sm:$0xff]
        %v392 = vld [vmem:[#allocation2 + $0x280] sm:$0xff]
        %v393 = vld [vmem:[#allocation2 + $0x288] sm:$0xff]
        %v394 = vld [vmem:[#allocation2 + $0x290] sm:$0xff]
        %v395 = vld [vmem:[#allocation2 + $0x298] sm:$0xff]
        %v396 = vld [vmem:[#allocation2 + $0x2a0] sm:$0xff]
        %v397 = vld [vmem:[#allocation2 + $0x2a8] sm:$0xff]
        %v398 = vld [vmem:[#allocation2 + $0x2b0] sm:$0xff]
        %v399 = vld [vmem:[#allocation2 + $0x2b8] sm:$0xff]
        %v400 = vld [vmem:[#allocation2 + $0x2c0] sm:$0xff]
        %v401 = vld [vmem:[#allocation2 + $0x2c8] sm:$0xff]
        %v402 = vld [vmem:[#allocation2 + $0x2d0] sm:$0xff]
        %v403 = vld [vmem:[#allocation2 + $0x2d8] sm:$0xff]
        %v404 = vld [vmem:[#allocation2 + $0x2e0] sm:$0xff]
        %v405 = vld [vmem:[#allocation2 + $0x2e8] sm:$0xff]
        %v406 = vld [vmem:[#allocation2 + $0x2f0] sm:$0xff]
        %v407 = vld [vmem:[#allocation2 + $0x2f8] sm:$0xff]
        %v408 = vld [vmem:[#allocation2 + $0x300] sm:$0xff]
        %v409 = vld [vmem:[#allocation2 + $0x308] sm:$0xff]
        %v410 = vld [vmem:[#allocation2 + $0x310] sm:$0xff]
        %v411 = vld [vmem:[#allocation2 + $0x318] sm:$0xff]
        %v412 = vld [vmem:[#allocation2 + $0x320] sm:$0xff]
        %v413 = vld [vmem:[#allocation2 + $0x328] sm:$0xff]
        %v414 = vld [vmem:[#allocation2 + $0x330] sm:$0xff]
        %v415 = vld [vmem:[#allocation2 + $0x338] sm:$0xff]
        %v416 = vld [vmem:[#allocation2 + $0x340] sm:$0xff]
        %v417 = vld [vmem:[#allocation2 + $0x348] sm:$0xff]
        %v418 = vld [vmem:[#allocation2 + $0x350] sm:$0xff]
        %v419 = vld [vmem:[#allocation2 + $0x358] sm:$0xff]
        %v420 = vld [vmem:[#allocation2 + $0x360] sm:$0xff]
        %v421 = vld [vmem:[#allocation2 + $0x368] sm:$0xff]
        %v422 = vld [vmem:[#allocation2 + $0x370] sm:$0xff]
        %v423 = vld [vmem:[#allocation2 + $0x378] sm:$0xff]
        %v424 = vld [vmem:[#allocation2 + $0x380] sm:$0xff]
        %v425 = vld [vmem:[#allocation2 + $0x388] sm:$0xff]
        %v426 = vld [vmem:[#allocation2 + $0x390] sm:$0xff]
        %v427 = vld [vmem:[#allocation2 + $0x398] sm:$0xff]
        %v428 = vld [vmem:[#allocation2 + $0x3a0] sm:$0xff]
        %v429 = vld [vmem:[#allocation2 + $0x3a8] sm:$0xff]
        %v430 = vld [vmem:[#allocation2 + $0x3b0] sm:$0xff]
        %v431 = vld [vmem:[#allocation2 + $0x3b8] sm:$0xff]
        %v432 = vld [vmem:[#allocation2 + $0x3c0] sm:$0xff]
        %v433 = vld [vmem:[#allocation2 + $0x3c8] sm:$0xff]
        %v434 = vld [vmem:[#allocation2 + $0x3d0] sm:$0xff]
        %v435 = vld [vmem:[#allocation2 + $0x3d8] sm:$0xff]
        %v436 = vld [vmem:[#allocation2 + $0x3e0] sm:$0xff]
        %v437 = vld [vmem:[#allocation2 + $0x3e8] sm:$0xff]
        %v438 = vld [vmem:[#allocation2 + $0x3f0] sm:$0xff]
        %v439 = vld [vmem:[#allocation2 + $0x3f8] sm:$0xff]
        %v440 = vld [vmem:[#allocation2 + $0x400] sm:$0xff]
        %v441 = vld [vmem:[#allocation2 + $0x408] sm:$0xff]
        %v442 = vld [vmem:[#allocation2 + $0x410] sm:$0xff]
        %v443 = vld [vmem:[#allocation2 + $0x418] sm:$0xff]
        %v444 = vld [vmem:[#allocation2 + $0x420] sm:$0xff]
        %v445 = vld [vmem:[#allocation2 + $0x428] sm:$0xff]
        %v446 = vld [vmem:[#allocation2 + $0x430] sm:$0xff]
        %v447 = vld [vmem:[#allocation2 + $0x438] sm:$0xff]
        %v448 = vld [vmem:[#allocation2 + $0x440] sm:$0xff]
        %v449 = vld [vmem:[#allocation2 + $0x448] sm:$0xff]
        %v450 = vld [vmem:[#allocation2 + $0x450] sm:$0xff]
        %v451 = vld [vmem:[#allocation2 + $0x458] sm:$0xff]
        %v452 = vld [vmem:[#allocation2 + $0x460] sm:$0xff]
        %v453 = vld [vmem:[#allocation2 + $0x468] sm:$0xff]
        %v454 = vld [vmem:[#allocation2 + $0x470] sm:$0xff]
        %v455 = vld [vmem:[#allocation2 + $0x478] sm:$0xff]
        %v456 = vld [vmem:[#allocation2 + $0x480] sm:$0xff]
        %v457 = vld [vmem:[#allocation2 + $0x488] sm:$0xff]
        %v458 = vld [vmem:[#allocation2 + $0x490] sm:$0xff]
        %v459 = vld [vmem:[#allocation2 + $0x498] sm:$0xff]
        %v460 = vld [vmem:[#allocation2 + $0x4a0] sm:$0xff]
        %v461 = vld [vmem:[#allocation2 + $0x4a8] sm:$0xff]
        %v462 = vld [vmem:[#allocation2 + $0x4b0] sm:$0xff]
        %v463 = vld [vmem:[#allocation2 + $0x4b8] sm:$0xff]
        %v464 = vld [vmem:[#allocation2 + $0x4c0] sm:$0xff]
        %v465 = vld [vmem:[#allocation2 + $0x4c8] sm:$0xff]
        %v466 = vld [vmem:[#allocation2 + $0x4d0] sm:$0xff]
        %v467 = vld [vmem:[#allocation2 + $0x4d8] sm:$0xff]
        %v468 = vld [vmem:[#allocation2 + $0x4e0] sm:$0xff]
        %v469 = vld [vmem:[#allocation2 + $0x4e8] sm:$0xff]
        %v470 = vld [vmem:[#allocation2 + $0x4f0] sm:$0xff]
        %v471 = vld [vmem:[#allocation2 + $0x4f8] sm:$0xff]
        %v472 = vld [vmem:[#allocation2 + $0x500] sm:$0xff]
        %v473 = vld [vmem:[#allocation2 + $0x508] sm:$0xff]
        %v474 = vld [vmem:[#allocation2 + $0x510] sm:$0xff]
        %v475 = vld [vmem:[#allocation2 + $0x518] sm:$0xff]
        %v476 = vld [vmem:[#allocation2 + $0x520] sm:$0xff]
        %v477 = vld [vmem:[#allocation2 + $0x528] sm:$0xff]
        %v478 = vld [vmem:[#allocation2 + $0x530] sm:$0xff]
        %v479 = vld [vmem:[#allocation2 + $0x538] sm:$0xff]
        %v480 = vld [vmem:[#allocation2 + $0x540] sm:$0xff]
        %v481 = vld [vmem:[#allocation2 + $0x548] sm:$0xff]
        %v482 = vld [vmem:[#allocation2 + $0x550] sm:$0xff]
        %v483 = vld [vmem:[#allocation2 + $0x558] sm:$0xff]
        %v484 = vld [vmem:[#allocation2 + $0x560] sm:$0xff]
        %v485 = vld [vmem:[#allocation2 + $0x568] sm:$0xff]
        %v486 = vld [vmem:[#allocation2 + $0x570] sm:$0xff]
        %v487 = vld [vmem:[#allocation2 + $0x578] sm:$0xff]
        %v488 = vld [vmem:[#allocation2 + $0x580] sm:$0xff]
        %v489 = vld [vmem:[#allocation2 + $0x588] sm:$0xff]
        %v490 = vld [vmem:[#allocation2 + $0x590] sm:$0xff]
        %v491 = vld [vmem:[#allocation2 + $0x598] sm:$0xff]
        %v492 = vld [vmem:[#allocation2 + $0x5a0] sm:$0xff]
        %v493 = vld [vmem:[#allocation2 + $0x5a8] sm:$0xff]
        %v494 = vld [vmem:[#allocation2 + $0x5b0] sm:$0xff]
        %v495 = vld [vmem:[#allocation2 + $0x5b8] sm:$0xff]
        %v496 = vld [vmem:[#allocation2 + $0x5c0] sm:$0xff]
        %v497 = vld [vmem:[#allocation2 + $0x5c8] sm:$0xff]
        %v498 = vld [vmem:[#allocation2 + $0x5d0] sm:$0xff]
        %v499 = vld [vmem:[#allocation2 + $0x5d8] sm:$0xff]
        %v500 = vld [vmem:[#allocation2 + $0x5e0] sm:$0xff]
        %v501 = vld [vmem:[#allocation2 + $0x5e8] sm:$0xff]
        %v502 = vld [vmem:[#allocation2 + $0x5f0] sm:$0xff]
        %v503 = vld [vmem:[#allocation2 + $0x5f8] sm:$0xff]
        %v504 = vld [vmem:[#allocation2 + $0x600] sm:$0xff]
        %v505 = vld [vmem:[#allocation2 + $0x608] sm:$0xff]
        %v506 = vld [vmem:[#allocation2 + $0x610] sm:$0xff]
        %v507 = vld [vmem:[#allocation2 + $0x618] sm:$0xff]
        %v508 = vld [vmem:[#allocation2 + $0x620] sm:$0xff]
        %v509 = vld [vmem:[#allocation2 + $0x628] sm:$0xff]
        %v510 = vld [vmem:[#allocation2 + $0x630] sm:$0xff]
        %v511 = vld [vmem:[#allocation2 + $0x638] sm:$0xff]
        %v512 = vld [vmem:[#allocation2 + $0x640] sm:$0xff]
        %v513 = vld [vmem:[#allocation2 + $0x648] sm:$0xff]
        %v514 = vld [vmem:[#allocation2 + $0x650] sm:$0xff]
        %v515 = vld [vmem:[#allocation2 + $0x658] sm:$0xff]
        %v516 = vld [vmem:[#allocation2 + $0x660] sm:$0xff]
        %v517 = vld [vmem:[#allocation2 + $0x668] sm:$0xff]
        %v518 = vld [vmem:[#allocation2 + $0x670] sm:$0xff]
        %v519 = vld [vmem:[#allocation2 + $0x678] sm:$0xff]
        %v520 = vld [vmem:[#allocation2 + $0x680] sm:$0xff]
        %v521 = vld [vmem:[#allocation2 + $0x688] sm:$0xff]
        %v522 = vld [vmem:[#allocation2 + $0x690] sm:$0xff]
        %v523 = vld [vmem:[#allocation2 + $0x698] sm:$0xff]
        %v524 = vld [vmem:[#allocation2 + $0x6a0] sm:$0xff]
        %v525 = vld [vmem:[#allocation2 + $0x6a8] sm:$0xff]
        %v526 = vld [vmem:[#allocation2 + $0x6b0] sm:$0xff]
        %v527 = vld [vmem:[#allocation2 + $0x6b8] sm:$0xff]
        %v528 = vld [vmem:[#allocation2 + $0x6c0] sm:$0xff]
        %v529 = vld [vmem:[#allocation2 + $0x6c8] sm:$0xff]
        %v530 = vld [vmem:[#allocation2 + $0x6d0] sm:$0xff]
        %v531 = vld [vmem:[#allocation2 + $0x6d8] sm:$0xff]
        %v532 = vld [vmem:[#allocation2 + $0x6e0] sm:$0xff]
        %v533 = vld [vmem:[#allocation2 + $0x6e8] sm:$0xff]
        %v534 = vld [vmem:[#allocation2 + $0x6f0] sm:$0xff]
        %v535 = vld [vmem:[#allocation2 + $0x6f8] sm:$0xff]
        %v536 = vld [vmem:[#allocation2 + $0x700] sm:$0xff]
        %v537 = vld [vmem:[#allocation2 + $0x708] sm:$0xff]
        %v538 = vld [vmem:[#allocation2 + $0x710] sm:$0xff]
        %v539 = vld [vmem:[#allocation2 + $0x718] sm:$0xff]
        %v540 = vld [vmem:[#allocation2 + $0x720] sm:$0xff]
        %v541 = vld [vmem:[#allocation2 + $0x728] sm:$0xff]
        %v542 = vld [vmem:[#allocation2 + $0x730] sm:$0xff]
        %v543 = vld [vmem:[#allocation2 + $0x738] sm:$0xff]
        %v544 = vld [vmem:[#allocation2 + $0x740] sm:$0xff]
        %v545 = vld [vmem:[#allocation2 + $0x748] sm:$0xff]
        %v546 = vld [vmem:[#allocation2 + $0x750] sm:$0xff]
        %v547 = vld [vmem:[#allocation2 + $0x758] sm:$0xff]
        %v548 = vld [vmem:[#allocation2 + $0x760] sm:$0xff]
        %v549 = vld [vmem:[#allocation2 + $0x768] sm:$0xff]
        %v550 = vld [vmem:[#allocation2 + $0x770] sm:$0xff]
        %v551 = vld [vmem:[#allocation2 + $0x778] sm:$0xff]
        %v552 = vld [vmem:[#allocation2 + $0x780] sm:$0xff]
        %v553 = vld [vmem:[#allocation2 + $0x788] sm:$0xff]
        %v554 = vld [vmem:[#allocation2 + $0x790] sm:$0xff]
        %v555 = vld [vmem:[#allocation2 + $0x798] sm:$0xff]
        %v556 = vld [vmem:[#allocation2 + $0x7a0] sm:$0xff]
        %v557 = vld [vmem:[#allocation2 + $0x7a8] sm:$0xff]
        %v558 = vld [vmem:[#allocation2 + $0x7b0] sm:$0xff]
        %v559 = vld [vmem:[#allocation2 + $0x7b8] sm:$0xff]
        %v560 = vld [vmem:[#allocation2 + $0x7c0] sm:$0xff]
        %v561 = vld [vmem:[#allocation2 + $0x7c8] sm:$0xff]
        %v562 = vld [vmem:[#allocation2 + $0x7d0] sm:$0xff]
        %v563 = vld [vmem:[#allocation2 + $0x7d8] sm:$0xff]
        %v564 = vld [vmem:[#allocation2 + $0x7e0] sm:$0xff]
        %v565 = vld [vmem:[#allocation2 + $0x7e8] sm:$0xff]
        %v566 = vld [vmem:[#allocation2 + $0x7f0] sm:$0xff]
        %v567 = vld [vmem:[#allocation2 + $0x7f8] sm:$0xff]
        %v568 = vld [vmem:[#allocation2 + $0x800] sm:$0xff]
        %v569 = vld [vmem:[#allocation2 + $0x808] sm:$0xff]
        %v570 = vld [vmem:[#allocation2 + $0x810] sm:$0xff]
        %v571 = vld [vmem:[#allocation2 + $0x818] sm:$0xff]
        %v572 = vld [vmem:[#allocation2 + $0x820] sm:$0xff]
        %v573 = vld [vmem:[#allocation2 + $0x828] sm:$0xff]
        %v574 = vld [vmem:[#allocation2 + $0x830] sm:$0xff]
        %v575 = vld [vmem:[#allocation2 + $0x838] sm:$0xff]
        %v576 = vld [vmem:[#allocation2 + $0x840] sm:$0xff]
        %v577 = vld [vmem:[#allocation2 + $0x848] sm:$0xff]
        %v578 = vld [vmem:[#allocation2 + $0x850] sm:$0xff]
        %v579 = vld [vmem:[#allocation2 + $0x858] sm:$0xff]
        %v580 = vld [vmem:[#allocation2 + $0x860] sm:$0xff]
        %v581 = vld [vmem:[#allocation2 + $0x868] sm:$0xff]
        %v582 = vld [vmem:[#allocation2 + $0x870] sm:$0xff]
        %v583 = vld [vmem:[#allocation2 + $0x878] sm:$0xff]
        %v584 = vld [vmem:[#allocation2 + $0x880] sm:$0xff]
        %v585 = vld [vmem:[#allocation2 + $0x888] sm:$0xff]
        %v586 = vld [vmem:[#allocation2 + $0x890] sm:$0xff]
        %v587 = vld [vmem:[#allocation2 + $0x898] sm:$0xff]
        %v588 = vld [vmem:[#allocation2 + $0x8a0] sm:$0xff]
        %v589 = vld [vmem:[#allocation2 + $0x8a8] sm:$0xff]
        %v590 = vld [vmem:[#allocation2 + $0x8b0] sm:$0xff]
        %v591 = vld [vmem:[#allocation2 + $0x8b8] sm:$0xff]
        %v592 = vld [vmem:[#allocation2 + $0x8c0] sm:$0xff]
        %v593 = vld [vmem:[#allocation2 + $0x8c8] sm:$0xff]
        %v594 = vld [vmem:[#allocation2 + $0x8d0] sm:$0xff]
        %v595 = vld [vmem:[#allocation2 + $0x8d8] sm:$0xff]
        %v596 = vld [vmem:[#allocation2 + $0x8e0] sm:$0xff]
        %v597 = vld [vmem:[#allocation2 + $0x8e8] sm:$0xff]
        %v598 = vld [vmem:[#allocation2 + $0x8f0] sm:$0xff]
        %v599 = vld [vmem:[#allocation2 + $0x8f8] sm:$0xff]
        %v600 = vld [vmem:[#allocation2 + $0x900] sm:$0xff]
        %v601 = vld [vmem:[#allocation2 + $0x908] sm:$0xff]
        %v602 = vld [vmem:[#allocation2 + $0x910] sm:$0xff]
        %v603 = vld [vmem:[#allocation2 + $0x918] sm:$0xff]
        %v604 = vld [vmem:[#allocation2 + $0x920] sm:$0xff]
        %v605 = vld [vmem:[#allocation2 + $0x928] sm:$0xff]
        %v606 = vld [vmem:[#allocation2 + $0x930] sm:$0xff]
        %v607 = vld [vmem:[#allocation2 + $0x938] sm:$0xff]
        %v608 = vld [vmem:[#allocation2 + $0x940] sm:$0xff]
        %v609 = vld [vmem:[#allocation2 + $0x948] sm:$0xff]
        %v610 = vld [vmem:[#allocation2 + $0x950] sm:$0xff]
        %v611 = vld [vmem:[#allocation2 + $0x958] sm:$0xff]
        %v612 = vld [vmem:[#allocation2 + $0x960] sm:$0xff]
        %v613 = vld [vmem:[#allocation2 + $0x968] sm:$0xff]
        %v614 = vld [vmem:[#allocation2 + $0x970] sm:$0xff]
        %v615 = vld [vmem:[#allocation2 + $0x978] sm:$0xff]
        %v616 = vld [vmem:[#allocation2 + $0x980] sm:$0xff]
        %v617 = vld [vmem:[#allocation2 + $0x988] sm:$0xff]
        %v618 = vld [vmem:[#allocation2 + $0x990] sm:$0xff]
        %v619 = vld [vmem:[#allocation2 + $0x998] sm:$0xff]
        %v620 = vld [vmem:[#allocation2 + $0x9a0] sm:$0xff]
        %v621 = vld [vmem:[#allocation2 + $0x9a8] sm:$0xff]
        %v622 = vld [vmem:[#allocation2 + $0x9b0] sm:$0xff]
        %v623 = vld [vmem:[#allocation2 + $0x9b8] sm:$0xff]
        %v624 = vld [vmem:[#allocation2 + $0x9c0] sm:$0xff]
        %v625 = vld [vmem:[#allocation2 + $0x9c8] sm:$0xff]
        %v626 = vld [vmem:[#allocation2 + $0x9d0] sm:$0xff]
        %v627 = vld [vmem:[#allocation2 + $0x9d8] sm:$0xff]
        %v628 = vld [vmem:[#allocation2 + $0x9e0] sm:$0xff]
        %v629 = vld [vmem:[#allocation2 + $0x9e8] sm:$0xff]
        %v630 = vld [vmem:[#allocation2 + $0x9f0] sm:$0xff]
        %v631 = vld [vmem:[#allocation2 + $0x9f8] sm:$0xff]
        %v632 = vld [vmem:[#allocation2] sm:$0xff]
        %v633 = vld [vmem:[#allocation2 + $0x8] sm:$0xff]
        %v634 = vld [vmem:[#allocation2 + $0x10] sm:$0xff]
        %v635 = vld [vmem:[#allocation2 + $0x18] sm:$0xff]
        %v636 = vld [vmem:[#allocation2 + $0x20] sm:$0xff]
        %v637 = vld [vmem:[#allocation2 + $0x28] sm:$0xff]
        %v638 = vld [vmem:[#allocation2 + $0x30] sm:$0xff]
        %v639 = vld [vmem:[#allocation2 + $0x38] sm:$0xff]
        %v640 = vld [vmem:[#allocation2 + $0x40] sm:$0xff]
        %v641 = vld [vmem:[#allocation2 + $0x48] sm:$0xff]
        %v642 = vld [vmem:[#allocation2 + $0x50] sm:$0xff]
        %v643 = vld [vmem:[#allocation2 + $0x58] sm:$0xff]
        %v644 = vld [vmem:[#allocation2 + $0x60] sm:$0xff]
        %v645 = vld [vmem:[#allocation2 + $0x68] sm:$0xff]
        %v646 = vld [vmem:[#allocation2 + $0x70] sm:$0xff]
        %v647 = vld [vmem:[#allocation2 + $0x78] sm:$0xff]
        %v648 = vld [vmem:[#allocation2 + $0x80] sm:$0xff]
        %v649 = vld [vmem:[#allocation2 + $0x88] sm:$0xff]
        %v650 = vld [vmem:[#allocation2 + $0x90] sm:$0xff]
        %v651 = vld [vmem:[#allocation2 + $0x98] sm:$0xff]
        %v652 = vld [vmem:[#allocation2 + $0xa0] sm:$0xff]
        %v653 = vld [vmem:[#allocation2 + $0xa8] sm:$0xff]
        %v654 = vld [vmem:[#allocation2 + $0xb0] sm:$0xff]
        %v655 = vld [vmem:[#allocation2 + $0xb8] sm:$0xff]
        %v656 = vld [vmem:[#allocation2 + $0xc0] sm:$0xff]
        %v657 = vld [vmem:[#allocation2 + $0xc8] sm:$0xff]
        %v658 = vld [vmem:[#allocation2 + $0xd0] sm:$0xff]
        %v659 = vld [vmem:[#allocation2 + $0xd8] sm:$0xff]
        %v660 = vld [vmem:[#allocation2 + $0xe0] sm:$0xff]
        %v661 = vld [vmem:[#allocation2 + $0xe8] sm:$0xff]
        %v662 = vld [vmem:[#allocation2 + $0xf0] sm:$0xff]
        %v663 = vld [vmem:[#allocation2 + $0xf8] sm:$0xff]
        %v664 = vld [vmem:[#allocation2 + $0x100] sm:$0xff]
        %v665 = vld [vmem:[#allocation2 + $0x108] sm:$0xff]
        %v666 = vld [vmem:[#allocation2 + $0x110] sm:$0xff]
        %v667 = vld [vmem:[#allocation2 + $0x118] sm:$0xff]
        %v668 = vld [vmem:[#allocation2 + $0x120] sm:$0xff]
        %v669 = vld [vmem:[#allocation2 + $0x128] sm:$0xff]
        %v670 = vld [vmem:[#allocation2 + $0x130] sm:$0xff]
        %v671 = vld [vmem:[#allocation2 + $0x138] sm:$0xff]
        %v672 = vld [vmem:[#allocation2 + $0x140] sm:$0xff]
        %v673 = vld [vmem:[#allocation2 + $0x148] sm:$0xff]
        %v674 = vld [vmem:[#allocation2 + $0x150] sm:$0xff]
        %v675 = vld [vmem:[#allocation2 + $0x158] sm:$0xff]
        %v676 = vld [vmem:[#allocation2 + $0x160] sm:$0xff]
        %v677 = vld [vmem:[#allocation2 + $0x168] sm:$0xff]
        %v678 = vld [vmem:[#allocation2 + $0x170] sm:$0xff]
        %v679 = vld [vmem:[#allocation2 + $0x178] sm:$0xff]
        %v680 = vld [vmem:[#allocation2 + $0x180] sm:$0xff]
        %v681 = vld [vmem:[#allocation2 + $0x188] sm:$0xff]
        %v682 = vld [vmem:[#allocation2 + $0x190] sm:$0xff]
        %v683 = vld [vmem:[#allocation2 + $0x198] sm:$0xff]
        %v684 = vld [vmem:[#allocation2 + $0x1a0] sm:$0xff]
        %v685 = vld [vmem:[#allocation2 + $0x1a8] sm:$0xff]
        %v686 = vld [vmem:[#allocation2 + $0x1b0] sm:$0xff]
        %v687 = vld [vmem:[#allocation2 + $0x1b8] sm:$0xff]
        %v688 = vld [vmem:[#allocation2 + $0x1c0] sm:$0xff]
        %v689 = vld [vmem:[#allocation2 + $0x1c8] sm:$0xff]
        %v690 = vld [vmem:[#allocation2 + $0x1d0] sm:$0xff]
        %v691 = vld [vmem:[#allocation2 + $0x1d8] sm:$0xff]
        %v692 = vld [vmem:[#allocation2 + $0x1e0] sm:$0xff]
        %v693 = vld [vmem:[#allocation2 + $0x1e8] sm:$0xff]
        %v694 = vld [vmem:[#allocation2 + $0x1f0] sm:$0xff]
        %v695 = vld [vmem:[#allocation2 + $0x1f8] sm:$0xff]
        %v696 = vand.u32 %v633, 4294901760
        %697 = vmatprep.subr.mxu0 %v696
        %v698 = vand.u32 %v632, 4294901760
        %699 = vmatpush1.msra.mxu0 %v698
        %v700 = vand.u32 %v637, 4294901760
        %701 = vmatprep.subr.mxu0 %v700
        %v702 = vand.u32 %v636, 4294901760
        %703 = vmatpush1.msra.mxu0 %v702
        %v704 = vand.u32 %v641, 4294901760
        %705 = vmatprep.subr.mxu0 %v704
        %v706 = vand.u32 %v640, 4294901760
        %707 = vmatpush1.msra.mxu0 %v706
        %v708 = vand.u32 %v645, 4294901760
        %709 = vmatprep.subr.mxu0 %v708
        %v710 = vand.u32 %v644, 4294901760
        %711 = vmatpush1.msra.mxu0 %v710
        %v712 = vand.u32 %v649, 4294901760
        %713 = vmatprep.subr.mxu0 %v712
        %v714 = vand.u32 %v648, 4294901760
        %715 = vmatpush1.msra.mxu0 %v714
        %v716 = vand.u32 %v653, 4294901760
        %717 = vmatprep.subr.mxu0 %v716
        %v718 = vand.u32 %v652, 4294901760
        %719 = vmatpush1.msra.mxu0 %v718
        %v720 = vand.u32 %v657, 4294901760
        %721 = vmatprep.subr.mxu0 %v720
        %v722 = vand.u32 %v656, 4294901760
        %723 = vmatpush1.msra.mxu0 %v722
        %v724 = vand.u32 %v661, 4294901760
        %725 = vmatprep.subr.mxu0 %v724
        %v726 = vand.u32 %v660, 4294901760
        %727 = vmatpush1.msra.mxu0 %v726
        %v728 = vand.u32 %v665, 4294901760
        %729 = vmatprep.subr.mxu0 %v728
        %v730 = vand.u32 %v664, 4294901760
        %731 = vmatpush1.msra.mxu0 %v730
        %v732 = vand.u32 %v669, 4294901760
        %733 = vmatprep.subr.mxu0 %v732
        %v734 = vand.u32 %v668, 4294901760
        %735 = vmatpush1.msra.mxu0 %v734
        %v736 = vand.u32 %v673, 4294901760
        %737 = vmatprep.subr.mxu0 %v736
        %v738 = vand.u32 %v672, 4294901760
        %739 = vmatpush1.msra.mxu0 %v738
        %v740 = vand.u32 %v677, 4294901760
        %741 = vmatprep.subr.mxu0 %v740
        %v742 = vand.u32 %v676, 4294901760
        %743 = vmatpush1.msra.mxu0 %v742
        %v744 = vand.u32 %v681, 4294901760
        %745 = vmatprep.subr.mxu0 %v744
        %v746 = vand.u32 %v680, 4294901760
        %747 = vmatpush1.msra.mxu0 %v746
        %v748 = vand.u32 %v685, 4294901760
        %749 = vmatprep.subr.mxu0 %v748
        %v750 = vand.u32 %v684, 4294901760
        %751 = vmatpush1.msra.mxu0 %v750
        %v752 = vand.u32 %v689, 4294901760
        %753 = vmatprep.subr.mxu0 %v752
        %v754 = vand.u32 %v688, 4294901760
        %755 = vmatpush1.msra.mxu0 %v754
        %v756 = vand.u32 %v693, 4294901760
        %757 = vmatprep.subr.mxu0 %v756
        %v758 = vand.u32 %v692, 4294901760
        %759 = vmatpush1.msra.mxu0 %v758
        %760 = vmatprep.subr.mxu0 0.0
        %761 = vmatpush1.msra.mxu0 0.0
        %762 = vmatprep.subr.mxu0 0.0
        %763 = vmatpush1.msra.mxu0 0.0
        %764 = vmatprep.subr.mxu0 0.0
        %765 = vmatpush1.msra.mxu0 0.0
        %766 = vmatprep.subr.mxu0 0.0
        %767 = vmatpush1.msra.mxu0 0.0
        %768 = vmatprep.subr.mxu0 0.0
        %769 = vmatpush1.msra.mxu0 0.0
        %770 = vmatprep.subr.mxu0 0.0
        %771 = vmatpush1.msra.mxu0 0.0
        %772 = vmatprep.subr.mxu0 0.0
        %773 = vmatpush1.msra.mxu0 0.0
        %774 = vmatprep.subr.mxu0 0.0
        %775 = vmatpush1.msra.mxu0 0.0
        %776 = vmatprep.subr.mxu0 0.0
        %777 = vmatpush1.msra.mxu0 0.0
        %778 = vmatprep.subr.mxu0 0.0
        %779 = vmatpush1.msra.mxu0 0.0
        %780 = vmatprep.subr.mxu0 0.0
        %781 = vmatpush1.msra.mxu0 0.0
        %782 = vmatprep.subr.mxu0 0.0
        %783 = vmatpush1.msra.mxu0 0.0
        %784 = vmatprep.subr.mxu0 0.0
        %785 = vmatpush1.msra.mxu0 0.0
        %786 = vmatprep.subr.mxu0 0.0
        %787 = vmatpush1.msra.mxu0 0.0
        %788 = vmatprep.subr.mxu0 0.0
        %789 = vmatpush1.msra.mxu0 0.0
        %790 = vmatprep.subr.mxu0 0.0
        %791 = vmatpush1.msra.mxu0 0.0
        %792 = vmatprep.mubr.f32.mxu0 0.0
        %v793 = vand.u32 %v365, 4294901760
        %v794 = vsub.f32 %v365, %v793
        %v795 = vand.u32 %v794, 4294901760
        %v796 = vsub.f32 %v794, %v795
        %v797 = vand.u32 %v796, 4294901760
        %798 = vmatmul.mubr.f32.gmra.mrb[0].mxu0 %v797
        %v799 = vpop.f32.mrb[0].mxu0
        %v800 = vadd.f32 0.0, %v799
        %v801 = vpop.f32.mrb[0].mxu0
        %v802 = vadd.f32 0.0, %v801
        %803 = vdwg.mxu0
        %v804 = vand.u32 %v633, 4294901760
        %v805 = vsub.f32 %v633, %v804
        %v806 = vand.u32 %v805, 4294901760
        %v807 = vsub.f32 %v805, %v806
        %v808 = vand.u32 %v807, 4294901760
        %809 = vmatprep.subr.mxu0 %v808
        %v810 = vand.u32 %v632, 4294901760
        %v811 = vsub.f32 %v632, %v810
        %v812 = vand.u32 %v811, 4294901760
        %v813 = vsub.f32 %v811, %v812
        %v814 = vand.u32 %v813, 4294901760
        %815 = vmatpush1.msra.mxu0 %v814
        %v816 = vand.u32 %v637, 4294901760
        %v817 = vsub.f32 %v637, %v816
        %v818 = vand.u32 %v817, 4294901760
        %v819 = vsub.f32 %v817, %v818
        %v820 = vand.u32 %v819, 4294901760
        %821 = vmatprep.subr.mxu0 %v820
        %v822 = vand.u32 %v636, 4294901760
        %v823 = vsub.f32 %v636, %v822
        %v824 = vand.u32 %v823, 4294901760
        %v825 = vsub.f32 %v823, %v824
        %v826 = vand.u32 %v825, 4294901760
        %827 = vmatpush1.msra.mxu0 %v826
        %v828 = vand.u32 %v641, 4294901760
        %v829 = vsub.f32 %v641, %v828
        %v830 = vand.u32 %v829, 4294901760
        %v831 = vsub.f32 %v829, %v830
        %v832 = vand.u32 %v831, 4294901760
        %833 = vmatprep.subr.mxu0 %v832
        %v834 = vand.u32 %v640, 4294901760
        %v835 = vsub.f32 %v640, %v834
        %v836 = vand.u32 %v835, 4294901760
        %v837 = vsub.f32 %v835, %v836
        %v838 = vand.u32 %v837, 4294901760
        %839 = vmatpush1.msra.mxu0 %v838
        %v840 = vand.u32 %v645, 4294901760
        %v841 = vsub.f32 %v645, %v840
        %v842 = vand.u32 %v841, 4294901760
        %v843 = vsub.f32 %v841, %v842
        %v844 = vand.u32 %v843, 4294901760
        %845 = vmatprep.subr.mxu0 %v844
        %v846 = vand.u32 %v644, 4294901760
        %v847 = vsub.f32 %v644, %v846
        %v848 = vand.u32 %v847, 4294901760
        %v849 = vsub.f32 %v847, %v848
        %v850 = vand.u32 %v849, 4294901760
        %851 = vmatpush1.msra.mxu0 %v850
        %v852 = vand.u32 %v649, 4294901760
        %v853 = vsub.f32 %v649, %v852
        %v854 = vand.u32 %v853, 4294901760
        %v855 = vsub.f32 %v853, %v854
        %v856 = vand.u32 %v855, 4294901760
        %857 = vmatprep.subr.mxu0 %v856
        %v858 = vand.u32 %v648, 4294901760
        %v859 = vsub.f32 %v648, %v858
        %v860 = vand.u32 %v859, 4294901760
        %v861 = vsub.f32 %v859, %v860
        %v862 = vand.u32 %v861, 4294901760
        %863 = vmatpush1.msra.mxu0 %v862
        %v864 = vand.u32 %v653, 4294901760
        %v865 = vsub.f32 %v653, %v864
        %v866 = vand.u32 %v865, 4294901760
        %v867 = vsub.f32 %v865, %v866
        %v868 = vand.u32 %v867, 4294901760
        %869 = vmatprep.subr.mxu0 %v868
        %v870 = vand.u32 %v652, 4294901760
        %v871 = vsub.f32 %v652, %v870
        %v872 = vand.u32 %v871, 4294901760
        %v873 = vsub.f32 %v871, %v872
        %v874 = vand.u32 %v873, 4294901760
        %875 = vmatpush1.msra.mxu0 %v874
        %v876 = vand.u32 %v657, 4294901760
        %v877 = vsub.f32 %v657, %v876
        %v878 = vand.u32 %v877, 4294901760
        %v879 = vsub.f32 %v877, %v878
        %v880 = vand.u32 %v879, 4294901760
        %881 = vmatprep.subr.mxu0 %v880
        %v882 = vand.u32 %v656, 4294901760
        %v883 = vsub.f32 %v656, %v882
        %v884 = vand.u32 %v883, 4294901760
        %v885 = vsub.f32 %v883, %v884
        %v886 = vand.u32 %v885, 4294901760
        %887 = vmatpush1.msra.mxu0 %v886
        %v888 = vand.u32 %v661, 4294901760
        %v889 = vsub.f32 %v661, %v888
        %v890 = vand.u32 %v889, 4294901760
        %v891 = vsub.f32 %v889, %v890
        %v892 = vand.u32 %v891, 4294901760
        %893 = vmatprep.subr.mxu0 %v892
        %v894 = vand.u32 %v660, 4294901760
        %v895 = vsub.f32 %v660, %v894
        %v896 = vand.u32 %v895, 4294901760
        %v897 = vsub.f32 %v895, %v896
        %v898 = vand.u32 %v897, 4294901760
        %899 = vmatpush1.msra.mxu0 %v898
        %v900 = vand.u32 %v665, 4294901760
        %v901 = vsub.f32 %v665, %v900
        %v902 = vand.u32 %v901, 4294901760
        %v903 = vsub.f32 %v901, %v902
        %v904 = vand.u32 %v903, 4294901760
        %905 = vmatprep.subr.mxu0 %v904
        %v906 = vand.u32 %v664, 4294901760
        %v907 = vsub.f32 %v664, %v906
        %v908 = vand.u32 %v907, 4294901760
        %v909 = vsub.f32 %v907, %v908
        %v910 = vand.u32 %v909, 4294901760
        %911 = vmatpush1.msra.mxu0 %v910
        %v912 = vand.u32 %v669, 4294901760
        %v913 = vsub.f32 %v669, %v912
        %v914 = vand.u32 %v913, 4294901760
        %v915 = vsub.f32 %v913, %v914
        %v916 = vand.u32 %v915, 4294901760
        %917 = vmatprep.subr.mxu0 %v916
        %v918 = vand.u32 %v668, 4294901760
        %v919 = vsub.f32 %v668, %v918
        %v920 = vand.u32 %v919, 4294901760
        %v921 = vsub.f32 %v919, %v920
        %v922 = vand.u32 %v921, 4294901760
        %923 = vmatpush1.msra.mxu0 %v922
        %v924 = vand.u32 %v673, 4294901760
        %v925 = vsub.f32 %v673, %v924
        %v926 = vand.u32 %v925, 4294901760
        %v927 = vsub.f32 %v925, %v926
        %v928 = vand.u32 %v927, 4294901760
        %929 = vmatprep.subr.mxu0 %v928
        %v930 = vand.u32 %v672, 4294901760
        %v931 = vsub.f32 %v672, %v930
        %v932 = vand.u32 %v931, 4294901760
        %v933 = vsub.f32 %v931, %v932
        %v934 = vand.u32 %v933, 4294901760
        %935 = vmatpush1.msra.mxu0 %v934
        %v936 = vand.u32 %v677, 4294901760
        %v937 = vsub.f32 %v677, %v936
        %v938 = vand.u32 %v937, 4294901760
        %v939 = vsub.f32 %v937, %v938
        %v940 = vand.u32 %v939, 4294901760
        %941 = vmatprep.subr.mxu0 %v940
        %v942 = vand.u32 %v676, 4294901760
        %v943 = vsub.f32 %v676, %v942
        %v944 = vand.u32 %v943, 4294901760
        %v945 = vsub.f32 %v943, %v944
        %v946 = vand.u32 %v945, 4294901760
        %947 = vmatpush1.msra.mxu0 %v946
        %v948 = vand.u32 %v681, 4294901760
        %v949 = vsub.f32 %v681, %v948
        %v950 = vand.u32 %v949, 4294901760
        %v951 = vsub.f32 %v949, %v950
        %v952 = vand.u32 %v951, 4294901760
        %953 = vmatprep.subr.mxu0 %v952
        %v954 = vand.u32 %v680, 4294901760
        %v955 = vsub.f32 %v680, %v954
        %v956 = vand.u32 %v955, 4294901760
        %v957 = vsub.f32 %v955, %v956
        %v958 = vand.u32 %v957, 4294901760
        %959 = vmatpush1.msra.mxu0 %v958
        %v960 = vand.u32 %v685, 4294901760
        %v961 = vsub.f32 %v685, %v960
        %v962 = vand.u32 %v961, 4294901760
        %v963 = vsub.f32 %v961, %v962
        %v964 = vand.u32 %v963, 4294901760
        %965 = vmatprep.subr.mxu0 %v964
        %v966 = vand.u32 %v684, 4294901760
        %v967 = vsub.f32 %v684, %v966
        %v968 = vand.u32 %v967, 4294901760
        %v969 = vsub.f32 %v967, %v968
        %v970 = vand.u32 %v969, 4294901760
        %971 = vmatpush1.msra.mxu0 %v970
        %v972 = vand.u32 %v689, 4294901760
        %v973 = vsub.f32 %v689, %v972
        %v974 = vand.u32 %v973, 4294901760
        %v975 = vsub.f32 %v973, %v974
        %v976 = vand.u32 %v975, 4294901760
        %977 = vmatprep.subr.mxu0 %v976
        %v978 = vand.u32 %v688, 4294901760
        %v979 = vsub.f32 %v688, %v978
        %v980 = vand.u32 %v979, 4294901760
        %v981 = vsub.f32 %v979, %v980
        %v982 = vand.u32 %v981, 4294901760
        %983 = vmatpush1.msra.mxu0 %v982
        %v984 = vand.u32 %v693, 4294901760
        %v985 = vsub.f32 %v693, %v984
        %v986 = vand.u32 %v985, 4294901760
        %v987 = vsub.f32 %v985, %v986
        %v988 = vand.u32 %v987, 4294901760
        %989 = vmatprep.subr.mxu0 %v988
        %v990 = vand.u32 %v692, 4294901760
        %v991 = vsub.f32 %v692, %v990
        %v992 = vand.u32 %v991, 4294901760
        %v993 = vsub.f32 %v991, %v992
        %v994 = vand.u32 %v993, 4294901760
        %995 = vmatpush1.msra.mxu0 %v994
        %996 = vmatprep.subr.mxu0 0.0
        %997 = vmatpush1.msra.mxu0 0.0
        %998 = vmatprep.subr.mxu0 0.0
        %999 = vmatpush1.msra.mxu0 0.0
        %1000 = vmatprep.subr.mxu0 0.0
        %1001 = vmatpush1.msra.mxu0 0.0
        %1002 = vmatprep.subr.mxu0 0.0
        %1003 = vmatpush1.msra.mxu0 0.0
        %1004 = vmatprep.subr.mxu0 0.0
        %1005 = vmatpush1.msra.mxu0 0.0
        %1006 = vmatprep.subr.mxu0 0.0
        %1007 = vmatpush1.msra.mxu0 0.0
        %1008 = vmatprep.subr.mxu0 0.0
        %1009 = vmatpush1.msra.mxu0 0.0
        %1010 = vmatprep.subr.mxu0 0.0
        %1011 = vmatpush1.msra.mxu0 0.0
        %1012 = vmatprep.subr.mxu0 0.0
        %1013 = vmatpush1.msra.mxu0 0.0
        %1014 = vmatprep.subr.mxu0 0.0
        %1015 = vmatpush1.msra.mxu0 0.0
        %1016 = vmatprep.subr.mxu0 0.0
        %1017 = vmatpush1.msra.mxu0 0.0
        %1018 = vmatprep.subr.mxu0 0.0
        %1019 = vmatpush1.msra.mxu0 0.0
        %1020 = vmatprep.subr.mxu0 0.0
        %1021 = vmatpush1.msra.mxu0 0.0
        %1022 = vmatprep.subr.mxu0 0.0
        %1023 = vmatpush1.msra.mxu0 0.0
        %1024 = vmatprep.subr.mxu0 0.0
        %1025 = vmatpush1.msra.mxu0 0.0
        %1026 = vmatprep.subr.mxu0 0.0
        %1027 = vmatpush1.msra.mxu0 0.0
        %1028 = vmatprep.mubr.f32.mxu0 0.0
        %v1029 = vand.u32 %v365, 4294901760
        %1030 = vmatmul.mubr.f32.gmra.mrb[0].mxu0 %v1029
        %v1031 = vpop.f32.mrb[0].mxu0
        %v1032 = vadd.f32 %v800, %v1031
        %v1033 = vpop.f32.mrb[0].mxu0
        %v1034 = vadd.f32 %v802, %v1033
        %1035 = vdwg.mxu0
        %v1036 = vand.u32 %v633, 4294901760
        %v1037 = vsub.f32 %v633, %v1036
        %1038 = vmatprep.subr.mxu0 %v1037
        %v1039 = vand.u32 %v632, 4294901760
        %v1040 = vsub.f32 %v632, %v1039
        %1041 = vmatpush1.msra.mxu0 %v1040
        %v1042 = vand.u32 %v637, 4294901760
        %v1043 = vsub.f32 %v637, %v1042
        %1044 = vmatprep.subr.mxu0 %v1043
        %v1045 = vand.u32 %v636, 4294901760
        %v1046 = vsub.f32 %v636, %v1045
        %1047 = vmatpush1.msra.mxu0 %v1046
        %v1048 = vand.u32 %v641, 4294901760
        %v1049 = vsub.f32 %v641, %v1048
        %1050 = vmatprep.subr.mxu0 %v1049
        %v1051 = vand.u32 %v640, 4294901760
        %v1052 = vsub.f32 %v640, %v1051
        %1053 = vmatpush1.msra.mxu0 %v1052
        %v1054 = vand.u32 %v645, 4294901760
        %v1055 = vsub.f32 %v645, %v1054
        %1056 = vmatprep.subr.mxu0 %v1055
        %v1057 = vand.u32 %v644, 4294901760
        %v1058 = vsub.f32 %v644, %v1057
        %1059 = vmatpush1.msra.mxu0 %v1058
        %v1060 = vand.u32 %v649, 4294901760
        %v1061 = vsub.f32 %v649, %v1060
        %1062 = vmatprep.subr.mxu0 %v1061
        %v1063 = vand.u32 %v648, 4294901760
        %v1064 = vsub.f32 %v648, %v1063
        %1065 = vmatpush1.msra.mxu0 %v1064
        %v1066 = vand.u32 %v653, 4294901760
        %v1067 = vsub.f32 %v653, %v1066
        %1068 = vmatprep.subr.mxu0 %v1067
        %v1069 = vand.u32 %v652, 4294901760
        %v1070 = vsub.f32 %v652, %v1069
        %1071 = vmatpush1.msra.mxu0 %v1070
        %v1072 = vand.u32 %v657, 4294901760
        %v1073 = vsub.f32 %v657, %v1072
        %1074 = vmatprep.subr.mxu0 %v1073
        %v1075 = vand.u32 %v656, 4294901760
        %v1076 = vsub.f32 %v656, %v1075
        %1077 = vmatpush1.msra.mxu0 %v1076
        %v1078 = vand.u32 %v661, 4294901760
        %v1079 = vsub.f32 %v661, %v1078
        %1080 = vmatprep.subr.mxu0 %v1079
        %v1081 = vand.u32 %v660, 4294901760
        %v1082 = vsub.f32 %v660, %v1081
        %1083 = vmatpush1.msra.mxu0 %v1082
        %v1084 = vand.u32 %v665, 4294901760
        %v1085 = vsub.f32 %v665, %v1084
        %1086 = vmatprep.subr.mxu0 %v1085
        %v1087 = vand.u32 %v664, 4294901760
        %v1088 = vsub.f32 %v664, %v1087
        %1089 = vmatpush1.msra.mxu0 %v1088
        %v1090 = vand.u32 %v669, 4294901760
        %v1091 = vsub.f32 %v669, %v1090
        %1092 = vmatprep.subr.mxu0 %v1091
        %v1093 = vand.u32 %v668, 4294901760
        %v1094 = vsub.f32 %v668, %v1093
        %1095 = vmatpush1.msra.mxu0 %v1094
        %v1096 = vand.u32 %v673, 4294901760
        %v1097 = vsub.f32 %v673, %v1096
        %1098 = vmatprep.subr.mxu0 %v1097
        %v1099 = vand.u32 %v672, 4294901760
        %v1100 = vsub.f32 %v672, %v1099
        %1101 = vmatpush1.msra.mxu0 %v1100
        %v1102 = vand.u32 %v677, 4294901760
        %v1103 = vsub.f32 %v677, %v1102
        %1104 = vmatprep.subr.mxu0 %v1103
        %v1105 = vand.u32 %v676, 4294901760
        %v1106 = vsub.f32 %v676, %v1105
        %1107 = vmatpush1.msra.mxu0 %v1106
        %v1108 = vand.u32 %v681, 4294901760
        %v1109 = vsub.f32 %v681, %v1108
        %1110 = vmatprep.subr.mxu0 %v1109
        %v1111 = vand.u32 %v680, 4294901760
        %v1112 = vsub.f32 %v680, %v1111
        %1113 = vmatpush1.msra.mxu0 %v1112
        %v1114 = vand.u32 %v685, 4294901760
        %v1115 = vsub.f32 %v685, %v1114
        %1116 = vmatprep.subr.mxu0 %v1115
        %v1117 = vand.u32 %v684, 4294901760
        %v1118 = vsub.f32 %v684, %v1117
        %1119 = vmatpush1.msra.mxu0 %v1118
        %v1120 = vand.u32 %v689, 4294901760
        %v1121 = vsub.f32 %v689, %v1120
        %1122 = vmatprep.subr.mxu0 %v1121
        %v1123 = vand.u32 %v688, 4294901760
        %v1124 = vsub.f32 %v688, %v1123
        %1125 = vmatpush1.msra.mxu0 %v1124
        %v1126 = vand.u32 %v693, 4294901760
        %v1127 = vsub.f32 %v693, %v1126
        %1128 = vmatprep.subr.mxu0 %v1127
        %v1129 = vand.u32 %v692, 4294901760
        %v1130 = vsub.f32 %v692, %v1129
        %1131 = vmatpush1.msra.mxu0 %v1130
        %1132 = vmatprep.subr.mxu0 0.0
        %1133 = vmatpush1.msra.mxu0 0.0
        %1134 = vmatprep.subr.mxu0 0.0
        %1135 = vmatpush1.msra.mxu0 0.0
        %1136 = vmatprep.subr.mxu0 0.0
        %1137 = vmatpush1.msra.mxu0 0.0
        %1138 = vmatprep.subr.mxu0 0.0
        %1139 = vmatpush1.msra.mxu0 0.0
        %1140 = vmatprep.subr.mxu0 0.0
        %1141 = vmatpush1.msra.mxu0 0.0
        %1142 = vmatprep.subr.mxu0 0.0
        %1143 = vmatpush1.msra.mxu0 0.0
        %1144 = vmatprep.subr.mxu0 0.0
        %1145 = vmatpush1.msra.mxu0 0.0
        %1146 = vmatprep.subr.mxu0 0.0
        %1147 = vmatpush1.msra.mxu0 0.0
        %1148 = vmatprep.subr.mxu0 0.0
        %1149 = vmatpush1.msra.mxu0 0.0
        %1150 = vmatprep.subr.mxu0 0.0
        %1151 = vmatpush1.msra.mxu0 0.0
        %1152 = vmatprep.subr.mxu0 0.0
        %1153 = vmatpush1.msra.mxu0 0.0
        %1154 = vmatprep.subr.mxu0 0.0
        %1155 = vmatpush1.msra.mxu0 0.0
        %1156 = vmatprep.subr.mxu0 0.0
        %1157 = vmatpush1.msra.mxu0 0.0
        %1158 = vmatprep.subr.mxu0 0.0
        %1159 = vmatpush1.msra.mxu0 0.0
        %1160 = vmatprep.subr.mxu0 0.0
        %1161 = vmatpush1.msra.mxu0 0.0
        %1162 = vmatprep.subr.mxu0 0.0
        %1163 = vmatpush1.msra.mxu0 0.0
        %1164 = vmatprep.mubr.f32.mxu0 0.0
        %v1165 = vand.u32 %v365, 4294901760
        %v1166 = vsub.f32 %v365, %v1165
        %1167 = vmatmul.mubr.f32.gmra.mrb[0].mxu0 %v1166
        %v1168 = vpop.f32.mrb[0].mxu0
        %v1169 = vadd.f32 %v1032, %v1168
        %v1170 = vpop.f32.mrb[0].mxu0
        %v1171 = vadd.f32 %v1034, %v1170
        %1172 = vdwg.mxu0
        %v1173 = vand.u32 %v633, 4294901760
        %1174 = vmatprep.subr.mxu0 %v1173
        %v1175 = vand.u32 %v632, 4294901760
        %1176 = vmatpush1.msra.mxu0 %v1175
        %v1177 = vand.u32 %v637, 4294901760
        %1178 = vmatprep.subr.mxu0 %v1177
        %v1179 = vand.u32 %v636, 4294901760
        %1180 = vmatpush1.msra.mxu0 %v1179
        %v1181 = vand.u32 %v641, 4294901760
        %1182 = vmatprep.subr.mxu0 %v1181
        %v1183 = vand.u32 %v640, 4294901760
        %1184 = vmatpush1.msra.mxu0 %v1183
        %v1185 = vand.u32 %v645, 4294901760
        %1186 = vmatprep.subr.mxu0 %v1185
        %v1187 = vand.u32 %v644, 4294901760
        %1188 = vmatpush1.msra.mxu0 %v1187
        %v1189 = vand.u32 %v649, 4294901760
        %1190 = vmatprep.subr.mxu0 %v1189
        %v1191 = vand.u32 %v648, 4294901760
        %1192 = vmatpush1.msra.mxu0 %v1191
        %v1193 = vand.u32 %v653, 4294901760
        %1194 = vmatprep.subr.mxu0 %v1193
        %v1195 = vand.u32 %v652, 4294901760
        %1196 = vmatpush1.msra.mxu0 %v1195
        %v1197 = vand.u32 %v657, 4294901760
        %1198 = vmatprep.subr.mxu0 %v1197
        %v1199 = vand.u32 %v656, 4294901760
        %1200 = vmatpush1.msra.mxu0 %v1199
        %v1201 = vand.u32 %v661, 4294901760
        %1202 = vmatprep.subr.mxu0 %v1201
        %v1203 = vand.u32 %v660, 4294901760
        %1204 = vmatpush1.msra.mxu0 %v1203
        %v1205 = vand.u32 %v665, 4294901760
        %1206 = vmatprep.subr.mxu0 %v1205
        %v1207 = vand.u32 %v664, 4294901760
        %1208 = vmatpush1.msra.mxu0 %v1207
        %v1209 = vand.u32 %v669, 4294901760
        %1210 = vmatprep.subr.mxu0 %v1209
        %v1211 = vand.u32 %v668, 4294901760
        %1212 = vmatpush1.msra.mxu0 %v1211
        %v1213 = vand.u32 %v673, 4294901760
        %1214 = vmatprep.subr.mxu0 %v1213
        %v1215 = vand.u32 %v672, 4294901760
        %1216 = vmatpush1.msra.mxu0 %v1215
        %v1217 = vand.u32 %v677, 4294901760
        %1218 = vmatprep.subr.mxu0 %v1217
        %v1219 = vand.u32 %v676, 4294901760
        %1220 = vmatpush1.msra.mxu0 %v1219
        %v1221 = vand.u32 %v681, 4294901760
        %1222 = vmatprep.subr.mxu0 %v1221
        %v1223 = vand.u32 %v680, 4294901760
        %1224 = vmatpush1.msra.mxu0 %v1223
        %v1225 = vand.u32 %v685, 4294901760
        %1226 = vmatprep.subr.mxu0 %v1225
        %v1227 = vand.u32 %v684, 4294901760
        %1228 = vmatpush1.msra.mxu0 %v1227
        %v1229 = vand.u32 %v689, 4294901760
        %1230 = vmatprep.subr.mxu0 %v1229
        %v1231 = vand.u32 %v688, 4294901760
        %1232 = vmatpush1.msra.mxu0 %v1231
        %v1233 = vand.u32 %v693, 4294901760
        %1234 = vmatprep.subr.mxu0 %v1233
        %v1235 = vand.u32 %v692, 4294901760
        %1236 = vmatpush1.msra.mxu0 %v1235
        %1237 = vmatprep.subr.mxu0 0.0
        %1238 = vmatpush1.msra.mxu0 0.0
        %1239 = vmatprep.subr.mxu0 0.0
        %1240 = vmatpush1.msra.mxu0 0.0
        %1241 = vmatprep.subr.mxu0 0.0
        %1242 = vmatpush1.msra.mxu0 0.0
        %1243 = vmatprep.subr.mxu0 0.0
        %1244 = vmatpush1.msra.mxu0 0.0
        %1245 = vmatprep.subr.mxu0 0.0
        %1246 = vmatpush1.msra.mxu0 0.0
        %1247 = vmatprep.subr.mxu0 0.0
        %1248 = vmatpush1.msra.mxu0 0.0
        %1249 = vmatprep.subr.mxu0 0.0
        %1250 = vmatpush1.msra.mxu0 0.0
        %1251 = vmatprep.subr.mxu0 0.0
        %1252 = vmatpush1.msra.mxu0 0.0
        %1253 = vmatprep.subr.mxu0 0.0
        %1254 = vmatpush1.msra.mxu0 0.0
        %1255 = vmatprep.subr.mxu0 0.0
        %1256 = vmatpush1.msra.mxu0 0.0
        %1257 = vmatprep.subr.mxu0 0.0
        %1258 = vmatpush1.msra.mxu0 0.0
        %1259 = vmatprep.subr.mxu0 0.0
        %1260 = vmatpush1.msra.mxu0 0.0
        %1261 = vmatprep.subr.mxu0 0.0
        %1262 = vmatpush1.msra.mxu0 0.0
        %1263 = vmatprep.subr.mxu0 0.0
        %1264 = vmatpush1.msra.mxu0 0.0
        %1265 = vmatprep.subr.mxu0 0.0
        %1266 = vmatpush1.msra.mxu0 0.0
        %1267 = vmatprep.subr.mxu0 0.0
        %1268 = vmatpush1.msra.mxu0 0.0
        %1269 = vmatprep.mubr.f32.mxu0 0.0
        %v1270 = vand.u32 %v365, 4294901760
        %v1271 = vsub.f32 %v365, %v1270
        %v1272 = vand.u32 %v1271, 4294901760
        %1273 = vmatmul.mubr.f32.gmra.mrb[0].mxu0 %v1272
        %v1274 = vpop.f32.mrb[0].mxu0
        %v1275 = vadd.f32 %v1169, %v1274
        %v1276 = vpop.f32.mrb[0].mxu0
        %v1277 = vadd.f32 %v1171, %v1276
        %1278 = vdwg.mxu0
        %v1279 = vand.u32 %v633, 4294901760
        %v1280 = vsub.f32 %v633, %v1279
        %v1281 = vand.u32 %v1280, 4294901760
        %1282 = vmatprep.subr.mxu0 %v1281
        %v1283 = vand.u32 %v632, 4294901760
        %v1284 = vsub.f32 %v632, %v1283
        %v1285 = vand.u32 %v1284, 4294901760
        %1286 = vmatpush1.msra.mxu0 %v1285
        %v1287 = vand.u32 %v637, 4294901760
        %v1288 = vsub.f32 %v637, %v1287
        %v1289 = vand.u32 %v1288, 4294901760
        %1290 = vmatprep.subr.mxu0 %v1289
        %v1291 = vand.u32 %v636, 4294901760
        %v1292 = vsub.f32 %v636, %v1291
        %v1293 = vand.u32 %v1292, 4294901760
        %1294 = vmatpush1.msra.mxu0 %v1293
        %v1295 = vand.u32 %v641, 4294901760
        %v1296 = vsub.f32 %v641, %v1295
        %v1297 = vand.u32 %v1296, 4294901760
        %1298 = vmatprep.subr.mxu0 %v1297
        %v1299 = vand.u32 %v640, 4294901760
        %v1300 = vsub.f32 %v640, %v1299
        %v1301 = vand.u32 %v1300, 4294901760
        %1302 = vmatpush1.msra.mxu0 %v1301
        %v1303 = vand.u32 %v645, 4294901760
        %v1304 = vsub.f32 %v645, %v1303
        %v1305 = vand.u32 %v1304, 4294901760
        %1306 = vmatprep.subr.mxu0 %v1305
        %v1307 = vand.u32 %v644, 4294901760
        %v1308 = vsub.f32 %v644, %v1307
        %v1309 = vand.u32 %v1308, 4294901760
        %1310 = vmatpush1.msra.mxu0 %v1309
        %v1311 = vand.u32 %v649, 4294901760
        %v1312 = vsub.f32 %v649, %v1311
        %v1313 = vand.u32 %v1312, 4294901760
        %1314 = vmatprep.subr.mxu0 %v1313
        %v1315 = vand.u32 %v648, 4294901760
        %v1316 = vsub.f32 %v648, %v1315
        %v1317 = vand.u32 %v1316, 4294901760
        %1318 = vmatpush1.msra.mxu0 %v1317
        %v1319 = vand.u32 %v653, 4294901760
        %v1320 = vsub.f32 %v653, %v1319
        %v1321 = vand.u32 %v1320, 4294901760
        %1322 = vmatprep.subr.mxu0 %v1321
        %v1323 = vand.u32 %v652, 4294901760
        %v1324 = vsub.f32 %v652, %v1323
        %v1325 = vand.u32 %v1324, 4294901760
        %1326 = vmatpush1.msra.mxu0 %v1325
        %v1327 = vand.u32 %v657, 4294901760
        %v1328 = vsub.f32 %v657, %v1327
        %v1329 = vand.u32 %v1328, 4294901760
        %1330 = vmatprep.subr.mxu0 %v1329
        %v1331 = vand.u32 %v656, 4294901760
        %v1332 = vsub.f32 %v656, %v1331
        %v1333 = vand.u32 %v1332, 4294901760
        %1334 = vmatpush1.msra.mxu0 %v1333
        %v1335 = vand.u32 %v661, 4294901760
        %v1336 = vsub.f32 %v661, %v1335
        %v1337 = vand.u32 %v1336, 4294901760
        %1338 = vmatprep.subr.mxu0 %v1337
        %v1339 = vand.u32 %v660, 4294901760
        %v1340 = vsub.f32 %v660, %v1339
        %v1341 = vand.u32 %v1340, 4294901760
        %1342 = vmatpush1.msra.mxu0 %v1341
        %v1343 = vand.u32 %v665, 4294901760
        %v1344 = vsub.f32 %v665, %v1343
        %v1345 = vand.u32 %v1344, 4294901760
        %1346 = vmatprep.subr.mxu0 %v1345
        %v1347 = vand.u32 %v664, 4294901760
        %v1348 = vsub.f32 %v664, %v1347
        %v1349 = vand.u32 %v1348, 4294901760
        %1350 = vmatpush1.msra.mxu0 %v1349
        %v1351 = vand.u32 %v669, 4294901760
        %v1352 = vsub.f32 %v669, %v1351
        %v1353 = vand.u32 %v1352, 4294901760
        %1354 = vmatprep.subr.mxu0 %v1353
        %v1355 = vand.u32 %v668, 4294901760
        %v1356 = vsub.f32 %v668, %v1355
        %v1357 = vand.u32 %v1356, 4294901760
        %1358 = vmatpush1.msra.mxu0 %v1357
        %v1359 = vand.u32 %v673, 4294901760
        %v1360 = vsub.f32 %v673, %v1359
        %v1361 = vand.u32 %v1360, 4294901760
        %1362 = vmatprep.subr.mxu0 %v1361
        %v1363 = vand.u32 %v672, 4294901760
        %v1364 = vsub.f32 %v672, %v1363
        %v1365 = vand.u32 %v1364, 4294901760
        %1366 = vmatpush1.msra.mxu0 %v1365
        %v1367 = vand.u32 %v677, 4294901760
        %v1368 = vsub.f32 %v677, %v1367
        %v1369 = vand.u32 %v1368, 4294901760
        %1370 = vmatprep.subr.mxu0 %v1369
        %v1371 = vand.u32 %v676, 4294901760
        %v1372 = vsub.f32 %v676, %v1371
        %v1373 = vand.u32 %v1372, 4294901760
        %1374 = vmatpush1.msra.mxu0 %v1373
        %v1375 = vand.u32 %v681, 4294901760
        %v1376 = vsub.f32 %v681, %v1375
        %v1377 = vand.u32 %v1376, 4294901760
        %1378 = vmatprep.subr.mxu0 %v1377
        %v1379 = vand.u32 %v680, 4294901760
        %v1380 = vsub.f32 %v680, %v1379
        %v1381 = vand.u32 %v1380, 4294901760
        %1382 = vmatpush1.msra.mxu0 %v1381
        %v1383 = vand.u32 %v685, 4294901760
        %v1384 = vsub.f32 %v685, %v1383
        %v1385 = vand.u32 %v1384, 4294901760
        %1386 = vmatprep.subr.mxu0 %v1385
        %v1387 = vand.u32 %v684, 4294901760
        %v1388 = vsub.f32 %v684, %v1387
        %v1389 = vand.u32 %v1388, 4294901760
        %1390 = vmatpush1.msra.mxu0 %v1389
        %v1391 = vand.u32 %v689, 4294901760
        %v1392 = vsub.f32 %v689, %v1391
        %v1393 = vand.u32 %v1392, 4294901760
        %1394 = vmatprep.subr.mxu0 %v1393
        %v1395 = vand.u32 %v688, 4294901760
        %v1396 = vsub.f32 %v688, %v1395
        %v1397 = vand.u32 %v1396, 4294901760
        %1398 = vmatpush1.msra.mxu0 %v1397
        %v1399 = vand.u32 %v693, 4294901760
        %v1400 = vsub.f32 %v693, %v1399
        %v1401 = vand.u32 %v1400, 4294901760
        %1402 = vmatprep.subr.mxu0 %v1401
        %v1403 = vand.u32 %v692, 4294901760
        %v1404 = vsub.f32 %v692, %v1403
        %v1405 = vand.u32 %v1404, 4294901760
        %1406 = vmatpush1.msra.mxu0 %v1405
        %1407 = vmatprep.subr.mxu0 0.0
        %1408 = vmatpush1.msra.mxu0 0.0
        %1409 = vmatprep.subr.mxu0 0.0
        %1410 = vmatpush1.msra.mxu0 0.0
        %1411 = vmatprep.subr.mxu0 0.0
        %1412 = vmatpush1.msra.mxu0 0.0
        %1413 = vmatprep.subr.mxu0 0.0
        %1414 = vmatpush1.msra.mxu0 0.0
        %1415 = vmatprep.subr.mxu0 0.0
        %1416 = vmatpush1.msra.mxu0 0.0
        %1417 = vmatprep.subr.mxu0 0.0
        %1418 = vmatpush1.msra.mxu0 0.0
        %1419 = vmatprep.subr.mxu0 0.0
        %1420 = vmatpush1.msra.mxu0 0.0
        %1421 = vmatprep.subr.mxu0 0.0
        %1422 = vmatpush1.msra.mxu0 0.0
        %1423 = vmatprep.subr.mxu0 0.0
        %1424 = vmatpush1.msra.mxu0 0.0
        %1425 = vmatprep.subr.mxu0 0.0
        %1426 = vmatpush1.msra.mxu0 0.0
        %1427 = vmatprep.subr.mxu0 0.0
        %1428 = vmatpush1.msra.mxu0 0.0
        %1429 = vmatprep.subr.mxu0 0.0
        %1430 = vmatpush1.msra.mxu0 0.0
        %1431 = vmatprep.subr.mxu0 0.0
        %1432 = vmatpush1.msra.mxu0 0.0
        %1433 = vmatprep.subr.mxu0 0.0
        %1434 = vmatpush1.msra.mxu0 0.0
        %1435 = vmatprep.subr.mxu0 0.0
        %1436 = vmatpush1.msra.mxu0 0.0
        %1437 = vmatprep.subr.mxu0 0.0
        %1438 = vmatpush1.msra.mxu0 0.0
        %1439 = vmatprep.mubr.f32.mxu0 0.0
        %v1440 = vand.u32 %v365, 4294901760
        %1441 = vmatmul.mubr.f32.gmra.mrb[0].mxu0 %v1440
        %v1442 = vpop.f32.mrb[0].mxu0
        %v1443 = vadd.f32 %v1275, %v1442
        %v1444 = vpop.f32.mrb[0].mxu0
        %v1445 = vadd.f32 %v1277, %v1444
        %1446 = vdwg.mxu0
        %v1447 = vand.u32 %v633, 4294901760
        %1448 = vmatprep.subr.mxu0 %v1447
        %v1449 = vand.u32 %v632, 4294901760
        %1450 = vmatpush1.msra.mxu0 %v1449
        %v1451 = vand.u32 %v637, 4294901760
        %1452 = vmatprep.subr.mxu0 %v1451
        %v1453 = vand.u32 %v636, 4294901760
        %1454 = vmatpush1.msra.mxu0 %v1453
        %v1455 = vand.u32 %v641, 4294901760
        %1456 = vmatprep.subr.mxu0 %v1455
        %v1457 = vand.u32 %v640, 4294901760
        %1458 = vmatpush1.msra.mxu0 %v1457
        %v1459 = vand.u32 %v645, 4294901760
        %1460 = vmatprep.subr.mxu0 %v1459
        %v1461 = vand.u32 %v644, 4294901760
        %1462 = vmatpush1.msra.mxu0 %v1461
        %v1463 = vand.u32 %v649, 4294901760
        %1464 = vmatprep.subr.mxu0 %v1463
        %v1465 = vand.u32 %v648, 4294901760
        %1466 = vmatpush1.msra.mxu0 %v1465
        %v1467 = vand.u32 %v653, 4294901760
        %1468 = vmatprep.subr.mxu0 %v1467
        %v1469 = vand.u32 %v652, 4294901760
        %1470 = vmatpush1.msra.mxu0 %v1469
        %v1471 = vand.u32 %v657, 4294901760
        %1472 = vmatprep.subr.mxu0 %v1471
        %v1473 = vand.u32 %v656, 4294901760
        %1474 = vmatpush1.msra.mxu0 %v1473
        %v1475 = vand.u32 %v661, 4294901760
        %1476 = vmatprep.subr.mxu0 %v1475
        %v1477 = vand.u32 %v660, 4294901760
        %1478 = vmatpush1.msra.mxu0 %v1477
        %v1479 = vand.u32 %v665, 4294901760
        %1480 = vmatprep.subr.mxu0 %v1479
        %v1481 = vand.u32 %v664, 4294901760
        %1482 = vmatpush1.msra.mxu0 %v1481
        %v1483 = vand.u32 %v669, 4294901760
        %1484 = vmatprep.subr.mxu0 %v1483
        %v1485 = vand.u32 %v668, 4294901760
        %1486 = vmatpush1.msra.mxu0 %v1485
        %v1487 = vand.u32 %v673, 4294901760
        %1488 = vmatprep.subr.mxu0 %v1487
        %v1489 = vand.u32 %v672, 4294901760
        %1490 = vmatpush1.msra.mxu0 %v1489
        %v1491 = vand.u32 %v677, 4294901760
        %1492 = vmatprep.subr.mxu0 %v1491
        %v1493 = vand.u32 %v676, 4294901760
        %1494 = vmatpush1.msra.mxu0 %v1493
        %v1495 = vand.u32 %v681, 4294901760
        %1496 = vmatprep.subr.mxu0 %v1495
        %v1497 = vand.u32 %v680, 4294901760
        %1498 = vmatpush1.msra.mxu0 %v1497
        %v1499 = vand.u32 %v685, 4294901760
        %1500 = vmatprep.subr.mxu0 %v1499
        %v1501 = vand.u32 %v684, 4294901760
        %1502 = vmatpush1.msra.mxu0 %v1501
        %v1503 = vand.u32 %v689, 4294901760
        %1504 = vmatprep.subr.mxu0 %v1503
        %v1505 = vand.u32 %v688, 4294901760
        %1506 = vmatpush1.msra.mxu0 %v1505
        %v1507 = vand.u32 %v693, 4294901760
        %1508 = vmatprep.subr.mxu0 %v1507
        %v1509 = vand.u32 %v692, 4294901760
        %1510 = vmatpush1.msra.mxu0 %v1509
        %1511 = vmatprep.subr.mxu0 0.0
        %1512 = vmatpush1.msra.mxu0 0.0
        %1513 = vmatprep.subr.mxu0 0.0
        %1514 = vmatpush1.msra.mxu0 0.0
        %1515 = vmatprep.subr.mxu0 0.0
        %1516 = vmatpush1.msra.mxu0 0.0
        %1517 = vmatprep.subr.mxu0 0.0
        %1518 = vmatpush1.msra.mxu0 0.0
        %1519 = vmatprep.subr.mxu0 0.0
        %1520 = vmatpush1.msra.mxu0 0.0
        %1521 = vmatprep.subr.mxu0 0.0
        %1522 = vmatpush1.msra.mxu0 0.0
        %1523 = vmatprep.subr.mxu0 0.0
        %1524 = vmatpush1.msra.mxu0 0.0
        %1525 = vmatprep.subr.mxu0 0.0
        %1526 = vmatpush1.msra.mxu0 0.0
        %1527 = vmatprep.subr.mxu0 0.0
        %1528 = vmatpush1.msra.mxu0 0.0
        %1529 = vmatprep.subr.mxu0 0.0
        %1530 = vmatpush1.msra.mxu0 0.0
        %1531 = vmatprep.subr.mxu0 0.0
        %1532 = vmatpush1.msra.mxu0 0.0
        %1533 = vmatprep.subr.mxu0 0.0
        %1534 = vmatpush1.msra.mxu0 0.0
        %1535 = vmatprep.subr.mxu0 0.0
        %1536 = vmatpush1.msra.mxu0 0.0
        %1537 = vmatprep.subr.mxu0 0.0
        %1538 = vmatpush1.msra.mxu0 0.0
        %1539 = vmatprep.subr.mxu0 0.0
        %1540 = vmatpush1.msra.mxu0 0.0
        %1541 = vmatprep.subr.mxu0 0.0
        %1542 = vmatpush1.msra.mxu0 0.0
        %1543 = vmatprep.mubr.f32.mxu0 0.0
        %v1544 = vand.u32 %v365, 4294901760
        %1545 = vmatmul.mubr.f32.gmra.mrb[0].mxu0 %v1544
        %v1546 = vpop.f32.mrb[0].mxu0
        %v1547 = vadd.f32 %v1443, %v1546
        %v1548 = vpop.f32.mrb[0].mxu0
        %v1549 = vadd.f32 %v1445, %v1548
        %1550 = vdwg.mxu0
        %v1551 = vand.u32 %v635, 4294901760
        %1552 = vmatprep.subr.mxu0 %v1551
        %v1553 = vand.u32 %v634, 4294901760
        %1554 = vmatpush1.msra.mxu0 %v1553
        %v1555 = vand.u32 %v639, 4294901760
        %1556 = vmatprep.subr.mxu0 %v1555
        %v1557 = vand.u32 %v638, 4294901760
        %1558 = vmatpush1.msra.mxu0 %v1557
        %v1559 = vand.u32 %v643, 4294901760
        %1560 = vmatprep.subr.mxu0 %v1559
        %v1561 = vand.u32 %v642, 4294901760
        %1562 = vmatpush1.msra.mxu0 %v1561
        %v1563 = vand.u32 %v647, 4294901760
        %1564 = vmatprep.subr.mxu0 %v1563
        %v1565 = vand.u32 %v646, 4294901760
        %1566 = vmatpush1.msra.mxu0 %v1565
        %v1567 = vand.u32 %v651, 4294901760
        %1568 = vmatprep.subr.mxu0 %v1567
        %v1569 = vand.u32 %v650, 4294901760
        %1570 = vmatpush1.msra.mxu0 %v1569
        %v1571 = vand.u32 %v655, 4294901760
        %1572 = vmatprep.subr.mxu0 %v1571
        %v1573 = vand.u32 %v654, 4294901760
        %1574 = vmatpush1.msra.mxu0 %v1573
        %v1575 = vand.u32 %v659, 4294901760
        %1576 = vmatprep.subr.mxu0 %v1575
        %v1577 = vand.u32 %v658, 4294901760
        %1578 = vmatpush1.msra.mxu0 %v1577
        %v1579 = vand.u32 %v663, 4294901760
        %1580 = vmatprep.subr.mxu0 %v1579
        %v1581 = vand.u32 %v662, 4294901760
        %1582 = vmatpush1.msra.mxu0 %v1581
        %v1583 = vand.u32 %v667, 4294901760
        %1584 = vmatprep.subr.mxu0 %v1583
        %v1585 = vand.u32 %v666, 4294901760
        %1586 = vmatpush1.msra.mxu0 %v1585
        %v1587 = vand.u32 %v671, 4294901760
        %1588 = vmatprep.subr.mxu0 %v1587
        %v1589 = vand.u32 %v670, 4294901760
        %1590 = vmatpush1.msra.mxu0 %v1589
        %v1591 = vand.u32 %v675, 4294901760
        %1592 = vmatprep.subr.mxu0 %v1591
        %v1593 = vand.u32 %v674, 4294901760
        %1594 = vmatpush1.msra.mxu0 %v1593
        %v1595 = vand.u32 %v679, 4294901760
        %1596 = vmatprep.subr.mxu0 %v1595
        %v1597 = vand.u32 %v678, 4294901760
        %1598 = vmatpush1.msra.mxu0 %v1597
        %v1599 = vand.u32 %v683, 4294901760
        %1600 = vmatprep.subr.mxu0 %v1599
        %v1601 = vand.u32 %v682, 4294901760
        %1602 = vmatpush1.msra.mxu0 %v1601
        %v1603 = vand.u32 %v687, 4294901760
        %1604 = vmatprep.subr.mxu0 %v1603
        %v1605 = vand.u32 %v686, 4294901760
        %1606 = vmatpush1.msra.mxu0 %v1605
        %v1607 = vand.u32 %v691, 4294901760
        %1608 = vmatprep.subr.mxu0 %v1607
        %v1609 = vand.u32 %v690, 4294901760
        %1610 = vmatpush1.msra.mxu0 %v1609
        %v1611 = vand.u32 %v695, 4294901760
        %1612 = vmatprep.subr.mxu0 %v1611
        %v1613 = vand.u32 %v694, 4294901760
        %1614 = vmatpush1.msra.mxu0 %v1613
        %1615 = vmatprep.subr.mxu0 0.0
        %1616 = vmatpush1.msra.mxu0 0.0
        %1617 = vmatprep.subr.mxu0 0.0
        %1618 = vmatpush1.msra.mxu0 0.0
        %1619 = vmatprep.subr.mxu0 0.0
        %1620 = vmatpush1.msra.mxu0 0.0
        %1621 = vmatprep.subr.mxu0 0.0
        %1622 = vmatpush1.msra.mxu0 0.0
        %1623 = vmatprep.subr.mxu0 0.0
        %1624 = vmatpush1.msra.mxu0 0.0
        %1625 = vmatprep.subr.mxu0 0.0
        %1626 = vmatpush1.msra.mxu0 0.0
        %1627 = vmatprep.subr.mxu0 0.0
        %1628 = vmatpush1.msra.mxu0 0.0
        %1629 = vmatprep.subr.mxu0 0.0
        %1630 = vmatpush1.msra.mxu0 0.0
        %1631 = vmatprep.subr.mxu0 0.0
        %1632 = vmatpush1.msra.mxu0 0.0
        %1633 = vmatprep.subr.mxu0 0.0
        %1634 = vmatpush1.msra.mxu0 0.0
        %1635 = vmatprep.subr.mxu0 0.0
        %1636 = vmatpush1.msra.mxu0 0.0
        %1637 = vmatprep.subr.mxu0 0.0
        %1638 = vmatpush1.msra.mxu0 0.0
        %1639 = vmatprep.subr.mxu0 0.0
        %1640 = vmatpush1.msra.mxu0 0.0
        %1641 = vmatprep.subr.mxu0 0.0
        %1642 = vmatpush1.msra.mxu0 0.0
        %1643 = vmatprep.subr.mxu0 0.0
        %1644 = vmatpush1.msra.mxu0 0.0
        %1645 = vmatprep.subr.mxu0 0.0
        %1646 = vmatpush1.msra.mxu0 0.0
        %1647 = vmatprep.mubr.f32.mxu0 0.0
        %v1648 = vand.u32 %v365, 4294901760
        %v1649 = vsub.f32 %v365, %v1648
        %v1650 = vand.u32 %v1649, 4294901760
        %v1651 = vsub.f32 %v1649, %v1650
        %v1652 = vand.u32 %v1651, 4294901760
        %1653 = vmatmul.mubr.f32.gmra.mrb[0].mxu0 %v1652
        %v1654 = vpop.f32.mrb[0].mxu0
        %v1655 = vadd.f32 0.0, %v1654
        %v1656 = vpop.f32.mrb[0].mxu0
        %v1657 = vadd.f32 0.0, %v1656
        %1658 = vdwg.mxu0
        %v1659 = vand.u32 %v635, 4294901760
        %v1660 = vsub.f32 %v635, %v1659
        %v1661 = vand.u32 %v1660, 4294901760
        %v1662 = vsub.f32 %v1660, %v1661
        %v1663 = vand.u32 %v1662, 4294901760
        %1664 = vmatprep.subr.mxu0 %v1663
        %v1665 = vand.u32 %v634, 4294901760
        %v1666 = vsub.f32 %v634, %v1665
        %v1667 = vand.u32 %v1666, 4294901760
        %v1668 = vsub.f32 %v1666, %v1667
        %v1669 = vand.u32 %v1668, 4294901760
        %1670 = vmatpush1.msra.mxu0 %v1669
        %v1671 = vand.u32 %v639, 4294901760
        %v1672 = vsub.f32 %v639, %v1671
        %v1673 = vand.u32 %v1672, 4294901760
        %v1674 = vsub.f32 %v1672, %v1673
        %v1675 = vand.u32 %v1674, 4294901760
        %1676 = vmatprep.subr.mxu0 %v1675
        %v1677 = vand.u32 %v638, 4294901760
        %v1678 = vsub.f32 %v638, %v1677
        %v1679 = vand.u32 %v1678, 4294901760
        %v1680 = vsub.f32 %v1678, %v1679
        %v1681 = vand.u32 %v1680, 4294901760
        %1682 = vmatpush1.msra.mxu0 %v1681
        %v1683 = vand.u32 %v643, 4294901760
        %v1684 = vsub.f32 %v643, %v1683
        %v1685 = vand.u32 %v1684, 4294901760
        %v1686 = vsub.f32 %v1684, %v1685
        %v1687 = vand.u32 %v1686, 4294901760
        %1688 = vmatprep.subr.mxu0 %v1687
        %v1689 = vand.u32 %v642, 4294901760
        %v1690 = vsub.f32 %v642, %v1689
        %v1691 = vand.u32 %v1690, 4294901760
        %v1692 = vsub.f32 %v1690, %v1691
        %v1693 = vand.u32 %v1692, 4294901760
        %1694 = vmatpush1.msra.mxu0 %v1693
        %v1695 = vand.u32 %v647, 4294901760
        %v1696 = vsub.f32 %v647, %v1695
        %v1697 = vand.u32 %v1696, 4294901760
        %v1698 = vsub.f32 %v1696, %v1697
        %v1699 = vand.u32 %v1698, 4294901760
        %1700 = vmatprep.subr.mxu0 %v1699
        %v1701 = vand.u32 %v646, 4294901760
        %v1702 = vsub.f32 %v646, %v1701
        %v1703 = vand.u32 %v1702, 4294901760
        %v1704 = vsub.f32 %v1702, %v1703
        %v1705 = vand.u32 %v1704, 4294901760
        %1706 = vmatpush1.msra.mxu0 %v1705
        %v1707 = vand.u32 %v651, 4294901760
        %v1708 = vsub.f32 %v651, %v1707
        %v1709 = vand.u32 %v1708, 4294901760
        %v1710 = vsub.f32 %v1708, %v1709
        %v1711 = vand.u32 %v1710, 4294901760
        %1712 = vmatprep.subr.mxu0 %v1711
        %v1713 = vand.u32 %v650, 4294901760
        %v1714 = vsub.f32 %v650, %v1713
        %v1715 = vand.u32 %v1714, 4294901760
        %v1716 = vsub.f32 %v1714, %v1715
        %v1717 = vand.u32 %v1716, 4294901760
        %1718 = vmatpush1.msra.mxu0 %v1717
        %v1719 = vand.u32 %v655, 4294901760
        %v1720 = vsub.f32 %v655, %v1719
        %v1721 = vand.u32 %v1720, 4294901760
        %v1722 = vsub.f32 %v1720, %v1721
        %v1723 = vand.u32 %v1722, 4294901760
        %1724 = vmatprep.subr.mxu0 %v1723
        %v1725 = vand.u32 %v654, 4294901760
        %v1726 = vsub.f32 %v654, %v1725
        %v1727 = vand.u32 %v1726, 4294901760
        %v1728 = vsub.f32 %v1726, %v1727
        %v1729 = vand.u32 %v1728, 4294901760
        %1730 = vmatpush1.msra.mxu0 %v1729
        %v1731 = vand.u32 %v659, 4294901760
        %v1732 = vsub.f32 %v659, %v1731
        %v1733 = vand.u32 %v1732, 4294901760
        %v1734 = vsub.f32 %v1732, %v1733
        %v1735 = vand.u32 %v1734, 4294901760
        %1736 = vmatprep.subr.mxu0 %v1735
        %v1737 = vand.u32 %v658, 4294901760
        %v1738 = vsub.f32 %v658, %v1737
        %v1739 = vand.u32 %v1738, 4294901760
        %v1740 = vsub.f32 %v1738, %v1739
        %v1741 = vand.u32 %v1740, 4294901760
        %1742 = vmatpush1.msra.mxu0 %v1741
        %v1743 = vand.u32 %v663, 4294901760
        %v1744 = vsub.f32 %v663, %v1743
        %v1745 = vand.u32 %v1744, 4294901760
        %v1746 = vsub.f32 %v1744, %v1745
        %v1747 = vand.u32 %v1746, 4294901760
        %1748 = vmatprep.subr.mxu0 %v1747
        %v1749 = vand.u32 %v662, 4294901760
        %v1750 = vsub.f32 %v662, %v1749
        %v1751 = vand.u32 %v1750, 4294901760
        %v1752 = vsub.f32 %v1750, %v1751
        %v1753 = vand.u32 %v1752, 4294901760
        %1754 = vmatpush1.msra.mxu0 %v1753
        %v1755 = vand.u32 %v667, 4294901760
        %v1756 = vsub.f32 %v667, %v1755
        %v1757 = vand.u32 %v1756, 4294901760
        %v1758 = vsub.f32 %v1756, %v1757
        %v1759 = vand.u32 %v1758, 4294901760
        %1760 = vmatprep.subr.mxu0 %v1759
        %v1761 = vand.u32 %v666, 4294901760
        %v1762 = vsub.f32 %v666, %v1761
        %v1763 = vand.u32 %v1762, 4294901760
        %v1764 = vsub.f32 %v1762, %v1763
        %v1765 = vand.u32 %v1764, 4294901760
        %1766 = vmatpush1.msra.mxu0 %v1765
        %v1767 = vand.u32 %v671, 4294901760
        %v1768 = vsub.f32 %v671, %v1767
        %v1769 = vand.u32 %v1768, 4294901760
        %v1770 = vsub.f32 %v1768, %v1769
        %v1771 = vand.u32 %v1770, 4294901760
        %1772 = vmatprep.subr.mxu0 %v1771
        %v1773 = vand.u32 %v670, 4294901760
        %v1774 = vsub.f32 %v670, %v1773
        %v1775 = vand.u32 %v1774, 4294901760
        %v1776 = vsub.f32 %v1774, %v1775
        %v1777 = vand.u32 %v1776, 4294901760
        %1778 = vmatpush1.msra.mxu0 %v1777
        %v1779 = vand.u32 %v675, 4294901760
        %v1780 = vsub.f32 %v675, %v1779
        %v1781 = vand.u32 %v1780, 4294901760
        %v1782 = vsub.f32 %v1780, %v1781
        %v1783 = vand.u32 %v1782, 4294901760
        %1784 = vmatprep.subr.mxu0 %v1783
        %v1785 = vand.u32 %v674, 4294901760
        %v1786 = vsub.f32 %v674, %v1785
        %v1787 = vand.u32 %v1786, 4294901760
        %v1788 = vsub.f32 %v1786, %v1787
        %v1789 = vand.u32 %v1788, 4294901760
        %1790 = vmatpush1.msra.mxu0 %v1789
        %v1791 = vand.u32 %v679, 4294901760
        %v1792 = vsub.f32 %v679, %v1791
        %v1793 = vand.u32 %v1792, 4294901760
        %v1794 = vsub.f32 %v1792, %v1793
        %v1795 = vand.u32 %v1794, 4294901760
        %1796 = vmatprep.subr.mxu0 %v1795
        %v1797 = vand.u32 %v678, 4294901760
        %v1798 = vsub.f32 %v678, %v1797
        %v1799 = vand.u32 %v1798, 4294901760
        %v1800 = vsub.f32 %v1798, %v1799
        %v1801 = vand.u32 %v1800, 4294901760
        %1802 = vmatpush1.msra.mxu0 %v1801
        %v1803 = vand.u32 %v683, 4294901760
        %v1804 = vsub.f32 %v683, %v1803
        %v1805 = vand.u32 %v1804, 4294901760
        %v1806 = vsub.f32 %v1804, %v1805
        %v1807 = vand.u32 %v1806, 4294901760
        %1808 = vmatprep.subr.mxu0 %v1807
        %v1809 = vand.u32 %v682, 4294901760
        %v1810 = vsub.f32 %v682, %v1809
        %v1811 = vand.u32 %v1810, 4294901760
        %v1812 = vsub.f32 %v1810, %v1811
        %v1813 = vand.u32 %v1812, 4294901760
        %1814 = vmatpush1.msra.mxu0 %v1813
        %v1815 = vand.u32 %v687, 4294901760
        %v1816 = vsub.f32 %v687, %v1815
        %v1817 = vand.u32 %v1816, 4294901760
        %v1818 = vsub.f32 %v1816, %v1817
        %v1819 = vand.u32 %v1818, 4294901760
        %1820 = vmatprep.subr.mxu0 %v1819
        %v1821 = vand.u32 %v686, 4294901760
        %v1822 = vsub.f32 %v686, %v1821
        %v1823 = vand.u32 %v1822, 4294901760
        %v1824 = vsub.f32 %v1822, %v1823
        %v1825 = vand.u32 %v1824, 4294901760
        %1826 = vmatpush1.msra.mxu0 %v1825
        %v1827 = vand.u32 %v691, 4294901760
        %v1828 = vsub.f32 %v691, %v1827
        %v1829 = vand.u32 %v1828, 4294901760
        %v1830 = vsub.f32 %v1828, %v1829
        %v1831 = vand.u32 %v1830, 4294901760
        %1832 = vmatprep.subr.mxu0 %v1831
        %v1833 = vand.u32 %v690, 4294901760
        %v1834 = vsub.f32 %v690, %v1833
        %v1835 = vand.u32 %v1834, 4294901760
        %v1836 = vsub.f32 %v1834, %v1835
        %v1837 = vand.u32 %v1836, 4294901760
        %1838 = vmatpush1.msra.mxu0 %v1837
        %v1839 = vand.u32 %v695, 4294901760
        %v1840 = vsub.f32 %v695, %v1839
        %v1841 = vand.u32 %v1840, 4294901760
        %v1842 = vsub.f32 %v1840, %v1841
        %v1843 = vand.u32 %v1842, 4294901760
        %1844 = vmatprep.subr.mxu0 %v1843
        %v1845 = vand.u32 %v694, 4294901760
        %v1846 = vsub.f32 %v694, %v1845
        %v1847 = vand.u32 %v1846, 4294901760
        %v1848 = vsub.f32 %v1846, %v1847
        %v1849 = vand.u32 %v1848, 4294901760
        %1850 = vmatpush1.msra.mxu0 %v1849
        %1851 = vmatprep.subr.mxu0 0.0
        %1852 = vmatpush1.msra.mxu0 0.0
        %1853 = vmatprep.subr.mxu0 0.0
        %1854 = vmatpush1.msra.mxu0 0.0
        %1855 = vmatprep.subr.mxu0 0.0
        %1856 = vmatpush1.msra.mxu0 0.0
        %1857 = vmatprep.subr.mxu0 0.0
        %1858 = vmatpush1.msra.mxu0 0.0
        %1859 = vmatprep.subr.mxu0 0.0
        %1860 = vmatpush1.msra.mxu0 0.0
        %1861 = vmatprep.subr.mxu0 0.0
        %1862 = vmatpush1.msra.mxu0 0.0
        %1863 = vmatprep.subr.mxu0 0.0
        %1864 = vmatpush1.msra.mxu0 0.0
        %1865 = vmatprep.subr.mxu0 0.0
        %1866 = vmatpush1.msra.mxu0 0.0
        %1867 = vmatprep.subr.mxu0 0.0
        %1868 = vmatpush1.msra.mxu0 0.0
        %1869 = vmatprep.subr.mxu0 0.0
        %1870 = vmatpush1.msra.mxu0 0.0
        %1871 = vmatprep.subr.mxu0 0.0
        %1872 = vmatpush1.msra.mxu0 0.0
        %1873 = vmatprep.subr.mxu0 0.0
        %1874 = vmatpush1.msra.mxu0 0.0
        %1875 = vmatprep.subr.mxu0 0.0
        %1876 = vmatpush1.msra.mxu0 0.0
        %1877 = vmatprep.subr.mxu0 0.0
        %1878 = vmatpush1.msra.mxu0 0.0
        %1879 = vmatprep.subr.mxu0 0.0
        %1880 = vmatpush1.msra.mxu0 0.0
        %1881 = vmatprep.subr.mxu0 0.0
        %1882 = vmatpush1.msra.mxu0 0.0
        %1883 = vmatprep.mubr.f32.mxu0 0.0
        %v1884 = vand.u32 %v365, 4294901760
        %1885 = vmatmul.mubr.f32.gmra.mrb[0].mxu0 %v1884
        %v1886 = vpop.f32.mrb[0].mxu0
        %v1887 = vadd.f32 %v1655, %v1886
        %v1888 = vpop.f32.mrb[0].mxu0
        %v1889 = vadd.f32 %v1657, %v1888
        %1890 = vdwg.mxu0
        %v1891 = vand.u32 %v635, 4294901760
        %v1892 = vsub.f32 %v635, %v1891
        %1893 = vmatprep.subr.mxu0 %v1892
        %v1894 = vand.u32 %v634, 4294901760
        %v1895 = vsub.f32 %v634, %v1894
        %1896 = vmatpush1.msra.mxu0 %v1895
        %v1897 = vand.u32 %v639, 4294901760
        %v1898 = vsub.f32 %v639, %v1897
        %1899 = vmatprep.subr.mxu0 %v1898
        %v1900 = vand.u32 %v638, 4294901760
        %v1901 = vsub.f32 %v638, %v1900
        %1902 = vmatpush1.msra.mxu0 %v1901
        %v1903 = vand.u32 %v643, 4294901760
        %v1904 = vsub.f32 %v643, %v1903
        %1905 = vmatprep.subr.mxu0 %v1904
        %v1906 = vand.u32 %v642, 4294901760
        %v1907 = vsub.f32 %v642, %v1906
        %1908 = vmatpush1.msra.mxu0 %v1907
        %v1909 = vand.u32 %v647, 4294901760
        %v1910 = vsub.f32 %v647, %v1909
        %1911 = vmatprep.subr.mxu0 %v1910
        %v1912 = vand.u32 %v646, 4294901760
        %v1913 = vsub.f32 %v646, %v1912
        %1914 = vmatpush1.msra.mxu0 %v1913
        %v1915 = vand.u32 %v651, 4294901760
        %v1916 = vsub.f32 %v651, %v1915
        %1917 = vmatprep.subr.mxu0 %v1916
        %v1918 = vand.u32 %v650, 4294901760
        %v1919 = vsub.f32 %v650, %v1918
        %1920 = vmatpush1.msra.mxu0 %v1919
        %v1921 = vand.u32 %v655, 4294901760
        %v1922 = vsub.f32 %v655, %v1921
        %1923 = vmatprep.subr.mxu0 %v1922
        %v1924 = vand.u32 %v654, 4294901760
        %v1925 = vsub.f32 %v654, %v1924
        %1926 = vmatpush1.msra.mxu0 %v1925
        %v1927 = vand.u32 %v659, 4294901760
        %v1928 = vsub.f32 %v659, %v1927
        %1929 = vmatprep.subr.mxu0 %v1928
        %v1930 = vand.u32 %v658, 4294901760
        %v1931 = vsub.f32 %v658, %v1930
        %1932 = vmatpush1.msra.mxu0 %v1931
        %v1933 = vand.u32 %v663, 4294901760
        %v1934 = vsub.f32 %v663, %v1933
        %1935 = vmatprep.subr.mxu0 %v1934
        %v1936 = vand.u32 %v662, 4294901760
        %v1937 = vsub.f32 %v662, %v1936
        %1938 = vmatpush1.msra.mxu0 %v1937
        %v1939 = vand.u32 %v667, 4294901760
        %v1940 = vsub.f32 %v667, %v1939
        %1941 = vmatprep.subr.mxu0 %v1940
        %v1942 = vand.u32 %v666, 4294901760
        %v1943 = vsub.f32 %v666, %v1942
        %1944 = vmatpush1.msra.mxu0 %v1943
        %v1945 = vand.u32 %v671, 4294901760
        %v1946 = vsub.f32 %v671, %v1945
        %1947 = vmatprep.subr.mxu0 %v1946
        %v1948 = vand.u32 %v670, 4294901760
        %v1949 = vsub.f32 %v670, %v1948
        %1950 = vmatpush1.msra.mxu0 %v1949
        %v1951 = vand.u32 %v675, 4294901760
        %v1952 = vsub.f32 %v675, %v1951
        %1953 = vmatprep.subr.mxu0 %v1952
        %v1954 = vand.u32 %v674, 4294901760
        %v1955 = vsub.f32 %v674, %v1954
        %1956 = vmatpush1.msra.mxu0 %v1955
        %v1957 = vand.u32 %v679, 4294901760
        %v1958 = vsub.f32 %v679, %v1957
        %1959 = vmatprep.subr.mxu0 %v1958
        %v1960 = vand.u32 %v678, 4294901760
        %v1961 = vsub.f32 %v678, %v1960
        %1962 = vmatpush1.msra.mxu0 %v1961
        %v1963 = vand.u32 %v683, 4294901760
        %v1964 = vsub.f32 %v683, %v1963
        %1965 = vmatprep.subr.mxu0 %v1964
        %v1966 = vand.u32 %v682, 4294901760
        %v1967 = vsub.f32 %v682, %v1966
        %1968 = vmatpush1.msra.mxu0 %v1967
        %v1969 = vand.u32 %v687, 4294901760
        %v1970 = vsub.f32 %v687, %v1969
        %1971 = vmatprep.subr.mxu0 %v1970
        %v1972 = vand.u32 %v686, 4294901760
        %v1973 = vsub.f32 %v686, %v1972
        %1974 = vmatpush1.msra.mxu0 %v1973
        %v1975 = vand.u32 %v691, 4294901760
        %v1976 = vsub.f32 %v691, %v1975
        %1977 = vmatprep.subr.mxu0 %v1976
        %v1978 = vand.u32 %v690, 4294901760
        %v1979 = vsub.f32 %v690, %v1978
        %1980 = vmatpush1.msra.mxu0 %v1979
        %v1981 = vand.u32 %v695, 4294901760
        %v1982 = vsub.f32 %v695, %v1981
        %1983 = vmatprep.subr.mxu0 %v1982
        %v1984 = vand.u32 %v694, 4294901760
        %v1985 = vsub.f32 %v694, %v1984
        %1986 = vmatpush1.msra.mxu0 %v1985
        %1987 = vmatprep.subr.mxu0 0.0
        %1988 = vmatpush1.msra.mxu0 0.0
        %1989 = vmatprep.subr.mxu0 0.0
        %1990 = vmatpush1.msra.mxu0 0.0
        %1991 = vmatprep.subr.mxu0 0.0
        %1992 = vmatpush1.msra.mxu0 0.0
        %1993 = vmatprep.subr.mxu0 0.0
        %1994 = vmatpush1.msra.mxu0 0.0
        %1995 = vmatprep.subr.mxu0 0.0
        %1996 = vmatpush1.msra.mxu0 0.0
        %1997 = vmatprep.subr.mxu0 0.0
        %1998 = vmatpush1.msra.mxu0 0.0
        %1999 = vmatprep.subr.mxu0 0.0
        %2000 = vmatpush1.msra.mxu0 0.0
        %2001 = vmatprep.subr.mxu0 0.0
        %2002 = vmatpush1.msra.mxu0 0.0
        %2003 = vmatprep.subr.mxu0 0.0
        %2004 = vmatpush1.msra.mxu0 0.0
        %2005 = vmatprep.subr.mxu0 0.0
        %2006 = vmatpush1.msra.mxu0 0.0
        %2007 = vmatprep.subr.mxu0 0.0
        %2008 = vmatpush1.msra.mxu0 0.0
        %2009 = vmatprep.subr.mxu0 0.0
        %2010 = vmatpush1.msra.mxu0 0.0
        %2011 = vmatprep.subr.mxu0 0.0
        %2012 = vmatpush1.msra.mxu0 0.0
        %2013 = vmatprep.subr.mxu0 0.0
        %2014 = vmatpush1.msra.mxu0 0.0
        %2015 = vmatprep.subr.mxu0 0.0
        %2016 = vmatpush1.msra.mxu0 0.0
        %2017 = vmatprep.subr.mxu0 0.0
        %2018 = vmatpush1.msra.mxu0 0.0
        %2019 = vmatprep.mubr.f32.mxu0 0.0
        %v2020 = vand.u32 %v365, 4294901760
        %v2021 = vsub.f32 %v365, %v2020
        %2022 = vmatmul.mubr.f32.gmra.mrb[0].mxu0 %v2021
        %v2023 = vpop.f32.mrb[0].mxu0
        %v2024 = vadd.f32 %v1887, %v2023
        %v2025 = vpop.f32.mrb[0].mxu0
        %v2026 = vadd.f32 %v1889, %v2025
        %2027 = vdwg.mxu0
        %v2028 = vand.u32 %v635, 4294901760
        %2029 = vmatprep.subr.mxu0 %v2028
        %v2030 = vand.u32 %v634, 4294901760
        %2031 = vmatpush1.msra.mxu0 %v2030
        %v2032 = vand.u32 %v639, 4294901760
        %2033 = vmatprep.subr.mxu0 %v2032
        %v2034 = vand.u32 %v638, 4294901760
        %2035 = vmatpush1.msra.mxu0 %v2034
        %v2036 = vand.u32 %v643, 4294901760
        %2037 = vmatprep.subr.mxu0 %v2036
        %v2038 = vand.u32 %v642, 4294901760
        %2039 = vmatpush1.msra.mxu0 %v2038
        %v2040 = vand.u32 %v647, 4294901760
        %2041 = vmatprep.subr.mxu0 %v2040
        %v2042 = vand.u32 %v646, 4294901760
        %2043 = vmatpush1.msra.mxu0 %v2042
        %v2044 = vand.u32 %v651, 4294901760
        %2045 = vmatprep.subr.mxu0 %v2044
        %v2046 = vand.u32 %v650, 4294901760
        %2047 = vmatpush1.msra.mxu0 %v2046
        %v2048 = vand.u32 %v655, 4294901760
        %2049 = vmatprep.subr.mxu0 %v2048
        %v2050 = vand.u32 %v654, 4294901760
        %2051 = vmatpush1.msra.mxu0 %v2050
        %v2052 = vand.u32 %v659, 4294901760
        %2053 = vmatprep.subr.mxu0 %v2052
        %v2054 = vand.u32 %v658, 4294901760
        %2055 = vmatpush1.msra.mxu0 %v2054
        %v2056 = vand.u32 %v663, 4294901760
        %2057 = vmatprep.subr.mxu0 %v2056
        %v2058 = vand.u32 %v662, 4294901760
        %2059 = vmatpush1.msra.mxu0 %v2058
        %v2060 = vand.u32 %v667, 4294901760
        %2061 = vmatprep.subr.mxu0 %v2060
        %v2062 = vand.u32 %v666, 4294901760
        %2063 = vmatpush1.msra.mxu0 %v2062
        %v2064 = vand.u32 %v671, 4294901760
        %2065 = vmatprep.subr.mxu0 %v2064
        %v2066 = vand.u32 %v670, 4294901760
        %2067 = vmatpush1.msra.mxu0 %v2066
        %v2068 = vand.u32 %v675, 4294901760
        %2069 = vmatprep.subr.mxu0 %v2068
        %v2070 = vand.u32 %v674, 4294901760
        %2071 = vmatpush1.msra.mxu0 %v2070
        %v2072 = vand.u32 %v679, 4294901760
        %2073 = vmatprep.subr.mxu0 %v2072
        %v2074 = vand.u32 %v678, 4294901760
        %2075 = vmatpush1.msra.mxu0 %v2074
        %v2076 = vand.u32 %v683, 4294901760
        %2077 = vmatprep.subr.mxu0 %v2076
        %v2078 = vand.u32 %v682, 4294901760
        %2079 = vmatpush1.msra.mxu0 %v2078
        %v2080 = vand.u32 %v687, 4294901760
        %2081 = vmatprep.subr.mxu0 %v2080
        %v2082 = vand.u32 %v686, 4294901760
        %2083 = vmatpush1.msra.mxu0 %v2082
        %v2084 = vand.u32 %v691, 4294901760
        %2085 = vmatprep.subr.mxu0 %v2084
        %v2086 = vand.u32 %v690, 4294901760
        %2087 = vmatpush1.msra.mxu0 %v2086
        %v2088 = vand.u32 %v695, 4294901760
        %2089 = vmatprep.subr.mxu0 %v2088
        %v2090 = vand.u32 %v694, 4294901760
        %2091 = vmatpush1.msra.mxu0 %v2090
        %2092 = vmatprep.subr.mxu0 0.0
        %2093 = vmatpush1.msra.mxu0 0.0
        %2094 = vmatprep.subr.mxu0 0.0
        %2095 = vmatpush1.msra.mxu0 0.0
        %2096 = vmatprep.subr.mxu0 0.0
        %2097 = vmatpush1.msra.mxu0 0.0
        %2098 = vmatprep.subr.mxu0 0.0
        %2099 = vmatpush1.msra.mxu0 0.0
        %2100 = vmatprep.subr.mxu0 0.0
        %2101 = vmatpush1.msra.mxu0 0.0
        %2102 = vmatprep.subr.mxu0 0.0
        %2103 = vmatpush1.msra.mxu0 0.0
        %2104 = vmatprep.subr.mxu0 0.0
        %2105 = vmatpush1.msra.mxu0 0.0
        %2106 = vmatprep.subr.mxu0 0.0
        %2107 = vmatpush1.msra.mxu0 0.0
        %2108 = vmatprep.subr.mxu0 0.0
        %2109 = vmatpush1.msra.mxu0 0.0
        %2110 = vmatprep.subr.mxu0 0.0
        %2111 = vmatpush1.msra.mxu0 0.0
        %2112 = vmatprep.subr.mxu0 0.0
        %2113 = vmatpush1.msra.mxu0 0.0
        %2114 = vmatprep.subr.mxu0 0.0
        %2115 = vmatpush1.msra.mxu0 0.0
        %2116 = vmatprep.subr.mxu0 0.0
        %2117 = vmatpush1.msra.mxu0 0.0
        %2118 = vmatprep.subr.mxu0 0.0
        %2119 = vmatpush1.msra.mxu0 0.0
        %2120 = vmatprep.subr.mxu0 0.0
        %2121 = vmatpush1.msra.mxu0 0.0
        %2122 = vmatprep.subr.mxu0 0.0
        %2123 = vmatpush1.msra.mxu0 0.0
        %2124 = vmatprep.mubr.f32.mxu0 0.0
        %v2125 = vand.u32 %v365, 4294901760
        %v2126 = vsub.f32 %v365, %v2125
        %v2127 = vand.u32 %v2126, 4294901760
        %2128 = vmatmul.mubr.f32.gmra.mrb[0].mxu0 %v2127
        %v2129 = vpop.f32.mrb[0].mxu0
        %v2130 = vadd.f32 %v2024, %v2129
        %v2131 = vpop.f32.mrb[0].mxu0
        %v2132 = vadd.f32 %v2026, %v2131
        %2133 = vdwg.mxu0
        %v2134 = vand.u32 %v635, 4294901760
        %v2135 = vsub.f32 %v635, %v2134
        %v2136 = vand.u32 %v2135, 4294901760
        %2137 = vmatprep.subr.mxu0 %v2136
        %v2138 = vand.u32 %v634, 4294901760
        %v2139 = vsub.f32 %v634, %v2138
        %v2140 = vand.u32 %v2139, 4294901760
        %2141 = vmatpush1.msra.mxu0 %v2140
        %v2142 = vand.u32 %v639, 4294901760
        %v2143 = vsub.f32 %v639, %v2142
        %v2144 = vand.u32 %v2143, 4294901760
        %2145 = vmatprep.subr.mxu0 %v2144
        %v2146 = vand.u32 %v638, 4294901760
        %v2147 = vsub.f32 %v638, %v2146
        %v2148 = vand.u32 %v2147, 4294901760
        %2149 = vmatpush1.msra.mxu0 %v2148
        %v2150 = vand.u32 %v643, 4294901760
        %v2151 = vsub.f32 %v643, %v2150
        %v2152 = vand.u32 %v2151, 4294901760
        %2153 = vmatprep.subr.mxu0 %v2152
        %v2154 = vand.u32 %v642, 4294901760
        %v2155 = vsub.f32 %v642, %v2154
        %v2156 = vand.u32 %v2155, 4294901760
        %2157 = vmatpush1.msra.mxu0 %v2156
        %v2158 = vand.u32 %v647, 4294901760
        %v2159 = vsub.f32 %v647, %v2158
        %v2160 = vand.u32 %v2159, 4294901760
        %2161 = vmatprep.subr.mxu0 %v2160
        %v2162 = vand.u32 %v646, 4294901760
        %v2163 = vsub.f32 %v646, %v2162
        %v2164 = vand.u32 %v2163, 4294901760
        %2165 = vmatpush1.msra.mxu0 %v2164
        %v2166 = vand.u32 %v651, 4294901760
        %v2167 = vsub.f32 %v651, %v2166
        %v2168 = vand.u32 %v2167, 4294901760
        %2169 = vmatprep.subr.mxu0 %v2168
        %v2170 = vand.u32 %v650, 4294901760
        %v2171 = vsub.f32 %v650, %v2170
        %v2172 = vand.u32 %v2171, 4294901760
        %2173 = vmatpush1.msra.mxu0 %v2172
        %v2174 = vand.u32 %v655, 4294901760
        %v2175 = vsub.f32 %v655, %v2174
        %v2176 = vand.u32 %v2175, 4294901760
        %2177 = vmatprep.subr.mxu0 %v2176
        %v2178 = vand.u32 %v654, 4294901760
        %v2179 = vsub.f32 %v654, %v2178
        %v2180 = vand.u32 %v2179, 4294901760
        %2181 = vmatpush1.msra.mxu0 %v2180
        %v2182 = vand.u32 %v659, 4294901760
        %v2183 = vsub.f32 %v659, %v2182
        %v2184 = vand.u32 %v2183, 4294901760
        %2185 = vmatprep.subr.mxu0 %v2184
        %v2186 = vand.u32 %v658, 4294901760
        %v2187 = vsub.f32 %v658, %v2186
        %v2188 = vand.u32 %v2187, 4294901760
        %2189 = vmatpush1.msra.mxu0 %v2188
        %v2190 = vand.u32 %v663, 4294901760
        %v2191 = vsub.f32 %v663, %v2190
        %v2192 = vand.u32 %v2191, 4294901760
        %2193 = vmatprep.subr.mxu0 %v2192
        %v2194 = vand.u32 %v662, 4294901760
        %v2195 = vsub.f32 %v662, %v2194
        %v2196 = vand.u32 %v2195, 4294901760
        %2197 = vmatpush1.msra.mxu0 %v2196
        %v2198 = vand.u32 %v667, 4294901760
        %v2199 = vsub.f32 %v667, %v2198
        %v2200 = vand.u32 %v2199, 4294901760
        %2201 = vmatprep.subr.mxu0 %v2200
        %v2202 = vand.u32 %v666, 4294901760
        %v2203 = vsub.f32 %v666, %v2202
        %v2204 = vand.u32 %v2203, 4294901760
        %2205 = vmatpush1.msra.mxu0 %v2204
        %v2206 = vand.u32 %v671, 4294901760
        %v2207 = vsub.f32 %v671, %v2206
        %v2208 = vand.u32 %v2207, 4294901760
        %2209 = vmatprep.subr.mxu0 %v2208
        %v2210 = vand.u32 %v670, 4294901760
        %v2211 = vsub.f32 %v670, %v2210
        %v2212 = vand.u32 %v2211, 4294901760
        %2213 = vmatpush1.msra.mxu0 %v2212
        %v2214 = vand.u32 %v675, 4294901760
        %v2215 = vsub.f32 %v675, %v2214
        %v2216 = vand.u32 %v2215, 4294901760
        %2217 = vmatprep.subr.mxu0 %v2216
        %v2218 = vand.u32 %v674, 4294901760
        %v2219 = vsub.f32 %v674, %v2218
        %v2220 = vand.u32 %v2219, 4294901760
        %2221 = vmatpush1.msra.mxu0 %v2220
        %v2222 = vand.u32 %v679, 4294901760
        %v2223 = vsub.f32 %v679, %v2222
        %v2224 = vand.u32 %v2223, 4294901760
        %2225 = vmatprep.subr.mxu0 %v2224
        %v2226 = vand.u32 %v678, 4294901760
        %v2227 = vsub.f32 %v678, %v2226
        %v2228 = vand.u32 %v2227, 4294901760
        %2229 = vmatpush1.msra.mxu0 %v2228
        %v2230 = vand.u32 %v683, 4294901760
        %v2231 = vsub.f32 %v683, %v2230
        %v2232 = vand.u32 %v2231, 4294901760
        %2233 = vmatprep.subr.mxu0 %v2232
        %v2234 = vand.u32 %v682, 4294901760
        %v2235 = vsub.f32 %v682, %v2234
        %v2236 = vand.u32 %v2235, 4294901760
        %2237 = vmatpush1.msra.mxu0 %v2236
        %v2238 = vand.u32 %v687, 4294901760
        %v2239 = vsub.f32 %v687, %v2238
        %v2240 = vand.u32 %v2239, 4294901760
        %2241 = vmatprep.subr.mxu0 %v2240
        %v2242 = vand.u32 %v686, 4294901760
        %v2243 = vsub.f32 %v686, %v2242
        %v2244 = vand.u32 %v2243, 4294901760
        %2245 = vmatpush1.msra.mxu0 %v2244
        %v2246 = vand.u32 %v691, 4294901760
        %v2247 = vsub.f32 %v691, %v2246
        %v2248 = vand.u32 %v2247, 4294901760
        %2249 = vmatprep.subr.mxu0 %v2248
        %v2250 = vand.u32 %v690, 4294901760
        %v2251 = vsub.f32 %v690, %v2250
        %v2252 = vand.u32 %v2251, 4294901760
        %2253 = vmatpush1.msra.mxu0 %v2252
        %v2254 = vand.u32 %v695, 4294901760
        %v2255 = vsub.f32 %v695, %v2254
        %v2256 = vand.u32 %v2255, 4294901760
        %2257 = vmatprep.subr.mxu0 %v2256
        %v2258 = vand.u32 %v694, 4294901760
        %v2259 = vsub.f32 %v694, %v2258
        %v2260 = vand.u32 %v2259, 4294901760
        %2261 = vmatpush1.msra.mxu0 %v2260
        %2262 = vmatprep.subr.mxu0 0.0
        %2263 = vmatpush1.msra.mxu0 0.0
        %2264 = vmatprep.subr.mxu0 0.0
        %2265 = vmatpush1.msra.mxu0 0.0
        %2266 = vmatprep.subr.mxu0 0.0
        %2267 = vmatpush1.msra.mxu0 0.0
        %2268 = vmatprep.subr.mxu0 0.0
        %2269 = vmatpush1.msra.mxu0 0.0
        %2270 = vmatprep.subr.mxu0 0.0
        %2271 = vmatpush1.msra.mxu0 0.0
        %2272 = vmatprep.subr.mxu0 0.0
        %2273 = vmatpush1.msra.mxu0 0.0
        %2274 = vmatprep.subr.mxu0 0.0
        %2275 = vmatpush1.msra.mxu0 0.0
        %2276 = vmatprep.subr.mxu0 0.0
        %2277 = vmatpush1.msra.mxu0 0.0
        %2278 = vmatprep.subr.mxu0 0.0
        %2279 = vmatpush1.msra.mxu0 0.0
        %2280 = vmatprep.subr.mxu0 0.0
        %2281 = vmatpush1.msra.mxu0 0.0
        %2282 = vmatprep.subr.mxu0 0.0
        %2283 = vmatpush1.msra.mxu0 0.0
        %2284 = vmatprep.subr.mxu0 0.0
        %2285 = vmatpush1.msra.mxu0 0.0
        %2286 = vmatprep.subr.mxu0 0.0
        %2287 = vmatpush1.msra.mxu0 0.0
        %2288 = vmatprep.subr.mxu0 0.0
        %2289 = vmatpush1.msra.mxu0 0.0
        %2290 = vmatprep.subr.mxu0 0.0
        %2291 = vmatpush1.msra.mxu0 0.0
        %2292 = vmatprep.subr.mxu0 0.0
        %2293 = vmatpush1.msra.mxu0 0.0
        %2294 = vmatprep.mubr.f32.mxu0 0.0
        %v2295 = vand.u32 %v365, 4294901760
        %2296 = vmatmul.mubr.f32.gmra.mrb[0].mxu0 %v2295
        %v2297 = vpop.f32.mrb[0].mxu0
        %v2298 = vadd.f32 %v2130, %v2297
        %v2299 = vpop.f32.mrb[0].mxu0
        %v2300 = vadd.f32 %v2132, %v2299
        %2301 = vdwg.mxu0
        %v2302 = vand.u32 %v635, 4294901760
        %2303 = vmatprep.subr.mxu0 %v2302
        %v2304 = vand.u32 %v634, 4294901760
        %2305 = vmatpush1.msra.mxu0 %v2304
        %v2306 = vand.u32 %v639, 4294901760
        %2307 = vmatprep.subr.mxu0 %v2306
        %v2308 = vand.u32 %v638, 4294901760
        %2309 = vmatpush1.msra.mxu0 %v2308
        %v2310 = vand.u32 %v643, 4294901760
        %2311 = vmatprep.subr.mxu0 %v2310
        %v2312 = vand.u32 %v642, 4294901760
        %2313 = vmatpush1.msra.mxu0 %v2312
        %v2314 = vand.u32 %v647, 4294901760
        %2315 = vmatprep.subr.mxu0 %v2314
        %v2316 = vand.u32 %v646, 4294901760
        %2317 = vmatpush1.msra.mxu0 %v2316
        %v2318 = vand.u32 %v651, 4294901760
        %2319 = vmatprep.subr.mxu0 %v2318
        %v2320 = vand.u32 %v650, 4294901760
        %2321 = vmatpush1.msra.mxu0 %v2320
        %v2322 = vand.u32 %v655, 4294901760
        %2323 = vmatprep.subr.mxu0 %v2322
        %v2324 = vand.u32 %v654, 4294901760
        %2325 = vmatpush1.msra.mxu0 %v2324
        %v2326 = vand.u32 %v659, 4294901760
        %2327 = vmatprep.subr.mxu0 %v2326
        %v2328 = vand.u32 %v658, 4294901760
        %2329 = vmatpush1.msra.mxu0 %v2328
        %v2330 = vand.u32 %v663, 4294901760
        %2331 = vmatprep.subr.mxu0 %v2330
        %v2332 = vand.u32 %v662, 4294901760
        %2333 = vmatpush1.msra.mxu0 %v2332
        %v2334 = vand.u32 %v667, 4294901760
        %2335 = vmatprep.subr.mxu0 %v2334
        %v2336 = vand.u32 %v666, 4294901760
        %2337 = vmatpush1.msra.mxu0 %v2336
        %v2338 = vand.u32 %v671, 4294901760
        %2339 = vmatprep.subr.mxu0 %v2338
        %v2340 = vand.u32 %v670, 4294901760
        %2341 = vmatpush1.msra.mxu0 %v2340
        %v2342 = vand.u32 %v675, 4294901760
        %2343 = vmatprep.subr.mxu0 %v2342
        %v2344 = vand.u32 %v674, 4294901760
        %2345 = vmatpush1.msra.mxu0 %v2344
        %v2346 = vand.u32 %v679, 4294901760
        %2347 = vmatprep.subr.mxu0 %v2346
        %v2348 = vand.u32 %v678, 4294901760
        %2349 = vmatpush1.msra.mxu0 %v2348
        %v2350 = vand.u32 %v683, 4294901760
        %2351 = vmatprep.subr.mxu0 %v2350
        %v2352 = vand.u32 %v682, 4294901760
        %2353 = vmatpush1.msra.mxu0 %v2352
        %v2354 = vand.u32 %v687, 4294901760
        %2355 = vmatprep.subr.mxu0 %v2354
        %v2356 = vand.u32 %v686, 4294901760
        %2357 = vmatpush1.msra.mxu0 %v2356
        %v2358 = vand.u32 %v691, 4294901760
        %2359 = vmatprep.subr.mxu0 %v2358
        %v2360 = vand.u32 %v690, 4294901760
        %2361 = vmatpush1.msra.mxu0 %v2360
        %v2362 = vand.u32 %v695, 4294901760
        %2363 = vmatprep.subr.mxu0 %v2362
        %v2364 = vand.u32 %v694, 4294901760
        %2365 = vmatpush1.msra.mxu0 %v2364
        %2366 = vmatprep.subr.mxu0 0.0
        %2367 = vmatpush1.msra.mxu0 0.0
        %2368 = vmatprep.subr.mxu0 0.0
        %2369 = vmatpush1.msra.mxu0 0.0
        %2370 = vmatprep.subr.mxu0 0.0
        %2371 = vmatpush1.msra.mxu0 0.0
        %2372 = vmatprep.subr.mxu0 0.0
        %2373 = vmatpush1.msra.mxu0 0.0
        %2374 = vmatprep.subr.mxu0 0.0
        %2375 = vmatpush1.msra.mxu0 0.0
        %2376 = vmatprep.subr.mxu0 0.0
        %2377 = vmatpush1.msra.mxu0 0.0
        %2378 = vmatprep.subr.mxu0 0.0
        %2379 = vmatpush1.msra.mxu0 0.0
        %2380 = vmatprep.subr.mxu0 0.0
        %2381 = vmatpush1.msra.mxu0 0.0
        %2382 = vmatprep.subr.mxu0 0.0
        %2383 = vmatpush1.msra.mxu0 0.0
        %2384 = vmatprep.subr.mxu0 0.0
        %2385 = vmatpush1.msra.mxu0 0.0
        %2386 = vmatprep.subr.mxu0 0.0
        %2387 = vmatpush1.msra.mxu0 0.0
        %2388 = vmatprep.subr.mxu0 0.0
        %2389 = vmatpush1.msra.mxu0 0.0
        %2390 = vmatprep.subr.mxu0 0.0
        %2391 = vmatpush1.msra.mxu0 0.0
        %2392 = vmatprep.subr.mxu0 0.0
        %2393 = vmatpush1.msra.mxu0 0.0
        %2394 = vmatprep.subr.mxu0 0.0
        %2395 = vmatpush1.msra.mxu0 0.0
        %2396 = vmatprep.subr.mxu0 0.0
        %2397 = vmatpush1.msra.mxu0 0.0
        %2398 = vmatprep.mubr.f32.mxu0 0.0
        %v2399 = vand.u32 %v365, 4294901760
        %2400 = vmatmul.mubr.f32.gmra.mrb[0].mxu0 %v2399
        %v2401 = vpop.f32.mrb[0].mxu0
        %v2402 = vadd.f32 %v2298, %v2401
        %v2403 = vpop.f32.mrb[0].mxu0
        %v2404 = vadd.f32 %v2300, %v2403
        %2405 = vdwg.mxu0
        %v2406 = vand.u32 %v377, 4294901760
        %2407 = vmatprep.subr.mxu0 %v2406
        %v2408 = vand.u32 %v376, 4294901760
        %2409 = vmatpush1.msra.mxu0 %v2408
        %v2410 = vand.u32 %v381, 4294901760
        %2411 = vmatprep.subr.mxu0 %v2410
        %v2412 = vand.u32 %v380, 4294901760
        %2413 = vmatpush1.msra.mxu0 %v2412
        %v2414 = vand.u32 %v385, 4294901760
        %2415 = vmatprep.subr.mxu0 %v2414
        %v2416 = vand.u32 %v384, 4294901760
        %2417 = vmatpush1.msra.mxu0 %v2416
        %v2418 = vand.u32 %v389, 4294901760
        %2419 = vmatprep.subr.mxu0 %v2418
        %v2420 = vand.u32 %v388, 4294901760
        %2421 = vmatpush1.msra.mxu0 %v2420
        %v2422 = vand.u32 %v393, 4294901760
        %2423 = vmatprep.subr.mxu0 %v2422
        %v2424 = vand.u32 %v392, 4294901760
        %2425 = vmatpush1.msra.mxu0 %v2424
        %v2426 = vand.u32 %v397, 4294901760
        %2427 = vmatprep.subr.mxu0 %v2426
        %v2428 = vand.u32 %v396, 4294901760
        %2429 = vmatpush1.msra.mxu0 %v2428
        %v2430 = vand.u32 %v401, 4294901760
        %2431 = vmatprep.subr.mxu0 %v2430
        %v2432 = vand.u32 %v400, 4294901760
        %2433 = vmatpush1.msra.mxu0 %v2432
        %v2434 = vand.u32 %v405, 4294901760
        %2435 = vmatprep.subr.mxu0 %v2434
        %v2436 = vand.u32 %v404, 4294901760
        %2437 = vmatpush1.msra.mxu0 %v2436
        %v2438 = vand.u32 %v409, 4294901760
        %2439 = vmatprep.subr.mxu0 %v2438
        %v2440 = vand.u32 %v408, 4294901760
        %2441 = vmatpush1.msra.mxu0 %v2440
        %v2442 = vand.u32 %v413, 4294901760
        %2443 = vmatprep.subr.mxu0 %v2442
        %v2444 = vand.u32 %v412, 4294901760
        %2445 = vmatpush1.msra.mxu0 %v2444
        %v2446 = vand.u32 %v417, 4294901760
        %2447 = vmatprep.subr.mxu0 %v2446
        %v2448 = vand.u32 %v416, 4294901760
        %2449 = vmatpush1.msra.mxu0 %v2448
        %v2450 = vand.u32 %v421, 4294901760
        %2451 = vmatprep.subr.mxu0 %v2450
        %v2452 = vand.u32 %v420, 4294901760
        %2453 = vmatpush1.msra.mxu0 %v2452
        %v2454 = vand.u32 %v425, 4294901760
        %2455 = vmatprep.subr.mxu0 %v2454
        %v2456 = vand.u32 %v424, 4294901760
        %2457 = vmatpush1.msra.mxu0 %v2456
        %v2458 = vand.u32 %v429, 4294901760
        %2459 = vmatprep.subr.mxu0 %v2458
        %v2460 = vand.u32 %v428, 4294901760
        %2461 = vmatpush1.msra.mxu0 %v2460
        %v2462 = vand.u32 %v433, 4294901760
        %2463 = vmatprep.subr.mxu0 %v2462
        %v2464 = vand.u32 %v432, 4294901760
        %2465 = vmatpush1.msra.mxu0 %v2464
        %v2466 = vand.u32 %v437, 4294901760
        %2467 = vmatprep.subr.mxu0 %v2466
        %v2468 = vand.u32 %v436, 4294901760
        %2469 = vmatpush1.msra.mxu0 %v2468
        %v2470 = vand.u32 %v441, 4294901760
        %2471 = vmatprep.subr.mxu0 %v2470
        %v2472 = vand.u32 %v440, 4294901760
        %2473 = vmatpush1.msra.mxu0 %v2472
        %v2474 = vand.u32 %v445, 4294901760
        %2475 = vmatprep.subr.mxu0 %v2474
        %v2476 = vand.u32 %v444, 4294901760
        %2477 = vmatpush1.msra.mxu0 %v2476
        %v2478 = vand.u32 %v449, 4294901760
        %2479 = vmatprep.subr.mxu0 %v2478
        %v2480 = vand.u32 %v448, 4294901760
        %2481 = vmatpush1.msra.mxu0 %v2480
        %v2482 = vand.u32 %v453, 4294901760
        %2483 = vmatprep.subr.mxu0 %v2482
        %v2484 = vand.u32 %v452, 4294901760
        %2485 = vmatpush1.msra.mxu0 %v2484
        %v2486 = vand.u32 %v457, 4294901760
        %2487 = vmatprep.subr.mxu0 %v2486
        %v2488 = vand.u32 %v456, 4294901760
        %2489 = vmatpush1.msra.mxu0 %v2488
        %v2490 = vand.u32 %v461, 4294901760
        %2491 = vmatprep.subr.mxu0 %v2490
        %v2492 = vand.u32 %v460, 4294901760
        %2493 = vmatpush1.msra.mxu0 %v2492
        %v2494 = vand.u32 %v465, 4294901760
        %2495 = vmatprep.subr.mxu0 %v2494
        %v2496 = vand.u32 %v464, 4294901760
        %2497 = vmatpush1.msra.mxu0 %v2496
        %v2498 = vand.u32 %v469, 4294901760
        %2499 = vmatprep.subr.mxu0 %v2498
        %v2500 = vand.u32 %v468, 4294901760
        %2501 = vmatpush1.msra.mxu0 %v2500
        %v2502 = vand.u32 %v473, 4294901760
        %2503 = vmatprep.subr.mxu0 %v2502
        %v2504 = vand.u32 %v472, 4294901760
        %2505 = vmatpush1.msra.mxu0 %v2504
        %v2506 = vand.u32 %v477, 4294901760
        %2507 = vmatprep.subr.mxu0 %v2506
        %v2508 = vand.u32 %v476, 4294901760
        %2509 = vmatpush1.msra.mxu0 %v2508
        %v2510 = vand.u32 %v481, 4294901760
        %2511 = vmatprep.subr.mxu0 %v2510
        %v2512 = vand.u32 %v480, 4294901760
        %2513 = vmatpush1.msra.mxu0 %v2512
        %v2514 = vand.u32 %v485, 4294901760
        %2515 = vmatprep.subr.mxu0 %v2514
        %v2516 = vand.u32 %v484, 4294901760
        %2517 = vmatpush1.msra.mxu0 %v2516
        %v2518 = vand.u32 %v489, 4294901760
        %2519 = vmatprep.subr.mxu0 %v2518
        %v2520 = vand.u32 %v488, 4294901760
        %2521 = vmatpush1.msra.mxu0 %v2520
        %v2522 = vand.u32 %v493, 4294901760
        %2523 = vmatprep.subr.mxu0 %v2522
        %v2524 = vand.u32 %v492, 4294901760
        %2525 = vmatpush1.msra.mxu0 %v2524
        %v2526 = vand.u32 %v497, 4294901760
        %2527 = vmatprep.subr.mxu0 %v2526
        %v2528 = vand.u32 %v496, 4294901760
        %2529 = vmatpush1.msra.mxu0 %v2528
        %v2530 = vand.u32 %v501, 4294901760
        %2531 = vmatprep.subr.mxu0 %v2530
        %v2532 = vand.u32 %v500, 4294901760
        %2533 = vmatpush1.msra.mxu0 %v2532
        %v2534 = vand.u32 %v373, 4294901760
        %v2535 = vsub.f32 %v373, %v2534
        %v2536 = vand.u32 %v2535, 4294901760
        %v2537 = vsub.f32 %v2535, %v2536
        %v2538 = vand.u32 %v2537, 4294901760
        %2539 = vmatprep.mubr.f32.mxu0 %v2538
        %v2540 = vand.u32 %v372, 4294901760
        %v2541 = vsub.f32 %v372, %v2540
        %v2542 = vand.u32 %v2541, 4294901760
        %v2543 = vsub.f32 %v2541, %v2542
        %v2544 = vand.u32 %v2543, 4294901760
        %2545 = vmatmul.mubr.f32.gmra.mrb[0].mxu0 %v2544
        %v2546 = vpop.f32.mrb[0].mxu0
        %v2547 = vadd.f32 %v1547, %v2546
        %v2548 = vpop.f32.mrb[0].mxu0
        %v2549 = vadd.f32 %v1549, %v2548
        %2550 = vdwg.mxu0
        %v2551 = vand.u32 %v377, 4294901760
        %v2552 = vsub.f32 %v377, %v2551
        %v2553 = vand.u32 %v2552, 4294901760
        %v2554 = vsub.f32 %v2552, %v2553
        %v2555 = vand.u32 %v2554, 4294901760
        %2556 = vmatprep.subr.mxu0 %v2555
        %v2557 = vand.u32 %v376, 4294901760
        %v2558 = vsub.f32 %v376, %v2557
        %v2559 = vand.u32 %v2558, 4294901760
        %v2560 = vsub.f32 %v2558, %v2559
        %v2561 = vand.u32 %v2560, 4294901760
        %2562 = vmatpush1.msra.mxu0 %v2561
        %v2563 = vand.u32 %v381, 4294901760
        %v2564 = vsub.f32 %v381, %v2563
        %v2565 = vand.u32 %v2564, 4294901760
        %v2566 = vsub.f32 %v2564, %v2565
        %v2567 = vand.u32 %v2566, 4294901760
        %2568 = vmatprep.subr.mxu0 %v2567
        %v2569 = vand.u32 %v380, 4294901760
        %v2570 = vsub.f32 %v380, %v2569
        %v2571 = vand.u32 %v2570, 4294901760
        %v2572 = vsub.f32 %v2570, %v2571
        %v2573 = vand.u32 %v2572, 4294901760
        %2574 = vmatpush1.msra.mxu0 %v2573
        %v2575 = vand.u32 %v385, 4294901760
        %v2576 = vsub.f32 %v385, %v2575
        %v2577 = vand.u32 %v2576, 4294901760
        %v2578 = vsub.f32 %v2576, %v2577
        %v2579 = vand.u32 %v2578, 4294901760
        %2580 = vmatprep.subr.mxu0 %v2579
        %v2581 = vand.u32 %v384, 4294901760
        %v2582 = vsub.f32 %v384, %v2581
        %v2583 = vand.u32 %v2582, 4294901760
        %v2584 = vsub.f32 %v2582, %v2583
        %v2585 = vand.u32 %v2584, 4294901760
        %2586 = vmatpush1.msra.mxu0 %v2585
        %v2587 = vand.u32 %v389, 4294901760
        %v2588 = vsub.f32 %v389, %v2587
        %v2589 = vand.u32 %v2588, 4294901760
        %v2590 = vsub.f32 %v2588, %v2589
        %v2591 = vand.u32 %v2590, 4294901760
        %2592 = vmatprep.subr.mxu0 %v2591
        %v2593 = vand.u32 %v388, 4294901760
        %v2594 = vsub.f32 %v388, %v2593
        %v2595 = vand.u32 %v2594, 4294901760
        %v2596 = vsub.f32 %v2594, %v2595
        %v2597 = vand.u32 %v2596, 4294901760
        %2598 = vmatpush1.msra.mxu0 %v2597
        %v2599 = vand.u32 %v393, 4294901760
        %v2600 = vsub.f32 %v393, %v2599
        %v2601 = vand.u32 %v2600, 4294901760
        %v2602 = vsub.f32 %v2600, %v2601
        %v2603 = vand.u32 %v2602, 4294901760
        %2604 = vmatprep.subr.mxu0 %v2603
        %v2605 = vand.u32 %v392, 4294901760
        %v2606 = vsub.f32 %v392, %v2605
        %v2607 = vand.u32 %v2606, 4294901760
        %v2608 = vsub.f32 %v2606, %v2607
        %v2609 = vand.u32 %v2608, 4294901760
        %2610 = vmatpush1.msra.mxu0 %v2609
        %v2611 = vand.u32 %v397, 4294901760
        %v2612 = vsub.f32 %v397, %v2611
        %v2613 = vand.u32 %v2612, 4294901760
        %v2614 = vsub.f32 %v2612, %v2613
        %v2615 = vand.u32 %v2614, 4294901760
        %2616 = vmatprep.subr.mxu0 %v2615
        %v2617 = vand.u32 %v396, 4294901760
        %v2618 = vsub.f32 %v396, %v2617
        %v2619 = vand.u32 %v2618, 4294901760
        %v2620 = vsub.f32 %v2618, %v2619
        %v2621 = vand.u32 %v2620, 4294901760
        %2622 = vmatpush1.msra.mxu0 %v2621
        %v2623 = vand.u32 %v401, 4294901760
        %v2624 = vsub.f32 %v401, %v2623
        %v2625 = vand.u32 %v2624, 4294901760
        %v2626 = vsub.f32 %v2624, %v2625
        %v2627 = vand.u32 %v2626, 4294901760
        %2628 = vmatprep.subr.mxu0 %v2627
        %v2629 = vand.u32 %v400, 4294901760
        %v2630 = vsub.f32 %v400, %v2629
        %v2631 = vand.u32 %v2630, 4294901760
        %v2632 = vsub.f32 %v2630, %v2631
        %v2633 = vand.u32 %v2632, 4294901760
        %2634 = vmatpush1.msra.mxu0 %v2633
        %v2635 = vand.u32 %v405, 4294901760
        %v2636 = vsub.f32 %v405, %v2635
        %v2637 = vand.u32 %v2636, 4294901760
        %v2638 = vsub.f32 %v2636, %v2637
        %v2639 = vand.u32 %v2638, 4294901760
        %2640 = vmatprep.subr.mxu0 %v2639
        %v2641 = vand.u32 %v404, 4294901760
        %v2642 = vsub.f32 %v404, %v2641
        %v2643 = vand.u32 %v2642, 4294901760
        %v2644 = vsub.f32 %v2642, %v2643
        %v2645 = vand.u32 %v2644, 4294901760
        %2646 = vmatpush1.msra.mxu0 %v2645
        %v2647 = vand.u32 %v409, 4294901760
        %v2648 = vsub.f32 %v409, %v2647
        %v2649 = vand.u32 %v2648, 4294901760
        %v2650 = vsub.f32 %v2648, %v2649
        %v2651 = vand.u32 %v2650, 4294901760
        %2652 = vmatprep.subr.mxu0 %v2651
        %v2653 = vand.u32 %v408, 4294901760
        %v2654 = vsub.f32 %v408, %v2653
        %v2655 = vand.u32 %v2654, 4294901760
        %v2656 = vsub.f32 %v2654, %v2655
        %v2657 = vand.u32 %v2656, 4294901760
        %2658 = vmatpush1.msra.mxu0 %v2657
        %v2659 = vand.u32 %v413, 4294901760
        %v2660 = vsub.f32 %v413, %v2659
        %v2661 = vand.u32 %v2660, 4294901760
        %v2662 = vsub.f32 %v2660, %v2661
        %v2663 = vand.u32 %v2662, 4294901760
        %2664 = vmatprep.subr.mxu0 %v2663
        %v2665 = vand.u32 %v412, 4294901760
        %v2666 = vsub.f32 %v412, %v2665
        %v2667 = vand.u32 %v2666, 4294901760
        %v2668 = vsub.f32 %v2666, %v2667
        %v2669 = vand.u32 %v2668, 4294901760
        %2670 = vmatpush1.msra.mxu0 %v2669
        %v2671 = vand.u32 %v417, 4294901760
        %v2672 = vsub.f32 %v417, %v2671
        %v2673 = vand.u32 %v2672, 4294901760
        %v2674 = vsub.f32 %v2672, %v2673
        %v2675 = vand.u32 %v2674, 4294901760
        %2676 = vmatprep.subr.mxu0 %v2675
        %v2677 = vand.u32 %v416, 4294901760
        %v2678 = vsub.f32 %v416, %v2677
        %v2679 = vand.u32 %v2678, 4294901760
        %v2680 = vsub.f32 %v2678, %v2679
        %v2681 = vand.u32 %v2680, 4294901760
        %2682 = vmatpush1.msra.mxu0 %v2681
        %v2683 = vand.u32 %v421, 4294901760
        %v2684 = vsub.f32 %v421, %v2683
        %v2685 = vand.u32 %v2684, 4294901760
        %v2686 = vsub.f32 %v2684, %v2685
        %v2687 = vand.u32 %v2686, 4294901760
        %2688 = vmatprep.subr.mxu0 %v2687
        %v2689 = vand.u32 %v420, 4294901760
        %v2690 = vsub.f32 %v420, %v2689
        %v2691 = vand.u32 %v2690, 4294901760
        %v2692 = vsub.f32 %v2690, %v2691
        %v2693 = vand.u32 %v2692, 4294901760
        %2694 = vmatpush1.msra.mxu0 %v2693
        %v2695 = vand.u32 %v425, 4294901760
        %v2696 = vsub.f32 %v425, %v2695
        %v2697 = vand.u32 %v2696, 4294901760
        %v2698 = vsub.f32 %v2696, %v2697
        %v2699 = vand.u32 %v2698, 4294901760
        %2700 = vmatprep.subr.mxu0 %v2699
        %v2701 = vand.u32 %v424, 4294901760
        %v2702 = vsub.f32 %v424, %v2701
        %v2703 = vand.u32 %v2702, 4294901760
        %v2704 = vsub.f32 %v2702, %v2703
        %v2705 = vand.u32 %v2704, 4294901760
        %2706 = vmatpush1.msra.mxu0 %v2705
        %v2707 = vand.u32 %v429, 4294901760
        %v2708 = vsub.f32 %v429, %v2707
        %v2709 = vand.u32 %v2708, 4294901760
        %v2710 = vsub.f32 %v2708, %v2709
        %v2711 = vand.u32 %v2710, 4294901760
        %2712 = vmatprep.subr.mxu0 %v2711
        %v2713 = vand.u32 %v428, 4294901760
        %v2714 = vsub.f32 %v428, %v2713
        %v2715 = vand.u32 %v2714, 4294901760
        %v2716 = vsub.f32 %v2714, %v2715
        %v2717 = vand.u32 %v2716, 4294901760
        %2718 = vmatpush1.msra.mxu0 %v2717
        %v2719 = vand.u32 %v433, 4294901760
        %v2720 = vsub.f32 %v433, %v2719
        %v2721 = vand.u32 %v2720, 4294901760
        %v2722 = vsub.f32 %v2720, %v2721
        %v2723 = vand.u32 %v2722, 4294901760
        %2724 = vmatprep.subr.mxu0 %v2723
        %v2725 = vand.u32 %v432, 4294901760
        %v2726 = vsub.f32 %v432, %v2725
        %v2727 = vand.u32 %v2726, 4294901760
        %v2728 = vsub.f32 %v2726, %v2727
        %v2729 = vand.u32 %v2728, 4294901760
        %2730 = vmatpush1.msra.mxu0 %v2729
        %v2731 = vand.u32 %v437, 4294901760
        %v2732 = vsub.f32 %v437, %v2731
        %v2733 = vand.u32 %v2732, 4294901760
        %v2734 = vsub.f32 %v2732, %v2733
        %v2735 = vand.u32 %v2734, 4294901760
        %2736 = vmatprep.subr.mxu0 %v2735
        %v2737 = vand.u32 %v436, 4294901760
        %v2738 = vsub.f32 %v436, %v2737
        %v2739 = vand.u32 %v2738, 4294901760
        %v2740 = vsub.f32 %v2738, %v2739
        %v2741 = vand.u32 %v2740, 4294901760
        %2742 = vmatpush1.msra.mxu0 %v2741
        %v2743 = vand.u32 %v441, 4294901760
        %v2744 = vsub.f32 %v441, %v2743
        %v2745 = vand.u32 %v2744, 4294901760
        %v2746 = vsub.f32 %v2744, %v2745
        %v2747 = vand.u32 %v2746, 4294901760
        %2748 = vmatprep.subr.mxu0 %v2747
        %v2749 = vand.u32 %v440, 4294901760
        %v2750 = vsub.f32 %v440, %v2749
        %v2751 = vand.u32 %v2750, 4294901760
        %v2752 = vsub.f32 %v2750, %v2751
        %v2753 = vand.u32 %v2752, 4294901760
        %2754 = vmatpush1.msra.mxu0 %v2753
        %v2755 = vand.u32 %v445, 4294901760
        %v2756 = vsub.f32 %v445, %v2755
        %v2757 = vand.u32 %v2756, 4294901760
        %v2758 = vsub.f32 %v2756, %v2757
        %v2759 = vand.u32 %v2758, 4294901760
        %2760 = vmatprep.subr.mxu0 %v2759
        %v2761 = vand.u32 %v444, 4294901760
        %v2762 = vsub.f32 %v444, %v2761
        %v2763 = vand.u32 %v2762, 4294901760
        %v2764 = vsub.f32 %v2762, %v2763
        %v2765 = vand.u32 %v2764, 4294901760
        %2766 = vmatpush1.msra.mxu0 %v2765
        %v2767 = vand.u32 %v449, 4294901760
        %v2768 = vsub.f32 %v449, %v2767
        %v2769 = vand.u32 %v2768, 4294901760
        %v2770 = vsub.f32 %v2768, %v2769
        %v2771 = vand.u32 %v2770, 4294901760
        %2772 = vmatprep.subr.mxu0 %v2771
        %v2773 = vand.u32 %v448, 4294901760
        %v2774 = vsub.f32 %v448, %v2773
        %v2775 = vand.u32 %v2774, 4294901760
        %v2776 = vsub.f32 %v2774, %v2775
        %v2777 = vand.u32 %v2776, 4294901760
        %2778 = vmatpush1.msra.mxu0 %v2777
        %v2779 = vand.u32 %v453, 4294901760
        %v2780 = vsub.f32 %v453, %v2779
        %v2781 = vand.u32 %v2780, 4294901760
        %v2782 = vsub.f32 %v2780, %v2781
        %v2783 = vand.u32 %v2782, 4294901760
        %2784 = vmatprep.subr.mxu0 %v2783
        %v2785 = vand.u32 %v452, 4294901760
        %v2786 = vsub.f32 %v452, %v2785
        %v2787 = vand.u32 %v2786, 4294901760
        %v2788 = vsub.f32 %v2786, %v2787
        %v2789 = vand.u32 %v2788, 4294901760
        %2790 = vmatpush1.msra.mxu0 %v2789
        %v2791 = vand.u32 %v457, 4294901760
        %v2792 = vsub.f32 %v457, %v2791
        %v2793 = vand.u32 %v2792, 4294901760
        %v2794 = vsub.f32 %v2792, %v2793
        %v2795 = vand.u32 %v2794, 4294901760
        %2796 = vmatprep.subr.mxu0 %v2795
        %v2797 = vand.u32 %v456, 4294901760
        %v2798 = vsub.f32 %v456, %v2797
        %v2799 = vand.u32 %v2798, 4294901760
        %v2800 = vsub.f32 %v2798, %v2799
        %v2801 = vand.u32 %v2800, 4294901760
        %2802 = vmatpush1.msra.mxu0 %v2801
        %v2803 = vand.u32 %v461, 4294901760
        %v2804 = vsub.f32 %v461, %v2803
        %v2805 = vand.u32 %v2804, 4294901760
        %v2806 = vsub.f32 %v2804, %v2805
        %v2807 = vand.u32 %v2806, 4294901760
        %2808 = vmatprep.subr.mxu0 %v2807
        %v2809 = vand.u32 %v460, 4294901760
        %v2810 = vsub.f32 %v460, %v2809
        %v2811 = vand.u32 %v2810, 4294901760
        %v2812 = vsub.f32 %v2810, %v2811
        %v2813 = vand.u32 %v2812, 4294901760
        %2814 = vmatpush1.msra.mxu0 %v2813
        %v2815 = vand.u32 %v465, 4294901760
        %v2816 = vsub.f32 %v465, %v2815
        %v2817 = vand.u32 %v2816, 4294901760
        %v2818 = vsub.f32 %v2816, %v2817
        %v2819 = vand.u32 %v2818, 4294901760
        %2820 = vmatprep.subr.mxu0 %v2819
        %v2821 = vand.u32 %v464, 4294901760
        %v2822 = vsub.f32 %v464, %v2821
        %v2823 = vand.u32 %v2822, 4294901760
        %v2824 = vsub.f32 %v2822, %v2823
        %v2825 = vand.u32 %v2824, 4294901760
        %2826 = vmatpush1.msra.mxu0 %v2825
        %v2827 = vand.u32 %v469, 4294901760
        %v2828 = vsub.f32 %v469, %v2827
        %v2829 = vand.u32 %v2828, 4294901760
        %v2830 = vsub.f32 %v2828, %v2829
        %v2831 = vand.u32 %v2830, 4294901760
        %2832 = vmatprep.subr.mxu0 %v2831
        %v2833 = vand.u32 %v468, 4294901760
        %v2834 = vsub.f32 %v468, %v2833
        %v2835 = vand.u32 %v2834, 4294901760
        %v2836 = vsub.f32 %v2834, %v2835
        %v2837 = vand.u32 %v2836, 4294901760
        %2838 = vmatpush1.msra.mxu0 %v2837
        %v2839 = vand.u32 %v473, 4294901760
        %v2840 = vsub.f32 %v473, %v2839
        %v2841 = vand.u32 %v2840, 4294901760
        %v2842 = vsub.f32 %v2840, %v2841
        %v2843 = vand.u32 %v2842, 4294901760
        %2844 = vmatprep.subr.mxu0 %v2843
        %v2845 = vand.u32 %v472, 4294901760
        %v2846 = vsub.f32 %v472, %v2845
        %v2847 = vand.u32 %v2846, 4294901760
        %v2848 = vsub.f32 %v2846, %v2847
        %v2849 = vand.u32 %v2848, 4294901760
        %2850 = vmatpush1.msra.mxu0 %v2849
        %v2851 = vand.u32 %v477, 4294901760
        %v2852 = vsub.f32 %v477, %v2851
        %v2853 = vand.u32 %v2852, 4294901760
        %v2854 = vsub.f32 %v2852, %v2853
        %v2855 = vand.u32 %v2854, 4294901760
        %2856 = vmatprep.subr.mxu0 %v2855
        %v2857 = vand.u32 %v476, 4294901760
        %v2858 = vsub.f32 %v476, %v2857
        %v2859 = vand.u32 %v2858, 4294901760
        %v2860 = vsub.f32 %v2858, %v2859
        %v2861 = vand.u32 %v2860, 4294901760
        %2862 = vmatpush1.msra.mxu0 %v2861
        %v2863 = vand.u32 %v481, 4294901760
        %v2864 = vsub.f32 %v481, %v2863
        %v2865 = vand.u32 %v2864, 4294901760
        %v2866 = vsub.f32 %v2864, %v2865
        %v2867 = vand.u32 %v2866, 4294901760
        %2868 = vmatprep.subr.mxu0 %v2867
        %v2869 = vand.u32 %v480, 4294901760
        %v2870 = vsub.f32 %v480, %v2869
        %v2871 = vand.u32 %v2870, 4294901760
        %v2872 = vsub.f32 %v2870, %v2871
        %v2873 = vand.u32 %v2872, 4294901760
        %2874 = vmatpush1.msra.mxu0 %v2873
        %v2875 = vand.u32 %v485, 4294901760
        %v2876 = vsub.f32 %v485, %v2875
        %v2877 = vand.u32 %v2876, 4294901760
        %v2878 = vsub.f32 %v2876, %v2877
        %v2879 = vand.u32 %v2878, 4294901760
        %2880 = vmatprep.subr.mxu0 %v2879
        %v2881 = vand.u32 %v484, 4294901760
        %v2882 = vsub.f32 %v484, %v2881
        %v2883 = vand.u32 %v2882, 4294901760
        %v2884 = vsub.f32 %v2882, %v2883
        %v2885 = vand.u32 %v2884, 4294901760
        %2886 = vmatpush1.msra.mxu0 %v2885
        %v2887 = vand.u32 %v489, 4294901760
        %v2888 = vsub.f32 %v489, %v2887
        %v2889 = vand.u32 %v2888, 4294901760
        %v2890 = vsub.f32 %v2888, %v2889
        %v2891 = vand.u32 %v2890, 4294901760
        %2892 = vmatprep.subr.mxu0 %v2891
        %v2893 = vand.u32 %v488, 4294901760
        %v2894 = vsub.f32 %v488, %v2893
        %v2895 = vand.u32 %v2894, 4294901760
        %v2896 = vsub.f32 %v2894, %v2895
        %v2897 = vand.u32 %v2896, 4294901760
        %2898 = vmatpush1.msra.mxu0 %v2897
        %v2899 = vand.u32 %v493, 4294901760
        %v2900 = vsub.f32 %v493, %v2899
        %v2901 = vand.u32 %v2900, 4294901760
        %v2902 = vsub.f32 %v2900, %v2901
        %v2903 = vand.u32 %v2902, 4294901760
        %2904 = vmatprep.subr.mxu0 %v2903
        %v2905 = vand.u32 %v492, 4294901760
        %v2906 = vsub.f32 %v492, %v2905
        %v2907 = vand.u32 %v2906, 4294901760
        %v2908 = vsub.f32 %v2906, %v2907
        %v2909 = vand.u32 %v2908, 4294901760
        %2910 = vmatpush1.msra.mxu0 %v2909
        %v2911 = vand.u32 %v497, 4294901760
        %v2912 = vsub.f32 %v497, %v2911
        %v2913 = vand.u32 %v2912, 4294901760
        %v2914 = vsub.f32 %v2912, %v2913
        %v2915 = vand.u32 %v2914, 4294901760
        %2916 = vmatprep.subr.mxu0 %v2915
        %v2917 = vand.u32 %v496, 4294901760
        %v2918 = vsub.f32 %v496, %v2917
        %v2919 = vand.u32 %v2918, 4294901760
        %v2920 = vsub.f32 %v2918, %v2919
        %v2921 = vand.u32 %v2920, 4294901760
        %2922 = vmatpush1.msra.mxu0 %v2921
        %v2923 = vand.u32 %v501, 4294901760
        %v2924 = vsub.f32 %v501, %v2923
        %v2925 = vand.u32 %v2924, 4294901760
        %v2926 = vsub.f32 %v2924, %v2925
        %v2927 = vand.u32 %v2926, 4294901760
        %2928 = vmatprep.subr.mxu0 %v2927
        %v2929 = vand.u32 %v500, 4294901760
        %v2930 = vsub.f32 %v500, %v2929
        %v2931 = vand.u32 %v2930, 4294901760
        %v2932 = vsub.f32 %v2930, %v2931
        %v2933 = vand.u32 %v2932, 4294901760
        %2934 = vmatpush1.msra.mxu0 %v2933
        %v2935 = vand.u32 %v373, 4294901760
        %2936 = vmatprep.mubr.f32.mxu0 %v2935
        %v2937 = vand.u32 %v372, 4294901760
        %2938 = vmatmul.mubr.f32.gmra.mrb[0].mxu0 %v2937
        %v2939 = vpop.f32.mrb[0].mxu0
        %v2940 = vadd.f32 %v2547, %v2939
        %v2941 = vpop.f32.mrb[0].mxu0
        %v2942 = vadd.f32 %v2549, %v2941
        %2943 = vdwg.mxu0
        %v2944 = vand.u32 %v377, 4294901760
        %v2945 = vsub.f32 %v377, %v2944
        %2946 = vmatprep.subr.mxu0 %v2945
        %v2947 = vand.u32 %v376, 4294901760
        %v2948 = vsub.f32 %v376, %v2947
        %2949 = vmatpush1.msra.mxu0 %v2948
        %v2950 = vand.u32 %v381, 4294901760
        %v2951 = vsub.f32 %v381, %v2950
        %2952 = vmatprep.subr.mxu0 %v2951
        %v2953 = vand.u32 %v380, 4294901760
        %v2954 = vsub.f32 %v380, %v2953
        %2955 = vmatpush1.msra.mxu0 %v2954
        %v2956 = vand.u32 %v385, 4294901760
        %v2957 = vsub.f32 %v385, %v2956
        %2958 = vmatprep.subr.mxu0 %v2957
        %v2959 = vand.u32 %v384, 4294901760
        %v2960 = vsub.f32 %v384, %v2959
        %2961 = vmatpush1.msra.mxu0 %v2960
        %v2962 = vand.u32 %v389, 4294901760
        %v2963 = vsub.f32 %v389, %v2962
        %2964 = vmatprep.subr.mxu0 %v2963
        %v2965 = vand.u32 %v388, 4294901760
        %v2966 = vsub.f32 %v388, %v2965
        %2967 = vmatpush1.msra.mxu0 %v2966
        %v2968 = vand.u32 %v393, 4294901760
        %v2969 = vsub.f32 %v393, %v2968
        %2970 = vmatprep.subr.mxu0 %v2969
        %v2971 = vand.u32 %v392, 4294901760
        %v2972 = vsub.f32 %v392, %v2971
        %2973 = vmatpush1.msra.mxu0 %v2972
        %v2974 = vand.u32 %v397, 4294901760
        %v2975 = vsub.f32 %v397, %v2974
        %2976 = vmatprep.subr.mxu0 %v2975
        %v2977 = vand.u32 %v396, 4294901760
        %v2978 = vsub.f32 %v396, %v2977
        %2979 = vmatpush1.msra.mxu0 %v2978
        %v2980 = vand.u32 %v401, 4294901760
        %v2981 = vsub.f32 %v401, %v2980
        %2982 = vmatprep.subr.mxu0 %v2981
        %v2983 = vand.u32 %v400, 4294901760
        %v2984 = vsub.f32 %v400, %v2983
        %2985 = vmatpush1.msra.mxu0 %v2984
        %v2986 = vand.u32 %v405, 4294901760
        %v2987 = vsub.f32 %v405, %v2986
        %2988 = vmatprep.subr.mxu0 %v2987
        %v2989 = vand.u32 %v404, 4294901760
        %v2990 = vsub.f32 %v404, %v2989
        %2991 = vmatpush1.msra.mxu0 %v2990
        %v2992 = vand.u32 %v409, 4294901760
        %v2993 = vsub.f32 %v409, %v2992
        %2994 = vmatprep.subr.mxu0 %v2993
        %v2995 = vand.u32 %v408, 4294901760
        %v2996 = vsub.f32 %v408, %v2995
        %2997 = vmatpush1.msra.mxu0 %v2996
        %v2998 = vand.u32 %v413, 4294901760
        %v2999 = vsub.f32 %v413, %v2998
        %3000 = vmatprep.subr.mxu0 %v2999
        %v3001 = vand.u32 %v412, 4294901760
        %v3002 = vsub.f32 %v412, %v3001
        %3003 = vmatpush1.msra.mxu0 %v3002
        %v3004 = vand.u32 %v417, 4294901760
        %v3005 = vsub.f32 %v417, %v3004
        %3006 = vmatprep.subr.mxu0 %v3005
        %v3007 = vand.u32 %v416, 4294901760
        %v3008 = vsub.f32 %v416, %v3007
        %3009 = vmatpush1.msra.mxu0 %v3008
        %v3010 = vand.u32 %v421, 4294901760
        %v3011 = vsub.f32 %v421, %v3010
        %3012 = vmatprep.subr.mxu0 %v3011
        %v3013 = vand.u32 %v420, 4294901760
        %v3014 = vsub.f32 %v420, %v3013
        %3015 = vmatpush1.msra.mxu0 %v3014
        %v3016 = vand.u32 %v425, 4294901760
        %v3017 = vsub.f32 %v425, %v3016
        %3018 = vmatprep.subr.mxu0 %v3017
        %v3019 = vand.u32 %v424, 4294901760
        %v3020 = vsub.f32 %v424, %v3019
        %3021 = vmatpush1.msra.mxu0 %v3020
        %v3022 = vand.u32 %v429, 4294901760
        %v3023 = vsub.f32 %v429, %v3022
        %3024 = vmatprep.subr.mxu0 %v3023
        %v3025 = vand.u32 %v428, 4294901760
        %v3026 = vsub.f32 %v428, %v3025
        %3027 = vmatpush1.msra.mxu0 %v3026
        %v3028 = vand.u32 %v433, 4294901760
        %v3029 = vsub.f32 %v433, %v3028
        %3030 = vmatprep.subr.mxu0 %v3029
        %v3031 = vand.u32 %v432, 4294901760
        %v3032 = vsub.f32 %v432, %v3031
        %3033 = vmatpush1.msra.mxu0 %v3032
        %v3034 = vand.u32 %v437, 4294901760
        %v3035 = vsub.f32 %v437, %v3034
        %3036 = vmatprep.subr.mxu0 %v3035
        %v3037 = vand.u32 %v436, 4294901760
        %v3038 = vsub.f32 %v436, %v3037
        %3039 = vmatpush1.msra.mxu0 %v3038
        %v3040 = vand.u32 %v441, 4294901760
        %v3041 = vsub.f32 %v441, %v3040
        %3042 = vmatprep.subr.mxu0 %v3041
        %v3043 = vand.u32 %v440, 4294901760
        %v3044 = vsub.f32 %v440, %v3043
        %3045 = vmatpush1.msra.mxu0 %v3044
        %v3046 = vand.u32 %v445, 4294901760
        %v3047 = vsub.f32 %v445, %v3046
        %3048 = vmatprep.subr.mxu0 %v3047
        %v3049 = vand.u32 %v444, 4294901760
        %v3050 = vsub.f32 %v444, %v3049
        %3051 = vmatpush1.msra.mxu0 %v3050
        %v3052 = vand.u32 %v449, 4294901760
        %v3053 = vsub.f32 %v449, %v3052
        %3054 = vmatprep.subr.mxu0 %v3053
        %v3055 = vand.u32 %v448, 4294901760
        %v3056 = vsub.f32 %v448, %v3055
        %3057 = vmatpush1.msra.mxu0 %v3056
        %v3058 = vand.u32 %v453, 4294901760
        %v3059 = vsub.f32 %v453, %v3058
        %3060 = vmatprep.subr.mxu0 %v3059
        %v3061 = vand.u32 %v452, 4294901760
        %v3062 = vsub.f32 %v452, %v3061
        %3063 = vmatpush1.msra.mxu0 %v3062
        %v3064 = vand.u32 %v457, 4294901760
        %v3065 = vsub.f32 %v457, %v3064
        %3066 = vmatprep.subr.mxu0 %v3065
        %v3067 = vand.u32 %v456, 4294901760
        %v3068 = vsub.f32 %v456, %v3067
        %3069 = vmatpush1.msra.mxu0 %v3068
        %v3070 = vand.u32 %v461, 4294901760
        %v3071 = vsub.f32 %v461, %v3070
        %3072 = vmatprep.subr.mxu0 %v3071
        %v3073 = vand.u32 %v460, 4294901760
        %v3074 = vsub.f32 %v460, %v3073
        %3075 = vmatpush1.msra.mxu0 %v3074
        %v3076 = vand.u32 %v465, 4294901760
        %v3077 = vsub.f32 %v465, %v3076
        %3078 = vmatprep.subr.mxu0 %v3077
        %v3079 = vand.u32 %v464, 4294901760
        %v3080 = vsub.f32 %v464, %v3079
        %3081 = vmatpush1.msra.mxu0 %v3080
        %v3082 = vand.u32 %v469, 4294901760
        %v3083 = vsub.f32 %v469, %v3082
        %3084 = vmatprep.subr.mxu0 %v3083
        %v3085 = vand.u32 %v468, 4294901760
        %v3086 = vsub.f32 %v468, %v3085
        %3087 = vmatpush1.msra.mxu0 %v3086
        %v3088 = vand.u32 %v473, 4294901760
        %v3089 = vsub.f32 %v473, %v3088
        %3090 = vmatprep.subr.mxu0 %v3089
        %v3091 = vand.u32 %v472, 4294901760
        %v3092 = vsub.f32 %v472, %v3091
        %3093 = vmatpush1.msra.mxu0 %v3092
        %v3094 = vand.u32 %v477, 4294901760
        %v3095 = vsub.f32 %v477, %v3094
        %3096 = vmatprep.subr.mxu0 %v3095
        %v3097 = vand.u32 %v476, 4294901760
        %v3098 = vsub.f32 %v476, %v3097
        %3099 = vmatpush1.msra.mxu0 %v3098
        %v3100 = vand.u32 %v481, 4294901760
        %v3101 = vsub.f32 %v481, %v3100
        %3102 = vmatprep.subr.mxu0 %v3101
        %v3103 = vand.u32 %v480, 4294901760
        %v3104 = vsub.f32 %v480, %v3103
        %3105 = vmatpush1.msra.mxu0 %v3104
        %v3106 = vand.u32 %v485, 4294901760
        %v3107 = vsub.f32 %v485, %v3106
        %3108 = vmatprep.subr.mxu0 %v3107
        %v3109 = vand.u32 %v484, 4294901760
        %v3110 = vsub.f32 %v484, %v3109
        %3111 = vmatpush1.msra.mxu0 %v3110
        %v3112 = vand.u32 %v489, 4294901760
        %v3113 = vsub.f32 %v489, %v3112
        %3114 = vmatprep.subr.mxu0 %v3113
        %v3115 = vand.u32 %v488, 4294901760
        %v3116 = vsub.f32 %v488, %v3115
        %3117 = vmatpush1.msra.mxu0 %v3116
        %v3118 = vand.u32 %v493, 4294901760
        %v3119 = vsub.f32 %v493, %v3118
        %3120 = vmatprep.subr.mxu0 %v3119
        %v3121 = vand.u32 %v492, 4294901760
        %v3122 = vsub.f32 %v492, %v3121
        %3123 = vmatpush1.msra.mxu0 %v3122
        %v3124 = vand.u32 %v497, 4294901760
        %v3125 = vsub.f32 %v497, %v3124
        %3126 = vmatprep.subr.mxu0 %v3125
        %v3127 = vand.u32 %v496, 4294901760
        %v3128 = vsub.f32 %v496, %v3127
        %3129 = vmatpush1.msra.mxu0 %v3128
        %v3130 = vand.u32 %v501, 4294901760
        %v3131 = vsub.f32 %v501, %v3130
        %3132 = vmatprep.subr.mxu0 %v3131
        %v3133 = vand.u32 %v500, 4294901760
        %v3134 = vsub.f32 %v500, %v3133
        %3135 = vmatpush1.msra.mxu0 %v3134
        %v3136 = vand.u32 %v373, 4294901760
        %v3137 = vsub.f32 %v373, %v3136
        %3138 = vmatprep.mubr.f32.mxu0 %v3137
        %v3139 = vand.u32 %v372, 4294901760
        %v3140 = vsub.f32 %v372, %v3139
        %3141 = vmatmul.mubr.f32.gmra.mrb[0].mxu0 %v3140
        %v3142 = vpop.f32.mrb[0].mxu0
        %v3143 = vadd.f32 %v2940, %v3142
        %v3144 = vpop.f32.mrb[0].mxu0
        %v3145 = vadd.f32 %v2942, %v3144
        %3146 = vdwg.mxu0
        %v3147 = vand.u32 %v377, 4294901760
        %3148 = vmatprep.subr.mxu0 %v3147
        %v3149 = vand.u32 %v376, 4294901760
        %3150 = vmatpush1.msra.mxu0 %v3149
        %v3151 = vand.u32 %v381, 4294901760
        %3152 = vmatprep.subr.mxu0 %v3151
        %v3153 = vand.u32 %v380, 4294901760
        %3154 = vmatpush1.msra.mxu0 %v3153
        %v3155 = vand.u32 %v385, 4294901760
        %3156 = vmatprep.subr.mxu0 %v3155
        %v3157 = vand.u32 %v384, 4294901760
        %3158 = vmatpush1.msra.mxu0 %v3157
        %v3159 = vand.u32 %v389, 4294901760
        %3160 = vmatprep.subr.mxu0 %v3159
        %v3161 = vand.u32 %v388, 4294901760
        %3162 = vmatpush1.msra.mxu0 %v3161
        %v3163 = vand.u32 %v393, 4294901760
        %3164 = vmatprep.subr.mxu0 %v3163
        %v3165 = vand.u32 %v392, 4294901760
        %3166 = vmatpush1.msra.mxu0 %v3165
        %v3167 = vand.u32 %v397, 4294901760
        %3168 = vmatprep.subr.mxu0 %v3167
        %v3169 = vand.u32 %v396, 4294901760
        %3170 = vmatpush1.msra.mxu0 %v3169
        %v3171 = vand.u32 %v401, 4294901760
        %3172 = vmatprep.subr.mxu0 %v3171
        %v3173 = vand.u32 %v400, 4294901760
        %3174 = vmatpush1.msra.mxu0 %v3173
        %v3175 = vand.u32 %v405, 4294901760
        %3176 = vmatprep.subr.mxu0 %v3175
        %v3177 = vand.u32 %v404, 4294901760
        %3178 = vmatpush1.msra.mxu0 %v3177
        %v3179 = vand.u32 %v409, 4294901760
        %3180 = vmatprep.subr.mxu0 %v3179
        %v3181 = vand.u32 %v408, 4294901760
        %3182 = vmatpush1.msra.mxu0 %v3181
        %v3183 = vand.u32 %v413, 4294901760
        %3184 = vmatprep.subr.mxu0 %v3183
        %v3185 = vand.u32 %v412, 4294901760
        %3186 = vmatpush1.msra.mxu0 %v3185
        %v3187 = vand.u32 %v417, 4294901760
        %3188 = vmatprep.subr.mxu0 %v3187
        %v3189 = vand.u32 %v416, 4294901760
        %3190 = vmatpush1.msra.mxu0 %v3189
        %v3191 = vand.u32 %v421, 4294901760
        %3192 = vmatprep.subr.mxu0 %v3191
        %v3193 = vand.u32 %v420, 4294901760
        %3194 = vmatpush1.msra.mxu0 %v3193
        %v3195 = vand.u32 %v425, 4294901760
        %3196 = vmatprep.subr.mxu0 %v3195
        %v3197 = vand.u32 %v424, 4294901760
        %3198 = vmatpush1.msra.mxu0 %v3197
        %v3199 = vand.u32 %v429, 4294901760
        %3200 = vmatprep.subr.mxu0 %v3199
        %v3201 = vand.u32 %v428, 4294901760
        %3202 = vmatpush1.msra.mxu0 %v3201
        %v3203 = vand.u32 %v433, 4294901760
        %3204 = vmatprep.subr.mxu0 %v3203
        %v3205 = vand.u32 %v432, 4294901760
        %3206 = vmatpush1.msra.mxu0 %v3205
        %v3207 = vand.u32 %v437, 4294901760
        %3208 = vmatprep.subr.mxu0 %v3207
        %v3209 = vand.u32 %v436, 4294901760
        %3210 = vmatpush1.msra.mxu0 %v3209
        %v3211 = vand.u32 %v441, 4294901760
        %3212 = vmatprep.subr.mxu0 %v3211
        %v3213 = vand.u32 %v440, 4294901760
        %3214 = vmatpush1.msra.mxu0 %v3213
        %v3215 = vand.u32 %v445, 4294901760
        %3216 = vmatprep.subr.mxu0 %v3215
        %v3217 = vand.u32 %v444, 4294901760
        %3218 = vmatpush1.msra.mxu0 %v3217
        %v3219 = vand.u32 %v449, 4294901760
        %3220 = vmatprep.subr.mxu0 %v3219
        %v3221 = vand.u32 %v448, 4294901760
        %3222 = vmatpush1.msra.mxu0 %v3221
        %v3223 = vand.u32 %v453, 4294901760
        %3224 = vmatprep.subr.mxu0 %v3223
        %v3225 = vand.u32 %v452, 4294901760
        %3226 = vmatpush1.msra.mxu0 %v3225
        %v3227 = vand.u32 %v457, 4294901760
        %3228 = vmatprep.subr.mxu0 %v3227
        %v3229 = vand.u32 %v456, 4294901760
        %3230 = vmatpush1.msra.mxu0 %v3229
        %v3231 = vand.u32 %v461, 4294901760
        %3232 = vmatprep.subr.mxu0 %v3231
        %v3233 = vand.u32 %v460, 4294901760
        %3234 = vmatpush1.msra.mxu0 %v3233
        %v3235 = vand.u32 %v465, 4294901760
        %3236 = vmatprep.subr.mxu0 %v3235
        %v3237 = vand.u32 %v464, 4294901760
        %3238 = vmatpush1.msra.mxu0 %v3237
        %v3239 = vand.u32 %v469, 4294901760
        %3240 = vmatprep.subr.mxu0 %v3239
        %v3241 = vand.u32 %v468, 4294901760
        %3242 = vmatpush1.msra.mxu0 %v3241
        %v3243 = vand.u32 %v473, 4294901760
        %3244 = vmatprep.subr.mxu0 %v3243
        %v3245 = vand.u32 %v472, 4294901760
        %3246 = vmatpush1.msra.mxu0 %v3245
        %v3247 = vand.u32 %v477, 4294901760
        %3248 = vmatprep.subr.mxu0 %v3247
        %v3249 = vand.u32 %v476, 4294901760
        %3250 = vmatpush1.msra.mxu0 %v3249
        %v3251 = vand.u32 %v481, 4294901760
        %3252 = vmatprep.subr.mxu0 %v3251
        %v3253 = vand.u32 %v480, 4294901760
        %3254 = vmatpush1.msra.mxu0 %v3253
        %v3255 = vand.u32 %v485, 4294901760
        %3256 = vmatprep.subr.mxu0 %v3255
        %v3257 = vand.u32 %v484, 4294901760
        %3258 = vmatpush1.msra.mxu0 %v3257
        %v3259 = vand.u32 %v489, 4294901760
        %3260 = vmatprep.subr.mxu0 %v3259
        %v3261 = vand.u32 %v488, 4294901760
        %3262 = vmatpush1.msra.mxu0 %v3261
        %v3263 = vand.u32 %v493, 4294901760
        %3264 = vmatprep.subr.mxu0 %v3263
        %v3265 = vand.u32 %v492, 4294901760
        %3266 = vmatpush1.msra.mxu0 %v3265
        %v3267 = vand.u32 %v497, 4294901760
        %3268 = vmatprep.subr.mxu0 %v3267
        %v3269 = vand.u32 %v496, 4294901760
        %3270 = vmatpush1.msra.mxu0 %v3269
        %v3271 = vand.u32 %v501, 4294901760
        %3272 = vmatprep.subr.mxu0 %v3271
        %v3273 = vand.u32 %v500, 4294901760
        %3274 = vmatpush1.msra.mxu0 %v3273
        %v3275 = vand.u32 %v373, 4294901760
        %v3276 = vsub.f32 %v373, %v3275
        %v3277 = vand.u32 %v3276, 4294901760
        %3278 = vmatprep.mubr.f32.mxu0 %v3277
        %v3279 = vand.u32 %v372, 4294901760
        %v3280 = vsub.f32 %v372, %v3279
        %v3281 = vand.u32 %v3280, 4294901760
        %3282 = vmatmul.mubr.f32.gmra.mrb[0].mxu0 %v3281
        %v3283 = vpop.f32.mrb[0].mxu0
        %v3284 = vadd.f32 %v3143, %v3283
        %v3285 = vpop.f32.mrb[0].mxu0
        %v3286 = vadd.f32 %v3145, %v3285
        %3287 = vdwg.mxu0
        %v3288 = vand.u32 %v377, 4294901760
        %v3289 = vsub.f32 %v377, %v3288
        %v3290 = vand.u32 %v3289, 4294901760
        %3291 = vmatprep.subr.mxu0 %v3290
        %v3292 = vand.u32 %v376, 4294901760
        %v3293 = vsub.f32 %v376, %v3292
        %v3294 = vand.u32 %v3293, 4294901760
        %3295 = vmatpush1.msra.mxu0 %v3294
        %v3296 = vand.u32 %v381, 4294901760
        %v3297 = vsub.f32 %v381, %v3296
        %v3298 = vand.u32 %v3297, 4294901760
        %3299 = vmatprep.subr.mxu0 %v3298
        %v3300 = vand.u32 %v380, 4294901760
        %v3301 = vsub.f32 %v380, %v3300
        %v3302 = vand.u32 %v3301, 4294901760
        %3303 = vmatpush1.msra.mxu0 %v3302
        %v3304 = vand.u32 %v385, 4294901760
        %v3305 = vsub.f32 %v385, %v3304
        %v3306 = vand.u32 %v3305, 4294901760
        %3307 = vmatprep.subr.mxu0 %v3306
        %v3308 = vand.u32 %v384, 4294901760
        %v3309 = vsub.f32 %v384, %v3308
        %v3310 = vand.u32 %v3309, 4294901760
        %3311 = vmatpush1.msra.mxu0 %v3310
        %v3312 = vand.u32 %v389, 4294901760
        %v3313 = vsub.f32 %v389, %v3312
        %v3314 = vand.u32 %v3313, 4294901760
        %3315 = vmatprep.subr.mxu0 %v3314
        %v3316 = vand.u32 %v388, 4294901760
        %v3317 = vsub.f32 %v388, %v3316
        %v3318 = vand.u32 %v3317, 4294901760
        %3319 = vmatpush1.msra.mxu0 %v3318
        %v3320 = vand.u32 %v393, 4294901760
        %v3321 = vsub.f32 %v393, %v3320
        %v3322 = vand.u32 %v3321, 4294901760
        %3323 = vmatprep.subr.mxu0 %v3322
        %v3324 = vand.u32 %v392, 4294901760
        %v3325 = vsub.f32 %v392, %v3324
        %v3326 = vand.u32 %v3325, 4294901760
        %3327 = vmatpush1.msra.mxu0 %v3326
        %v3328 = vand.u32 %v397, 4294901760
        %v3329 = vsub.f32 %v397, %v3328
        %v3330 = vand.u32 %v3329, 4294901760
        %3331 = vmatprep.subr.mxu0 %v3330
        %v3332 = vand.u32 %v396, 4294901760
        %v3333 = vsub.f32 %v396, %v3332
        %v3334 = vand.u32 %v3333, 4294901760
        %3335 = vmatpush1.msra.mxu0 %v3334
        %v3336 = vand.u32 %v401, 4294901760
        %v3337 = vsub.f32 %v401, %v3336
        %v3338 = vand.u32 %v3337, 4294901760
        %3339 = vmatprep.subr.mxu0 %v3338
        %v3340 = vand.u32 %v400, 4294901760
        %v3341 = vsub.f32 %v400, %v3340
        %v3342 = vand.u32 %v3341, 4294901760
        %3343 = vmatpush1.msra.mxu0 %v3342
        %v3344 = vand.u32 %v405, 4294901760
        %v3345 = vsub.f32 %v405, %v3344
        %v3346 = vand.u32 %v3345, 4294901760
        %3347 = vmatprep.subr.mxu0 %v3346
        %v3348 = vand.u32 %v404, 4294901760
        %v3349 = vsub.f32 %v404, %v3348
        %v3350 = vand.u32 %v3349, 4294901760
        %3351 = vmatpush1.msra.mxu0 %v3350
        %v3352 = vand.u32 %v409, 4294901760
        %v3353 = vsub.f32 %v409, %v3352
        %v3354 = vand.u32 %v3353, 4294901760
        %3355 = vmatprep.subr.mxu0 %v3354
        %v3356 = vand.u32 %v408, 4294901760
        %v3357 = vsub.f32 %v408, %v3356
        %v3358 = vand.u32 %v3357, 4294901760
        %3359 = vmatpush1.msra.mxu0 %v3358
        %v3360 = vand.u32 %v413, 4294901760
        %v3361 = vsub.f32 %v413, %v3360
        %v3362 = vand.u32 %v3361, 4294901760
        %3363 = vmatprep.subr.mxu0 %v3362
        %v3364 = vand.u32 %v412, 4294901760
        %v3365 = vsub.f32 %v412, %v3364
        %v3366 = vand.u32 %v3365, 4294901760
        %3367 = vmatpush1.msra.mxu0 %v3366
        %v3368 = vand.u32 %v417, 4294901760
        %v3369 = vsub.f32 %v417, %v3368
        %v3370 = vand.u32 %v3369, 4294901760
        %3371 = vmatprep.subr.mxu0 %v3370
        %v3372 = vand.u32 %v416, 4294901760
        %v3373 = vsub.f32 %v416, %v3372
        %v3374 = vand.u32 %v3373, 4294901760
        %3375 = vmatpush1.msra.mxu0 %v3374
        %v3376 = vand.u32 %v421, 4294901760
        %v3377 = vsub.f32 %v421, %v3376
        %v3378 = vand.u32 %v3377, 4294901760
        %3379 = vmatprep.subr.mxu0 %v3378
        %v3380 = vand.u32 %v420, 4294901760
        %v3381 = vsub.f32 %v420, %v3380
        %v3382 = vand.u32 %v3381, 4294901760
        %3383 = vmatpush1.msra.mxu0 %v3382
        %v3384 = vand.u32 %v425, 4294901760
        %v3385 = vsub.f32 %v425, %v3384
        %v3386 = vand.u32 %v3385, 4294901760
        %3387 = vmatprep.subr.mxu0 %v3386
        %v3388 = vand.u32 %v424, 4294901760
        %v3389 = vsub.f32 %v424, %v3388
        %v3390 = vand.u32 %v3389, 4294901760
        %3391 = vmatpush1.msra.mxu0 %v3390
        %v3392 = vand.u32 %v429, 4294901760
        %v3393 = vsub.f32 %v429, %v3392
        %v3394 = vand.u32 %v3393, 4294901760
        %3395 = vmatprep.subr.mxu0 %v3394
        %v3396 = vand.u32 %v428, 4294901760
        %v3397 = vsub.f32 %v428, %v3396
        %v3398 = vand.u32 %v3397, 4294901760
        %3399 = vmatpush1.msra.mxu0 %v3398
        %v3400 = vand.u32 %v433, 4294901760
        %v3401 = vsub.f32 %v433, %v3400
        %v3402 = vand.u32 %v3401, 4294901760
        %3403 = vmatprep.subr.mxu0 %v3402
        %v3404 = vand.u32 %v432, 4294901760
        %v3405 = vsub.f32 %v432, %v3404
        %v3406 = vand.u32 %v3405, 4294901760
        %3407 = vmatpush1.msra.mxu0 %v3406
        %v3408 = vand.u32 %v437, 4294901760
        %v3409 = vsub.f32 %v437, %v3408
        %v3410 = vand.u32 %v3409, 4294901760
        %3411 = vmatprep.subr.mxu0 %v3410
        %v3412 = vand.u32 %v436, 4294901760
        %v3413 = vsub.f32 %v436, %v3412
        %v3414 = vand.u32 %v3413, 4294901760
        %3415 = vmatpush1.msra.mxu0 %v3414
        %v3416 = vand.u32 %v441, 4294901760
        %v3417 = vsub.f32 %v441, %v3416
        %v3418 = vand.u32 %v3417, 4294901760
        %3419 = vmatprep.subr.mxu0 %v3418
        %v3420 = vand.u32 %v440, 4294901760
        %v3421 = vsub.f32 %v440, %v3420
        %v3422 = vand.u32 %v3421, 4294901760
        %3423 = vmatpush1.msra.mxu0 %v3422
        %v3424 = vand.u32 %v445, 4294901760
        %v3425 = vsub.f32 %v445, %v3424
        %v3426 = vand.u32 %v3425, 4294901760
        %3427 = vmatprep.subr.mxu0 %v3426
        %v3428 = vand.u32 %v444, 4294901760
        %v3429 = vsub.f32 %v444, %v3428
        %v3430 = vand.u32 %v3429, 4294901760
        %3431 = vmatpush1.msra.mxu0 %v3430
        %v3432 = vand.u32 %v449, 4294901760
        %v3433 = vsub.f32 %v449, %v3432
        %v3434 = vand.u32 %v3433, 4294901760
        %3435 = vmatprep.subr.mxu0 %v3434
        %v3436 = vand.u32 %v448, 4294901760
        %v3437 = vsub.f32 %v448, %v3436
        %v3438 = vand.u32 %v3437, 4294901760
        %3439 = vmatpush1.msra.mxu0 %v3438
        %v3440 = vand.u32 %v453, 4294901760
        %v3441 = vsub.f32 %v453, %v3440
        %v3442 = vand.u32 %v3441, 4294901760
        %3443 = vmatprep.subr.mxu0 %v3442
        %v3444 = vand.u32 %v452, 4294901760
        %v3445 = vsub.f32 %v452, %v3444
        %v3446 = vand.u32 %v3445, 4294901760
        %3447 = vmatpush1.msra.mxu0 %v3446
        %v3448 = vand.u32 %v457, 4294901760
        %v3449 = vsub.f32 %v457, %v3448
        %v3450 = vand.u32 %v3449, 4294901760
        %3451 = vmatprep.subr.mxu0 %v3450
        %v3452 = vand.u32 %v456, 4294901760
        %v3453 = vsub.f32 %v456, %v3452
        %v3454 = vand.u32 %v3453, 4294901760
        %3455 = vmatpush1.msra.mxu0 %v3454
        %v3456 = vand.u32 %v461, 4294901760
        %v3457 = vsub.f32 %v461, %v3456
        %v3458 = vand.u32 %v3457, 4294901760
        %3459 = vmatprep.subr.mxu0 %v3458
        %v3460 = vand.u32 %v460, 4294901760
        %v3461 = vsub.f32 %v460, %v3460
        %v3462 = vand.u32 %v3461, 4294901760
        %3463 = vmatpush1.msra.mxu0 %v3462
        %v3464 = vand.u32 %v465, 4294901760
        %v3465 = vsub.f32 %v465, %v3464
        %v3466 = vand.u32 %v3465, 4294901760
        %3467 = vmatprep.subr.mxu0 %v3466
        %v3468 = vand.u32 %v464, 4294901760
        %v3469 = vsub.f32 %v464, %v3468
        %v3470 = vand.u32 %v3469, 4294901760
        %3471 = vmatpush1.msra.mxu0 %v3470
        %v3472 = vand.u32 %v469, 4294901760
        %v3473 = vsub.f32 %v469, %v3472
        %v3474 = vand.u32 %v3473, 4294901760
        %3475 = vmatprep.subr.mxu0 %v3474
        %v3476 = vand.u32 %v468, 4294901760
        %v3477 = vsub.f32 %v468, %v3476
        %v3478 = vand.u32 %v3477, 4294901760
        %3479 = vmatpush1.msra.mxu0 %v3478
        %v3480 = vand.u32 %v473, 4294901760
        %v3481 = vsub.f32 %v473, %v3480
        %v3482 = vand.u32 %v3481, 4294901760
        %3483 = vmatprep.subr.mxu0 %v3482
        %v3484 = vand.u32 %v472, 4294901760
        %v3485 = vsub.f32 %v472, %v3484
        %v3486 = vand.u32 %v3485, 4294901760
        %3487 = vmatpush1.msra.mxu0 %v3486
        %v3488 = vand.u32 %v477, 4294901760
        %v3489 = vsub.f32 %v477, %v3488
        %v3490 = vand.u32 %v3489, 4294901760
        %3491 = vmatprep.subr.mxu0 %v3490
        %v3492 = vand.u32 %v476, 4294901760
        %v3493 = vsub.f32 %v476, %v3492
        %v3494 = vand.u32 %v3493, 4294901760
        %3495 = vmatpush1.msra.mxu0 %v3494
        %v3496 = vand.u32 %v481, 4294901760
        %v3497 = vsub.f32 %v481, %v3496
        %v3498 = vand.u32 %v3497, 4294901760
        %3499 = vmatprep.subr.mxu0 %v3498
        %v3500 = vand.u32 %v480, 4294901760
        %v3501 = vsub.f32 %v480, %v3500
        %v3502 = vand.u32 %v3501, 4294901760
        %3503 = vmatpush1.msra.mxu0 %v3502
        %v3504 = vand.u32 %v485, 4294901760
        %v3505 = vsub.f32 %v485, %v3504
        %v3506 = vand.u32 %v3505, 4294901760
        %3507 = vmatprep.subr.mxu0 %v3506
        %v3508 = vand.u32 %v484, 4294901760
        %v3509 = vsub.f32 %v484, %v3508
        %v3510 = vand.u32 %v3509, 4294901760
        %3511 = vmatpush1.msra.mxu0 %v3510
        %v3512 = vand.u32 %v489, 4294901760
        %v3513 = vsub.f32 %v489, %v3512
        %v3514 = vand.u32 %v3513, 4294901760
        %3515 = vmatprep.subr.mxu0 %v3514
        %v3516 = vand.u32 %v488, 4294901760
        %v3517 = vsub.f32 %v488, %v3516
        %v3518 = vand.u32 %v3517, 4294901760
        %3519 = vmatpush1.msra.mxu0 %v3518
        %v3520 = vand.u32 %v493, 4294901760
        %v3521 = vsub.f32 %v493, %v3520
        %v3522 = vand.u32 %v3521, 4294901760
        %3523 = vmatprep.subr.mxu0 %v3522
        %v3524 = vand.u32 %v492, 4294901760
        %v3525 = vsub.f32 %v492, %v3524
        %v3526 = vand.u32 %v3525, 4294901760
        %3527 = vmatpush1.msra.mxu0 %v3526
        %v3528 = vand.u32 %v497, 4294901760
        %v3529 = vsub.f32 %v497, %v3528
        %v3530 = vand.u32 %v3529, 4294901760
        %3531 = vmatprep.subr.mxu0 %v3530
        %v3532 = vand.u32 %v496, 4294901760
        %v3533 = vsub.f32 %v496, %v3532
        %v3534 = vand.u32 %v3533, 4294901760
        %3535 = vmatpush1.msra.mxu0 %v3534
        %v3536 = vand.u32 %v501, 4294901760
        %v3537 = vsub.f32 %v501, %v3536
        %v3538 = vand.u32 %v3537, 4294901760
        %3539 = vmatprep.subr.mxu0 %v3538
        %v3540 = vand.u32 %v500, 4294901760
        %v3541 = vsub.f32 %v500, %v3540
        %v3542 = vand.u32 %v3541, 4294901760
        %3543 = vmatpush1.msra.mxu0 %v3542
        %v3544 = vand.u32 %v373, 4294901760
        %3545 = vmatprep.mubr.f32.mxu0 %v3544
        %v3546 = vand.u32 %v372, 4294901760
        %3547 = vmatmul.mubr.f32.gmra.mrb[0].mxu0 %v3546
        %v3548 = vpop.f32.mrb[0].mxu0
        %v3549 = vadd.f32 %v3284, %v3548
        %v3550 = vpop.f32.mrb[0].mxu0
        %v3551 = vadd.f32 %v3286, %v3550
        %3552 = vdwg.mxu0
        %v3553 = vand.u32 %v377, 4294901760
        %3554 = vmatprep.subr.mxu0 %v3553
        %v3555 = vand.u32 %v376, 4294901760
        %3556 = vmatpush1.msra.mxu0 %v3555
        %v3557 = vand.u32 %v381, 4294901760
        %3558 = vmatprep.subr.mxu0 %v3557
        %v3559 = vand.u32 %v380, 4294901760
        %3560 = vmatpush1.msra.mxu0 %v3559
        %v3561 = vand.u32 %v385, 4294901760
        %3562 = vmatprep.subr.mxu0 %v3561
        %v3563 = vand.u32 %v384, 4294901760
        %3564 = vmatpush1.msra.mxu0 %v3563
        %v3565 = vand.u32 %v389, 4294901760
        %3566 = vmatprep.subr.mxu0 %v3565
        %v3567 = vand.u32 %v388, 4294901760
        %3568 = vmatpush1.msra.mxu0 %v3567
        %v3569 = vand.u32 %v393, 4294901760
        %3570 = vmatprep.subr.mxu0 %v3569
        %v3571 = vand.u32 %v392, 4294901760
        %3572 = vmatpush1.msra.mxu0 %v3571
        %v3573 = vand.u32 %v397, 4294901760
        %3574 = vmatprep.subr.mxu0 %v3573
        %v3575 = vand.u32 %v396, 4294901760
        %3576 = vmatpush1.msra.mxu0 %v3575
        %v3577 = vand.u32 %v401, 4294901760
        %3578 = vmatprep.subr.mxu0 %v3577
        %v3579 = vand.u32 %v400, 4294901760
        %3580 = vmatpush1.msra.mxu0 %v3579
        %v3581 = vand.u32 %v405, 4294901760
        %3582 = vmatprep.subr.mxu0 %v3581
        %v3583 = vand.u32 %v404, 4294901760
        %3584 = vmatpush1.msra.mxu0 %v3583
        %v3585 = vand.u32 %v409, 4294901760
        %3586 = vmatprep.subr.mxu0 %v3585
        %v3587 = vand.u32 %v408, 4294901760
        %3588 = vmatpush1.msra.mxu0 %v3587
        %v3589 = vand.u32 %v413, 4294901760
        %3590 = vmatprep.subr.mxu0 %v3589
        %v3591 = vand.u32 %v412, 4294901760
        %3592 = vmatpush1.msra.mxu0 %v3591
        %v3593 = vand.u32 %v417, 4294901760
        %3594 = vmatprep.subr.mxu0 %v3593
        %v3595 = vand.u32 %v416, 4294901760
        %3596 = vmatpush1.msra.mxu0 %v3595
        %v3597 = vand.u32 %v421, 4294901760
        %3598 = vmatprep.subr.mxu0 %v3597
        %v3599 = vand.u32 %v420, 4294901760
        %3600 = vmatpush1.msra.mxu0 %v3599
        %v3601 = vand.u32 %v425, 4294901760
        %3602 = vmatprep.subr.mxu0 %v3601
        %v3603 = vand.u32 %v424, 4294901760
        %3604 = vmatpush1.msra.mxu0 %v3603
        %v3605 = vand.u32 %v429, 4294901760
        %3606 = vmatprep.subr.mxu0 %v3605
        %v3607 = vand.u32 %v428, 4294901760
        %3608 = vmatpush1.msra.mxu0 %v3607
        %v3609 = vand.u32 %v433, 4294901760
        %3610 = vmatprep.subr.mxu0 %v3609
        %v3611 = vand.u32 %v432, 4294901760
        %3612 = vmatpush1.msra.mxu0 %v3611
        %v3613 = vand.u32 %v437, 4294901760
        %3614 = vmatprep.subr.mxu0 %v3613
        %v3615 = vand.u32 %v436, 4294901760
        %3616 = vmatpush1.msra.mxu0 %v3615
        %v3617 = vand.u32 %v441, 4294901760
        %3618 = vmatprep.subr.mxu0 %v3617
        %v3619 = vand.u32 %v440, 4294901760
        %3620 = vmatpush1.msra.mxu0 %v3619
        %v3621 = vand.u32 %v445, 4294901760
        %3622 = vmatprep.subr.mxu0 %v3621
        %v3623 = vand.u32 %v444, 4294901760
        %3624 = vmatpush1.msra.mxu0 %v3623
        %v3625 = vand.u32 %v449, 4294901760
        %3626 = vmatprep.subr.mxu0 %v3625
        %v3627 = vand.u32 %v448, 4294901760
        %3628 = vmatpush1.msra.mxu0 %v3627
        %v3629 = vand.u32 %v453, 4294901760
        %3630 = vmatprep.subr.mxu0 %v3629
        %v3631 = vand.u32 %v452, 4294901760
        %3632 = vmatpush1.msra.mxu0 %v3631
        %v3633 = vand.u32 %v457, 4294901760
        %3634 = vmatprep.subr.mxu0 %v3633
        %v3635 = vand.u32 %v456, 4294901760
        %3636 = vmatpush1.msra.mxu0 %v3635
        %v3637 = vand.u32 %v461, 4294901760
        %3638 = vmatprep.subr.mxu0 %v3637
        %v3639 = vand.u32 %v460, 4294901760
        %3640 = vmatpush1.msra.mxu0 %v3639
        %v3641 = vand.u32 %v465, 4294901760
        %3642 = vmatprep.subr.mxu0 %v3641
        %v3643 = vand.u32 %v464, 4294901760
        %3644 = vmatpush1.msra.mxu0 %v3643
        %v3645 = vand.u32 %v469, 4294901760
        %3646 = vmatprep.subr.mxu0 %v3645
        %v3647 = vand.u32 %v468, 4294901760
        %3648 = vmatpush1.msra.mxu0 %v3647
        %v3649 = vand.u32 %v473, 4294901760
        %3650 = vmatprep.subr.mxu0 %v3649
        %v3651 = vand.u32 %v472, 4294901760
        %3652 = vmatpush1.msra.mxu0 %v3651
        %v3653 = vand.u32 %v477, 4294901760
        %3654 = vmatprep.subr.mxu0 %v3653
        %v3655 = vand.u32 %v476, 4294901760
        %3656 = vmatpush1.msra.mxu0 %v3655
        %v3657 = vand.u32 %v481, 4294901760
        %3658 = vmatprep.subr.mxu0 %v3657
        %v3659 = vand.u32 %v480, 4294901760
        %3660 = vmatpush1.msra.mxu0 %v3659
        %v3661 = vand.u32 %v485, 4294901760
        %3662 = vmatprep.subr.mxu0 %v3661
        %v3663 = vand.u32 %v484, 4294901760
        %3664 = vmatpush1.msra.mxu0 %v3663
        %v3665 = vand.u32 %v489, 4294901760
        %3666 = vmatprep.subr.mxu0 %v3665
        %v3667 = vand.u32 %v488, 4294901760
        %3668 = vmatpush1.msra.mxu0 %v3667
        %v3669 = vand.u32 %v493, 4294901760
        %3670 = vmatprep.subr.mxu0 %v3669
        %v3671 = vand.u32 %v492, 4294901760
        %3672 = vmatpush1.msra.mxu0 %v3671
        %v3673 = vand.u32 %v497, 4294901760
        %3674 = vmatprep.subr.mxu0 %v3673
        %v3675 = vand.u32 %v496, 4294901760
        %3676 = vmatpush1.msra.mxu0 %v3675
        %v3677 = vand.u32 %v501, 4294901760
        %3678 = vmatprep.subr.mxu0 %v3677
        %v3679 = vand.u32 %v500, 4294901760
        %3680 = vmatpush1.msra.mxu0 %v3679
        %v3681 = vand.u32 %v373, 4294901760
        %3682 = vmatprep.mubr.f32.mxu0 %v3681
        %v3683 = vand.u32 %v372, 4294901760
        %3684 = vmatmul.mubr.f32.gmra.mrb[0].mxu0 %v3683
        %v3685 = vpop.f32.mrb[0].mxu0
        %v3686 = vadd.f32 %v3549, %v3685
        %v3687 = vpop.f32.mrb[0].mxu0
        %v3688 = vadd.f32 %v3551, %v3687
        %3689 = vdwg.mxu0
        %v3690 = vand.u32 %v505, 4294901760
        %3691 = vmatprep.subr.mxu0 %v3690
        %v3692 = vand.u32 %v504, 4294901760
        %3693 = vmatpush1.msra.mxu0 %v3692
        %v3694 = vand.u32 %v509, 4294901760
        %3695 = vmatprep.subr.mxu0 %v3694
        %v3696 = vand.u32 %v508, 4294901760
        %3697 = vmatpush1.msra.mxu0 %v3696
        %v3698 = vand.u32 %v513, 4294901760
        %3699 = vmatprep.subr.mxu0 %v3698
        %v3700 = vand.u32 %v512, 4294901760
        %3701 = vmatpush1.msra.mxu0 %v3700
        %v3702 = vand.u32 %v517, 4294901760
        %3703 = vmatprep.subr.mxu0 %v3702
        %v3704 = vand.u32 %v516, 4294901760
        %3705 = vmatpush1.msra.mxu0 %v3704
        %v3706 = vand.u32 %v521, 4294901760
        %3707 = vmatprep.subr.mxu0 %v3706
        %v3708 = vand.u32 %v520, 4294901760
        %3709 = vmatpush1.msra.mxu0 %v3708
        %v3710 = vand.u32 %v525, 4294901760
        %3711 = vmatprep.subr.mxu0 %v3710
        %v3712 = vand.u32 %v524, 4294901760
        %3713 = vmatpush1.msra.mxu0 %v3712
        %v3714 = vand.u32 %v529, 4294901760
        %3715 = vmatprep.subr.mxu0 %v3714
        %v3716 = vand.u32 %v528, 4294901760
        %3717 = vmatpush1.msra.mxu0 %v3716
        %v3718 = vand.u32 %v533, 4294901760
        %3719 = vmatprep.subr.mxu0 %v3718
        %v3720 = vand.u32 %v532, 4294901760
        %3721 = vmatpush1.msra.mxu0 %v3720
        %v3722 = vand.u32 %v537, 4294901760
        %3723 = vmatprep.subr.mxu0 %v3722
        %v3724 = vand.u32 %v536, 4294901760
        %3725 = vmatpush1.msra.mxu0 %v3724
        %v3726 = vand.u32 %v541, 4294901760
        %3727 = vmatprep.subr.mxu0 %v3726
        %v3728 = vand.u32 %v540, 4294901760
        %3729 = vmatpush1.msra.mxu0 %v3728
        %v3730 = vand.u32 %v545, 4294901760
        %3731 = vmatprep.subr.mxu0 %v3730
        %v3732 = vand.u32 %v544, 4294901760
        %3733 = vmatpush1.msra.mxu0 %v3732
        %v3734 = vand.u32 %v549, 4294901760
        %3735 = vmatprep.subr.mxu0 %v3734
        %v3736 = vand.u32 %v548, 4294901760
        %3737 = vmatpush1.msra.mxu0 %v3736
        %v3738 = vand.u32 %v553, 4294901760
        %3739 = vmatprep.subr.mxu0 %v3738
        %v3740 = vand.u32 %v552, 4294901760
        %3741 = vmatpush1.msra.mxu0 %v3740
        %v3742 = vand.u32 %v557, 4294901760
        %3743 = vmatprep.subr.mxu0 %v3742
        %v3744 = vand.u32 %v556, 4294901760
        %3745 = vmatpush1.msra.mxu0 %v3744
        %v3746 = vand.u32 %v561, 4294901760
        %3747 = vmatprep.subr.mxu0 %v3746
        %v3748 = vand.u32 %v560, 4294901760
        %3749 = vmatpush1.msra.mxu0 %v3748
        %v3750 = vand.u32 %v565, 4294901760
        %3751 = vmatprep.subr.mxu0 %v3750
        %v3752 = vand.u32 %v564, 4294901760
        %3753 = vmatpush1.msra.mxu0 %v3752
        %v3754 = vand.u32 %v569, 4294901760
        %3755 = vmatprep.subr.mxu0 %v3754
        %v3756 = vand.u32 %v568, 4294901760
        %3757 = vmatpush1.msra.mxu0 %v3756
        %v3758 = vand.u32 %v573, 4294901760
        %3759 = vmatprep.subr.mxu0 %v3758
        %v3760 = vand.u32 %v572, 4294901760
        %3761 = vmatpush1.msra.mxu0 %v3760
        %v3762 = vand.u32 %v577, 4294901760
        %3763 = vmatprep.subr.mxu0 %v3762
        %v3764 = vand.u32 %v576, 4294901760
        %3765 = vmatpush1.msra.mxu0 %v3764
        %v3766 = vand.u32 %v581, 4294901760
        %3767 = vmatprep.subr.mxu0 %v3766
        %v3768 = vand.u32 %v580, 4294901760
        %3769 = vmatpush1.msra.mxu0 %v3768
        %v3770 = vand.u32 %v585, 4294901760
        %3771 = vmatprep.subr.mxu0 %v3770
        %v3772 = vand.u32 %v584, 4294901760
        %3773 = vmatpush1.msra.mxu0 %v3772
        %v3774 = vand.u32 %v589, 4294901760
        %3775 = vmatprep.subr.mxu0 %v3774
        %v3776 = vand.u32 %v588, 4294901760
        %3777 = vmatpush1.msra.mxu0 %v3776
        %v3778 = vand.u32 %v593, 4294901760
        %3779 = vmatprep.subr.mxu0 %v3778
        %v3780 = vand.u32 %v592, 4294901760
        %3781 = vmatpush1.msra.mxu0 %v3780
        %v3782 = vand.u32 %v597, 4294901760
        %3783 = vmatprep.subr.mxu0 %v3782
        %v3784 = vand.u32 %v596, 4294901760
        %3785 = vmatpush1.msra.mxu0 %v3784
        %v3786 = vand.u32 %v601, 4294901760
        %3787 = vmatprep.subr.mxu0 %v3786
        %v3788 = vand.u32 %v600, 4294901760
        %3789 = vmatpush1.msra.mxu0 %v3788
        %v3790 = vand.u32 %v605, 4294901760
        %3791 = vmatprep.subr.mxu0 %v3790
        %v3792 = vand.u32 %v604, 4294901760
        %3793 = vmatpush1.msra.mxu0 %v3792
        %v3794 = vand.u32 %v609, 4294901760
        %3795 = vmatprep.subr.mxu0 %v3794
        %v3796 = vand.u32 %v608, 4294901760
        %3797 = vmatpush1.msra.mxu0 %v3796
        %v3798 = vand.u32 %v613, 4294901760
        %3799 = vmatprep.subr.mxu0 %v3798
        %v3800 = vand.u32 %v612, 4294901760
        %3801 = vmatpush1.msra.mxu0 %v3800
        %v3802 = vand.u32 %v617, 4294901760
        %3803 = vmatprep.subr.mxu0 %v3802
        %v3804 = vand.u32 %v616, 4294901760
        %3805 = vmatpush1.msra.mxu0 %v3804
        %v3806 = vand.u32 %v621, 4294901760
        %3807 = vmatprep.subr.mxu0 %v3806
        %v3808 = vand.u32 %v620, 4294901760
        %3809 = vmatpush1.msra.mxu0 %v3808
        %v3810 = vand.u32 %v625, 4294901760
        %3811 = vmatprep.subr.mxu0 %v3810
        %v3812 = vand.u32 %v624, 4294901760
        %3813 = vmatpush1.msra.mxu0 %v3812
        %v3814 = vand.u32 %v629, 4294901760
        %3815 = vmatprep.subr.mxu0 %v3814
        %v3816 = vand.u32 %v628, 4294901760
        %3817 = vmatpush1.msra.mxu0 %v3816
        %v3818 = vand.u32 %v375, 4294901760
        %v3819 = vsub.f32 %v375, %v3818
        %v3820 = vand.u32 %v3819, 4294901760
        %v3821 = vsub.f32 %v3819, %v3820
        %v3822 = vand.u32 %v3821, 4294901760
        %3823 = vmatprep.mubr.f32.mxu0 %v3822
        %v3824 = vand.u32 %v374, 4294901760
        %v3825 = vsub.f32 %v374, %v3824
        %v3826 = vand.u32 %v3825, 4294901760
        %v3827 = vsub.f32 %v3825, %v3826
        %v3828 = vand.u32 %v3827, 4294901760
        %3829 = vmatmul.mubr.f32.gmra.mrb[0].mxu0 %v3828
        %v3830 = vpop.f32.mrb[0].mxu0
        %v3831 = vadd.f32 %v3686, %v3830
        %v3832 = vpop.f32.mrb[0].mxu0
        %v3833 = vadd.f32 %v3688, %v3832
        %3834 = vdwg.mxu0
        %v3835 = vand.u32 %v505, 4294901760
        %v3836 = vsub.f32 %v505, %v3835
        %v3837 = vand.u32 %v3836, 4294901760
        %v3838 = vsub.f32 %v3836, %v3837
        %v3839 = vand.u32 %v3838, 4294901760
        %3840 = vmatprep.subr.mxu0 %v3839
        %v3841 = vand.u32 %v504, 4294901760
        %v3842 = vsub.f32 %v504, %v3841
        %v3843 = vand.u32 %v3842, 4294901760
        %v3844 = vsub.f32 %v3842, %v3843
        %v3845 = vand.u32 %v3844, 4294901760
        %3846 = vmatpush1.msra.mxu0 %v3845
        %v3847 = vand.u32 %v509, 4294901760
        %v3848 = vsub.f32 %v509, %v3847
        %v3849 = vand.u32 %v3848, 4294901760
        %v3850 = vsub.f32 %v3848, %v3849
        %v3851 = vand.u32 %v3850, 4294901760
        %3852 = vmatprep.subr.mxu0 %v3851
        %v3853 = vand.u32 %v508, 4294901760
        %v3854 = vsub.f32 %v508, %v3853
        %v3855 = vand.u32 %v3854, 4294901760
        %v3856 = vsub.f32 %v3854, %v3855
        %v3857 = vand.u32 %v3856, 4294901760
        %3858 = vmatpush1.msra.mxu0 %v3857
        %v3859 = vand.u32 %v513, 4294901760
        %v3860 = vsub.f32 %v513, %v3859
        %v3861 = vand.u32 %v3860, 4294901760
        %v3862 = vsub.f32 %v3860, %v3861
        %v3863 = vand.u32 %v3862, 4294901760
        %3864 = vmatprep.subr.mxu0 %v3863
        %v3865 = vand.u32 %v512, 4294901760
        %v3866 = vsub.f32 %v512, %v3865
        %v3867 = vand.u32 %v3866, 4294901760
        %v3868 = vsub.f32 %v3866, %v3867
        %v3869 = vand.u32 %v3868, 4294901760
        %3870 = vmatpush1.msra.mxu0 %v3869
        %v3871 = vand.u32 %v517, 4294901760
        %v3872 = vsub.f32 %v517, %v3871
        %v3873 = vand.u32 %v3872, 4294901760
        %v3874 = vsub.f32 %v3872, %v3873
        %v3875 = vand.u32 %v3874, 4294901760
        %3876 = vmatprep.subr.mxu0 %v3875
        %v3877 = vand.u32 %v516, 4294901760
        %v3878 = vsub.f32 %v516, %v3877
        %v3879 = vand.u32 %v3878, 4294901760
        %v3880 = vsub.f32 %v3878, %v3879
        %v3881 = vand.u32 %v3880, 4294901760
        %3882 = vmatpush1.msra.mxu0 %v3881
        %v3883 = vand.u32 %v521, 4294901760
        %v3884 = vsub.f32 %v521, %v3883
        %v3885 = vand.u32 %v3884, 4294901760
        %v3886 = vsub.f32 %v3884, %v3885
        %v3887 = vand.u32 %v3886, 4294901760
        %3888 = vmatprep.subr.mxu0 %v3887
        %v3889 = vand.u32 %v520, 4294901760
        %v3890 = vsub.f32 %v520, %v3889
        %v3891 = vand.u32 %v3890, 4294901760
        %v3892 = vsub.f32 %v3890, %v3891
        %v3893 = vand.u32 %v3892, 4294901760
        %3894 = vmatpush1.msra.mxu0 %v3893
        %v3895 = vand.u32 %v525, 4294901760
        %v3896 = vsub.f32 %v525, %v3895
        %v3897 = vand.u32 %v3896, 4294901760
        %v3898 = vsub.f32 %v3896, %v3897
        %v3899 = vand.u32 %v3898, 4294901760
        %3900 = vmatprep.subr.mxu0 %v3899
        %v3901 = vand.u32 %v524, 4294901760
        %v3902 = vsub.f32 %v524, %v3901
        %v3903 = vand.u32 %v3902, 4294901760
        %v3904 = vsub.f32 %v3902, %v3903
        %v3905 = vand.u32 %v3904, 4294901760
        %3906 = vmatpush1.msra.mxu0 %v3905
        %v3907 = vand.u32 %v529, 4294901760
        %v3908 = vsub.f32 %v529, %v3907
        %v3909 = vand.u32 %v3908, 4294901760
        %v3910 = vsub.f32 %v3908, %v3909
        %v3911 = vand.u32 %v3910, 4294901760
        %3912 = vmatprep.subr.mxu0 %v3911
        %v3913 = vand.u32 %v528, 4294901760
        %v3914 = vsub.f32 %v528, %v3913
        %v3915 = vand.u32 %v3914, 4294901760
        %v3916 = vsub.f32 %v3914, %v3915
        %v3917 = vand.u32 %v3916, 4294901760
        %3918 = vmatpush1.msra.mxu0 %v3917
        %v3919 = vand.u32 %v533, 4294901760
        %v3920 = vsub.f32 %v533, %v3919
        %v3921 = vand.u32 %v3920, 4294901760
        %v3922 = vsub.f32 %v3920, %v3921
        %v3923 = vand.u32 %v3922, 4294901760
        %3924 = vmatprep.subr.mxu0 %v3923
        %v3925 = vand.u32 %v532, 4294901760
        %v3926 = vsub.f32 %v532, %v3925
        %v3927 = vand.u32 %v3926, 4294901760
        %v3928 = vsub.f32 %v3926, %v3927
        %v3929 = vand.u32 %v3928, 4294901760
        %3930 = vmatpush1.msra.mxu0 %v3929
        %v3931 = vand.u32 %v537, 4294901760
        %v3932 = vsub.f32 %v537, %v3931
        %v3933 = vand.u32 %v3932, 4294901760
        %v3934 = vsub.f32 %v3932, %v3933
        %v3935 = vand.u32 %v3934, 4294901760
        %3936 = vmatprep.subr.mxu0 %v3935
        %v3937 = vand.u32 %v536, 4294901760
        %v3938 = vsub.f32 %v536, %v3937
        %v3939 = vand.u32 %v3938, 4294901760
        %v3940 = vsub.f32 %v3938, %v3939
        %v3941 = vand.u32 %v3940, 4294901760
        %3942 = vmatpush1.msra.mxu0 %v3941
        %v3943 = vand.u32 %v541, 4294901760
        %v3944 = vsub.f32 %v541, %v3943
        %v3945 = vand.u32 %v3944, 4294901760
        %v3946 = vsub.f32 %v3944, %v3945
        %v3947 = vand.u32 %v3946, 4294901760
        %3948 = vmatprep.subr.mxu0 %v3947
        %v3949 = vand.u32 %v540, 4294901760
        %v3950 = vsub.f32 %v540, %v3949
        %v3951 = vand.u32 %v3950, 4294901760
        %v3952 = vsub.f32 %v3950, %v3951
        %v3953 = vand.u32 %v3952, 4294901760
        %3954 = vmatpush1.msra.mxu0 %v3953
        %v3955 = vand.u32 %v545, 4294901760
        %v3956 = vsub.f32 %v545, %v3955
        %v3957 = vand.u32 %v3956, 4294901760
        %v3958 = vsub.f32 %v3956, %v3957
        %v3959 = vand.u32 %v3958, 4294901760
        %3960 = vmatprep.subr.mxu0 %v3959
        %v3961 = vand.u32 %v544, 4294901760
        %v3962 = vsub.f32 %v544, %v3961
        %v3963 = vand.u32 %v3962, 4294901760
        %v3964 = vsub.f32 %v3962, %v3963
        %v3965 = vand.u32 %v3964, 4294901760
        %3966 = vmatpush1.msra.mxu0 %v3965
        %v3967 = vand.u32 %v549, 4294901760
        %v3968 = vsub.f32 %v549, %v3967
        %v3969 = vand.u32 %v3968, 4294901760
        %v3970 = vsub.f32 %v3968, %v3969
        %v3971 = vand.u32 %v3970, 4294901760
        %3972 = vmatprep.subr.mxu0 %v3971
        %v3973 = vand.u32 %v548, 4294901760
        %v3974 = vsub.f32 %v548, %v3973
        %v3975 = vand.u32 %v3974, 4294901760
        %v3976 = vsub.f32 %v3974, %v3975
        %v3977 = vand.u32 %v3976, 4294901760
        %3978 = vmatpush1.msra.mxu0 %v3977
        %v3979 = vand.u32 %v553, 4294901760
        %v3980 = vsub.f32 %v553, %v3979
        %v3981 = vand.u32 %v3980, 4294901760
        %v3982 = vsub.f32 %v3980, %v3981
        %v3983 = vand.u32 %v3982, 4294901760
        %3984 = vmatprep.subr.mxu0 %v3983
        %v3985 = vand.u32 %v552, 4294901760
        %v3986 = vsub.f32 %v552, %v3985
        %v3987 = vand.u32 %v3986, 4294901760
        %v3988 = vsub.f32 %v3986, %v3987
        %v3989 = vand.u32 %v3988, 4294901760
        %3990 = vmatpush1.msra.mxu0 %v3989
        %v3991 = vand.u32 %v557, 4294901760
        %v3992 = vsub.f32 %v557, %v3991
        %v3993 = vand.u32 %v3992, 4294901760
        %v3994 = vsub.f32 %v3992, %v3993
        %v3995 = vand.u32 %v3994, 4294901760
        %3996 = vmatprep.subr.mxu0 %v3995
        %v3997 = vand.u32 %v556, 4294901760
        %v3998 = vsub.f32 %v556, %v3997
        %v3999 = vand.u32 %v3998, 4294901760
        %v4000 = vsub.f32 %v3998, %v3999
        %v4001 = vand.u32 %v4000, 4294901760
        %4002 = vmatpush1.msra.mxu0 %v4001
        %v4003 = vand.u32 %v561, 4294901760
        %v4004 = vsub.f32 %v561, %v4003
        %v4005 = vand.u32 %v4004, 4294901760
        %v4006 = vsub.f32 %v4004, %v4005
        %v4007 = vand.u32 %v4006, 4294901760
        %4008 = vmatprep.subr.mxu0 %v4007
        %v4009 = vand.u32 %v560, 4294901760
        %v4010 = vsub.f32 %v560, %v4009
        %v4011 = vand.u32 %v4010, 4294901760
        %v4012 = vsub.f32 %v4010, %v4011
        %v4013 = vand.u32 %v4012, 4294901760
        %4014 = vmatpush1.msra.mxu0 %v4013
        %v4015 = vand.u32 %v565, 4294901760
        %v4016 = vsub.f32 %v565, %v4015
        %v4017 = vand.u32 %v4016, 4294901760
        %v4018 = vsub.f32 %v4016, %v4017
        %v4019 = vand.u32 %v4018, 4294901760
        %4020 = vmatprep.subr.mxu0 %v4019
        %v4021 = vand.u32 %v564, 4294901760
        %v4022 = vsub.f32 %v564, %v4021
        %v4023 = vand.u32 %v4022, 4294901760
        %v4024 = vsub.f32 %v4022, %v4023
        %v4025 = vand.u32 %v4024, 4294901760
        %4026 = vmatpush1.msra.mxu0 %v4025
        %v4027 = vand.u32 %v569, 4294901760
        %v4028 = vsub.f32 %v569, %v4027
        %v4029 = vand.u32 %v4028, 4294901760
        %v4030 = vsub.f32 %v4028, %v4029
        %v4031 = vand.u32 %v4030, 4294901760
        %4032 = vmatprep.subr.mxu0 %v4031
        %v4033 = vand.u32 %v568, 4294901760
        %v4034 = vsub.f32 %v568, %v4033
        %v4035 = vand.u32 %v4034, 4294901760
        %v4036 = vsub.f32 %v4034, %v4035
        %v4037 = vand.u32 %v4036, 4294901760
        %4038 = vmatpush1.msra.mxu0 %v4037
        %v4039 = vand.u32 %v573, 4294901760
        %v4040 = vsub.f32 %v573, %v4039
        %v4041 = vand.u32 %v4040, 4294901760
        %v4042 = vsub.f32 %v4040, %v4041
        %v4043 = vand.u32 %v4042, 4294901760
        %4044 = vmatprep.subr.mxu0 %v4043
        %v4045 = vand.u32 %v572, 4294901760
        %v4046 = vsub.f32 %v572, %v4045
        %v4047 = vand.u32 %v4046, 4294901760
        %v4048 = vsub.f32 %v4046, %v4047
        %v4049 = vand.u32 %v4048, 4294901760
        %4050 = vmatpush1.msra.mxu0 %v4049
        %v4051 = vand.u32 %v577, 4294901760
        %v4052 = vsub.f32 %v577, %v4051
        %v4053 = vand.u32 %v4052, 4294901760
        %v4054 = vsub.f32 %v4052, %v4053
        %v4055 = vand.u32 %v4054, 4294901760
        %4056 = vmatprep.subr.mxu0 %v4055
        %v4057 = vand.u32 %v576, 4294901760
        %v4058 = vsub.f32 %v576, %v4057
        %v4059 = vand.u32 %v4058, 4294901760
        %v4060 = vsub.f32 %v4058, %v4059
        %v4061 = vand.u32 %v4060, 4294901760
        %4062 = vmatpush1.msra.mxu0 %v4061
        %v4063 = vand.u32 %v581, 4294901760
        %v4064 = vsub.f32 %v581, %v4063
        %v4065 = vand.u32 %v4064, 4294901760
        %v4066 = vsub.f32 %v4064, %v4065
        %v4067 = vand.u32 %v4066, 4294901760
        %4068 = vmatprep.subr.mxu0 %v4067
        %v4069 = vand.u32 %v580, 4294901760
        %v4070 = vsub.f32 %v580, %v4069
        %v4071 = vand.u32 %v4070, 4294901760
        %v4072 = vsub.f32 %v4070, %v4071
        %v4073 = vand.u32 %v4072, 4294901760
        %4074 = vmatpush1.msra.mxu0 %v4073
        %v4075 = vand.u32 %v585, 4294901760
        %v4076 = vsub.f32 %v585, %v4075
        %v4077 = vand.u32 %v4076, 4294901760
        %v4078 = vsub.f32 %v4076, %v4077
        %v4079 = vand.u32 %v4078, 4294901760
        %4080 = vmatprep.subr.mxu0 %v4079
        %v4081 = vand.u32 %v584, 4294901760
        %v4082 = vsub.f32 %v584, %v4081
        %v4083 = vand.u32 %v4082, 4294901760
        %v4084 = vsub.f32 %v4082, %v4083
        %v4085 = vand.u32 %v4084, 4294901760
        %4086 = vmatpush1.msra.mxu0 %v4085
        %v4087 = vand.u32 %v589, 4294901760
        %v4088 = vsub.f32 %v589, %v4087
        %v4089 = vand.u32 %v4088, 4294901760
        %v4090 = vsub.f32 %v4088, %v4089
        %v4091 = vand.u32 %v4090, 4294901760
        %4092 = vmatprep.subr.mxu0 %v4091
        %v4093 = vand.u32 %v588, 4294901760
        %v4094 = vsub.f32 %v588, %v4093
        %v4095 = vand.u32 %v4094, 4294901760
        %v4096 = vsub.f32 %v4094, %v4095
        %v4097 = vand.u32 %v4096, 4294901760
        %4098 = vmatpush1.msra.mxu0 %v4097
        %v4099 = vand.u32 %v593, 4294901760
        %v4100 = vsub.f32 %v593, %v4099
        %v4101 = vand.u32 %v4100, 4294901760
        %v4102 = vsub.f32 %v4100, %v4101
        %v4103 = vand.u32 %v4102, 4294901760
        %4104 = vmatprep.subr.mxu0 %v4103
        %v4105 = vand.u32 %v592, 4294901760
        %v4106 = vsub.f32 %v592, %v4105
        %v4107 = vand.u32 %v4106, 4294901760
        %v4108 = vsub.f32 %v4106, %v4107
        %v4109 = vand.u32 %v4108, 4294901760
        %4110 = vmatpush1.msra.mxu0 %v4109
        %v4111 = vand.u32 %v597, 4294901760
        %v4112 = vsub.f32 %v597, %v4111
        %v4113 = vand.u32 %v4112, 4294901760
        %v4114 = vsub.f32 %v4112, %v4113
        %v4115 = vand.u32 %v4114, 4294901760
        %4116 = vmatprep.subr.mxu0 %v4115
        %v4117 = vand.u32 %v596, 4294901760
        %v4118 = vsub.f32 %v596, %v4117
        %v4119 = vand.u32 %v4118, 4294901760
        %v4120 = vsub.f32 %v4118, %v4119
        %v4121 = vand.u32 %v4120, 4294901760
        %4122 = vmatpush1.msra.mxu0 %v4121
        %v4123 = vand.u32 %v601, 4294901760
        %v4124 = vsub.f32 %v601, %v4123
        %v4125 = vand.u32 %v4124, 4294901760
        %v4126 = vsub.f32 %v4124, %v4125
        %v4127 = vand.u32 %v4126, 4294901760
        %4128 = vmatprep.subr.mxu0 %v4127
        %v4129 = vand.u32 %v600, 4294901760
        %v4130 = vsub.f32 %v600, %v4129
        %v4131 = vand.u32 %v4130, 4294901760
        %v4132 = vsub.f32 %v4130, %v4131
        %v4133 = vand.u32 %v4132, 4294901760
        %4134 = vmatpush1.msra.mxu0 %v4133
        %v4135 = vand.u32 %v605, 4294901760
        %v4136 = vsub.f32 %v605, %v4135
        %v4137 = vand.u32 %v4136, 4294901760
        %v4138 = vsub.f32 %v4136, %v4137
        %v4139 = vand.u32 %v4138, 4294901760
        %4140 = vmatprep.subr.mxu0 %v4139
        %v4141 = vand.u32 %v604, 4294901760
        %v4142 = vsub.f32 %v604, %v4141
        %v4143 = vand.u32 %v4142, 4294901760
        %v4144 = vsub.f32 %v4142, %v4143
        %v4145 = vand.u32 %v4144, 4294901760
        %4146 = vmatpush1.msra.mxu0 %v4145
        %v4147 = vand.u32 %v609, 4294901760
        %v4148 = vsub.f32 %v609, %v4147
        %v4149 = vand.u32 %v4148, 4294901760
        %v4150 = vsub.f32 %v4148, %v4149
        %v4151 = vand.u32 %v4150, 4294901760
        %4152 = vmatprep.subr.mxu0 %v4151
        %v4153 = vand.u32 %v608, 4294901760
        %v4154 = vsub.f32 %v608, %v4153
        %v4155 = vand.u32 %v4154, 4294901760
        %v4156 = vsub.f32 %v4154, %v4155
        %v4157 = vand.u32 %v4156, 4294901760
        %4158 = vmatpush1.msra.mxu0 %v4157
        %v4159 = vand.u32 %v613, 4294901760
        %v4160 = vsub.f32 %v613, %v4159
        %v4161 = vand.u32 %v4160, 4294901760
        %v4162 = vsub.f32 %v4160, %v4161
        %v4163 = vand.u32 %v4162, 4294901760
        %4164 = vmatprep.subr.mxu0 %v4163
        %v4165 = vand.u32 %v612, 4294901760
        %v4166 = vsub.f32 %v612, %v4165
        %v4167 = vand.u32 %v4166, 4294901760
        %v4168 = vsub.f32 %v4166, %v4167
        %v4169 = vand.u32 %v4168, 4294901760
        %4170 = vmatpush1.msra.mxu0 %v4169
        %v4171 = vand.u32 %v617, 4294901760
        %v4172 = vsub.f32 %v617, %v4171
        %v4173 = vand.u32 %v4172, 4294901760
        %v4174 = vsub.f32 %v4172, %v4173
        %v4175 = vand.u32 %v4174, 4294901760
        %4176 = vmatprep.subr.mxu0 %v4175
        %v4177 = vand.u32 %v616, 4294901760
        %v4178 = vsub.f32 %v616, %v4177
        %v4179 = vand.u32 %v4178, 4294901760
        %v4180 = vsub.f32 %v4178, %v4179
        %v4181 = vand.u32 %v4180, 4294901760
        %4182 = vmatpush1.msra.mxu0 %v4181
        %v4183 = vand.u32 %v621, 4294901760
        %v4184 = vsub.f32 %v621, %v4183
        %v4185 = vand.u32 %v4184, 4294901760
        %v4186 = vsub.f32 %v4184, %v4185
        %v4187 = vand.u32 %v4186, 4294901760
        %4188 = vmatprep.subr.mxu0 %v4187
        %v4189 = vand.u32 %v620, 4294901760
        %v4190 = vsub.f32 %v620, %v4189
        %v4191 = vand.u32 %v4190, 4294901760
        %v4192 = vsub.f32 %v4190, %v4191
        %v4193 = vand.u32 %v4192, 4294901760
        %4194 = vmatpush1.msra.mxu0 %v4193
        %v4195 = vand.u32 %v625, 4294901760
        %v4196 = vsub.f32 %v625, %v4195
        %v4197 = vand.u32 %v4196, 4294901760
        %v4198 = vsub.f32 %v4196, %v4197
        %v4199 = vand.u32 %v4198, 4294901760
        %4200 = vmatprep.subr.mxu0 %v4199
        %v4201 = vand.u32 %v624, 4294901760
        %v4202 = vsub.f32 %v624, %v4201
        %v4203 = vand.u32 %v4202, 4294901760
        %v4204 = vsub.f32 %v4202, %v4203
        %v4205 = vand.u32 %v4204, 4294901760
        %4206 = vmatpush1.msra.mxu0 %v4205
        %v4207 = vand.u32 %v629, 4294901760
        %v4208 = vsub.f32 %v629, %v4207
        %v4209 = vand.u32 %v4208, 4294901760
        %v4210 = vsub.f32 %v4208, %v4209
        %v4211 = vand.u32 %v4210, 4294901760
        %4212 = vmatprep.subr.mxu0 %v4211
        %v4213 = vand.u32 %v628, 4294901760
        %v4214 = vsub.f32 %v628, %v4213
        %v4215 = vand.u32 %v4214, 4294901760
        %v4216 = vsub.f32 %v4214, %v4215
        %v4217 = vand.u32 %v4216, 4294901760
        %4218 = vmatpush1.msra.mxu0 %v4217
        %v4219 = vand.u32 %v375, 4294901760
        %4220 = vmatprep.mubr.f32.mxu0 %v4219
        %v4221 = vand.u32 %v374, 4294901760
        %4222 = vmatmul.mubr.f32.gmra.mrb[0].mxu0 %v4221
        %v4223 = vpop.f32.mrb[0].mxu0
        %v4224 = vadd.f32 %v3831, %v4223
        %v4225 = vpop.f32.mrb[0].mxu0
        %v4226 = vadd.f32 %v3833, %v4225
        %4227 = vdwg.mxu0
        %v4228 = vand.u32 %v505, 4294901760
        %v4229 = vsub.f32 %v505, %v4228
        %4230 = vmatprep.subr.mxu0 %v4229
        %v4231 = vand.u32 %v504, 4294901760
        %v4232 = vsub.f32 %v504, %v4231
        %4233 = vmatpush1.msra.mxu0 %v4232
        %v4234 = vand.u32 %v509, 4294901760
        %v4235 = vsub.f32 %v509, %v4234
        %4236 = vmatprep.subr.mxu0 %v4235
        %v4237 = vand.u32 %v508, 4294901760
        %v4238 = vsub.f32 %v508, %v4237
        %4239 = vmatpush1.msra.mxu0 %v4238
        %v4240 = vand.u32 %v513, 4294901760
        %v4241 = vsub.f32 %v513, %v4240
        %4242 = vmatprep.subr.mxu0 %v4241
        %v4243 = vand.u32 %v512, 4294901760
        %v4244 = vsub.f32 %v512, %v4243
        %4245 = vmatpush1.msra.mxu0 %v4244
        %v4246 = vand.u32 %v517, 4294901760
        %v4247 = vsub.f32 %v517, %v4246
        %4248 = vmatprep.subr.mxu0 %v4247
        %v4249 = vand.u32 %v516, 4294901760
        %v4250 = vsub.f32 %v516, %v4249
        %4251 = vmatpush1.msra.mxu0 %v4250
        %v4252 = vand.u32 %v521, 4294901760
        %v4253 = vsub.f32 %v521, %v4252
        %4254 = vmatprep.subr.mxu0 %v4253
        %v4255 = vand.u32 %v520, 4294901760
        %v4256 = vsub.f32 %v520, %v4255
        %4257 = vmatpush1.msra.mxu0 %v4256
        %v4258 = vand.u32 %v525, 4294901760
        %v4259 = vsub.f32 %v525, %v4258
        %4260 = vmatprep.subr.mxu0 %v4259
        %v4261 = vand.u32 %v524, 4294901760
        %v4262 = vsub.f32 %v524, %v4261
        %4263 = vmatpush1.msra.mxu0 %v4262
        %v4264 = vand.u32 %v529, 4294901760
        %v4265 = vsub.f32 %v529, %v4264
        %4266 = vmatprep.subr.mxu0 %v4265
        %v4267 = vand.u32 %v528, 4294901760
        %v4268 = vsub.f32 %v528, %v4267
        %4269 = vmatpush1.msra.mxu0 %v4268
        %v4270 = vand.u32 %v533, 4294901760
        %v4271 = vsub.f32 %v533, %v4270
        %4272 = vmatprep.subr.mxu0 %v4271
        %v4273 = vand.u32 %v532, 4294901760
        %v4274 = vsub.f32 %v532, %v4273
        %4275 = vmatpush1.msra.mxu0 %v4274
        %v4276 = vand.u32 %v537, 4294901760
        %v4277 = vsub.f32 %v537, %v4276
        %4278 = vmatprep.subr.mxu0 %v4277
        %v4279 = vand.u32 %v536, 4294901760
        %v4280 = vsub.f32 %v536, %v4279
        %4281 = vmatpush1.msra.mxu0 %v4280
        %v4282 = vand.u32 %v541, 4294901760
        %v4283 = vsub.f32 %v541, %v4282
        %4284 = vmatprep.subr.mxu0 %v4283
        %v4285 = vand.u32 %v540, 4294901760
        %v4286 = vsub.f32 %v540, %v4285
        %4287 = vmatpush1.msra.mxu0 %v4286
        %v4288 = vand.u32 %v545, 4294901760
        %v4289 = vsub.f32 %v545, %v4288
        %4290 = vmatprep.subr.mxu0 %v4289
        %v4291 = vand.u32 %v544, 4294901760
        %v4292 = vsub.f32 %v544, %v4291
        %4293 = vmatpush1.msra.mxu0 %v4292
        %v4294 = vand.u32 %v549, 4294901760
        %v4295 = vsub.f32 %v549, %v4294
        %4296 = vmatprep.subr.mxu0 %v4295
        %v4297 = vand.u32 %v548, 4294901760
        %v4298 = vsub.f32 %v548, %v4297
        %4299 = vmatpush1.msra.mxu0 %v4298
        %v4300 = vand.u32 %v553, 4294901760
        %v4301 = vsub.f32 %v553, %v4300
        %4302 = vmatprep.subr.mxu0 %v4301
        %v4303 = vand.u32 %v552, 4294901760
        %v4304 = vsub.f32 %v552, %v4303
        %4305 = vmatpush1.msra.mxu0 %v4304
        %v4306 = vand.u32 %v557, 4294901760
        %v4307 = vsub.f32 %v557, %v4306
        %4308 = vmatprep.subr.mxu0 %v4307
        %v4309 = vand.u32 %v556, 4294901760
        %v4310 = vsub.f32 %v556, %v4309
        %4311 = vmatpush1.msra.mxu0 %v4310
        %v4312 = vand.u32 %v561, 4294901760
        %v4313 = vsub.f32 %v561, %v4312
        %4314 = vmatprep.subr.mxu0 %v4313
        %v4315 = vand.u32 %v560, 4294901760
        %v4316 = vsub.f32 %v560, %v4315
        %4317 = vmatpush1.msra.mxu0 %v4316
        %v4318 = vand.u32 %v565, 4294901760
        %v4319 = vsub.f32 %v565, %v4318
        %4320 = vmatprep.subr.mxu0 %v4319
        %v4321 = vand.u32 %v564, 4294901760
        %v4322 = vsub.f32 %v564, %v4321
        %4323 = vmatpush1.msra.mxu0 %v4322
        %v4324 = vand.u32 %v569, 4294901760
        %v4325 = vsub.f32 %v569, %v4324
        %4326 = vmatprep.subr.mxu0 %v4325
        %v4327 = vand.u32 %v568, 4294901760
        %v4328 = vsub.f32 %v568, %v4327
        %4329 = vmatpush1.msra.mxu0 %v4328
        %v4330 = vand.u32 %v573, 4294901760
        %v4331 = vsub.f32 %v573, %v4330
        %4332 = vmatprep.subr.mxu0 %v4331
        %v4333 = vand.u32 %v572, 4294901760
        %v4334 = vsub.f32 %v572, %v4333
        %4335 = vmatpush1.msra.mxu0 %v4334
        %v4336 = vand.u32 %v577, 4294901760
        %v4337 = vsub.f32 %v577, %v4336
        %4338 = vmatprep.subr.mxu0 %v4337
        %v4339 = vand.u32 %v576, 4294901760
        %v4340 = vsub.f32 %v576, %v4339
        %4341 = vmatpush1.msra.mxu0 %v4340
        %v4342 = vand.u32 %v581, 4294901760
        %v4343 = vsub.f32 %v581, %v4342
        %4344 = vmatprep.subr.mxu0 %v4343
        %v4345 = vand.u32 %v580, 4294901760
        %v4346 = vsub.f32 %v580, %v4345
        %4347 = vmatpush1.msra.mxu0 %v4346
        %v4348 = vand.u32 %v585, 4294901760
        %v4349 = vsub.f32 %v585, %v4348
        %4350 = vmatprep.subr.mxu0 %v4349
        %v4351 = vand.u32 %v584, 4294901760
        %v4352 = vsub.f32 %v584, %v4351
        %4353 = vmatpush1.msra.mxu0 %v4352
        %v4354 = vand.u32 %v589, 4294901760
        %v4355 = vsub.f32 %v589, %v4354
        %4356 = vmatprep.subr.mxu0 %v4355
        %v4357 = vand.u32 %v588, 4294901760
        %v4358 = vsub.f32 %v588, %v4357
        %4359 = vmatpush1.msra.mxu0 %v4358
        %v4360 = vand.u32 %v593, 4294901760
        %v4361 = vsub.f32 %v593, %v4360
        %4362 = vmatprep.subr.mxu0 %v4361
        %v4363 = vand.u32 %v592, 4294901760
        %v4364 = vsub.f32 %v592, %v4363
        %4365 = vmatpush1.msra.mxu0 %v4364
        %v4366 = vand.u32 %v597, 4294901760
        %v4367 = vsub.f32 %v597, %v4366
        %4368 = vmatprep.subr.mxu0 %v4367
        %v4369 = vand.u32 %v596, 4294901760
        %v4370 = vsub.f32 %v596, %v4369
        %4371 = vmatpush1.msra.mxu0 %v4370
        %v4372 = vand.u32 %v601, 4294901760
        %v4373 = vsub.f32 %v601, %v4372
        %4374 = vmatprep.subr.mxu0 %v4373
        %v4375 = vand.u32 %v600, 4294901760
        %v4376 = vsub.f32 %v600, %v4375
        %4377 = vmatpush1.msra.mxu0 %v4376
        %v4378 = vand.u32 %v605, 4294901760
        %v4379 = vsub.f32 %v605, %v4378
        %4380 = vmatprep.subr.mxu0 %v4379
        %v4381 = vand.u32 %v604, 4294901760
        %v4382 = vsub.f32 %v604, %v4381
        %4383 = vmatpush1.msra.mxu0 %v4382
        %v4384 = vand.u32 %v609, 4294901760
        %v4385 = vsub.f32 %v609, %v4384
        %4386 = vmatprep.subr.mxu0 %v4385
        %v4387 = vand.u32 %v608, 4294901760
        %v4388 = vsub.f32 %v608, %v4387
        %4389 = vmatpush1.msra.mxu0 %v4388
        %v4390 = vand.u32 %v613, 4294901760
        %v4391 = vsub.f32 %v613, %v4390
        %4392 = vmatprep.subr.mxu0 %v4391
        %v4393 = vand.u32 %v612, 4294901760
        %v4394 = vsub.f32 %v612, %v4393
        %4395 = vmatpush1.msra.mxu0 %v4394
        %v4396 = vand.u32 %v617, 4294901760
        %v4397 = vsub.f32 %v617, %v4396
        %4398 = vmatprep.subr.mxu0 %v4397
        %v4399 = vand.u32 %v616, 4294901760
        %v4400 = vsub.f32 %v616, %v4399
        %4401 = vmatpush1.msra.mxu0 %v4400
        %v4402 = vand.u32 %v621, 4294901760
        %v4403 = vsub.f32 %v621, %v4402
        %4404 = vmatprep.subr.mxu0 %v4403
        %v4405 = vand.u32 %v620, 4294901760
        %v4406 = vsub.f32 %v620, %v4405
        %4407 = vmatpush1.msra.mxu0 %v4406
        %v4408 = vand.u32 %v625, 4294901760
        %v4409 = vsub.f32 %v625, %v4408
        %4410 = vmatprep.subr.mxu0 %v4409
        %v4411 = vand.u32 %v624, 4294901760
        %v4412 = vsub.f32 %v624, %v4411
        %4413 = vmatpush1.msra.mxu0 %v4412
        %v4414 = vand.u32 %v629, 4294901760
        %v4415 = vsub.f32 %v629, %v4414
        %4416 = vmatprep.subr.mxu0 %v4415
        %v4417 = vand.u32 %v628, 4294901760
        %v4418 = vsub.f32 %v628, %v4417
        %4419 = vmatpush1.msra.mxu0 %v4418
        %v4420 = vand.u32 %v375, 4294901760
        %v4421 = vsub.f32 %v375, %v4420
        %4422 = vmatprep.mubr.f32.mxu0 %v4421
        %v4423 = vand.u32 %v374, 4294901760
        %v4424 = vsub.f32 %v374, %v4423
        %4425 = vmatmul.mubr.f32.gmra.mrb[0].mxu0 %v4424
        %v4426 = vpop.f32.mrb[0].mxu0
        %v4427 = vadd.f32 %v4224, %v4426
        %v4428 = vpop.f32.mrb[0].mxu0
        %v4429 = vadd.f32 %v4226, %v4428
        %4430 = vdwg.mxu0
        %v4431 = vand.u32 %v505, 4294901760
        %4432 = vmatprep.subr.mxu0 %v4431
        %v4433 = vand.u32 %v504, 4294901760
        %4434 = vmatpush1.msra.mxu0 %v4433
        %v4435 = vand.u32 %v509, 4294901760
        %4436 = vmatprep.subr.mxu0 %v4435
        %v4437 = vand.u32 %v508, 4294901760
        %4438 = vmatpush1.msra.mxu0 %v4437
        %v4439 = vand.u32 %v513, 4294901760
        %4440 = vmatprep.subr.mxu0 %v4439
        %v4441 = vand.u32 %v512, 4294901760
        %4442 = vmatpush1.msra.mxu0 %v4441
        %v4443 = vand.u32 %v517, 4294901760
        %4444 = vmatprep.subr.mxu0 %v4443
        %v4445 = vand.u32 %v516, 4294901760
        %4446 = vmatpush1.msra.mxu0 %v4445
        %v4447 = vand.u32 %v521, 4294901760
        %4448 = vmatprep.subr.mxu0 %v4447
        %v4449 = vand.u32 %v520, 4294901760
        %4450 = vmatpush1.msra.mxu0 %v4449
        %v4451 = vand.u32 %v525, 4294901760
        %4452 = vmatprep.subr.mxu0 %v4451
        %v4453 = vand.u32 %v524, 4294901760
        %4454 = vmatpush1.msra.mxu0 %v4453
        %v4455 = vand.u32 %v529, 4294901760
        %4456 = vmatprep.subr.mxu0 %v4455
        %v4457 = vand.u32 %v528, 4294901760
        %4458 = vmatpush1.msra.mxu0 %v4457
        %v4459 = vand.u32 %v533, 4294901760
        %4460 = vmatprep.subr.mxu0 %v4459
        %v4461 = vand.u32 %v532, 4294901760
        %4462 = vmatpush1.msra.mxu0 %v4461
        %v4463 = vand.u32 %v537, 4294901760
        %4464 = vmatprep.subr.mxu0 %v4463
        %v4465 = vand.u32 %v536, 4294901760
        %4466 = vmatpush1.msra.mxu0 %v4465
        %v4467 = vand.u32 %v541, 4294901760
        %4468 = vmatprep.subr.mxu0 %v4467
        %v4469 = vand.u32 %v540, 4294901760
        %4470 = vmatpush1.msra.mxu0 %v4469
        %v4471 = vand.u32 %v545, 4294901760
        %4472 = vmatprep.subr.mxu0 %v4471
        %v4473 = vand.u32 %v544, 4294901760
        %4474 = vmatpush1.msra.mxu0 %v4473
        %v4475 = vand.u32 %v549, 4294901760
        %4476 = vmatprep.subr.mxu0 %v4475
        %v4477 = vand.u32 %v548, 4294901760
        %4478 = vmatpush1.msra.mxu0 %v4477
        %v4479 = vand.u32 %v553, 4294901760
        %4480 = vmatprep.subr.mxu0 %v4479
        %v4481 = vand.u32 %v552, 4294901760
        %4482 = vmatpush1.msra.mxu0 %v4481
        %v4483 = vand.u32 %v557, 4294901760
        %4484 = vmatprep.subr.mxu0 %v4483
        %v4485 = vand.u32 %v556, 4294901760
        %4486 = vmatpush1.msra.mxu0 %v4485
        %v4487 = vand.u32 %v561, 4294901760
        %4488 = vmatprep.subr.mxu0 %v4487
        %v4489 = vand.u32 %v560, 4294901760
        %4490 = vmatpush1.msra.mxu0 %v4489
        %v4491 = vand.u32 %v565, 4294901760
        %4492 = vmatprep.subr.mxu0 %v4491
        %v4493 = vand.u32 %v564, 4294901760
        %4494 = vmatpush1.msra.mxu0 %v4493
        %v4495 = vand.u32 %v569, 4294901760
        %4496 = vmatprep.subr.mxu0 %v4495
        %v4497 = vand.u32 %v568, 4294901760
        %4498 = vmatpush1.msra.mxu0 %v4497
        %v4499 = vand.u32 %v573, 4294901760
        %4500 = vmatprep.subr.mxu0 %v4499
        %v4501 = vand.u32 %v572, 4294901760
        %4502 = vmatpush1.msra.mxu0 %v4501
        %v4503 = vand.u32 %v577, 4294901760
        %4504 = vmatprep.subr.mxu0 %v4503
        %v4505 = vand.u32 %v576, 4294901760
        %4506 = vmatpush1.msra.mxu0 %v4505
        %v4507 = vand.u32 %v581, 4294901760
        %4508 = vmatprep.subr.mxu0 %v4507
        %v4509 = vand.u32 %v580, 4294901760
        %4510 = vmatpush1.msra.mxu0 %v4509
        %v4511 = vand.u32 %v585, 4294901760
        %4512 = vmatprep.subr.mxu0 %v4511
        %v4513 = vand.u32 %v584, 4294901760
        %4514 = vmatpush1.msra.mxu0 %v4513
        %v4515 = vand.u32 %v589, 4294901760
        %4516 = vmatprep.subr.mxu0 %v4515
        %v4517 = vand.u32 %v588, 4294901760
        %4518 = vmatpush1.msra.mxu0 %v4517
        %v4519 = vand.u32 %v593, 4294901760
        %4520 = vmatprep.subr.mxu0 %v4519
        %v4521 = vand.u32 %v592, 4294901760
        %4522 = vmatpush1.msra.mxu0 %v4521
        %v4523 = vand.u32 %v597, 4294901760
        %4524 = vmatprep.subr.mxu0 %v4523
        %v4525 = vand.u32 %v596, 4294901760
        %4526 = vmatpush1.msra.mxu0 %v4525
        %v4527 = vand.u32 %v601, 4294901760
        %4528 = vmatprep.subr.mxu0 %v4527
        %v4529 = vand.u32 %v600, 4294901760
        %4530 = vmatpush1.msra.mxu0 %v4529
        %v4531 = vand.u32 %v605, 4294901760
        %4532 = vmatprep.subr.mxu0 %v4531
        %v4533 = vand.u32 %v604, 4294901760
        %4534 = vmatpush1.msra.mxu0 %v4533
        %v4535 = vand.u32 %v609, 4294901760
        %4536 = vmatprep.subr.mxu0 %v4535
        %v4537 = vand.u32 %v608, 4294901760
        %4538 = vmatpush1.msra.mxu0 %v4537
        %v4539 = vand.u32 %v613, 4294901760
        %4540 = vmatprep.subr.mxu0 %v4539
        %v4541 = vand.u32 %v612, 4294901760
        %4542 = vmatpush1.msra.mxu0 %v4541
        %v4543 = vand.u32 %v617, 4294901760
        %4544 = vmatprep.subr.mxu0 %v4543
        %v4545 = vand.u32 %v616, 4294901760
        %4546 = vmatpush1.msra.mxu0 %v4545
        %v4547 = vand.u32 %v621, 4294901760
        %4548 = vmatprep.subr.mxu0 %v4547
        %v4549 = vand.u32 %v620, 4294901760
        %4550 = vmatpush1.msra.mxu0 %v4549
        %v4551 = vand.u32 %v625, 4294901760
        %4552 = vmatprep.subr.mxu0 %v4551
        %v4553 = vand.u32 %v624, 4294901760
        %4554 = vmatpush1.msra.mxu0 %v4553
        %v4555 = vand.u32 %v629, 4294901760
        %4556 = vmatprep.subr.mxu0 %v4555
        %v4557 = vand.u32 %v628, 4294901760
        %4558 = vmatpush1.msra.mxu0 %v4557
        %v4559 = vand.u32 %v375, 4294901760
        %v4560 = vsub.f32 %v375, %v4559
        %v4561 = vand.u32 %v4560, 4294901760
        %4562 = vmatprep.mubr.f32.mxu0 %v4561
        %v4563 = vand.u32 %v374, 4294901760
        %v4564 = vsub.f32 %v374, %v4563
        %v4565 = vand.u32 %v4564, 4294901760
        %4566 = vmatmul.mubr.f32.gmra.mrb[0].mxu0 %v4565
        %v4567 = vpop.f32.mrb[0].mxu0
        %v4568 = vadd.f32 %v4427, %v4567
        %v4569 = vpop.f32.mrb[0].mxu0
        %v4570 = vadd.f32 %v4429, %v4569
        %4571 = vdwg.mxu0
        %v4572 = vand.u32 %v505, 4294901760
        %v4573 = vsub.f32 %v505, %v4572
        %v4574 = vand.u32 %v4573, 4294901760
        %4575 = vmatprep.subr.mxu0 %v4574
        %v4576 = vand.u32 %v504, 4294901760
        %v4577 = vsub.f32 %v504, %v4576
        %v4578 = vand.u32 %v4577, 4294901760
        %4579 = vmatpush1.msra.mxu0 %v4578
        %v4580 = vand.u32 %v509, 4294901760
        %v4581 = vsub.f32 %v509, %v4580
        %v4582 = vand.u32 %v4581, 4294901760
        %4583 = vmatprep.subr.mxu0 %v4582
        %v4584 = vand.u32 %v508, 4294901760
        %v4585 = vsub.f32 %v508, %v4584
        %v4586 = vand.u32 %v4585, 4294901760
        %4587 = vmatpush1.msra.mxu0 %v4586
        %v4588 = vand.u32 %v513, 4294901760
        %v4589 = vsub.f32 %v513, %v4588
        %v4590 = vand.u32 %v4589, 4294901760
        %4591 = vmatprep.subr.mxu0 %v4590
        %v4592 = vand.u32 %v512, 4294901760
        %v4593 = vsub.f32 %v512, %v4592
        %v4594 = vand.u32 %v4593, 4294901760
        %4595 = vmatpush1.msra.mxu0 %v4594
        %v4596 = vand.u32 %v517, 4294901760
        %v4597 = vsub.f32 %v517, %v4596
        %v4598 = vand.u32 %v4597, 4294901760
        %4599 = vmatprep.subr.mxu0 %v4598
        %v4600 = vand.u32 %v516, 4294901760
        %v4601 = vsub.f32 %v516, %v4600
        %v4602 = vand.u32 %v4601, 4294901760
        %4603 = vmatpush1.msra.mxu0 %v4602
        %v4604 = vand.u32 %v521, 4294901760
        %v4605 = vsub.f32 %v521, %v4604
        %v4606 = vand.u32 %v4605, 4294901760
        %4607 = vmatprep.subr.mxu0 %v4606
        %v4608 = vand.u32 %v520, 4294901760
        %v4609 = vsub.f32 %v520, %v4608
        %v4610 = vand.u32 %v4609, 4294901760
        %4611 = vmatpush1.msra.mxu0 %v4610
        %v4612 = vand.u32 %v525, 4294901760
        %v4613 = vsub.f32 %v525, %v4612
        %v4614 = vand.u32 %v4613, 4294901760
        %4615 = vmatprep.subr.mxu0 %v4614
        %v4616 = vand.u32 %v524, 4294901760
        %v4617 = vsub.f32 %v524, %v4616
        %v4618 = vand.u32 %v4617, 4294901760
        %4619 = vmatpush1.msra.mxu0 %v4618
        %v4620 = vand.u32 %v529, 4294901760
        %v4621 = vsub.f32 %v529, %v4620
        %v4622 = vand.u32 %v4621, 4294901760
        %4623 = vmatprep.subr.mxu0 %v4622
        %v4624 = vand.u32 %v528, 4294901760
        %v4625 = vsub.f32 %v528, %v4624
        %v4626 = vand.u32 %v4625, 4294901760
        %4627 = vmatpush1.msra.mxu0 %v4626
        %v4628 = vand.u32 %v533, 4294901760
        %v4629 = vsub.f32 %v533, %v4628
        %v4630 = vand.u32 %v4629, 4294901760
        %4631 = vmatprep.subr.mxu0 %v4630
        %v4632 = vand.u32 %v532, 4294901760
        %v4633 = vsub.f32 %v532, %v4632
        %v4634 = vand.u32 %v4633, 4294901760
        %4635 = vmatpush1.msra.mxu0 %v4634
        %v4636 = vand.u32 %v537, 4294901760
        %v4637 = vsub.f32 %v537, %v4636
        %v4638 = vand.u32 %v4637, 4294901760
        %4639 = vmatprep.subr.mxu0 %v4638
        %v4640 = vand.u32 %v536, 4294901760
        %v4641 = vsub.f32 %v536, %v4640
        %v4642 = vand.u32 %v4641, 4294901760
        %4643 = vmatpush1.msra.mxu0 %v4642
        %v4644 = vand.u32 %v541, 4294901760
        %v4645 = vsub.f32 %v541, %v4644
        %v4646 = vand.u32 %v4645, 4294901760
        %4647 = vmatprep.subr.mxu0 %v4646
        %v4648 = vand.u32 %v540, 4294901760
        %v4649 = vsub.f32 %v540, %v4648
        %v4650 = vand.u32 %v4649, 4294901760
        %4651 = vmatpush1.msra.mxu0 %v4650
        %v4652 = vand.u32 %v545, 4294901760
        %v4653 = vsub.f32 %v545, %v4652
        %v4654 = vand.u32 %v4653, 4294901760
        %4655 = vmatprep.subr.mxu0 %v4654
        %v4656 = vand.u32 %v544, 4294901760
        %v4657 = vsub.f32 %v544, %v4656
        %v4658 = vand.u32 %v4657, 4294901760
        %4659 = vmatpush1.msra.mxu0 %v4658
        %v4660 = vand.u32 %v549, 4294901760
        %v4661 = vsub.f32 %v549, %v4660
        %v4662 = vand.u32 %v4661, 4294901760
        %4663 = vmatprep.subr.mxu0 %v4662
        %v4664 = vand.u32 %v548, 4294901760
        %v4665 = vsub.f32 %v548, %v4664
        %v4666 = vand.u32 %v4665, 4294901760
        %4667 = vmatpush1.msra.mxu0 %v4666
        %v4668 = vand.u32 %v553, 4294901760
        %v4669 = vsub.f32 %v553, %v4668
        %v4670 = vand.u32 %v4669, 4294901760
        %4671 = vmatprep.subr.mxu0 %v4670
        %v4672 = vand.u32 %v552, 4294901760
        %v4673 = vsub.f32 %v552, %v4672
        %v4674 = vand.u32 %v4673, 4294901760
        %4675 = vmatpush1.msra.mxu0 %v4674
        %v4676 = vand.u32 %v557, 4294901760
        %v4677 = vsub.f32 %v557, %v4676
        %v4678 = vand.u32 %v4677, 4294901760
        %4679 = vmatprep.subr.mxu0 %v4678
        %v4680 = vand.u32 %v556, 4294901760
        %v4681 = vsub.f32 %v556, %v4680
        %v4682 = vand.u32 %v4681, 4294901760
        %4683 = vmatpush1.msra.mxu0 %v4682
        %v4684 = vand.u32 %v561, 4294901760
        %v4685 = vsub.f32 %v561, %v4684
        %v4686 = vand.u32 %v4685, 4294901760
        %4687 = vmatprep.subr.mxu0 %v4686
        %v4688 = vand.u32 %v560, 4294901760
        %v4689 = vsub.f32 %v560, %v4688
        %v4690 = vand.u32 %v4689, 4294901760
        %4691 = vmatpush1.msra.mxu0 %v4690
        %v4692 = vand.u32 %v565, 4294901760
        %v4693 = vsub.f32 %v565, %v4692
        %v4694 = vand.u32 %v4693, 4294901760
        %4695 = vmatprep.subr.mxu0 %v4694
        %v4696 = vand.u32 %v564, 4294901760
        %v4697 = vsub.f32 %v564, %v4696
        %v4698 = vand.u32 %v4697, 4294901760
        %4699 = vmatpush1.msra.mxu0 %v4698
        %v4700 = vand.u32 %v569, 4294901760
        %v4701 = vsub.f32 %v569, %v4700
        %v4702 = vand.u32 %v4701, 4294901760
        %4703 = vmatprep.subr.mxu0 %v4702
        %v4704 = vand.u32 %v568, 4294901760
        %v4705 = vsub.f32 %v568, %v4704
        %v4706 = vand.u32 %v4705, 4294901760
        %4707 = vmatpush1.msra.mxu0 %v4706
        %v4708 = vand.u32 %v573, 4294901760
        %v4709 = vsub.f32 %v573, %v4708
        %v4710 = vand.u32 %v4709, 4294901760
        %4711 = vmatprep.subr.mxu0 %v4710
        %v4712 = vand.u32 %v572, 4294901760
        %v4713 = vsub.f32 %v572, %v4712
        %v4714 = vand.u32 %v4713, 4294901760
        %4715 = vmatpush1.msra.mxu0 %v4714
        %v4716 = vand.u32 %v577, 4294901760
        %v4717 = vsub.f32 %v577, %v4716
        %v4718 = vand.u32 %v4717, 4294901760
        %4719 = vmatprep.subr.mxu0 %v4718
        %v4720 = vand.u32 %v576, 4294901760
        %v4721 = vsub.f32 %v576, %v4720
        %v4722 = vand.u32 %v4721, 4294901760
        %4723 = vmatpush1.msra.mxu0 %v4722
        %v4724 = vand.u32 %v581, 4294901760
        %v4725 = vsub.f32 %v581, %v4724
        %v4726 = vand.u32 %v4725, 4294901760
        %4727 = vmatprep.subr.mxu0 %v4726
        %v4728 = vand.u32 %v580, 4294901760
        %v4729 = vsub.f32 %v580, %v4728
        %v4730 = vand.u32 %v4729, 4294901760
        %4731 = vmatpush1.msra.mxu0 %v4730
        %v4732 = vand.u32 %v585, 4294901760
        %v4733 = vsub.f32 %v585, %v4732
        %v4734 = vand.u32 %v4733, 4294901760
        %4735 = vmatprep.subr.mxu0 %v4734
        %v4736 = vand.u32 %v584, 4294901760
        %v4737 = vsub.f32 %v584, %v4736
        %v4738 = vand.u32 %v4737, 4294901760
        %4739 = vmatpush1.msra.mxu0 %v4738
        %v4740 = vand.u32 %v589, 4294901760
        %v4741 = vsub.f32 %v589, %v4740
        %v4742 = vand.u32 %v4741, 4294901760
        %4743 = vmatprep.subr.mxu0 %v4742
        %v4744 = vand.u32 %v588, 4294901760
        %v4745 = vsub.f32 %v588, %v4744
        %v4746 = vand.u32 %v4745, 4294901760
        %4747 = vmatpush1.msra.mxu0 %v4746
        %v4748 = vand.u32 %v593, 4294901760
        %v4749 = vsub.f32 %v593, %v4748
        %v4750 = vand.u32 %v4749, 4294901760
        %4751 = vmatprep.subr.mxu0 %v4750
        %v4752 = vand.u32 %v592, 4294901760
        %v4753 = vsub.f32 %v592, %v4752
        %v4754 = vand.u32 %v4753, 4294901760
        %4755 = vmatpush1.msra.mxu0 %v4754
        %v4756 = vand.u32 %v597, 4294901760
        %v4757 = vsub.f32 %v597, %v4756
        %v4758 = vand.u32 %v4757, 4294901760
        %4759 = vmatprep.subr.mxu0 %v4758
        %v4760 = vand.u32 %v596, 4294901760
        %v4761 = vsub.f32 %v596, %v4760
        %v4762 = vand.u32 %v4761, 4294901760
        %4763 = vmatpush1.msra.mxu0 %v4762
        %v4764 = vand.u32 %v601, 4294901760
        %v4765 = vsub.f32 %v601, %v4764
        %v4766 = vand.u32 %v4765, 4294901760
        %4767 = vmatprep.subr.mxu0 %v4766
        %v4768 = vand.u32 %v600, 4294901760
        %v4769 = vsub.f32 %v600, %v4768
        %v4770 = vand.u32 %v4769, 4294901760
        %4771 = vmatpush1.msra.mxu0 %v4770
        %v4772 = vand.u32 %v605, 4294901760
        %v4773 = vsub.f32 %v605, %v4772
        %v4774 = vand.u32 %v4773, 4294901760
        %4775 = vmatprep.subr.mxu0 %v4774
        %v4776 = vand.u32 %v604, 4294901760
        %v4777 = vsub.f32 %v604, %v4776
        %v4778 = vand.u32 %v4777, 4294901760
        %4779 = vmatpush1.msra.mxu0 %v4778
        %v4780 = vand.u32 %v609, 4294901760
        %v4781 = vsub.f32 %v609, %v4780
        %v4782 = vand.u32 %v4781, 4294901760
        %4783 = vmatprep.subr.mxu0 %v4782
        %v4784 = vand.u32 %v608, 4294901760
        %v4785 = vsub.f32 %v608, %v4784
        %v4786 = vand.u32 %v4785, 4294901760
        %4787 = vmatpush1.msra.mxu0 %v4786
        %v4788 = vand.u32 %v613, 4294901760
        %v4789 = vsub.f32 %v613, %v4788
        %v4790 = vand.u32 %v4789, 4294901760
        %4791 = vmatprep.subr.mxu0 %v4790
        %v4792 = vand.u32 %v612, 4294901760
        %v4793 = vsub.f32 %v612, %v4792
        %v4794 = vand.u32 %v4793, 4294901760
        %4795 = vmatpush1.msra.mxu0 %v4794
        %v4796 = vand.u32 %v617, 4294901760
        %v4797 = vsub.f32 %v617, %v4796
        %v4798 = vand.u32 %v4797, 4294901760
        %4799 = vmatprep.subr.mxu0 %v4798
        %v4800 = vand.u32 %v616, 4294901760
        %v4801 = vsub.f32 %v616, %v4800
        %v4802 = vand.u32 %v4801, 4294901760
        %4803 = vmatpush1.msra.mxu0 %v4802
        %v4804 = vand.u32 %v621, 4294901760
        %v4805 = vsub.f32 %v621, %v4804
        %v4806 = vand.u32 %v4805, 4294901760
        %4807 = vmatprep.subr.mxu0 %v4806
        %v4808 = vand.u32 %v620, 4294901760
        %v4809 = vsub.f32 %v620, %v4808
        %v4810 = vand.u32 %v4809, 4294901760
        %4811 = vmatpush1.msra.mxu0 %v4810
        %v4812 = vand.u32 %v625, 4294901760
        %v4813 = vsub.f32 %v625, %v4812
        %v4814 = vand.u32 %v4813, 4294901760
        %4815 = vmatprep.subr.mxu0 %v4814
        %v4816 = vand.u32 %v624, 4294901760
        %v4817 = vsub.f32 %v624, %v4816
        %v4818 = vand.u32 %v4817, 4294901760
        %4819 = vmatpush1.msra.mxu0 %v4818
        %v4820 = vand.u32 %v629, 4294901760
        %v4821 = vsub.f32 %v629, %v4820
        %v4822 = vand.u32 %v4821, 4294901760
        %4823 = vmatprep.subr.mxu0 %v4822
        %v4824 = vand.u32 %v628, 4294901760
        %v4825 = vsub.f32 %v628, %v4824
        %v4826 = vand.u32 %v4825, 4294901760
        %4827 = vmatpush1.msra.mxu0 %v4826
        %v4828 = vand.u32 %v375, 4294901760
        %4829 = vmatprep.mubr.f32.mxu0 %v4828
        %v4830 = vand.u32 %v374, 4294901760
        %4831 = vmatmul.mubr.f32.gmra.mrb[0].mxu0 %v4830
        %v4832 = vpop.f32.mrb[0].mxu0
        %v4833 = vadd.f32 %v4568, %v4832
        %v4834 = vpop.f32.mrb[0].mxu0
        %v4835 = vadd.f32 %v4570, %v4834
        %4836 = vdwg.mxu0
        %v4837 = vand.u32 %v505, 4294901760
        %4838 = vmatprep.subr.mxu0 %v4837
        %v4839 = vand.u32 %v504, 4294901760
        %4840 = vmatpush1.msra.mxu0 %v4839
        %v4841 = vand.u32 %v509, 4294901760
        %4842 = vmatprep.subr.mxu0 %v4841
        %v4843 = vand.u32 %v508, 4294901760
        %4844 = vmatpush1.msra.mxu0 %v4843
        %v4845 = vand.u32 %v513, 4294901760
        %4846 = vmatprep.subr.mxu0 %v4845
        %v4847 = vand.u32 %v512, 4294901760
        %4848 = vmatpush1.msra.mxu0 %v4847
        %v4849 = vand.u32 %v517, 4294901760
        %4850 = vmatprep.subr.mxu0 %v4849
        %v4851 = vand.u32 %v516, 4294901760
        %4852 = vmatpush1.msra.mxu0 %v4851
        %v4853 = vand.u32 %v521, 4294901760
        %4854 = vmatprep.subr.mxu0 %v4853
        %v4855 = vand.u32 %v520, 4294901760
        %4856 = vmatpush1.msra.mxu0 %v4855
        %v4857 = vand.u32 %v525, 4294901760
        %4858 = vmatprep.subr.mxu0 %v4857
        %v4859 = vand.u32 %v524, 4294901760
        %4860 = vmatpush1.msra.mxu0 %v4859
        %v4861 = vand.u32 %v529, 4294901760
        %4862 = vmatprep.subr.mxu0 %v4861
        %v4863 = vand.u32 %v528, 4294901760
        %4864 = vmatpush1.msra.mxu0 %v4863
        %v4865 = vand.u32 %v533, 4294901760
        %4866 = vmatprep.subr.mxu0 %v4865
        %v4867 = vand.u32 %v532, 4294901760
        %4868 = vmatpush1.msra.mxu0 %v4867
        %v4869 = vand.u32 %v537, 4294901760
        %4870 = vmatprep.subr.mxu0 %v4869
        %v4871 = vand.u32 %v536, 4294901760
        %4872 = vmatpush1.msra.mxu0 %v4871
        %v4873 = vand.u32 %v541, 4294901760
        %4874 = vmatprep.subr.mxu0 %v4873
        %v4875 = vand.u32 %v540, 4294901760
        %4876 = vmatpush1.msra.mxu0 %v4875
        %v4877 = vand.u32 %v545, 4294901760
        %4878 = vmatprep.subr.mxu0 %v4877
        %v4879 = vand.u32 %v544, 4294901760
        %4880 = vmatpush1.msra.mxu0 %v4879
        %v4881 = vand.u32 %v549, 4294901760
        %4882 = vmatprep.subr.mxu0 %v4881
        %v4883 = vand.u32 %v548, 4294901760
        %4884 = vmatpush1.msra.mxu0 %v4883
        %v4885 = vand.u32 %v553, 4294901760
        %4886 = vmatprep.subr.mxu0 %v4885
        %v4887 = vand.u32 %v552, 4294901760
        %4888 = vmatpush1.msra.mxu0 %v4887
        %v4889 = vand.u32 %v557, 4294901760
        %4890 = vmatprep.subr.mxu0 %v4889
        %v4891 = vand.u32 %v556, 4294901760
        %4892 = vmatpush1.msra.mxu0 %v4891
        %v4893 = vand.u32 %v561, 4294901760
        %4894 = vmatprep.subr.mxu0 %v4893
        %v4895 = vand.u32 %v560, 4294901760
        %4896 = vmatpush1.msra.mxu0 %v4895
        %v4897 = vand.u32 %v565, 4294901760
        %4898 = vmatprep.subr.mxu0 %v4897
        %v4899 = vand.u32 %v564, 4294901760
        %4900 = vmatpush1.msra.mxu0 %v4899
        %v4901 = vand.u32 %v569, 4294901760
        %4902 = vmatprep.subr.mxu0 %v4901
        %v4903 = vand.u32 %v568, 4294901760
        %4904 = vmatpush1.msra.mxu0 %v4903
        %v4905 = vand.u32 %v573, 4294901760
        %4906 = vmatprep.subr.mxu0 %v4905
        %v4907 = vand.u32 %v572, 4294901760
        %4908 = vmatpush1.msra.mxu0 %v4907
        %v4909 = vand.u32 %v577, 4294901760
        %4910 = vmatprep.subr.mxu0 %v4909
        %v4911 = vand.u32 %v576, 4294901760
        %4912 = vmatpush1.msra.mxu0 %v4911
        %v4913 = vand.u32 %v581, 4294901760
        %4914 = vmatprep.subr.mxu0 %v4913
        %v4915 = vand.u32 %v580, 4294901760
        %4916 = vmatpush1.msra.mxu0 %v4915
        %v4917 = vand.u32 %v585, 4294901760
        %4918 = vmatprep.subr.mxu0 %v4917
        %v4919 = vand.u32 %v584, 4294901760
        %4920 = vmatpush1.msra.mxu0 %v4919
        %v4921 = vand.u32 %v589, 4294901760
        %4922 = vmatprep.subr.mxu0 %v4921
        %v4923 = vand.u32 %v588, 4294901760
        %4924 = vmatpush1.msra.mxu0 %v4923
        %v4925 = vand.u32 %v593, 4294901760
        %4926 = vmatprep.subr.mxu0 %v4925
        %v4927 = vand.u32 %v592, 4294901760
        %4928 = vmatpush1.msra.mxu0 %v4927
        %v4929 = vand.u32 %v597, 4294901760
        %4930 = vmatprep.subr.mxu0 %v4929
        %v4931 = vand.u32 %v596, 4294901760
        %4932 = vmatpush1.msra.mxu0 %v4931
        %v4933 = vand.u32 %v601, 4294901760
        %4934 = vmatprep.subr.mxu0 %v4933
        %v4935 = vand.u32 %v600, 4294901760
        %4936 = vmatpush1.msra.mxu0 %v4935
        %v4937 = vand.u32 %v605, 4294901760
        %4938 = vmatprep.subr.mxu0 %v4937
        %v4939 = vand.u32 %v604, 4294901760
        %4940 = vmatpush1.msra.mxu0 %v4939
        %v4941 = vand.u32 %v609, 4294901760
        %4942 = vmatprep.subr.mxu0 %v4941
        %v4943 = vand.u32 %v608, 4294901760
        %4944 = vmatpush1.msra.mxu0 %v4943
        %v4945 = vand.u32 %v613, 4294901760
        %4946 = vmatprep.subr.mxu0 %v4945
        %v4947 = vand.u32 %v612, 4294901760
        %4948 = vmatpush1.msra.mxu0 %v4947
        %v4949 = vand.u32 %v617, 4294901760
        %4950 = vmatprep.subr.mxu0 %v4949
        %v4951 = vand.u32 %v616, 4294901760
        %4952 = vmatpush1.msra.mxu0 %v4951
        %v4953 = vand.u32 %v621, 4294901760
        %4954 = vmatprep.subr.mxu0 %v4953
        %v4955 = vand.u32 %v620, 4294901760
        %4956 = vmatpush1.msra.mxu0 %v4955
        %v4957 = vand.u32 %v625, 4294901760
        %4958 = vmatprep.subr.mxu0 %v4957
        %v4959 = vand.u32 %v624, 4294901760
        %4960 = vmatpush1.msra.mxu0 %v4959
        %v4961 = vand.u32 %v629, 4294901760
        %4962 = vmatprep.subr.mxu0 %v4961
        %v4963 = vand.u32 %v628, 4294901760
        %4964 = vmatpush1.msra.mxu0 %v4963
        %v4965 = vand.u32 %v375, 4294901760
        %4966 = vmatprep.mubr.f32.mxu0 %v4965
        %v4967 = vand.u32 %v374, 4294901760
        %4968 = vmatmul.mubr.f32.gmra.mrb[0].mxu0 %v4967
        %v4969 = vpop.f32.mrb[0].mxu0
        %v4970 = vadd.f32 %v4833, %v4969
        %v4971 = vpop.f32.mrb[0].mxu0
        %v4972 = vadd.f32 %v4835, %v4971
        %4973 = vdwg.mxu0
        %v4974 = vand.u32 %v379, 4294901760
        %4975 = vmatprep.subr.mxu0 %v4974
        %v4976 = vand.u32 %v378, 4294901760
        %4977 = vmatpush1.msra.mxu0 %v4976
        %v4978 = vand.u32 %v383, 4294901760
        %4979 = vmatprep.subr.mxu0 %v4978
        %v4980 = vand.u32 %v382, 4294901760
        %4981 = vmatpush1.msra.mxu0 %v4980
        %v4982 = vand.u32 %v387, 4294901760
        %4983 = vmatprep.subr.mxu0 %v4982
        %v4984 = vand.u32 %v386, 4294901760
        %4985 = vmatpush1.msra.mxu0 %v4984
        %v4986 = vand.u32 %v391, 4294901760
        %4987 = vmatprep.subr.mxu0 %v4986
        %v4988 = vand.u32 %v390, 4294901760
        %4989 = vmatpush1.msra.mxu0 %v4988
        %v4990 = vand.u32 %v395, 4294901760
        %4991 = vmatprep.subr.mxu0 %v4990
        %v4992 = vand.u32 %v394, 4294901760
        %4993 = vmatpush1.msra.mxu0 %v4992
        %v4994 = vand.u32 %v399, 4294901760
        %4995 = vmatprep.subr.mxu0 %v4994
        %v4996 = vand.u32 %v398, 4294901760
        %4997 = vmatpush1.msra.mxu0 %v4996
        %v4998 = vand.u32 %v403, 4294901760
        %4999 = vmatprep.subr.mxu0 %v4998
        %v5000 = vand.u32 %v402, 4294901760
        %5001 = vmatpush1.msra.mxu0 %v5000
        %v5002 = vand.u32 %v407, 4294901760
        %5003 = vmatprep.subr.mxu0 %v5002
        %v5004 = vand.u32 %v406, 4294901760
        %5005 = vmatpush1.msra.mxu0 %v5004
        %v5006 = vand.u32 %v411, 4294901760
        %5007 = vmatprep.subr.mxu0 %v5006
        %v5008 = vand.u32 %v410, 4294901760
        %5009 = vmatpush1.msra.mxu0 %v5008
        %v5010 = vand.u32 %v415, 4294901760
        %5011 = vmatprep.subr.mxu0 %v5010
        %v5012 = vand.u32 %v414, 4294901760
        %5013 = vmatpush1.msra.mxu0 %v5012
        %v5014 = vand.u32 %v419, 4294901760
        %5015 = vmatprep.subr.mxu0 %v5014
        %v5016 = vand.u32 %v418, 4294901760
        %5017 = vmatpush1.msra.mxu0 %v5016
        %v5018 = vand.u32 %v423, 4294901760
        %5019 = vmatprep.subr.mxu0 %v5018
        %v5020 = vand.u32 %v422, 4294901760
        %5021 = vmatpush1.msra.mxu0 %v5020
        %v5022 = vand.u32 %v427, 4294901760
        %5023 = vmatprep.subr.mxu0 %v5022
        %v5024 = vand.u32 %v426, 4294901760
        %5025 = vmatpush1.msra.mxu0 %v5024
        %v5026 = vand.u32 %v431, 4294901760
        %5027 = vmatprep.subr.mxu0 %v5026
        %v5028 = vand.u32 %v430, 4294901760
        %5029 = vmatpush1.msra.mxu0 %v5028
        %v5030 = vand.u32 %v435, 4294901760
        %5031 = vmatprep.subr.mxu0 %v5030
        %v5032 = vand.u32 %v434, 4294901760
        %5033 = vmatpush1.msra.mxu0 %v5032
        %v5034 = vand.u32 %v439, 4294901760
        %5035 = vmatprep.subr.mxu0 %v5034
        %v5036 = vand.u32 %v438, 4294901760
        %5037 = vmatpush1.msra.mxu0 %v5036
        %v5038 = vand.u32 %v443, 4294901760
        %5039 = vmatprep.subr.mxu0 %v5038
        %v5040 = vand.u32 %v442, 4294901760
        %5041 = vmatpush1.msra.mxu0 %v5040
        %v5042 = vand.u32 %v447, 4294901760
        %5043 = vmatprep.subr.mxu0 %v5042
        %v5044 = vand.u32 %v446, 4294901760
        %5045 = vmatpush1.msra.mxu0 %v5044
        %v5046 = vand.u32 %v451, 4294901760
        %5047 = vmatprep.subr.mxu0 %v5046
        %v5048 = vand.u32 %v450, 4294901760
        %5049 = vmatpush1.msra.mxu0 %v5048
        %v5050 = vand.u32 %v455, 4294901760
        %5051 = vmatprep.subr.mxu0 %v5050
        %v5052 = vand.u32 %v454, 4294901760
        %5053 = vmatpush1.msra.mxu0 %v5052
        %v5054 = vand.u32 %v459, 4294901760
        %5055 = vmatprep.subr.mxu0 %v5054
        %v5056 = vand.u32 %v458, 4294901760
        %5057 = vmatpush1.msra.mxu0 %v5056
        %v5058 = vand.u32 %v463, 4294901760
        %5059 = vmatprep.subr.mxu0 %v5058
        %v5060 = vand.u32 %v462, 4294901760
        %5061 = vmatpush1.msra.mxu0 %v5060
        %v5062 = vand.u32 %v467, 4294901760
        %5063 = vmatprep.subr.mxu0 %v5062
        %v5064 = vand.u32 %v466, 4294901760
        %5065 = vmatpush1.msra.mxu0 %v5064
        %v5066 = vand.u32 %v471, 4294901760
        %5067 = vmatprep.subr.mxu0 %v5066
        %v5068 = vand.u32 %v470, 4294901760
        %5069 = vmatpush1.msra.mxu0 %v5068
        %v5070 = vand.u32 %v475, 4294901760
        %5071 = vmatprep.subr.mxu0 %v5070
        %v5072 = vand.u32 %v474, 4294901760
        %5073 = vmatpush1.msra.mxu0 %v5072
        %v5074 = vand.u32 %v479, 4294901760
        %5075 = vmatprep.subr.mxu0 %v5074
        %v5076 = vand.u32 %v478, 4294901760
        %5077 = vmatpush1.msra.mxu0 %v5076
        %v5078 = vand.u32 %v483, 4294901760
        %5079 = vmatprep.subr.mxu0 %v5078
        %v5080 = vand.u32 %v482, 4294901760
        %5081 = vmatpush1.msra.mxu0 %v5080
        %v5082 = vand.u32 %v487, 4294901760
        %5083 = vmatprep.subr.mxu0 %v5082
        %v5084 = vand.u32 %v486, 4294901760
        %5085 = vmatpush1.msra.mxu0 %v5084
        %v5086 = vand.u32 %v491, 4294901760
        %5087 = vmatprep.subr.mxu0 %v5086
        %v5088 = vand.u32 %v490, 4294901760
        %5089 = vmatpush1.msra.mxu0 %v5088
        %v5090 = vand.u32 %v495, 4294901760
        %5091 = vmatprep.subr.mxu0 %v5090
        %v5092 = vand.u32 %v494, 4294901760
        %5093 = vmatpush1.msra.mxu0 %v5092
        %v5094 = vand.u32 %v499, 4294901760
        %5095 = vmatprep.subr.mxu0 %v5094
        %v5096 = vand.u32 %v498, 4294901760
        %5097 = vmatpush1.msra.mxu0 %v5096
        %v5098 = vand.u32 %v503, 4294901760
        %5099 = vmatprep.subr.mxu0 %v5098
        %v5100 = vand.u32 %v502, 4294901760
        %5101 = vmatpush1.msra.mxu0 %v5100
        %v5102 = vand.u32 %v373, 4294901760
        %v5103 = vsub.f32 %v373, %v5102
        %v5104 = vand.u32 %v5103, 4294901760
        %v5105 = vsub.f32 %v5103, %v5104
        %v5106 = vand.u32 %v5105, 4294901760
        %5107 = vmatprep.mubr.f32.mxu0 %v5106
        %v5108 = vand.u32 %v372, 4294901760
        %v5109 = vsub.f32 %v372, %v5108
        %v5110 = vand.u32 %v5109, 4294901760
        %v5111 = vsub.f32 %v5109, %v5110
        %v5112 = vand.u32 %v5111, 4294901760
        %5113 = vmatmul.mubr.f32.gmra.mrb[0].mxu0 %v5112
        %v5114 = vpop.f32.mrb[0].mxu0
        %v5115 = vadd.f32 %v2402, %v5114
        %v5116 = vpop.f32.mrb[0].mxu0
        %v5117 = vadd.f32 %v2404, %v5116
        %5118 = vdwg.mxu0
        %v5119 = vand.u32 %v379, 4294901760
        %v5120 = vsub.f32 %v379, %v5119
        %v5121 = vand.u32 %v5120, 4294901760
        %v5122 = vsub.f32 %v5120, %v5121
        %v5123 = vand.u32 %v5122, 4294901760
        %5124 = vmatprep.subr.mxu0 %v5123
        %v5125 = vand.u32 %v378, 4294901760
        %v5126 = vsub.f32 %v378, %v5125
        %v5127 = vand.u32 %v5126, 4294901760
        %v5128 = vsub.f32 %v5126, %v5127
        %v5129 = vand.u32 %v5128, 4294901760
        %5130 = vmatpush1.msra.mxu0 %v5129
        %v5131 = vand.u32 %v383, 4294901760
        %v5132 = vsub.f32 %v383, %v5131
        %v5133 = vand.u32 %v5132, 4294901760
        %v5134 = vsub.f32 %v5132, %v5133
        %v5135 = vand.u32 %v5134, 4294901760
        %5136 = vmatprep.subr.mxu0 %v5135
        %v5137 = vand.u32 %v382, 4294901760
        %v5138 = vsub.f32 %v382, %v5137
        %v5139 = vand.u32 %v5138, 4294901760
        %v5140 = vsub.f32 %v5138, %v5139
        %v5141 = vand.u32 %v5140, 4294901760
        %5142 = vmatpush1.msra.mxu0 %v5141
        %v5143 = vand.u32 %v387, 4294901760
        %v5144 = vsub.f32 %v387, %v5143
        %v5145 = vand.u32 %v5144, 4294901760
        %v5146 = vsub.f32 %v5144, %v5145
        %v5147 = vand.u32 %v5146, 4294901760
        %5148 = vmatprep.subr.mxu0 %v5147
        %v5149 = vand.u32 %v386, 4294901760
        %v5150 = vsub.f32 %v386, %v5149
        %v5151 = vand.u32 %v5150, 4294901760
        %v5152 = vsub.f32 %v5150, %v5151
        %v5153 = vand.u32 %v5152, 4294901760
        %5154 = vmatpush1.msra.mxu0 %v5153
        %v5155 = vand.u32 %v391, 4294901760
        %v5156 = vsub.f32 %v391, %v5155
        %v5157 = vand.u32 %v5156, 4294901760
        %v5158 = vsub.f32 %v5156, %v5157
        %v5159 = vand.u32 %v5158, 4294901760
        %5160 = vmatprep.subr.mxu0 %v5159
        %v5161 = vand.u32 %v390, 4294901760
        %v5162 = vsub.f32 %v390, %v5161
        %v5163 = vand.u32 %v5162, 4294901760
        %v5164 = vsub.f32 %v5162, %v5163
        %v5165 = vand.u32 %v5164, 4294901760
        %5166 = vmatpush1.msra.mxu0 %v5165
        %v5167 = vand.u32 %v395, 4294901760
        %v5168 = vsub.f32 %v395, %v5167
        %v5169 = vand.u32 %v5168, 4294901760
        %v5170 = vsub.f32 %v5168, %v5169
        %v5171 = vand.u32 %v5170, 4294901760
        %5172 = vmatprep.subr.mxu0 %v5171
        %v5173 = vand.u32 %v394, 4294901760
        %v5174 = vsub.f32 %v394, %v5173
        %v5175 = vand.u32 %v5174, 4294901760
        %v5176 = vsub.f32 %v5174, %v5175
        %v5177 = vand.u32 %v5176, 4294901760
        %5178 = vmatpush1.msra.mxu0 %v5177
        %v5179 = vand.u32 %v399, 4294901760
        %v5180 = vsub.f32 %v399, %v5179
        %v5181 = vand.u32 %v5180, 4294901760
        %v5182 = vsub.f32 %v5180, %v5181
        %v5183 = vand.u32 %v5182, 4294901760
        %5184 = vmatprep.subr.mxu0 %v5183
        %v5185 = vand.u32 %v398, 4294901760
        %v5186 = vsub.f32 %v398, %v5185
        %v5187 = vand.u32 %v5186, 4294901760
        %v5188 = vsub.f32 %v5186, %v5187
        %v5189 = vand.u32 %v5188, 4294901760
        %5190 = vmatpush1.msra.mxu0 %v5189
        %v5191 = vand.u32 %v403, 4294901760
        %v5192 = vsub.f32 %v403, %v5191
        %v5193 = vand.u32 %v5192, 4294901760
        %v5194 = vsub.f32 %v5192, %v5193
        %v5195 = vand.u32 %v5194, 4294901760
        %5196 = vmatprep.subr.mxu0 %v5195
        %v5197 = vand.u32 %v402, 4294901760
        %v5198 = vsub.f32 %v402, %v5197
        %v5199 = vand.u32 %v5198, 4294901760
        %v5200 = vsub.f32 %v5198, %v5199
        %v5201 = vand.u32 %v5200, 4294901760
        %5202 = vmatpush1.msra.mxu0 %v5201
        %v5203 = vand.u32 %v407, 4294901760
        %v5204 = vsub.f32 %v407, %v5203
        %v5205 = vand.u32 %v5204, 4294901760
        %v5206 = vsub.f32 %v5204, %v5205
        %v5207 = vand.u32 %v5206, 4294901760
        %5208 = vmatprep.subr.mxu0 %v5207
        %v5209 = vand.u32 %v406, 4294901760
        %v5210 = vsub.f32 %v406, %v5209
        %v5211 = vand.u32 %v5210, 4294901760
        %v5212 = vsub.f32 %v5210, %v5211
        %v5213 = vand.u32 %v5212, 4294901760
        %5214 = vmatpush1.msra.mxu0 %v5213
        %v5215 = vand.u32 %v411, 4294901760
        %v5216 = vsub.f32 %v411, %v5215
        %v5217 = vand.u32 %v5216, 4294901760
        %v5218 = vsub.f32 %v5216, %v5217
        %v5219 = vand.u32 %v5218, 4294901760
        %5220 = vmatprep.subr.mxu0 %v5219
        %v5221 = vand.u32 %v410, 4294901760
        %v5222 = vsub.f32 %v410, %v5221
        %v5223 = vand.u32 %v5222, 4294901760
        %v5224 = vsub.f32 %v5222, %v5223
        %v5225 = vand.u32 %v5224, 4294901760
        %5226 = vmatpush1.msra.mxu0 %v5225
        %v5227 = vand.u32 %v415, 4294901760
        %v5228 = vsub.f32 %v415, %v5227
        %v5229 = vand.u32 %v5228, 4294901760
        %v5230 = vsub.f32 %v5228, %v5229
        %v5231 = vand.u32 %v5230, 4294901760
        %5232 = vmatprep.subr.mxu0 %v5231
        %v5233 = vand.u32 %v414, 4294901760
        %v5234 = vsub.f32 %v414, %v5233
        %v5235 = vand.u32 %v5234, 4294901760
        %v5236 = vsub.f32 %v5234, %v5235
        %v5237 = vand.u32 %v5236, 4294901760
        %5238 = vmatpush1.msra.mxu0 %v5237
        %v5239 = vand.u32 %v419, 4294901760
        %v5240 = vsub.f32 %v419, %v5239
        %v5241 = vand.u32 %v5240, 4294901760
        %v5242 = vsub.f32 %v5240, %v5241
        %v5243 = vand.u32 %v5242, 4294901760
        %5244 = vmatprep.subr.mxu0 %v5243
        %v5245 = vand.u32 %v418, 4294901760
        %v5246 = vsub.f32 %v418, %v5245
        %v5247 = vand.u32 %v5246, 4294901760
        %v5248 = vsub.f32 %v5246, %v5247
        %v5249 = vand.u32 %v5248, 4294901760
        %5250 = vmatpush1.msra.mxu0 %v5249
        %v5251 = vand.u32 %v423, 4294901760
        %v5252 = vsub.f32 %v423, %v5251
        %v5253 = vand.u32 %v5252, 4294901760
        %v5254 = vsub.f32 %v5252, %v5253
        %v5255 = vand.u32 %v5254, 4294901760
        %5256 = vmatprep.subr.mxu0 %v5255
        %v5257 = vand.u32 %v422, 4294901760
        %v5258 = vsub.f32 %v422, %v5257
        %v5259 = vand.u32 %v5258, 4294901760
        %v5260 = vsub.f32 %v5258, %v5259
        %v5261 = vand.u32 %v5260, 4294901760
        %5262 = vmatpush1.msra.mxu0 %v5261
        %v5263 = vand.u32 %v427, 4294901760
        %v5264 = vsub.f32 %v427, %v5263
        %v5265 = vand.u32 %v5264, 4294901760
        %v5266 = vsub.f32 %v5264, %v5265
        %v5267 = vand.u32 %v5266, 4294901760
        %5268 = vmatprep.subr.mxu0 %v5267
        %v5269 = vand.u32 %v426, 4294901760
        %v5270 = vsub.f32 %v426, %v5269
        %v5271 = vand.u32 %v5270, 4294901760
        %v5272 = vsub.f32 %v5270, %v5271
        %v5273 = vand.u32 %v5272, 4294901760
        %5274 = vmatpush1.msra.mxu0 %v5273
        %v5275 = vand.u32 %v431, 4294901760
        %v5276 = vsub.f32 %v431, %v5275
        %v5277 = vand.u32 %v5276, 4294901760
        %v5278 = vsub.f32 %v5276, %v5277
        %v5279 = vand.u32 %v5278, 4294901760
        %5280 = vmatprep.subr.mxu0 %v5279
        %v5281 = vand.u32 %v430, 4294901760
        %v5282 = vsub.f32 %v430, %v5281
        %v5283 = vand.u32 %v5282, 4294901760
        %v5284 = vsub.f32 %v5282, %v5283
        %v5285 = vand.u32 %v5284, 4294901760
        %5286 = vmatpush1.msra.mxu0 %v5285
        %v5287 = vand.u32 %v435, 4294901760
        %v5288 = vsub.f32 %v435, %v5287
        %v5289 = vand.u32 %v5288, 4294901760
        %v5290 = vsub.f32 %v5288, %v5289
        %v5291 = vand.u32 %v5290, 4294901760
        %5292 = vmatprep.subr.mxu0 %v5291
        %v5293 = vand.u32 %v434, 4294901760
        %v5294 = vsub.f32 %v434, %v5293
        %v5295 = vand.u32 %v5294, 4294901760
        %v5296 = vsub.f32 %v5294, %v5295
        %v5297 = vand.u32 %v5296, 4294901760
        %5298 = vmatpush1.msra.mxu0 %v5297
        %v5299 = vand.u32 %v439, 4294901760
        %v5300 = vsub.f32 %v439, %v5299
        %v5301 = vand.u32 %v5300, 4294901760
        %v5302 = vsub.f32 %v5300, %v5301
        %v5303 = vand.u32 %v5302, 4294901760
        %5304 = vmatprep.subr.mxu0 %v5303
        %v5305 = vand.u32 %v438, 4294901760
        %v5306 = vsub.f32 %v438, %v5305
        %v5307 = vand.u32 %v5306, 4294901760
        %v5308 = vsub.f32 %v5306, %v5307
        %v5309 = vand.u32 %v5308, 4294901760
        %5310 = vmatpush1.msra.mxu0 %v5309
        %v5311 = vand.u32 %v443, 4294901760
        %v5312 = vsub.f32 %v443, %v5311
        %v5313 = vand.u32 %v5312, 4294901760
        %v5314 = vsub.f32 %v5312, %v5313
        %v5315 = vand.u32 %v5314, 4294901760
        %5316 = vmatprep.subr.mxu0 %v5315
        %v5317 = vand.u32 %v442, 4294901760
        %v5318 = vsub.f32 %v442, %v5317
        %v5319 = vand.u32 %v5318, 4294901760
        %v5320 = vsub.f32 %v5318, %v5319
        %v5321 = vand.u32 %v5320, 4294901760
        %5322 = vmatpush1.msra.mxu0 %v5321
        %v5323 = vand.u32 %v447, 4294901760
        %v5324 = vsub.f32 %v447, %v5323
        %v5325 = vand.u32 %v5324, 4294901760
        %v5326 = vsub.f32 %v5324, %v5325
        %v5327 = vand.u32 %v5326, 4294901760
        %5328 = vmatprep.subr.mxu0 %v5327
        %v5329 = vand.u32 %v446, 4294901760
        %v5330 = vsub.f32 %v446, %v5329
        %v5331 = vand.u32 %v5330, 4294901760
        %v5332 = vsub.f32 %v5330, %v5331
        %v5333 = vand.u32 %v5332, 4294901760
        %5334 = vmatpush1.msra.mxu0 %v5333
        %v5335 = vand.u32 %v451, 4294901760
        %v5336 = vsub.f32 %v451, %v5335
        %v5337 = vand.u32 %v5336, 4294901760
        %v5338 = vsub.f32 %v5336, %v5337
        %v5339 = vand.u32 %v5338, 4294901760
        %5340 = vmatprep.subr.mxu0 %v5339
        %v5341 = vand.u32 %v450, 4294901760
        %v5342 = vsub.f32 %v450, %v5341
        %v5343 = vand.u32 %v5342, 4294901760
        %v5344 = vsub.f32 %v5342, %v5343
        %v5345 = vand.u32 %v5344, 4294901760
        %5346 = vmatpush1.msra.mxu0 %v5345
        %v5347 = vand.u32 %v455, 4294901760
        %v5348 = vsub.f32 %v455, %v5347
        %v5349 = vand.u32 %v5348, 4294901760
        %v5350 = vsub.f32 %v5348, %v5349
        %v5351 = vand.u32 %v5350, 4294901760
        %5352 = vmatprep.subr.mxu0 %v5351
        %v5353 = vand.u32 %v454, 4294901760
        %v5354 = vsub.f32 %v454, %v5353
        %v5355 = vand.u32 %v5354, 4294901760
        %v5356 = vsub.f32 %v5354, %v5355
        %v5357 = vand.u32 %v5356, 4294901760
        %5358 = vmatpush1.msra.mxu0 %v5357
        %v5359 = vand.u32 %v459, 4294901760
        %v5360 = vsub.f32 %v459, %v5359
        %v5361 = vand.u32 %v5360, 4294901760
        %v5362 = vsub.f32 %v5360, %v5361
        %v5363 = vand.u32 %v5362, 4294901760
        %5364 = vmatprep.subr.mxu0 %v5363
        %v5365 = vand.u32 %v458, 4294901760
        %v5366 = vsub.f32 %v458, %v5365
        %v5367 = vand.u32 %v5366, 4294901760
        %v5368 = vsub.f32 %v5366, %v5367
        %v5369 = vand.u32 %v5368, 4294901760
        %5370 = vmatpush1.msra.mxu0 %v5369
        %v5371 = vand.u32 %v463, 4294901760
        %v5372 = vsub.f32 %v463, %v5371
        %v5373 = vand.u32 %v5372, 4294901760
        %v5374 = vsub.f32 %v5372, %v5373
        %v5375 = vand.u32 %v5374, 4294901760
        %5376 = vmatprep.subr.mxu0 %v5375
        %v5377 = vand.u32 %v462, 4294901760
        %v5378 = vsub.f32 %v462, %v5377
        %v5379 = vand.u32 %v5378, 4294901760
        %v5380 = vsub.f32 %v5378, %v5379
        %v5381 = vand.u32 %v5380, 4294901760
        %5382 = vmatpush1.msra.mxu0 %v5381
        %v5383 = vand.u32 %v467, 4294901760
        %v5384 = vsub.f32 %v467, %v5383
        %v5385 = vand.u32 %v5384, 4294901760
        %v5386 = vsub.f32 %v5384, %v5385
        %v5387 = vand.u32 %v5386, 4294901760
        %5388 = vmatprep.subr.mxu0 %v5387
        %v5389 = vand.u32 %v466, 4294901760
        %v5390 = vsub.f32 %v466, %v5389
        %v5391 = vand.u32 %v5390, 4294901760
        %v5392 = vsub.f32 %v5390, %v5391
        %v5393 = vand.u32 %v5392, 4294901760
        %5394 = vmatpush1.msra.mxu0 %v5393
        %v5395 = vand.u32 %v471, 4294901760
        %v5396 = vsub.f32 %v471, %v5395
        %v5397 = vand.u32 %v5396, 4294901760
        %v5398 = vsub.f32 %v5396, %v5397
        %v5399 = vand.u32 %v5398, 4294901760
        %5400 = vmatprep.subr.mxu0 %v5399
        %v5401 = vand.u32 %v470, 4294901760
        %v5402 = vsub.f32 %v470, %v5401
        %v5403 = vand.u32 %v5402, 4294901760
        %v5404 = vsub.f32 %v5402, %v5403
        %v5405 = vand.u32 %v5404, 4294901760
        %5406 = vmatpush1.msra.mxu0 %v5405
        %v5407 = vand.u32 %v475, 4294901760
        %v5408 = vsub.f32 %v475, %v5407
        %v5409 = vand.u32 %v5408, 4294901760
        %v5410 = vsub.f32 %v5408, %v5409
        %v5411 = vand.u32 %v5410, 4294901760
        %5412 = vmatprep.subr.mxu0 %v5411
        %v5413 = vand.u32 %v474, 4294901760
        %v5414 = vsub.f32 %v474, %v5413
        %v5415 = vand.u32 %v5414, 4294901760
        %v5416 = vsub.f32 %v5414, %v5415
        %v5417 = vand.u32 %v5416, 4294901760
        %5418 = vmatpush1.msra.mxu0 %v5417
        %v5419 = vand.u32 %v479, 4294901760
        %v5420 = vsub.f32 %v479, %v5419
        %v5421 = vand.u32 %v5420, 4294901760
        %v5422 = vsub.f32 %v5420, %v5421
        %v5423 = vand.u32 %v5422, 4294901760
        %5424 = vmatprep.subr.mxu0 %v5423
        %v5425 = vand.u32 %v478, 4294901760
        %v5426 = vsub.f32 %v478, %v5425
        %v5427 = vand.u32 %v5426, 4294901760
        %v5428 = vsub.f32 %v5426, %v5427
        %v5429 = vand.u32 %v5428, 4294901760
        %5430 = vmatpush1.msra.mxu0 %v5429
        %v5431 = vand.u32 %v483, 4294901760
        %v5432 = vsub.f32 %v483, %v5431
        %v5433 = vand.u32 %v5432, 4294901760
        %v5434 = vsub.f32 %v5432, %v5433
        %v5435 = vand.u32 %v5434, 4294901760
        %5436 = vmatprep.subr.mxu0 %v5435
        %v5437 = vand.u32 %v482, 4294901760
        %v5438 = vsub.f32 %v482, %v5437
        %v5439 = vand.u32 %v5438, 4294901760
        %v5440 = vsub.f32 %v5438, %v5439
        %v5441 = vand.u32 %v5440, 4294901760
        %5442 = vmatpush1.msra.mxu0 %v5441
        %v5443 = vand.u32 %v487, 4294901760
        %v5444 = vsub.f32 %v487, %v5443
        %v5445 = vand.u32 %v5444, 4294901760
        %v5446 = vsub.f32 %v5444, %v5445
        %v5447 = vand.u32 %v5446, 4294901760
        %5448 = vmatprep.subr.mxu0 %v5447
        %v5449 = vand.u32 %v486, 4294901760
        %v5450 = vsub.f32 %v486, %v5449
        %v5451 = vand.u32 %v5450, 4294901760
        %v5452 = vsub.f32 %v5450, %v5451
        %v5453 = vand.u32 %v5452, 4294901760
        %5454 = vmatpush1.msra.mxu0 %v5453
        %v5455 = vand.u32 %v491, 4294901760
        %v5456 = vsub.f32 %v491, %v5455
        %v5457 = vand.u32 %v5456, 4294901760
        %v5458 = vsub.f32 %v5456, %v5457
        %v5459 = vand.u32 %v5458, 4294901760
        %5460 = vmatprep.subr.mxu0 %v5459
        %v5461 = vand.u32 %v490, 4294901760
        %v5462 = vsub.f32 %v490, %v5461
        %v5463 = vand.u32 %v5462, 4294901760
        %v5464 = vsub.f32 %v5462, %v5463
        %v5465 = vand.u32 %v5464, 4294901760
        %5466 = vmatpush1.msra.mxu0 %v5465
        %v5467 = vand.u32 %v495, 4294901760
        %v5468 = vsub.f32 %v495, %v5467
        %v5469 = vand.u32 %v5468, 4294901760
        %v5470 = vsub.f32 %v5468, %v5469
        %v5471 = vand.u32 %v5470, 4294901760
        %5472 = vmatprep.subr.mxu0 %v5471
        %v5473 = vand.u32 %v494, 4294901760
        %v5474 = vsub.f32 %v494, %v5473
        %v5475 = vand.u32 %v5474, 4294901760
        %v5476 = vsub.f32 %v5474, %v5475
        %v5477 = vand.u32 %v5476, 4294901760
        %5478 = vmatpush1.msra.mxu0 %v5477
        %v5479 = vand.u32 %v499, 4294901760
        %v5480 = vsub.f32 %v499, %v5479
        %v5481 = vand.u32 %v5480, 4294901760
        %v5482 = vsub.f32 %v5480, %v5481
        %v5483 = vand.u32 %v5482, 4294901760
        %5484 = vmatprep.subr.mxu0 %v5483
        %v5485 = vand.u32 %v498, 4294901760
        %v5486 = vsub.f32 %v498, %v5485
        %v5487 = vand.u32 %v5486, 4294901760
        %v5488 = vsub.f32 %v5486, %v5487
        %v5489 = vand.u32 %v5488, 4294901760
        %5490 = vmatpush1.msra.mxu0 %v5489
        %v5491 = vand.u32 %v503, 4294901760
        %v5492 = vsub.f32 %v503, %v5491
        %v5493 = vand.u32 %v5492, 4294901760
        %v5494 = vsub.f32 %v5492, %v5493
        %v5495 = vand.u32 %v5494, 4294901760
        %5496 = vmatprep.subr.mxu0 %v5495
        %v5497 = vand.u32 %v502, 4294901760
        %v5498 = vsub.f32 %v502, %v5497
        %v5499 = vand.u32 %v5498, 4294901760
        %v5500 = vsub.f32 %v5498, %v5499
        %v5501 = vand.u32 %v5500, 4294901760
        %5502 = vmatpush1.msra.mxu0 %v5501
        %v5503 = vand.u32 %v373, 4294901760
        %5504 = vmatprep.mubr.f32.mxu0 %v5503
        %v5505 = vand.u32 %v372, 4294901760
        %5506 = vmatmul.mubr.f32.gmra.mrb[0].mxu0 %v5505
        %v5507 = vpop.f32.mrb[0].mxu0
        %v5508 = vadd.f32 %v5115, %v5507
        %v5509 = vpop.f32.mrb[0].mxu0
        %v5510 = vadd.f32 %v5117, %v5509
        %5511 = vdwg.mxu0
        %v5512 = vand.u32 %v379, 4294901760
        %v5513 = vsub.f32 %v379, %v5512
        %5514 = vmatprep.subr.mxu0 %v5513
        %v5515 = vand.u32 %v378, 4294901760
        %v5516 = vsub.f32 %v378, %v5515
        %5517 = vmatpush1.msra.mxu0 %v5516
        %v5518 = vand.u32 %v383, 4294901760
        %v5519 = vsub.f32 %v383, %v5518
        %5520 = vmatprep.subr.mxu0 %v5519
        %v5521 = vand.u32 %v382, 4294901760
        %v5522 = vsub.f32 %v382, %v5521
        %5523 = vmatpush1.msra.mxu0 %v5522
        %v5524 = vand.u32 %v387, 4294901760
        %v5525 = vsub.f32 %v387, %v5524
        %5526 = vmatprep.subr.mxu0 %v5525
        %v5527 = vand.u32 %v386, 4294901760
        %v5528 = vsub.f32 %v386, %v5527
        %5529 = vmatpush1.msra.mxu0 %v5528
        %v5530 = vand.u32 %v391, 4294901760
        %v5531 = vsub.f32 %v391, %v5530
        %5532 = vmatprep.subr.mxu0 %v5531
        %v5533 = vand.u32 %v390, 4294901760
        %v5534 = vsub.f32 %v390, %v5533
        %5535 = vmatpush1.msra.mxu0 %v5534
        %v5536 = vand.u32 %v395, 4294901760
        %v5537 = vsub.f32 %v395, %v5536
        %5538 = vmatprep.subr.mxu0 %v5537
        %v5539 = vand.u32 %v394, 4294901760
        %v5540 = vsub.f32 %v394, %v5539
        %5541 = vmatpush1.msra.mxu0 %v5540
        %v5542 = vand.u32 %v399, 4294901760
        %v5543 = vsub.f32 %v399, %v5542
        %5544 = vmatprep.subr.mxu0 %v5543
        %v5545 = vand.u32 %v398, 4294901760
        %v5546 = vsub.f32 %v398, %v5545
        %5547 = vmatpush1.msra.mxu0 %v5546
        %v5548 = vand.u32 %v403, 4294901760
        %v5549 = vsub.f32 %v403, %v5548
        %5550 = vmatprep.subr.mxu0 %v5549
        %v5551 = vand.u32 %v402, 4294901760
        %v5552 = vsub.f32 %v402, %v5551
        %5553 = vmatpush1.msra.mxu0 %v5552
        %v5554 = vand.u32 %v407, 4294901760
        %v5555 = vsub.f32 %v407, %v5554
        %5556 = vmatprep.subr.mxu0 %v5555
        %v5557 = vand.u32 %v406, 4294901760
        %v5558 = vsub.f32 %v406, %v5557
        %5559 = vmatpush1.msra.mxu0 %v5558
        %v5560 = vand.u32 %v411, 4294901760
        %v5561 = vsub.f32 %v411, %v5560
        %5562 = vmatprep.subr.mxu0 %v5561
        %v5563 = vand.u32 %v410, 4294901760
        %v5564 = vsub.f32 %v410, %v5563
        %5565 = vmatpush1.msra.mxu0 %v5564
        %v5566 = vand.u32 %v415, 4294901760
        %v5567 = vsub.f32 %v415, %v5566
        %5568 = vmatprep.subr.mxu0 %v5567
        %v5569 = vand.u32 %v414, 4294901760
        %v5570 = vsub.f32 %v414, %v5569
        %5571 = vmatpush1.msra.mxu0 %v5570
        %v5572 = vand.u32 %v419, 4294901760
        %v5573 = vsub.f32 %v419, %v5572
        %5574 = vmatprep.subr.mxu0 %v5573
        %v5575 = vand.u32 %v418, 4294901760
        %v5576 = vsub.f32 %v418, %v5575
        %5577 = vmatpush1.msra.mxu0 %v5576
        %v5578 = vand.u32 %v423, 4294901760
        %v5579 = vsub.f32 %v423, %v5578
        %5580 = vmatprep.subr.mxu0 %v5579
        %v5581 = vand.u32 %v422, 4294901760
        %v5582 = vsub.f32 %v422, %v5581
        %5583 = vmatpush1.msra.mxu0 %v5582
        %v5584 = vand.u32 %v427, 4294901760
        %v5585 = vsub.f32 %v427, %v5584
        %5586 = vmatprep.subr.mxu0 %v5585
        %v5587 = vand.u32 %v426, 4294901760
        %v5588 = vsub.f32 %v426, %v5587
        %5589 = vmatpush1.msra.mxu0 %v5588
        %v5590 = vand.u32 %v431, 4294901760
        %v5591 = vsub.f32 %v431, %v5590
        %5592 = vmatprep.subr.mxu0 %v5591
        %v5593 = vand.u32 %v430, 4294901760
        %v5594 = vsub.f32 %v430, %v5593
        %5595 = vmatpush1.msra.mxu0 %v5594
        %v5596 = vand.u32 %v435, 4294901760
        %v5597 = vsub.f32 %v435, %v5596
        %5598 = vmatprep.subr.mxu0 %v5597
        %v5599 = vand.u32 %v434, 4294901760
        %v5600 = vsub.f32 %v434, %v5599
        %5601 = vmatpush1.msra.mxu0 %v5600
        %v5602 = vand.u32 %v439, 4294901760
        %v5603 = vsub.f32 %v439, %v5602
        %5604 = vmatprep.subr.mxu0 %v5603
        %v5605 = vand.u32 %v438, 4294901760
        %v5606 = vsub.f32 %v438, %v5605
        %5607 = vmatpush1.msra.mxu0 %v5606
        %v5608 = vand.u32 %v443, 4294901760
        %v5609 = vsub.f32 %v443, %v5608
        %5610 = vmatprep.subr.mxu0 %v5609
        %v5611 = vand.u32 %v442, 4294901760
        %v5612 = vsub.f32 %v442, %v5611
        %5613 = vmatpush1.msra.mxu0 %v5612
        %v5614 = vand.u32 %v447, 4294901760
        %v5615 = vsub.f32 %v447, %v5614
        %5616 = vmatprep.subr.mxu0 %v5615
        %v5617 = vand.u32 %v446, 4294901760
        %v5618 = vsub.f32 %v446, %v5617
        %5619 = vmatpush1.msra.mxu0 %v5618
        %v5620 = vand.u32 %v451, 4294901760
        %v5621 = vsub.f32 %v451, %v5620
        %5622 = vmatprep.subr.mxu0 %v5621
        %v5623 = vand.u32 %v450, 4294901760
        %v5624 = vsub.f32 %v450, %v5623
        %5625 = vmatpush1.msra.mxu0 %v5624
        %v5626 = vand.u32 %v455, 4294901760
        %v5627 = vsub.f32 %v455, %v5626
        %5628 = vmatprep.subr.mxu0 %v5627
        %v5629 = vand.u32 %v454, 4294901760
        %v5630 = vsub.f32 %v454, %v5629
        %5631 = vmatpush1.msra.mxu0 %v5630
        %v5632 = vand.u32 %v459, 4294901760
        %v5633 = vsub.f32 %v459, %v5632
        %5634 = vmatprep.subr.mxu0 %v5633
        %v5635 = vand.u32 %v458, 4294901760
        %v5636 = vsub.f32 %v458, %v5635
        %5637 = vmatpush1.msra.mxu0 %v5636
        %v5638 = vand.u32 %v463, 4294901760
        %v5639 = vsub.f32 %v463, %v5638
        %5640 = vmatprep.subr.mxu0 %v5639
        %v5641 = vand.u32 %v462, 4294901760
        %v5642 = vsub.f32 %v462, %v5641
        %5643 = vmatpush1.msra.mxu0 %v5642
        %v5644 = vand.u32 %v467, 4294901760
        %v5645 = vsub.f32 %v467, %v5644
        %5646 = vmatprep.subr.mxu0 %v5645
        %v5647 = vand.u32 %v466, 4294901760
        %v5648 = vsub.f32 %v466, %v5647
        %5649 = vmatpush1.msra.mxu0 %v5648
        %v5650 = vand.u32 %v471, 4294901760
        %v5651 = vsub.f32 %v471, %v5650
        %5652 = vmatprep.subr.mxu0 %v5651
        %v5653 = vand.u32 %v470, 4294901760
        %v5654 = vsub.f32 %v470, %v5653
        %5655 = vmatpush1.msra.mxu0 %v5654
        %v5656 = vand.u32 %v475, 4294901760
        %v5657 = vsub.f32 %v475, %v5656
        %5658 = vmatprep.subr.mxu0 %v5657
        %v5659 = vand.u32 %v474, 4294901760
        %v5660 = vsub.f32 %v474, %v5659
        %5661 = vmatpush1.msra.mxu0 %v5660
        %v5662 = vand.u32 %v479, 4294901760
        %v5663 = vsub.f32 %v479, %v5662
        %5664 = vmatprep.subr.mxu0 %v5663
        %v5665 = vand.u32 %v478, 4294901760
        %v5666 = vsub.f32 %v478, %v5665
        %5667 = vmatpush1.msra.mxu0 %v5666
        %v5668 = vand.u32 %v483, 4294901760
        %v5669 = vsub.f32 %v483, %v5668
        %5670 = vmatprep.subr.mxu0 %v5669
        %v5671 = vand.u32 %v482, 4294901760
        %v5672 = vsub.f32 %v482, %v5671
        %5673 = vmatpush1.msra.mxu0 %v5672
        %v5674 = vand.u32 %v487, 4294901760
        %v5675 = vsub.f32 %v487, %v5674
        %5676 = vmatprep.subr.mxu0 %v5675
        %v5677 = vand.u32 %v486, 4294901760
        %v5678 = vsub.f32 %v486, %v5677
        %5679 = vmatpush1.msra.mxu0 %v5678
        %v5680 = vand.u32 %v491, 4294901760
        %v5681 = vsub.f32 %v491, %v5680
        %5682 = vmatprep.subr.mxu0 %v5681
        %v5683 = vand.u32 %v490, 4294901760
        %v5684 = vsub.f32 %v490, %v5683
        %5685 = vmatpush1.msra.mxu0 %v5684
        %v5686 = vand.u32 %v495, 4294901760
        %v5687 = vsub.f32 %v495, %v5686
        %5688 = vmatprep.subr.mxu0 %v5687
        %v5689 = vand.u32 %v494, 4294901760
        %v5690 = vsub.f32 %v494, %v5689
        %5691 = vmatpush1.msra.mxu0 %v5690
        %v5692 = vand.u32 %v499, 4294901760
        %v5693 = vsub.f32 %v499, %v5692
        %5694 = vmatprep.subr.mxu0 %v5693
        %v5695 = vand.u32 %v498, 4294901760
        %v5696 = vsub.f32 %v498, %v5695
        %5697 = vmatpush1.msra.mxu0 %v5696
        %v5698 = vand.u32 %v503, 4294901760
        %v5699 = vsub.f32 %v503, %v5698
        %5700 = vmatprep.subr.mxu0 %v5699
        %v5701 = vand.u32 %v502, 4294901760
        %v5702 = vsub.f32 %v502, %v5701
        %5703 = vmatpush1.msra.mxu0 %v5702
        %v5704 = vand.u32 %v373, 4294901760
        %v5705 = vsub.f32 %v373, %v5704
        %5706 = vmatprep.mubr.f32.mxu0 %v5705
        %v5707 = vand.u32 %v372, 4294901760
        %v5708 = vsub.f32 %v372, %v5707
        %5709 = vmatmul.mubr.f32.gmra.mrb[0].mxu0 %v5708
        %v5710 = vpop.f32.mrb[0].mxu0
        %v5711 = vadd.f32 %v5508, %v5710
        %v5712 = vpop.f32.mrb[0].mxu0
        %v5713 = vadd.f32 %v5510, %v5712
        %5714 = vdwg.mxu0
        %v5715 = vand.u32 %v379, 4294901760
        %5716 = vmatprep.subr.mxu0 %v5715
        %v5717 = vand.u32 %v378, 4294901760
        %5718 = vmatpush1.msra.mxu0 %v5717
        %v5719 = vand.u32 %v383, 4294901760
        %5720 = vmatprep.subr.mxu0 %v5719
        %v5721 = vand.u32 %v382, 4294901760
        %5722 = vmatpush1.msra.mxu0 %v5721
        %v5723 = vand.u32 %v387, 4294901760
        %5724 = vmatprep.subr.mxu0 %v5723
        %v5725 = vand.u32 %v386, 4294901760
        %5726 = vmatpush1.msra.mxu0 %v5725
        %v5727 = vand.u32 %v391, 4294901760
        %5728 = vmatprep.subr.mxu0 %v5727
        %v5729 = vand.u32 %v390, 4294901760
        %5730 = vmatpush1.msra.mxu0 %v5729
        %v5731 = vand.u32 %v395, 4294901760
        %5732 = vmatprep.subr.mxu0 %v5731
        %v5733 = vand.u32 %v394, 4294901760
        %5734 = vmatpush1.msra.mxu0 %v5733
        %v5735 = vand.u32 %v399, 4294901760
        %5736 = vmatprep.subr.mxu0 %v5735
        %v5737 = vand.u32 %v398, 4294901760
        %5738 = vmatpush1.msra.mxu0 %v5737
        %v5739 = vand.u32 %v403, 4294901760
        %5740 = vmatprep.subr.mxu0 %v5739
        %v5741 = vand.u32 %v402, 4294901760
        %5742 = vmatpush1.msra.mxu0 %v5741
        %v5743 = vand.u32 %v407, 4294901760
        %5744 = vmatprep.subr.mxu0 %v5743
        %v5745 = vand.u32 %v406, 4294901760
        %5746 = vmatpush1.msra.mxu0 %v5745
        %v5747 = vand.u32 %v411, 4294901760
        %5748 = vmatprep.subr.mxu0 %v5747
        %v5749 = vand.u32 %v410, 4294901760
        %5750 = vmatpush1.msra.mxu0 %v5749
        %v5751 = vand.u32 %v415, 4294901760
        %5752 = vmatprep.subr.mxu0 %v5751
        %v5753 = vand.u32 %v414, 4294901760
        %5754 = vmatpush1.msra.mxu0 %v5753
        %v5755 = vand.u32 %v419, 4294901760
        %5756 = vmatprep.subr.mxu0 %v5755
        %v5757 = vand.u32 %v418, 4294901760
        %5758 = vmatpush1.msra.mxu0 %v5757
        %v5759 = vand.u32 %v423, 4294901760
        %5760 = vmatprep.subr.mxu0 %v5759
        %v5761 = vand.u32 %v422, 4294901760
        %5762 = vmatpush1.msra.mxu0 %v5761
        %v5763 = vand.u32 %v427, 4294901760
        %5764 = vmatprep.subr.mxu0 %v5763
        %v5765 = vand.u32 %v426, 4294901760
        %5766 = vmatpush1.msra.mxu0 %v5765
        %v5767 = vand.u32 %v431, 4294901760
        %5768 = vmatprep.subr.mxu0 %v5767
        %v5769 = vand.u32 %v430, 4294901760
        %5770 = vmatpush1.msra.mxu0 %v5769
        %v5771 = vand.u32 %v435, 4294901760
        %5772 = vmatprep.subr.mxu0 %v5771
        %v5773 = vand.u32 %v434, 4294901760
        %5774 = vmatpush1.msra.mxu0 %v5773
        %v5775 = vand.u32 %v439, 4294901760
        %5776 = vmatprep.subr.mxu0 %v5775
        %v5777 = vand.u32 %v438, 4294901760
        %5778 = vmatpush1.msra.mxu0 %v5777
        %v5779 = vand.u32 %v443, 4294901760
        %5780 = vmatprep.subr.mxu0 %v5779
        %v5781 = vand.u32 %v442, 4294901760
        %5782 = vmatpush1.msra.mxu0 %v5781
        %v5783 = vand.u32 %v447, 4294901760
        %5784 = vmatprep.subr.mxu0 %v5783
        %v5785 = vand.u32 %v446, 4294901760
        %5786 = vmatpush1.msra.mxu0 %v5785
        %v5787 = vand.u32 %v451, 4294901760
        %5788 = vmatprep.subr.mxu0 %v5787
        %v5789 = vand.u32 %v450, 4294901760
        %5790 = vmatpush1.msra.mxu0 %v5789
        %v5791 = vand.u32 %v455, 4294901760
        %5792 = vmatprep.subr.mxu0 %v5791
        %v5793 = vand.u32 %v454, 4294901760
        %5794 = vmatpush1.msra.mxu0 %v5793
        %v5795 = vand.u32 %v459, 4294901760
        %5796 = vmatprep.subr.mxu0 %v5795
        %v5797 = vand.u32 %v458, 4294901760
        %5798 = vmatpush1.msra.mxu0 %v5797
        %v5799 = vand.u32 %v463, 4294901760
        %5800 = vmatprep.subr.mxu0 %v5799
        %v5801 = vand.u32 %v462, 4294901760
        %5802 = vmatpush1.msra.mxu0 %v5801
        %v5803 = vand.u32 %v467, 4294901760
        %5804 = vmatprep.subr.mxu0 %v5803
        %v5805 = vand.u32 %v466, 4294901760
        %5806 = vmatpush1.msra.mxu0 %v5805
        %v5807 = vand.u32 %v471, 4294901760
        %5808 = vmatprep.subr.mxu0 %v5807
        %v5809 = vand.u32 %v470, 4294901760
        %5810 = vmatpush1.msra.mxu0 %v5809
        %v5811 = vand.u32 %v475, 4294901760
        %5812 = vmatprep.subr.mxu0 %v5811
        %v5813 = vand.u32 %v474, 4294901760
        %5814 = vmatpush1.msra.mxu0 %v5813
        %v5815 = vand.u32 %v479, 4294901760
        %5816 = vmatprep.subr.mxu0 %v5815
        %v5817 = vand.u32 %v478, 4294901760
        %5818 = vmatpush1.msra.mxu0 %v5817
        %v5819 = vand.u32 %v483, 4294901760
        %5820 = vmatprep.subr.mxu0 %v5819
        %v5821 = vand.u32 %v482, 4294901760
        %5822 = vmatpush1.msra.mxu0 %v5821
        %v5823 = vand.u32 %v487, 4294901760
        %5824 = vmatprep.subr.mxu0 %v5823
        %v5825 = vand.u32 %v486, 4294901760
        %5826 = vmatpush1.msra.mxu0 %v5825
        %v5827 = vand.u32 %v491, 4294901760
        %5828 = vmatprep.subr.mxu0 %v5827
        %v5829 = vand.u32 %v490, 4294901760
        %5830 = vmatpush1.msra.mxu0 %v5829
        %v5831 = vand.u32 %v495, 4294901760
        %5832 = vmatprep.subr.mxu0 %v5831
        %v5833 = vand.u32 %v494, 4294901760
        %5834 = vmatpush1.msra.mxu0 %v5833
        %v5835 = vand.u32 %v499, 4294901760
        %5836 = vmatprep.subr.mxu0 %v5835
        %v5837 = vand.u32 %v498, 4294901760
        %5838 = vmatpush1.msra.mxu0 %v5837
        %v5839 = vand.u32 %v503, 4294901760
        %5840 = vmatprep.subr.mxu0 %v5839
        %v5841 = vand.u32 %v502, 4294901760
        %5842 = vmatpush1.msra.mxu0 %v5841
        %v5843 = vand.u32 %v373, 4294901760
        %v5844 = vsub.f32 %v373, %v5843
        %v5845 = vand.u32 %v5844, 4294901760
        %5846 = vmatprep.mubr.f32.mxu0 %v5845
        %v5847 = vand.u32 %v372, 4294901760
        %v5848 = vsub.f32 %v372, %v5847
        %v5849 = vand.u32 %v5848, 4294901760
        %5850 = vmatmul.mubr.f32.gmra.mrb[0].mxu0 %v5849
        %v5851 = vpop.f32.mrb[0].mxu0
        %v5852 = vadd.f32 %v5711, %v5851
        %v5853 = vpop.f32.mrb[0].mxu0
        %v5854 = vadd.f32 %v5713, %v5853
        %5855 = vdwg.mxu0
        %v5856 = vand.u32 %v379, 4294901760
        %v5857 = vsub.f32 %v379, %v5856
        %v5858 = vand.u32 %v5857, 4294901760
        %5859 = vmatprep.subr.mxu0 %v5858
        %v5860 = vand.u32 %v378, 4294901760
        %v5861 = vsub.f32 %v378, %v5860
        %v5862 = vand.u32 %v5861, 4294901760
        %5863 = vmatpush1.msra.mxu0 %v5862
        %v5864 = vand.u32 %v383, 4294901760
        %v5865 = vsub.f32 %v383, %v5864
        %v5866 = vand.u32 %v5865, 4294901760
        %5867 = vmatprep.subr.mxu0 %v5866
        %v5868 = vand.u32 %v382, 4294901760
        %v5869 = vsub.f32 %v382, %v5868
        %v5870 = vand.u32 %v5869, 4294901760
        %5871 = vmatpush1.msra.mxu0 %v5870
        %v5872 = vand.u32 %v387, 4294901760
        %v5873 = vsub.f32 %v387, %v5872
        %v5874 = vand.u32 %v5873, 4294901760
        %5875 = vmatprep.subr.mxu0 %v5874
        %v5876 = vand.u32 %v386, 4294901760
        %v5877 = vsub.f32 %v386, %v5876
        %v5878 = vand.u32 %v5877, 4294901760
        %5879 = vmatpush1.msra.mxu0 %v5878
        %v5880 = vand.u32 %v391, 4294901760
        %v5881 = vsub.f32 %v391, %v5880
        %v5882 = vand.u32 %v5881, 4294901760
        %5883 = vmatprep.subr.mxu0 %v5882
        %v5884 = vand.u32 %v390, 4294901760
        %v5885 = vsub.f32 %v390, %v5884
        %v5886 = vand.u32 %v5885, 4294901760
        %5887 = vmatpush1.msra.mxu0 %v5886
        %v5888 = vand.u32 %v395, 4294901760
        %v5889 = vsub.f32 %v395, %v5888
        %v5890 = vand.u32 %v5889, 4294901760
        %5891 = vmatprep.subr.mxu0 %v5890
        %v5892 = vand.u32 %v394, 4294901760
        %v5893 = vsub.f32 %v394, %v5892
        %v5894 = vand.u32 %v5893, 4294901760
        %5895 = vmatpush1.msra.mxu0 %v5894
        %v5896 = vand.u32 %v399, 4294901760
        %v5897 = vsub.f32 %v399, %v5896
        %v5898 = vand.u32 %v5897, 4294901760
        %5899 = vmatprep.subr.mxu0 %v5898
        %v5900 = vand.u32 %v398, 4294901760
        %v5901 = vsub.f32 %v398, %v5900
        %v5902 = vand.u32 %v5901, 4294901760
        %5903 = vmatpush1.msra.mxu0 %v5902
        %v5904 = vand.u32 %v403, 4294901760
        %v5905 = vsub.f32 %v403, %v5904
        %v5906 = vand.u32 %v5905, 4294901760
        %5907 = vmatprep.subr.mxu0 %v5906
        %v5908 = vand.u32 %v402, 4294901760
        %v5909 = vsub.f32 %v402, %v5908
        %v5910 = vand.u32 %v5909, 4294901760
        %5911 = vmatpush1.msra.mxu0 %v5910
        %v5912 = vand.u32 %v407, 4294901760
        %v5913 = vsub.f32 %v407, %v5912
        %v5914 = vand.u32 %v5913, 4294901760
        %5915 = vmatprep.subr.mxu0 %v5914
        %v5916 = vand.u32 %v406, 4294901760
        %v5917 = vsub.f32 %v406, %v5916
        %v5918 = vand.u32 %v5917, 4294901760
        %5919 = vmatpush1.msra.mxu0 %v5918
        %v5920 = vand.u32 %v411, 4294901760
        %v5921 = vsub.f32 %v411, %v5920
        %v5922 = vand.u32 %v5921, 4294901760
        %5923 = vmatprep.subr.mxu0 %v5922
        %v5924 = vand.u32 %v410, 4294901760
        %v5925 = vsub.f32 %v410, %v5924
        %v5926 = vand.u32 %v5925, 4294901760
        %5927 = vmatpush1.msra.mxu0 %v5926
        %v5928 = vand.u32 %v415, 4294901760
        %v5929 = vsub.f32 %v415, %v5928
        %v5930 = vand.u32 %v5929, 4294901760
        %5931 = vmatprep.subr.mxu0 %v5930
        %v5932 = vand.u32 %v414, 4294901760
        %v5933 = vsub.f32 %v414, %v5932
        %v5934 = vand.u32 %v5933, 4294901760
        %5935 = vmatpush1.msra.mxu0 %v5934
        %v5936 = vand.u32 %v419, 4294901760
        %v5937 = vsub.f32 %v419, %v5936
        %v5938 = vand.u32 %v5937, 4294901760
        %5939 = vmatprep.subr.mxu0 %v5938
        %v5940 = vand.u32 %v418, 4294901760
        %v5941 = vsub.f32 %v418, %v5940
        %v5942 = vand.u32 %v5941, 4294901760
        %5943 = vmatpush1.msra.mxu0 %v5942
        %v5944 = vand.u32 %v423, 4294901760
        %v5945 = vsub.f32 %v423, %v5944
        %v5946 = vand.u32 %v5945, 4294901760
        %5947 = vmatprep.subr.mxu0 %v5946
        %v5948 = vand.u32 %v422, 4294901760
        %v5949 = vsub.f32 %v422, %v5948
        %v5950 = vand.u32 %v5949, 4294901760
        %5951 = vmatpush1.msra.mxu0 %v5950
        %v5952 = vand.u32 %v427, 4294901760
        %v5953 = vsub.f32 %v427, %v5952
        %v5954 = vand.u32 %v5953, 4294901760
        %5955 = vmatprep.subr.mxu0 %v5954
        %v5956 = vand.u32 %v426, 4294901760
        %v5957 = vsub.f32 %v426, %v5956
        %v5958 = vand.u32 %v5957, 4294901760
        %5959 = vmatpush1.msra.mxu0 %v5958
        %v5960 = vand.u32 %v431, 4294901760
        %v5961 = vsub.f32 %v431, %v5960
        %v5962 = vand.u32 %v5961, 4294901760
        %5963 = vmatprep.subr.mxu0 %v5962
        %v5964 = vand.u32 %v430, 4294901760
        %v5965 = vsub.f32 %v430, %v5964
        %v5966 = vand.u32 %v5965, 4294901760
        %5967 = vmatpush1.msra.mxu0 %v5966
        %v5968 = vand.u32 %v435, 4294901760
        %v5969 = vsub.f32 %v435, %v5968
        %v5970 = vand.u32 %v5969, 4294901760
        %5971 = vmatprep.subr.mxu0 %v5970
        %v5972 = vand.u32 %v434, 4294901760
        %v5973 = vsub.f32 %v434, %v5972
        %v5974 = vand.u32 %v5973, 4294901760
        %5975 = vmatpush1.msra.mxu0 %v5974
        %v5976 = vand.u32 %v439, 4294901760
        %v5977 = vsub.f32 %v439, %v5976
        %v5978 = vand.u32 %v5977, 4294901760
        %5979 = vmatprep.subr.mxu0 %v5978
        %v5980 = vand.u32 %v438, 4294901760
        %v5981 = vsub.f32 %v438, %v5980
        %v5982 = vand.u32 %v5981, 4294901760
        %5983 = vmatpush1.msra.mxu0 %v5982
        %v5984 = vand.u32 %v443, 4294901760
        %v5985 = vsub.f32 %v443, %v5984
        %v5986 = vand.u32 %v5985, 4294901760
        %5987 = vmatprep.subr.mxu0 %v5986
        %v5988 = vand.u32 %v442, 4294901760
        %v5989 = vsub.f32 %v442, %v5988
        %v5990 = vand.u32 %v5989, 4294901760
        %5991 = vmatpush1.msra.mxu0 %v5990
        %v5992 = vand.u32 %v447, 4294901760
        %v5993 = vsub.f32 %v447, %v5992
        %v5994 = vand.u32 %v5993, 4294901760
        %5995 = vmatprep.subr.mxu0 %v5994
        %v5996 = vand.u32 %v446, 4294901760
        %v5997 = vsub.f32 %v446, %v5996
        %v5998 = vand.u32 %v5997, 4294901760
        %5999 = vmatpush1.msra.mxu0 %v5998
        %v6000 = vand.u32 %v451, 4294901760
        %v6001 = vsub.f32 %v451, %v6000
        %v6002 = vand.u32 %v6001, 4294901760
        %6003 = vmatprep.subr.mxu0 %v6002
        %v6004 = vand.u32 %v450, 4294901760
        %v6005 = vsub.f32 %v450, %v6004
        %v6006 = vand.u32 %v6005, 4294901760
        %6007 = vmatpush1.msra.mxu0 %v6006
        %v6008 = vand.u32 %v455, 4294901760
        %v6009 = vsub.f32 %v455, %v6008
        %v6010 = vand.u32 %v6009, 4294901760
        %6011 = vmatprep.subr.mxu0 %v6010
        %v6012 = vand.u32 %v454, 4294901760
        %v6013 = vsub.f32 %v454, %v6012
        %v6014 = vand.u32 %v6013, 4294901760
        %6015 = vmatpush1.msra.mxu0 %v6014
        %v6016 = vand.u32 %v459, 4294901760
        %v6017 = vsub.f32 %v459, %v6016
        %v6018 = vand.u32 %v6017, 4294901760
        %6019 = vmatprep.subr.mxu0 %v6018
        %v6020 = vand.u32 %v458, 4294901760
        %v6021 = vsub.f32 %v458, %v6020
        %v6022 = vand.u32 %v6021, 4294901760
        %6023 = vmatpush1.msra.mxu0 %v6022
        %v6024 = vand.u32 %v463, 4294901760
        %v6025 = vsub.f32 %v463, %v6024
        %v6026 = vand.u32 %v6025, 4294901760
        %6027 = vmatprep.subr.mxu0 %v6026
        %v6028 = vand.u32 %v462, 4294901760
        %v6029 = vsub.f32 %v462, %v6028
        %v6030 = vand.u32 %v6029, 4294901760
        %6031 = vmatpush1.msra.mxu0 %v6030
        %v6032 = vand.u32 %v467, 4294901760
        %v6033 = vsub.f32 %v467, %v6032
        %v6034 = vand.u32 %v6033, 4294901760
        %6035 = vmatprep.subr.mxu0 %v6034
        %v6036 = vand.u32 %v466, 4294901760
        %v6037 = vsub.f32 %v466, %v6036
        %v6038 = vand.u32 %v6037, 4294901760
        %6039 = vmatpush1.msra.mxu0 %v6038
        %v6040 = vand.u32 %v471, 4294901760
        %v6041 = vsub.f32 %v471, %v6040
        %v6042 = vand.u32 %v6041, 4294901760
        %6043 = vmatprep.subr.mxu0 %v6042
        %v6044 = vand.u32 %v470, 4294901760
        %v6045 = vsub.f32 %v470, %v6044
        %v6046 = vand.u32 %v6045, 4294901760
        %6047 = vmatpush1.msra.mxu0 %v6046
        %v6048 = vand.u32 %v475, 4294901760
        %v6049 = vsub.f32 %v475, %v6048
        %v6050 = vand.u32 %v6049, 4294901760
        %6051 = vmatprep.subr.mxu0 %v6050
        %v6052 = vand.u32 %v474, 4294901760
        %v6053 = vsub.f32 %v474, %v6052
        %v6054 = vand.u32 %v6053, 4294901760
        %6055 = vmatpush1.msra.mxu0 %v6054
        %v6056 = vand.u32 %v479, 4294901760
        %v6057 = vsub.f32 %v479, %v6056
        %v6058 = vand.u32 %v6057, 4294901760
        %6059 = vmatprep.subr.mxu0 %v6058
        %v6060 = vand.u32 %v478, 4294901760
        %v6061 = vsub.f32 %v478, %v6060
        %v6062 = vand.u32 %v6061, 4294901760
        %6063 = vmatpush1.msra.mxu0 %v6062
        %v6064 = vand.u32 %v483, 4294901760
        %v6065 = vsub.f32 %v483, %v6064
        %v6066 = vand.u32 %v6065, 4294901760
        %6067 = vmatprep.subr.mxu0 %v6066
        %v6068 = vand.u32 %v482, 4294901760
        %v6069 = vsub.f32 %v482, %v6068
        %v6070 = vand.u32 %v6069, 4294901760
        %6071 = vmatpush1.msra.mxu0 %v6070
        %v6072 = vand.u32 %v487, 4294901760
        %v6073 = vsub.f32 %v487, %v6072
        %v6074 = vand.u32 %v6073, 4294901760
        %6075 = vmatprep.subr.mxu0 %v6074
        %v6076 = vand.u32 %v486, 4294901760
        %v6077 = vsub.f32 %v486, %v6076
        %v6078 = vand.u32 %v6077, 4294901760
        %6079 = vmatpush1.msra.mxu0 %v6078
        %v6080 = vand.u32 %v491, 4294901760
        %v6081 = vsub.f32 %v491, %v6080
        %v6082 = vand.u32 %v6081, 4294901760
        %6083 = vmatprep.subr.mxu0 %v6082
        %v6084 = vand.u32 %v490, 4294901760
        %v6085 = vsub.f32 %v490, %v6084
        %v6086 = vand.u32 %v6085, 4294901760
        %6087 = vmatpush1.msra.mxu0 %v6086
        %v6088 = vand.u32 %v495, 4294901760
        %v6089 = vsub.f32 %v495, %v6088
        %v6090 = vand.u32 %v6089, 4294901760
        %6091 = vmatprep.subr.mxu0 %v6090
        %v6092 = vand.u32 %v494, 4294901760
        %v6093 = vsub.f32 %v494, %v6092
        %v6094 = vand.u32 %v6093, 4294901760
        %6095 = vmatpush1.msra.mxu0 %v6094
        %v6096 = vand.u32 %v499, 4294901760
        %v6097 = vsub.f32 %v499, %v6096
        %v6098 = vand.u32 %v6097, 4294901760
        %6099 = vmatprep.subr.mxu0 %v6098
        %v6100 = vand.u32 %v498, 4294901760
        %v6101 = vsub.f32 %v498, %v6100
        %v6102 = vand.u32 %v6101, 4294901760
        %6103 = vmatpush1.msra.mxu0 %v6102
        %v6104 = vand.u32 %v503, 4294901760
        %v6105 = vsub.f32 %v503, %v6104
        %v6106 = vand.u32 %v6105, 4294901760
        %6107 = vmatprep.subr.mxu0 %v6106
        %v6108 = vand.u32 %v502, 4294901760
        %v6109 = vsub.f32 %v502, %v6108
        %v6110 = vand.u32 %v6109, 4294901760
        %6111 = vmatpush1.msra.mxu0 %v6110
        %v6112 = vand.u32 %v373, 4294901760
        %6113 = vmatprep.mubr.f32.mxu0 %v6112
        %v6114 = vand.u32 %v372, 4294901760
        %6115 = vmatmul.mubr.f32.gmra.mrb[0].mxu0 %v6114
        %v6116 = vpop.f32.mrb[0].mxu0
        %v6117 = vadd.f32 %v5852, %v6116
        %v6118 = vpop.f32.mrb[0].mxu0
        %v6119 = vadd.f32 %v5854, %v6118
        %6120 = vdwg.mxu0
        %v6121 = vand.u32 %v379, 4294901760
        %6122 = vmatprep.subr.mxu0 %v6121
        %v6123 = vand.u32 %v378, 4294901760
        %6124 = vmatpush1.msra.mxu0 %v6123
        %v6125 = vand.u32 %v383, 4294901760
        %6126 = vmatprep.subr.mxu0 %v6125
        %v6127 = vand.u32 %v382, 4294901760
        %6128 = vmatpush1.msra.mxu0 %v6127
        %v6129 = vand.u32 %v387, 4294901760
        %6130 = vmatprep.subr.mxu0 %v6129
        %v6131 = vand.u32 %v386, 4294901760
        %6132 = vmatpush1.msra.mxu0 %v6131
        %v6133 = vand.u32 %v391, 4294901760
        %6134 = vmatprep.subr.mxu0 %v6133
        %v6135 = vand.u32 %v390, 4294901760
        %6136 = vmatpush1.msra.mxu0 %v6135
        %v6137 = vand.u32 %v395, 4294901760
        %6138 = vmatprep.subr.mxu0 %v6137
        %v6139 = vand.u32 %v394, 4294901760
        %6140 = vmatpush1.msra.mxu0 %v6139
        %v6141 = vand.u32 %v399, 4294901760
        %6142 = vmatprep.subr.mxu0 %v6141
        %v6143 = vand.u32 %v398, 4294901760
        %6144 = vmatpush1.msra.mxu0 %v6143
        %v6145 = vand.u32 %v403, 4294901760
        %6146 = vmatprep.subr.mxu0 %v6145
        %v6147 = vand.u32 %v402, 4294901760
        %6148 = vmatpush1.msra.mxu0 %v6147
        %v6149 = vand.u32 %v407, 4294901760
        %6150 = vmatprep.subr.mxu0 %v6149
        %v6151 = vand.u32 %v406, 4294901760
        %6152 = vmatpush1.msra.mxu0 %v6151
        %v6153 = vand.u32 %v411, 4294901760
        %6154 = vmatprep.subr.mxu0 %v6153
        %v6155 = vand.u32 %v410, 4294901760
        %6156 = vmatpush1.msra.mxu0 %v6155
        %v6157 = vand.u32 %v415, 4294901760
        %6158 = vmatprep.subr.mxu0 %v6157
        %v6159 = vand.u32 %v414, 4294901760
        %6160 = vmatpush1.msra.mxu0 %v6159
        %v6161 = vand.u32 %v419, 4294901760
        %6162 = vmatprep.subr.mxu0 %v6161
        %v6163 = vand.u32 %v418, 4294901760
        %6164 = vmatpush1.msra.mxu0 %v6163
        %v6165 = vand.u32 %v423, 4294901760
        %6166 = vmatprep.subr.mxu0 %v6165
        %v6167 = vand.u32 %v422, 4294901760
        %6168 = vmatpush1.msra.mxu0 %v6167
        %v6169 = vand.u32 %v427, 4294901760
        %6170 = vmatprep.subr.mxu0 %v6169
        %v6171 = vand.u32 %v426, 4294901760
        %6172 = vmatpush1.msra.mxu0 %v6171
        %v6173 = vand.u32 %v431, 4294901760
        %6174 = vmatprep.subr.mxu0 %v6173
        %v6175 = vand.u32 %v430, 4294901760
        %6176 = vmatpush1.msra.mxu0 %v6175
        %v6177 = vand.u32 %v435, 4294901760
        %6178 = vmatprep.subr.mxu0 %v6177
        %v6179 = vand.u32 %v434, 4294901760
        %6180 = vmatpush1.msra.mxu0 %v6179
        %v6181 = vand.u32 %v439, 4294901760
        %6182 = vmatprep.subr.mxu0 %v6181
        %v6183 = vand.u32 %v438, 4294901760
        %6184 = vmatpush1.msra.mxu0 %v6183
        %v6185 = vand.u32 %v443, 4294901760
        %6186 = vmatprep.subr.mxu0 %v6185
        %v6187 = vand.u32 %v442, 4294901760
        %6188 = vmatpush1.msra.mxu0 %v6187
        %v6189 = vand.u32 %v447, 4294901760
        %6190 = vmatprep.subr.mxu0 %v6189
        %v6191 = vand.u32 %v446, 4294901760
        %6192 = vmatpush1.msra.mxu0 %v6191
        %v6193 = vand.u32 %v451, 4294901760
        %6194 = vmatprep.subr.mxu0 %v6193
        %v6195 = vand.u32 %v450, 4294901760
        %6196 = vmatpush1.msra.mxu0 %v6195
        %v6197 = vand.u32 %v455, 4294901760
        %6198 = vmatprep.subr.mxu0 %v6197
        %v6199 = vand.u32 %v454, 4294901760
        %6200 = vmatpush1.msra.mxu0 %v6199
        %v6201 = vand.u32 %v459, 4294901760
        %6202 = vmatprep.subr.mxu0 %v6201
        %v6203 = vand.u32 %v458, 4294901760
        %6204 = vmatpush1.msra.mxu0 %v6203
        %v6205 = vand.u32 %v463, 4294901760
        %6206 = vmatprep.subr.mxu0 %v6205
        %v6207 = vand.u32 %v462, 4294901760
        %6208 = vmatpush1.msra.mxu0 %v6207
        %v6209 = vand.u32 %v467, 4294901760
        %6210 = vmatprep.subr.mxu0 %v6209
        %v6211 = vand.u32 %v466, 4294901760
        %6212 = vmatpush1.msra.mxu0 %v6211
        %v6213 = vand.u32 %v471, 4294901760
        %6214 = vmatprep.subr.mxu0 %v6213
        %v6215 = vand.u32 %v470, 4294901760
        %6216 = vmatpush1.msra.mxu0 %v6215
        %v6217 = vand.u32 %v475, 4294901760
        %6218 = vmatprep.subr.mxu0 %v6217
        %v6219 = vand.u32 %v474, 4294901760
        %6220 = vmatpush1.msra.mxu0 %v6219
        %v6221 = vand.u32 %v479, 4294901760
        %6222 = vmatprep.subr.mxu0 %v6221
        %v6223 = vand.u32 %v478, 4294901760
        %6224 = vmatpush1.msra.mxu0 %v6223
        %v6225 = vand.u32 %v483, 4294901760
        %6226 = vmatprep.subr.mxu0 %v6225
        %v6227 = vand.u32 %v482, 4294901760
        %6228 = vmatpush1.msra.mxu0 %v6227
        %v6229 = vand.u32 %v487, 4294901760
        %6230 = vmatprep.subr.mxu0 %v6229
        %v6231 = vand.u32 %v486, 4294901760
        %6232 = vmatpush1.msra.mxu0 %v6231
        %v6233 = vand.u32 %v491, 4294901760
        %6234 = vmatprep.subr.mxu0 %v6233
        %v6235 = vand.u32 %v490, 4294901760
        %6236 = vmatpush1.msra.mxu0 %v6235
        %v6237 = vand.u32 %v495, 4294901760
        %6238 = vmatprep.subr.mxu0 %v6237
        %v6239 = vand.u32 %v494, 4294901760
        %6240 = vmatpush1.msra.mxu0 %v6239
        %v6241 = vand.u32 %v499, 4294901760
        %6242 = vmatprep.subr.mxu0 %v6241
        %v6243 = vand.u32 %v498, 4294901760
        %6244 = vmatpush1.msra.mxu0 %v6243
        %v6245 = vand.u32 %v503, 4294901760
        %6246 = vmatprep.subr.mxu0 %v6245
        %v6247 = vand.u32 %v502, 4294901760
        %6248 = vmatpush1.msra.mxu0 %v6247
        %v6249 = vand.u32 %v373, 4294901760
        %6250 = vmatprep.mubr.f32.mxu0 %v6249
        %v6251 = vand.u32 %v372, 4294901760
        %6252 = vmatmul.mubr.f32.gmra.mrb[0].mxu0 %v6251
        %v6253 = vpop.f32.mrb[0].mxu0
        %v6254 = vadd.f32 %v6117, %v6253
        %v6255 = vpop.f32.mrb[0].mxu0
        %v6256 = vadd.f32 %v6119, %v6255
        %6257 = vdwg.mxu0
        %v6258 = vand.u32 %v507, 4294901760
        %6259 = vmatprep.subr.mxu0 %v6258
        %v6260 = vand.u32 %v506, 4294901760
        %6261 = vmatpush1.msra.mxu0 %v6260
        %v6262 = vand.u32 %v511, 4294901760
        %6263 = vmatprep.subr.mxu0 %v6262
        %v6264 = vand.u32 %v510, 4294901760
        %6265 = vmatpush1.msra.mxu0 %v6264
        %v6266 = vand.u32 %v515, 4294901760
        %6267 = vmatprep.subr.mxu0 %v6266
        %v6268 = vand.u32 %v514, 4294901760
        %6269 = vmatpush1.msra.mxu0 %v6268
        %v6270 = vand.u32 %v519, 4294901760
        %6271 = vmatprep.subr.mxu0 %v6270
        %v6272 = vand.u32 %v518, 4294901760
        %6273 = vmatpush1.msra.mxu0 %v6272
        %v6274 = vand.u32 %v523, 4294901760
        %6275 = vmatprep.subr.mxu0 %v6274
        %v6276 = vand.u32 %v522, 4294901760
        %6277 = vmatpush1.msra.mxu0 %v6276
        %v6278 = vand.u32 %v527, 4294901760
        %6279 = vmatprep.subr.mxu0 %v6278
        %v6280 = vand.u32 %v526, 4294901760
        %6281 = vmatpush1.msra.mxu0 %v6280
        %v6282 = vand.u32 %v531, 4294901760
        %6283 = vmatprep.subr.mxu0 %v6282
        %v6284 = vand.u32 %v530, 4294901760
        %6285 = vmatpush1.msra.mxu0 %v6284
        %v6286 = vand.u32 %v535, 4294901760
        %6287 = vmatprep.subr.mxu0 %v6286
        %v6288 = vand.u32 %v534, 4294901760
        %6289 = vmatpush1.msra.mxu0 %v6288
        %v6290 = vand.u32 %v539, 4294901760
        %6291 = vmatprep.subr.mxu0 %v6290
        %v6292 = vand.u32 %v538, 4294901760
        %6293 = vmatpush1.msra.mxu0 %v6292
        %v6294 = vand.u32 %v543, 4294901760
        %6295 = vmatprep.subr.mxu0 %v6294
        %v6296 = vand.u32 %v542, 4294901760
        %6297 = vmatpush1.msra.mxu0 %v6296
        %v6298 = vand.u32 %v547, 4294901760
        %6299 = vmatprep.subr.mxu0 %v6298
        %v6300 = vand.u32 %v546, 4294901760
        %6301 = vmatpush1.msra.mxu0 %v6300
        %v6302 = vand.u32 %v551, 4294901760
        %6303 = vmatprep.subr.mxu0 %v6302
        %v6304 = vand.u32 %v550, 4294901760
        %6305 = vmatpush1.msra.mxu0 %v6304
        %v6306 = vand.u32 %v555, 4294901760
        %6307 = vmatprep.subr.mxu0 %v6306
        %v6308 = vand.u32 %v554, 4294901760
        %6309 = vmatpush1.msra.mxu0 %v6308
        %v6310 = vand.u32 %v559, 4294901760
        %6311 = vmatprep.subr.mxu0 %v6310
        %v6312 = vand.u32 %v558, 4294901760
        %6313 = vmatpush1.msra.mxu0 %v6312
        %v6314 = vand.u32 %v563, 4294901760
        %6315 = vmatprep.subr.mxu0 %v6314
        %v6316 = vand.u32 %v562, 4294901760
        %6317 = vmatpush1.msra.mxu0 %v6316
        %v6318 = vand.u32 %v567, 4294901760
        %6319 = vmatprep.subr.mxu0 %v6318
        %v6320 = vand.u32 %v566, 4294901760
        %6321 = vmatpush1.msra.mxu0 %v6320
        %v6322 = vand.u32 %v571, 4294901760
        %6323 = vmatprep.subr.mxu0 %v6322
        %v6324 = vand.u32 %v570, 4294901760
        %6325 = vmatpush1.msra.mxu0 %v6324
        %v6326 = vand.u32 %v575, 4294901760
        %6327 = vmatprep.subr.mxu0 %v6326
        %v6328 = vand.u32 %v574, 4294901760
        %6329 = vmatpush1.msra.mxu0 %v6328
        %v6330 = vand.u32 %v579, 4294901760
        %6331 = vmatprep.subr.mxu0 %v6330
        %v6332 = vand.u32 %v578, 4294901760
        %6333 = vmatpush1.msra.mxu0 %v6332
        %v6334 = vand.u32 %v583, 4294901760
        %6335 = vmatprep.subr.mxu0 %v6334
        %v6336 = vand.u32 %v582, 4294901760
        %6337 = vmatpush1.msra.mxu0 %v6336
        %v6338 = vand.u32 %v587, 4294901760
        %6339 = vmatprep.subr.mxu0 %v6338
        %v6340 = vand.u32 %v586, 4294901760
        %6341 = vmatpush1.msra.mxu0 %v6340
        %v6342 = vand.u32 %v591, 4294901760
        %6343 = vmatprep.subr.mxu0 %v6342
        %v6344 = vand.u32 %v590, 4294901760
        %6345 = vmatpush1.msra.mxu0 %v6344
        %v6346 = vand.u32 %v595, 4294901760
        %6347 = vmatprep.subr.mxu0 %v6346
        %v6348 = vand.u32 %v594, 4294901760
        %6349 = vmatpush1.msra.mxu0 %v6348
        %v6350 = vand.u32 %v599, 4294901760
        %6351 = vmatprep.subr.mxu0 %v6350
        %v6352 = vand.u32 %v598, 4294901760
        %6353 = vmatpush1.msra.mxu0 %v6352
        %v6354 = vand.u32 %v603, 4294901760
        %6355 = vmatprep.subr.mxu0 %v6354
        %v6356 = vand.u32 %v602, 4294901760
        %6357 = vmatpush1.msra.mxu0 %v6356
        %v6358 = vand.u32 %v607, 4294901760
        %6359 = vmatprep.subr.mxu0 %v6358
        %v6360 = vand.u32 %v606, 4294901760
        %6361 = vmatpush1.msra.mxu0 %v6360
        %v6362 = vand.u32 %v611, 4294901760
        %6363 = vmatprep.subr.mxu0 %v6362
        %v6364 = vand.u32 %v610, 4294901760
        %6365 = vmatpush1.msra.mxu0 %v6364
        %v6366 = vand.u32 %v615, 4294901760
        %6367 = vmatprep.subr.mxu0 %v6366
        %v6368 = vand.u32 %v614, 4294901760
        %6369 = vmatpush1.msra.mxu0 %v6368
        %v6370 = vand.u32 %v619, 4294901760
        %6371 = vmatprep.subr.mxu0 %v6370
        %v6372 = vand.u32 %v618, 4294901760
        %6373 = vmatpush1.msra.mxu0 %v6372
        %v6374 = vand.u32 %v623, 4294901760
        %6375 = vmatprep.subr.mxu0 %v6374
        %v6376 = vand.u32 %v622, 4294901760
        %6377 = vmatpush1.msra.mxu0 %v6376
        %v6378 = vand.u32 %v627, 4294901760
        %6379 = vmatprep.subr.mxu0 %v6378
        %v6380 = vand.u32 %v626, 4294901760
        %6381 = vmatpush1.msra.mxu0 %v6380
        %v6382 = vand.u32 %v631, 4294901760
        %6383 = vmatprep.subr.mxu0 %v6382
        %v6384 = vand.u32 %v630, 4294901760
        %6385 = vmatpush1.msra.mxu0 %v6384
        %v6386 = vand.u32 %v375, 4294901760
        %v6387 = vsub.f32 %v375, %v6386
        %v6388 = vand.u32 %v6387, 4294901760
        %v6389 = vsub.f32 %v6387, %v6388
        %v6390 = vand.u32 %v6389, 4294901760
        %6391 = vmatprep.mubr.f32.mxu0 %v6390
        %v6392 = vand.u32 %v374, 4294901760
        %v6393 = vsub.f32 %v374, %v6392
        %v6394 = vand.u32 %v6393, 4294901760
        %v6395 = vsub.f32 %v6393, %v6394
        %v6396 = vand.u32 %v6395, 4294901760
        %6397 = vmatmul.mubr.f32.gmra.mrb[0].mxu0 %v6396
        %v6398 = vpop.f32.mrb[0].mxu0
        %v6399 = vadd.f32 %v6254, %v6398
        %v6400 = vpop.f32.mrb[0].mxu0
        %v6401 = vadd.f32 %v6256, %v6400
        %6402 = vdwg.mxu0
        %v6403 = vand.u32 %v507, 4294901760
        %v6404 = vsub.f32 %v507, %v6403
        %v6405 = vand.u32 %v6404, 4294901760
        %v6406 = vsub.f32 %v6404, %v6405
        %v6407 = vand.u32 %v6406, 4294901760
        %6408 = vmatprep.subr.mxu0 %v6407
        %v6409 = vand.u32 %v506, 4294901760
        %v6410 = vsub.f32 %v506, %v6409
        %v6411 = vand.u32 %v6410, 4294901760
        %v6412 = vsub.f32 %v6410, %v6411
        %v6413 = vand.u32 %v6412, 4294901760
        %6414 = vmatpush1.msra.mxu0 %v6413
        %v6415 = vand.u32 %v511, 4294901760
        %v6416 = vsub.f32 %v511, %v6415
        %v6417 = vand.u32 %v6416, 4294901760
        %v6418 = vsub.f32 %v6416, %v6417
        %v6419 = vand.u32 %v6418, 4294901760
        %6420 = vmatprep.subr.mxu0 %v6419
        %v6421 = vand.u32 %v510, 4294901760
        %v6422 = vsub.f32 %v510, %v6421
        %v6423 = vand.u32 %v6422, 4294901760
        %v6424 = vsub.f32 %v6422, %v6423
        %v6425 = vand.u32 %v6424, 4294901760
        %6426 = vmatpush1.msra.mxu0 %v6425
        %v6427 = vand.u32 %v515, 4294901760
        %v6428 = vsub.f32 %v515, %v6427
        %v6429 = vand.u32 %v6428, 4294901760
        %v6430 = vsub.f32 %v6428, %v6429
        %v6431 = vand.u32 %v6430, 4294901760
        %6432 = vmatprep.subr.mxu0 %v6431
        %v6433 = vand.u32 %v514, 4294901760
        %v6434 = vsub.f32 %v514, %v6433
        %v6435 = vand.u32 %v6434, 4294901760
        %v6436 = vsub.f32 %v6434, %v6435
        %v6437 = vand.u32 %v6436, 4294901760
        %6438 = vmatpush1.msra.mxu0 %v6437
        %v6439 = vand.u32 %v519, 4294901760
        %v6440 = vsub.f32 %v519, %v6439
        %v6441 = vand.u32 %v6440, 4294901760
        %v6442 = vsub.f32 %v6440, %v6441
        %v6443 = vand.u32 %v6442, 4294901760
        %6444 = vmatprep.subr.mxu0 %v6443
        %v6445 = vand.u32 %v518, 4294901760
        %v6446 = vsub.f32 %v518, %v6445
        %v6447 = vand.u32 %v6446, 4294901760
        %v6448 = vsub.f32 %v6446, %v6447
        %v6449 = vand.u32 %v6448, 4294901760
        %6450 = vmatpush1.msra.mxu0 %v6449
        %v6451 = vand.u32 %v523, 4294901760
        %v6452 = vsub.f32 %v523, %v6451
        %v6453 = vand.u32 %v6452, 4294901760
        %v6454 = vsub.f32 %v6452, %v6453
        %v6455 = vand.u32 %v6454, 4294901760
        %6456 = vmatprep.subr.mxu0 %v6455
        %v6457 = vand.u32 %v522, 4294901760
        %v6458 = vsub.f32 %v522, %v6457
        %v6459 = vand.u32 %v6458, 4294901760
        %v6460 = vsub.f32 %v6458, %v6459
        %v6461 = vand.u32 %v6460, 4294901760
        %6462 = vmatpush1.msra.mxu0 %v6461
        %v6463 = vand.u32 %v527, 4294901760
        %v6464 = vsub.f32 %v527, %v6463
        %v6465 = vand.u32 %v6464, 4294901760
        %v6466 = vsub.f32 %v6464, %v6465
        %v6467 = vand.u32 %v6466, 4294901760
        %6468 = vmatprep.subr.mxu0 %v6467
        %v6469 = vand.u32 %v526, 4294901760
        %v6470 = vsub.f32 %v526, %v6469
        %v6471 = vand.u32 %v6470, 4294901760
        %v6472 = vsub.f32 %v6470, %v6471
        %v6473 = vand.u32 %v6472, 4294901760
        %6474 = vmatpush1.msra.mxu0 %v6473
        %v6475 = vand.u32 %v531, 4294901760
        %v6476 = vsub.f32 %v531, %v6475
        %v6477 = vand.u32 %v6476, 4294901760
        %v6478 = vsub.f32 %v6476, %v6477
        %v6479 = vand.u32 %v6478, 4294901760
        %6480 = vmatprep.subr.mxu0 %v6479
        %v6481 = vand.u32 %v530, 4294901760
        %v6482 = vsub.f32 %v530, %v6481
        %v6483 = vand.u32 %v6482, 4294901760
        %v6484 = vsub.f32 %v6482, %v6483
        %v6485 = vand.u32 %v6484, 4294901760
        %6486 = vmatpush1.msra.mxu0 %v6485
        %v6487 = vand.u32 %v535, 4294901760
        %v6488 = vsub.f32 %v535, %v6487
        %v6489 = vand.u32 %v6488, 4294901760
        %v6490 = vsub.f32 %v6488, %v6489
        %v6491 = vand.u32 %v6490, 4294901760
        %6492 = vmatprep.subr.mxu0 %v6491
        %v6493 = vand.u32 %v534, 4294901760
        %v6494 = vsub.f32 %v534, %v6493
        %v6495 = vand.u32 %v6494, 4294901760
        %v6496 = vsub.f32 %v6494, %v6495
        %v6497 = vand.u32 %v6496, 4294901760
        %6498 = vmatpush1.msra.mxu0 %v6497
        %v6499 = vand.u32 %v539, 4294901760
        %v6500 = vsub.f32 %v539, %v6499
        %v6501 = vand.u32 %v6500, 4294901760
        %v6502 = vsub.f32 %v6500, %v6501
        %v6503 = vand.u32 %v6502, 4294901760
        %6504 = vmatprep.subr.mxu0 %v6503
        %v6505 = vand.u32 %v538, 4294901760
        %v6506 = vsub.f32 %v538, %v6505
        %v6507 = vand.u32 %v6506, 4294901760
        %v6508 = vsub.f32 %v6506, %v6507
        %v6509 = vand.u32 %v6508, 4294901760
        %6510 = vmatpush1.msra.mxu0 %v6509
        %v6511 = vand.u32 %v543, 4294901760
        %v6512 = vsub.f32 %v543, %v6511
        %v6513 = vand.u32 %v6512, 4294901760
        %v6514 = vsub.f32 %v6512, %v6513
        %v6515 = vand.u32 %v6514, 4294901760
        %6516 = vmatprep.subr.mxu0 %v6515
        %v6517 = vand.u32 %v542, 4294901760
        %v6518 = vsub.f32 %v542, %v6517
        %v6519 = vand.u32 %v6518, 4294901760
        %v6520 = vsub.f32 %v6518, %v6519
        %v6521 = vand.u32 %v6520, 4294901760
        %6522 = vmatpush1.msra.mxu0 %v6521
        %v6523 = vand.u32 %v547, 4294901760
        %v6524 = vsub.f32 %v547, %v6523
        %v6525 = vand.u32 %v6524, 4294901760
        %v6526 = vsub.f32 %v6524, %v6525
        %v6527 = vand.u32 %v6526, 4294901760
        %6528 = vmatprep.subr.mxu0 %v6527
        %v6529 = vand.u32 %v546, 4294901760
        %v6530 = vsub.f32 %v546, %v6529
        %v6531 = vand.u32 %v6530, 4294901760
        %v6532 = vsub.f32 %v6530, %v6531
        %v6533 = vand.u32 %v6532, 4294901760
        %6534 = vmatpush1.msra.mxu0 %v6533
        %v6535 = vand.u32 %v551, 4294901760
        %v6536 = vsub.f32 %v551, %v6535
        %v6537 = vand.u32 %v6536, 4294901760
        %v6538 = vsub.f32 %v6536, %v6537
        %v6539 = vand.u32 %v6538, 4294901760
        %6540 = vmatprep.subr.mxu0 %v6539
        %v6541 = vand.u32 %v550, 4294901760
        %v6542 = vsub.f32 %v550, %v6541
        %v6543 = vand.u32 %v6542, 4294901760
        %v6544 = vsub.f32 %v6542, %v6543
        %v6545 = vand.u32 %v6544, 4294901760
        %6546 = vmatpush1.msra.mxu0 %v6545
        %v6547 = vand.u32 %v555, 4294901760
        %v6548 = vsub.f32 %v555, %v6547
        %v6549 = vand.u32 %v6548, 4294901760
        %v6550 = vsub.f32 %v6548, %v6549
        %v6551 = vand.u32 %v6550, 4294901760
        %6552 = vmatprep.subr.mxu0 %v6551
        %v6553 = vand.u32 %v554, 4294901760
        %v6554 = vsub.f32 %v554, %v6553
        %v6555 = vand.u32 %v6554, 4294901760
        %v6556 = vsub.f32 %v6554, %v6555
        %v6557 = vand.u32 %v6556, 4294901760
        %6558 = vmatpush1.msra.mxu0 %v6557
        %v6559 = vand.u32 %v559, 4294901760
        %v6560 = vsub.f32 %v559, %v6559
        %v6561 = vand.u32 %v6560, 4294901760
        %v6562 = vsub.f32 %v6560, %v6561
        %v6563 = vand.u32 %v6562, 4294901760
        %6564 = vmatprep.subr.mxu0 %v6563
        %v6565 = vand.u32 %v558, 4294901760
        %v6566 = vsub.f32 %v558, %v6565
        %v6567 = vand.u32 %v6566, 4294901760
        %v6568 = vsub.f32 %v6566, %v6567
        %v6569 = vand.u32 %v6568, 4294901760
        %6570 = vmatpush1.msra.mxu0 %v6569
        %v6571 = vand.u32 %v563, 4294901760
        %v6572 = vsub.f32 %v563, %v6571
        %v6573 = vand.u32 %v6572, 4294901760
        %v6574 = vsub.f32 %v6572, %v6573
        %v6575 = vand.u32 %v6574, 4294901760
        %6576 = vmatprep.subr.mxu0 %v6575
        %v6577 = vand.u32 %v562, 4294901760
        %v6578 = vsub.f32 %v562, %v6577
        %v6579 = vand.u32 %v6578, 4294901760
        %v6580 = vsub.f32 %v6578, %v6579
        %v6581 = vand.u32 %v6580, 4294901760
        %6582 = vmatpush1.msra.mxu0 %v6581
        %v6583 = vand.u32 %v567, 4294901760
        %v6584 = vsub.f32 %v567, %v6583
        %v6585 = vand.u32 %v6584, 4294901760
        %v6586 = vsub.f32 %v6584, %v6585
        %v6587 = vand.u32 %v6586, 4294901760
        %6588 = vmatprep.subr.mxu0 %v6587
        %v6589 = vand.u32 %v566, 4294901760
        %v6590 = vsub.f32 %v566, %v6589
        %v6591 = vand.u32 %v6590, 4294901760
        %v6592 = vsub.f32 %v6590, %v6591
        %v6593 = vand.u32 %v6592, 4294901760
        %6594 = vmatpush1.msra.mxu0 %v6593
        %v6595 = vand.u32 %v571, 4294901760
        %v6596 = vsub.f32 %v571, %v6595
        %v6597 = vand.u32 %v6596, 4294901760
        %v6598 = vsub.f32 %v6596, %v6597
        %v6599 = vand.u32 %v6598, 4294901760
        %6600 = vmatprep.subr.mxu0 %v6599
        %v6601 = vand.u32 %v570, 4294901760
        %v6602 = vsub.f32 %v570, %v6601
        %v6603 = vand.u32 %v6602, 4294901760
        %v6604 = vsub.f32 %v6602, %v6603
        %v6605 = vand.u32 %v6604, 4294901760
        %6606 = vmatpush1.msra.mxu0 %v6605
        %v6607 = vand.u32 %v575, 4294901760
        %v6608 = vsub.f32 %v575, %v6607
        %v6609 = vand.u32 %v6608, 4294901760
        %v6610 = vsub.f32 %v6608, %v6609
        %v6611 = vand.u32 %v6610, 4294901760
        %6612 = vmatprep.subr.mxu0 %v6611
        %v6613 = vand.u32 %v574, 4294901760
        %v6614 = vsub.f32 %v574, %v6613
        %v6615 = vand.u32 %v6614, 4294901760
        %v6616 = vsub.f32 %v6614, %v6615
        %v6617 = vand.u32 %v6616, 4294901760
        %6618 = vmatpush1.msra.mxu0 %v6617
        %v6619 = vand.u32 %v579, 4294901760
        %v6620 = vsub.f32 %v579, %v6619
        %v6621 = vand.u32 %v6620, 4294901760
        %v6622 = vsub.f32 %v6620, %v6621
        %v6623 = vand.u32 %v6622, 4294901760
        %6624 = vmatprep.subr.mxu0 %v6623
        %v6625 = vand.u32 %v578, 4294901760
        %v6626 = vsub.f32 %v578, %v6625
        %v6627 = vand.u32 %v6626, 4294901760
        %v6628 = vsub.f32 %v6626, %v6627
        %v6629 = vand.u32 %v6628, 4294901760
        %6630 = vmatpush1.msra.mxu0 %v6629
        %v6631 = vand.u32 %v583, 4294901760
        %v6632 = vsub.f32 %v583, %v6631
        %v6633 = vand.u32 %v6632, 4294901760
        %v6634 = vsub.f32 %v6632, %v6633
        %v6635 = vand.u32 %v6634, 4294901760
        %6636 = vmatprep.subr.mxu0 %v6635
        %v6637 = vand.u32 %v582, 4294901760
        %v6638 = vsub.f32 %v582, %v6637
        %v6639 = vand.u32 %v6638, 4294901760
        %v6640 = vsub.f32 %v6638, %v6639
        %v6641 = vand.u32 %v6640, 4294901760
        %6642 = vmatpush1.msra.mxu0 %v6641
        %v6643 = vand.u32 %v587, 4294901760
        %v6644 = vsub.f32 %v587, %v6643
        %v6645 = vand.u32 %v6644, 4294901760
        %v6646 = vsub.f32 %v6644, %v6645
        %v6647 = vand.u32 %v6646, 4294901760
        %6648 = vmatprep.subr.mxu0 %v6647
        %v6649 = vand.u32 %v586, 4294901760
        %v6650 = vsub.f32 %v586, %v6649
        %v6651 = vand.u32 %v6650, 4294901760
        %v6652 = vsub.f32 %v6650, %v6651
        %v6653 = vand.u32 %v6652, 4294901760
        %6654 = vmatpush1.msra.mxu0 %v6653
        %v6655 = vand.u32 %v591, 4294901760
        %v6656 = vsub.f32 %v591, %v6655
        %v6657 = vand.u32 %v6656, 4294901760
        %v6658 = vsub.f32 %v6656, %v6657
        %v6659 = vand.u32 %v6658, 4294901760
        %6660 = vmatprep.subr.mxu0 %v6659
        %v6661 = vand.u32 %v590, 4294901760
        %v6662 = vsub.f32 %v590, %v6661
        %v6663 = vand.u32 %v6662, 4294901760
        %v6664 = vsub.f32 %v6662, %v6663
        %v6665 = vand.u32 %v6664, 4294901760
        %6666 = vmatpush1.msra.mxu0 %v6665
        %v6667 = vand.u32 %v595, 4294901760
        %v6668 = vsub.f32 %v595, %v6667
        %v6669 = vand.u32 %v6668, 4294901760
        %v6670 = vsub.f32 %v6668, %v6669
        %v6671 = vand.u32 %v6670, 4294901760
        %6672 = vmatprep.subr.mxu0 %v6671
        %v6673 = vand.u32 %v594, 4294901760
        %v6674 = vsub.f32 %v594, %v6673
        %v6675 = vand.u32 %v6674, 4294901760
        %v6676 = vsub.f32 %v6674, %v6675
        %v6677 = vand.u32 %v6676, 4294901760
        %6678 = vmatpush1.msra.mxu0 %v6677
        %v6679 = vand.u32 %v599, 4294901760
        %v6680 = vsub.f32 %v599, %v6679
        %v6681 = vand.u32 %v6680, 4294901760
        %v6682 = vsub.f32 %v6680, %v6681
        %v6683 = vand.u32 %v6682, 4294901760
        %6684 = vmatprep.subr.mxu0 %v6683
        %v6685 = vand.u32 %v598, 4294901760
        %v6686 = vsub.f32 %v598, %v6685
        %v6687 = vand.u32 %v6686, 4294901760
        %v6688 = vsub.f32 %v6686, %v6687
        %v6689 = vand.u32 %v6688, 4294901760
        %6690 = vmatpush1.msra.mxu0 %v6689
        %v6691 = vand.u32 %v603, 4294901760
        %v6692 = vsub.f32 %v603, %v6691
        %v6693 = vand.u32 %v6692, 4294901760
        %v6694 = vsub.f32 %v6692, %v6693
        %v6695 = vand.u32 %v6694, 4294901760
        %6696 = vmatprep.subr.mxu0 %v6695
        %v6697 = vand.u32 %v602, 4294901760
        %v6698 = vsub.f32 %v602, %v6697
        %v6699 = vand.u32 %v6698, 4294901760
        %v6700 = vsub.f32 %v6698, %v6699
        %v6701 = vand.u32 %v6700, 4294901760
        %6702 = vmatpush1.msra.mxu0 %v6701
        %v6703 = vand.u32 %v607, 4294901760
        %v6704 = vsub.f32 %v607, %v6703
        %v6705 = vand.u32 %v6704, 4294901760
        %v6706 = vsub.f32 %v6704, %v6705
        %v6707 = vand.u32 %v6706, 4294901760
        %6708 = vmatprep.subr.mxu0 %v6707
        %v6709 = vand.u32 %v606, 4294901760
        %v6710 = vsub.f32 %v606, %v6709
        %v6711 = vand.u32 %v6710, 4294901760
        %v6712 = vsub.f32 %v6710, %v6711
        %v6713 = vand.u32 %v6712, 4294901760
        %6714 = vmatpush1.msra.mxu0 %v6713
        %v6715 = vand.u32 %v611, 4294901760
        %v6716 = vsub.f32 %v611, %v6715
        %v6717 = vand.u32 %v6716, 4294901760
        %v6718 = vsub.f32 %v6716, %v6717
        %v6719 = vand.u32 %v6718, 4294901760
        %6720 = vmatprep.subr.mxu0 %v6719
        %v6721 = vand.u32 %v610, 4294901760
        %v6722 = vsub.f32 %v610, %v6721
        %v6723 = vand.u32 %v6722, 4294901760
        %v6724 = vsub.f32 %v6722, %v6723
        %v6725 = vand.u32 %v6724, 4294901760
        %6726 = vmatpush1.msra.mxu0 %v6725
        %v6727 = vand.u32 %v615, 4294901760
        %v6728 = vsub.f32 %v615, %v6727
        %v6729 = vand.u32 %v6728, 4294901760
        %v6730 = vsub.f32 %v6728, %v6729
        %v6731 = vand.u32 %v6730, 4294901760
        %6732 = vmatprep.subr.mxu0 %v6731
        %v6733 = vand.u32 %v614, 4294901760
        %v6734 = vsub.f32 %v614, %v6733
        %v6735 = vand.u32 %v6734, 4294901760
        %v6736 = vsub.f32 %v6734, %v6735
        %v6737 = vand.u32 %v6736, 4294901760
        %6738 = vmatpush1.msra.mxu0 %v6737
        %v6739 = vand.u32 %v619, 4294901760
        %v6740 = vsub.f32 %v619, %v6739
        %v6741 = vand.u32 %v6740, 4294901760
        %v6742 = vsub.f32 %v6740, %v6741
        %v6743 = vand.u32 %v6742, 4294901760
        %6744 = vmatprep.subr.mxu0 %v6743
        %v6745 = vand.u32 %v618, 4294901760
        %v6746 = vsub.f32 %v618, %v6745
        %v6747 = vand.u32 %v6746, 4294901760
        %v6748 = vsub.f32 %v6746, %v6747
        %v6749 = vand.u32 %v6748, 4294901760
        %6750 = vmatpush1.msra.mxu0 %v6749
        %v6751 = vand.u32 %v623, 4294901760
        %v6752 = vsub.f32 %v623, %v6751
        %v6753 = vand.u32 %v6752, 4294901760
        %v6754 = vsub.f32 %v6752, %v6753
        %v6755 = vand.u32 %v6754, 4294901760
        %6756 = vmatprep.subr.mxu0 %v6755
        %v6757 = vand.u32 %v622, 4294901760
        %v6758 = vsub.f32 %v622, %v6757
        %v6759 = vand.u32 %v6758, 4294901760
        %v6760 = vsub.f32 %v6758, %v6759
        %v6761 = vand.u32 %v6760, 4294901760
        %6762 = vmatpush1.msra.mxu0 %v6761
        %v6763 = vand.u32 %v627, 4294901760
        %v6764 = vsub.f32 %v627, %v6763
        %v6765 = vand.u32 %v6764, 4294901760
        %v6766 = vsub.f32 %v6764, %v6765
        %v6767 = vand.u32 %v6766, 4294901760
        %6768 = vmatprep.subr.mxu0 %v6767
        %v6769 = vand.u32 %v626, 4294901760
        %v6770 = vsub.f32 %v626, %v6769
        %v6771 = vand.u32 %v6770, 4294901760
        %v6772 = vsub.f32 %v6770, %v6771
        %v6773 = vand.u32 %v6772, 4294901760
        %6774 = vmatpush1.msra.mxu0 %v6773
        %v6775 = vand.u32 %v631, 4294901760
        %v6776 = vsub.f32 %v631, %v6775
        %v6777 = vand.u32 %v6776, 4294901760
        %v6778 = vsub.f32 %v6776, %v6777
        %v6779 = vand.u32 %v6778, 4294901760
        %6780 = vmatprep.subr.mxu0 %v6779
        %v6781 = vand.u32 %v630, 4294901760
        %v6782 = vsub.f32 %v630, %v6781
        %v6783 = vand.u32 %v6782, 4294901760
        %v6784 = vsub.f32 %v6782, %v6783
        %v6785 = vand.u32 %v6784, 4294901760
        %6786 = vmatpush1.msra.mxu0 %v6785
        %v6787 = vand.u32 %v375, 4294901760
        %6788 = vmatprep.mubr.f32.mxu0 %v6787
        %v6789 = vand.u32 %v374, 4294901760
        %6790 = vmatmul.mubr.f32.gmra.mrb[0].mxu0 %v6789
        %v6791 = vpop.f32.mrb[0].mxu0
        %v6792 = vadd.f32 %v6399, %v6791
        %v6793 = vpop.f32.mrb[0].mxu0
        %v6794 = vadd.f32 %v6401, %v6793
        %6795 = vdwg.mxu0
        %v6796 = vand.u32 %v507, 4294901760
        %v6797 = vsub.f32 %v507, %v6796
        %6798 = vmatprep.subr.mxu0 %v6797
        %v6799 = vand.u32 %v506, 4294901760
        %v6800 = vsub.f32 %v506, %v6799
        %6801 = vmatpush1.msra.mxu0 %v6800
        %v6802 = vand.u32 %v511, 4294901760
        %v6803 = vsub.f32 %v511, %v6802
        %6804 = vmatprep.subr.mxu0 %v6803
        %v6805 = vand.u32 %v510, 4294901760
        %v6806 = vsub.f32 %v510, %v6805
        %6807 = vmatpush1.msra.mxu0 %v6806
        %v6808 = vand.u32 %v515, 4294901760
        %v6809 = vsub.f32 %v515, %v6808
        %6810 = vmatprep.subr.mxu0 %v6809
        %v6811 = vand.u32 %v514, 4294901760
        %v6812 = vsub.f32 %v514, %v6811
        %6813 = vmatpush1.msra.mxu0 %v6812
        %v6814 = vand.u32 %v519, 4294901760
        %v6815 = vsub.f32 %v519, %v6814
        %6816 = vmatprep.subr.mxu0 %v6815
        %v6817 = vand.u32 %v518, 4294901760
        %v6818 = vsub.f32 %v518, %v6817
        %6819 = vmatpush1.msra.mxu0 %v6818
        %v6820 = vand.u32 %v523, 4294901760
        %v6821 = vsub.f32 %v523, %v6820
        %6822 = vmatprep.subr.mxu0 %v6821
        %v6823 = vand.u32 %v522, 4294901760
        %v6824 = vsub.f32 %v522, %v6823
        %6825 = vmatpush1.msra.mxu0 %v6824
        %v6826 = vand.u32 %v527, 4294901760
        %v6827 = vsub.f32 %v527, %v6826
        %6828 = vmatprep.subr.mxu0 %v6827
        %v6829 = vand.u32 %v526, 4294901760
        %v6830 = vsub.f32 %v526, %v6829
        %6831 = vmatpush1.msra.mxu0 %v6830
        %v6832 = vand.u32 %v531, 4294901760
        %v6833 = vsub.f32 %v531, %v6832
        %6834 = vmatprep.subr.mxu0 %v6833
        %v6835 = vand.u32 %v530, 4294901760
        %v6836 = vsub.f32 %v530, %v6835
        %6837 = vmatpush1.msra.mxu0 %v6836
        %v6838 = vand.u32 %v535, 4294901760
        %v6839 = vsub.f32 %v535, %v6838
        %6840 = vmatprep.subr.mxu0 %v6839
        %v6841 = vand.u32 %v534, 4294901760
        %v6842 = vsub.f32 %v534, %v6841
        %6843 = vmatpush1.msra.mxu0 %v6842
        %v6844 = vand.u32 %v539, 4294901760
        %v6845 = vsub.f32 %v539, %v6844
        %6846 = vmatprep.subr.mxu0 %v6845
        %v6847 = vand.u32 %v538, 4294901760
        %v6848 = vsub.f32 %v538, %v6847
        %6849 = vmatpush1.msra.mxu0 %v6848
        %v6850 = vand.u32 %v543, 4294901760
        %v6851 = vsub.f32 %v543, %v6850
        %6852 = vmatprep.subr.mxu0 %v6851
        %v6853 = vand.u32 %v542, 4294901760
        %v6854 = vsub.f32 %v542, %v6853
        %6855 = vmatpush1.msra.mxu0 %v6854
        %v6856 = vand.u32 %v547, 4294901760
        %v6857 = vsub.f32 %v547, %v6856
        %6858 = vmatprep.subr.mxu0 %v6857
        %v6859 = vand.u32 %v546, 4294901760
        %v6860 = vsub.f32 %v546, %v6859
        %6861 = vmatpush1.msra.mxu0 %v6860
        %v6862 = vand.u32 %v551, 4294901760
        %v6863 = vsub.f32 %v551, %v6862
        %6864 = vmatprep.subr.mxu0 %v6863
        %v6865 = vand.u32 %v550, 4294901760
        %v6866 = vsub.f32 %v550, %v6865
        %6867 = vmatpush1.msra.mxu0 %v6866
        %v6868 = vand.u32 %v555, 4294901760
        %v6869 = vsub.f32 %v555, %v6868
        %6870 = vmatprep.subr.mxu0 %v6869
        %v6871 = vand.u32 %v554, 4294901760
        %v6872 = vsub.f32 %v554, %v6871
        %6873 = vmatpush1.msra.mxu0 %v6872
        %v6874 = vand.u32 %v559, 4294901760
        %v6875 = vsub.f32 %v559, %v6874
        %6876 = vmatprep.subr.mxu0 %v6875
        %v6877 = vand.u32 %v558, 4294901760
        %v6878 = vsub.f32 %v558, %v6877
        %6879 = vmatpush1.msra.mxu0 %v6878
        %v6880 = vand.u32 %v563, 4294901760
        %v6881 = vsub.f32 %v563, %v6880
        %6882 = vmatprep.subr.mxu0 %v6881
        %v6883 = vand.u32 %v562, 4294901760
        %v6884 = vsub.f32 %v562, %v6883
        %6885 = vmatpush1.msra.mxu0 %v6884
        %v6886 = vand.u32 %v567, 4294901760
        %v6887 = vsub.f32 %v567, %v6886
        %6888 = vmatprep.subr.mxu0 %v6887
        %v6889 = vand.u32 %v566, 4294901760
        %v6890 = vsub.f32 %v566, %v6889
        %6891 = vmatpush1.msra.mxu0 %v6890
        %v6892 = vand.u32 %v571, 4294901760
        %v6893 = vsub.f32 %v571, %v6892
        %6894 = vmatprep.subr.mxu0 %v6893
        %v6895 = vand.u32 %v570, 4294901760
        %v6896 = vsub.f32 %v570, %v6895
        %6897 = vmatpush1.msra.mxu0 %v6896
        %v6898 = vand.u32 %v575, 4294901760
        %v6899 = vsub.f32 %v575, %v6898
        %6900 = vmatprep.subr.mxu0 %v6899
        %v6901 = vand.u32 %v574, 4294901760
        %v6902 = vsub.f32 %v574, %v6901
        %6903 = vmatpush1.msra.mxu0 %v6902
        %v6904 = vand.u32 %v579, 4294901760
        %v6905 = vsub.f32 %v579, %v6904
        %6906 = vmatprep.subr.mxu0 %v6905
        %v6907 = vand.u32 %v578, 4294901760
        %v6908 = vsub.f32 %v578, %v6907
        %6909 = vmatpush1.msra.mxu0 %v6908
        %v6910 = vand.u32 %v583, 4294901760
        %v6911 = vsub.f32 %v583, %v6910
        %6912 = vmatprep.subr.mxu0 %v6911
        %v6913 = vand.u32 %v582, 4294901760
        %v6914 = vsub.f32 %v582, %v6913
        %6915 = vmatpush1.msra.mxu0 %v6914
        %v6916 = vand.u32 %v587, 4294901760
        %v6917 = vsub.f32 %v587, %v6916
        %6918 = vmatprep.subr.mxu0 %v6917
        %v6919 = vand.u32 %v586, 4294901760
        %v6920 = vsub.f32 %v586, %v6919
        %6921 = vmatpush1.msra.mxu0 %v6920
        %v6922 = vand.u32 %v591, 4294901760
        %v6923 = vsub.f32 %v591, %v6922
        %6924 = vmatprep.subr.mxu0 %v6923
        %v6925 = vand.u32 %v590, 4294901760
        %v6926 = vsub.f32 %v590, %v6925
        %6927 = vmatpush1.msra.mxu0 %v6926
        %v6928 = vand.u32 %v595, 4294901760
        %v6929 = vsub.f32 %v595, %v6928
        %6930 = vmatprep.subr.mxu0 %v6929
        %v6931 = vand.u32 %v594, 4294901760
        %v6932 = vsub.f32 %v594, %v6931
        %6933 = vmatpush1.msra.mxu0 %v6932
        %v6934 = vand.u32 %v599, 4294901760
        %v6935 = vsub.f32 %v599, %v6934
        %6936 = vmatprep.subr.mxu0 %v6935
        %v6937 = vand.u32 %v598, 4294901760
        %v6938 = vsub.f32 %v598, %v6937
        %6939 = vmatpush1.msra.mxu0 %v6938
        %v6940 = vand.u32 %v603, 4294901760
        %v6941 = vsub.f32 %v603, %v6940
        %6942 = vmatprep.subr.mxu0 %v6941
        %v6943 = vand.u32 %v602, 4294901760
        %v6944 = vsub.f32 %v602, %v6943
        %6945 = vmatpush1.msra.mxu0 %v6944
        %v6946 = vand.u32 %v607, 4294901760
        %v6947 = vsub.f32 %v607, %v6946
        %6948 = vmatprep.subr.mxu0 %v6947
        %v6949 = vand.u32 %v606, 4294901760
        %v6950 = vsub.f32 %v606, %v6949
        %6951 = vmatpush1.msra.mxu0 %v6950
        %v6952 = vand.u32 %v611, 4294901760
        %v6953 = vsub.f32 %v611, %v6952
        %6954 = vmatprep.subr.mxu0 %v6953
        %v6955 = vand.u32 %v610, 4294901760
        %v6956 = vsub.f32 %v610, %v6955
        %6957 = vmatpush1.msra.mxu0 %v6956
        %v6958 = vand.u32 %v615, 4294901760
        %v6959 = vsub.f32 %v615, %v6958
        %6960 = vmatprep.subr.mxu0 %v6959
        %v6961 = vand.u32 %v614, 4294901760
        %v6962 = vsub.f32 %v614, %v6961
        %6963 = vmatpush1.msra.mxu0 %v6962
        %v6964 = vand.u32 %v619, 4294901760
        %v6965 = vsub.f32 %v619, %v6964
        %6966 = vmatprep.subr.mxu0 %v6965
        %v6967 = vand.u32 %v618, 4294901760
        %v6968 = vsub.f32 %v618, %v6967
        %6969 = vmatpush1.msra.mxu0 %v6968
        %v6970 = vand.u32 %v623, 4294901760
        %v6971 = vsub.f32 %v623, %v6970
        %6972 = vmatprep.subr.mxu0 %v6971
        %v6973 = vand.u32 %v622, 4294901760
        %v6974 = vsub.f32 %v622, %v6973
        %6975 = vmatpush1.msra.mxu0 %v6974
        %v6976 = vand.u32 %v627, 4294901760
        %v6977 = vsub.f32 %v627, %v6976
        %6978 = vmatprep.subr.mxu0 %v6977
        %v6979 = vand.u32 %v626, 4294901760
        %v6980 = vsub.f32 %v626, %v6979
        %6981 = vmatpush1.msra.mxu0 %v6980
        %v6982 = vand.u32 %v631, 4294901760
        %v6983 = vsub.f32 %v631, %v6982
        %6984 = vmatprep.subr.mxu0 %v6983
        %v6985 = vand.u32 %v630, 4294901760
        %v6986 = vsub.f32 %v630, %v6985
        %6987 = vmatpush1.msra.mxu0 %v6986
        %v6988 = vand.u32 %v375, 4294901760
        %v6989 = vsub.f32 %v375, %v6988
        %6990 = vmatprep.mubr.f32.mxu0 %v6989
        %v6991 = vand.u32 %v374, 4294901760
        %v6992 = vsub.f32 %v374, %v6991
        %6993 = vmatmul.mubr.f32.gmra.mrb[0].mxu0 %v6992
        %v6994 = vpop.f32.mrb[0].mxu0
        %v6995 = vadd.f32 %v6792, %v6994
        %v6996 = vpop.f32.mrb[0].mxu0
        %v6997 = vadd.f32 %v6794, %v6996
        %6998 = vdwg.mxu0
        %v6999 = vand.u32 %v507, 4294901760
        %7000 = vmatprep.subr.mxu0 %v6999
        %v7001 = vand.u32 %v506, 4294901760
        %7002 = vmatpush1.msra.mxu0 %v7001
        %v7003 = vand.u32 %v511, 4294901760
        %7004 = vmatprep.subr.mxu0 %v7003
        %v7005 = vand.u32 %v510, 4294901760
        %7006 = vmatpush1.msra.mxu0 %v7005
        %v7007 = vand.u32 %v515, 4294901760
        %7008 = vmatprep.subr.mxu0 %v7007
        %v7009 = vand.u32 %v514, 4294901760
        %7010 = vmatpush1.msra.mxu0 %v7009
        %v7011 = vand.u32 %v519, 4294901760
        %7012 = vmatprep.subr.mxu0 %v7011
        %v7013 = vand.u32 %v518, 4294901760
        %7014 = vmatpush1.msra.mxu0 %v7013
        %v7015 = vand.u32 %v523, 4294901760
        %7016 = vmatprep.subr.mxu0 %v7015
        %v7017 = vand.u32 %v522, 4294901760
        %7018 = vmatpush1.msra.mxu0 %v7017
        %v7019 = vand.u32 %v527, 4294901760
        %7020 = vmatprep.subr.mxu0 %v7019
        %v7021 = vand.u32 %v526, 4294901760
        %7022 = vmatpush1.msra.mxu0 %v7021
        %v7023 = vand.u32 %v531, 4294901760
        %7024 = vmatprep.subr.mxu0 %v7023
        %v7025 = vand.u32 %v530, 4294901760
        %7026 = vmatpush1.msra.mxu0 %v7025
        %v7027 = vand.u32 %v535, 4294901760
        %7028 = vmatprep.subr.mxu0 %v7027
        %v7029 = vand.u32 %v534, 4294901760
        %7030 = vmatpush1.msra.mxu0 %v7029
        %v7031 = vand.u32 %v539, 4294901760
        %7032 = vmatprep.subr.mxu0 %v7031
        %v7033 = vand.u32 %v538, 4294901760
        %7034 = vmatpush1.msra.mxu0 %v7033
        %v7035 = vand.u32 %v543, 4294901760
        %7036 = vmatprep.subr.mxu0 %v7035
        %v7037 = vand.u32 %v542, 4294901760
        %7038 = vmatpush1.msra.mxu0 %v7037
        %v7039 = vand.u32 %v547, 4294901760
        %7040 = vmatprep.subr.mxu0 %v7039
        %v7041 = vand.u32 %v546, 4294901760
        %7042 = vmatpush1.msra.mxu0 %v7041
        %v7043 = vand.u32 %v551, 4294901760
        %7044 = vmatprep.subr.mxu0 %v7043
        %v7045 = vand.u32 %v550, 4294901760
        %7046 = vmatpush1.msra.mxu0 %v7045
        %v7047 = vand.u32 %v555, 4294901760
        %7048 = vmatprep.subr.mxu0 %v7047
        %v7049 = vand.u32 %v554, 4294901760
        %7050 = vmatpush1.msra.mxu0 %v7049
        %v7051 = vand.u32 %v559, 4294901760
        %7052 = vmatprep.subr.mxu0 %v7051
        %v7053 = vand.u32 %v558, 4294901760
        %7054 = vmatpush1.msra.mxu0 %v7053
        %v7055 = vand.u32 %v563, 4294901760
        %7056 = vmatprep.subr.mxu0 %v7055
        %v7057 = vand.u32 %v562, 4294901760
        %7058 = vmatpush1.msra.mxu0 %v7057
        %v7059 = vand.u32 %v567, 4294901760
        %7060 = vmatprep.subr.mxu0 %v7059
        %v7061 = vand.u32 %v566, 4294901760
        %7062 = vmatpush1.msra.mxu0 %v7061
        %v7063 = vand.u32 %v571, 4294901760
        %7064 = vmatprep.subr.mxu0 %v7063
        %v7065 = vand.u32 %v570, 4294901760
        %7066 = vmatpush1.msra.mxu0 %v7065
        %v7067 = vand.u32 %v575, 4294901760
        %7068 = vmatprep.subr.mxu0 %v7067
        %v7069 = vand.u32 %v574, 4294901760
        %7070 = vmatpush1.msra.mxu0 %v7069
        %v7071 = vand.u32 %v579, 4294901760
        %7072 = vmatprep.subr.mxu0 %v7071
        %v7073 = vand.u32 %v578, 4294901760
        %7074 = vmatpush1.msra.mxu0 %v7073
        %v7075 = vand.u32 %v583, 4294901760
        %7076 = vmatprep.subr.mxu0 %v7075
        %v7077 = vand.u32 %v582, 4294901760
        %7078 = vmatpush1.msra.mxu0 %v7077
        %v7079 = vand.u32 %v587, 4294901760
        %7080 = vmatprep.subr.mxu0 %v7079
        %v7081 = vand.u32 %v586, 4294901760
        %7082 = vmatpush1.msra.mxu0 %v7081
        %v7083 = vand.u32 %v591, 4294901760
        %7084 = vmatprep.subr.mxu0 %v7083
        %v7085 = vand.u32 %v590, 4294901760
        %7086 = vmatpush1.msra.mxu0 %v7085
        %v7087 = vand.u32 %v595, 4294901760
        %7088 = vmatprep.subr.mxu0 %v7087
        %v7089 = vand.u32 %v594, 4294901760
        %7090 = vmatpush1.msra.mxu0 %v7089
        %v7091 = vand.u32 %v599, 4294901760
        %7092 = vmatprep.subr.mxu0 %v7091
        %v7093 = vand.u32 %v598, 4294901760
        %7094 = vmatpush1.msra.mxu0 %v7093
        %v7095 = vand.u32 %v603, 4294901760
        %7096 = vmatprep.subr.mxu0 %v7095
        %v7097 = vand.u32 %v602, 4294901760
        %7098 = vmatpush1.msra.mxu0 %v7097
        %v7099 = vand.u32 %v607, 4294901760
        %7100 = vmatprep.subr.mxu0 %v7099
        %v7101 = vand.u32 %v606, 4294901760
        %7102 = vmatpush1.msra.mxu0 %v7101
        %v7103 = vand.u32 %v611, 4294901760
        %7104 = vmatprep.subr.mxu0 %v7103
        %v7105 = vand.u32 %v610, 4294901760
        %7106 = vmatpush1.msra.mxu0 %v7105
        %v7107 = vand.u32 %v615, 4294901760
        %7108 = vmatprep.subr.mxu0 %v7107
        %v7109 = vand.u32 %v614, 4294901760
        %7110 = vmatpush1.msra.mxu0 %v7109
        %v7111 = vand.u32 %v619, 4294901760
        %7112 = vmatprep.subr.mxu0 %v7111
        %v7113 = vand.u32 %v618, 4294901760
        %7114 = vmatpush1.msra.mxu0 %v7113
        %v7115 = vand.u32 %v623, 4294901760
        %7116 = vmatprep.subr.mxu0 %v7115
        %v7117 = vand.u32 %v622, 4294901760
        %7118 = vmatpush1.msra.mxu0 %v7117
        %v7119 = vand.u32 %v627, 4294901760
        %7120 = vmatprep.subr.mxu0 %v7119
        %v7121 = vand.u32 %v626, 4294901760
        %7122 = vmatpush1.msra.mxu0 %v7121
        %v7123 = vand.u32 %v631, 4294901760
        %7124 = vmatprep.subr.mxu0 %v7123
        %v7125 = vand.u32 %v630, 4294901760
        %7126 = vmatpush1.msra.mxu0 %v7125
        %v7127 = vand.u32 %v375, 4294901760
        %v7128 = vsub.f32 %v375, %v7127
        %v7129 = vand.u32 %v7128, 4294901760
        %7130 = vmatprep.mubr.f32.mxu0 %v7129
        %v7131 = vand.u32 %v374, 4294901760
        %v7132 = vsub.f32 %v374, %v7131
        %v7133 = vand.u32 %v7132, 4294901760
        %7134 = vmatmul.mubr.f32.gmra.mrb[0].mxu0 %v7133
        %v7135 = vpop.f32.mrb[0].mxu0
        %v7136 = vadd.f32 %v6995, %v7135
        %v7137 = vpop.f32.mrb[0].mxu0
        %v7138 = vadd.f32 %v6997, %v7137
        %7139 = vdwg.mxu0
        %v7140 = vand.u32 %v507, 4294901760
        %v7141 = vsub.f32 %v507, %v7140
        %v7142 = vand.u32 %v7141, 4294901760
        %7143 = vmatprep.subr.mxu0 %v7142
        %v7144 = vand.u32 %v506, 4294901760
        %v7145 = vsub.f32 %v506, %v7144
        %v7146 = vand.u32 %v7145, 4294901760
        %7147 = vmatpush1.msra.mxu0 %v7146
        %v7148 = vand.u32 %v511, 4294901760
        %v7149 = vsub.f32 %v511, %v7148
        %v7150 = vand.u32 %v7149, 4294901760
        %7151 = vmatprep.subr.mxu0 %v7150
        %v7152 = vand.u32 %v510, 4294901760
        %v7153 = vsub.f32 %v510, %v7152
        %v7154 = vand.u32 %v7153, 4294901760
        %7155 = vmatpush1.msra.mxu0 %v7154
        %v7156 = vand.u32 %v515, 4294901760
        %v7157 = vsub.f32 %v515, %v7156
        %v7158 = vand.u32 %v7157, 4294901760
        %7159 = vmatprep.subr.mxu0 %v7158
        %v7160 = vand.u32 %v514, 4294901760
        %v7161 = vsub.f32 %v514, %v7160
        %v7162 = vand.u32 %v7161, 4294901760
        %7163 = vmatpush1.msra.mxu0 %v7162
        %v7164 = vand.u32 %v519, 4294901760
        %v7165 = vsub.f32 %v519, %v7164
        %v7166 = vand.u32 %v7165, 4294901760
        %7167 = vmatprep.subr.mxu0 %v7166
        %v7168 = vand.u32 %v518, 4294901760
        %v7169 = vsub.f32 %v518, %v7168
        %v7170 = vand.u32 %v7169, 4294901760
        %7171 = vmatpush1.msra.mxu0 %v7170
        %v7172 = vand.u32 %v523, 4294901760
        %v7173 = vsub.f32 %v523, %v7172
        %v7174 = vand.u32 %v7173, 4294901760
        %7175 = vmatprep.subr.mxu0 %v7174
        %v7176 = vand.u32 %v522, 4294901760
        %v7177 = vsub.f32 %v522, %v7176
        %v7178 = vand.u32 %v7177, 4294901760
        %7179 = vmatpush1.msra.mxu0 %v7178
        %v7180 = vand.u32 %v527, 4294901760
        %v7181 = vsub.f32 %v527, %v7180
        %v7182 = vand.u32 %v7181, 4294901760
        %7183 = vmatprep.subr.mxu0 %v7182
        %v7184 = vand.u32 %v526, 4294901760
        %v7185 = vsub.f32 %v526, %v7184
        %v7186 = vand.u32 %v7185, 4294901760
        %7187 = vmatpush1.msra.mxu0 %v7186
        %v7188 = vand.u32 %v531, 4294901760
        %v7189 = vsub.f32 %v531, %v7188
        %v7190 = vand.u32 %v7189, 4294901760
        %7191 = vmatprep.subr.mxu0 %v7190
        %v7192 = vand.u32 %v530, 4294901760
        %v7193 = vsub.f32 %v530, %v7192
        %v7194 = vand.u32 %v7193, 4294901760
        %7195 = vmatpush1.msra.mxu0 %v7194
        %v7196 = vand.u32 %v535, 4294901760
        %v7197 = vsub.f32 %v535, %v7196
        %v7198 = vand.u32 %v7197, 4294901760
        %7199 = vmatprep.subr.mxu0 %v7198
        %v7200 = vand.u32 %v534, 4294901760
        %v7201 = vsub.f32 %v534, %v7200
        %v7202 = vand.u32 %v7201, 4294901760
        %7203 = vmatpush1.msra.mxu0 %v7202
        %v7204 = vand.u32 %v539, 4294901760
        %v7205 = vsub.f32 %v539, %v7204
        %v7206 = vand.u32 %v7205, 4294901760
        %7207 = vmatprep.subr.mxu0 %v7206
        %v7208 = vand.u32 %v538, 4294901760
        %v7209 = vsub.f32 %v538, %v7208
        %v7210 = vand.u32 %v7209, 4294901760
        %7211 = vmatpush1.msra.mxu0 %v7210
        %v7212 = vand.u32 %v543, 4294901760
        %v7213 = vsub.f32 %v543, %v7212
        %v7214 = vand.u32 %v7213, 4294901760
        %7215 = vmatprep.subr.mxu0 %v7214
        %v7216 = vand.u32 %v542, 4294901760
        %v7217 = vsub.f32 %v542, %v7216
        %v7218 = vand.u32 %v7217, 4294901760
        %7219 = vmatpush1.msra.mxu0 %v7218
        %v7220 = vand.u32 %v547, 4294901760
        %v7221 = vsub.f32 %v547, %v7220
        %v7222 = vand.u32 %v7221, 4294901760
        %7223 = vmatprep.subr.mxu0 %v7222
        %v7224 = vand.u32 %v546, 4294901760
        %v7225 = vsub.f32 %v546, %v7224
        %v7226 = vand.u32 %v7225, 4294901760
        %7227 = vmatpush1.msra.mxu0 %v7226
        %v7228 = vand.u32 %v551, 4294901760
        %v7229 = vsub.f32 %v551, %v7228
        %v7230 = vand.u32 %v7229, 4294901760
        %7231 = vmatprep.subr.mxu0 %v7230
        %v7232 = vand.u32 %v550, 4294901760
        %v7233 = vsub.f32 %v550, %v7232
        %v7234 = vand.u32 %v7233, 4294901760
        %7235 = vmatpush1.msra.mxu0 %v7234
        %v7236 = vand.u32 %v555, 4294901760
        %v7237 = vsub.f32 %v555, %v7236
        %v7238 = vand.u32 %v7237, 4294901760
        %7239 = vmatprep.subr.mxu0 %v7238
        %v7240 = vand.u32 %v554, 4294901760
        %v7241 = vsub.f32 %v554, %v7240
        %v7242 = vand.u32 %v7241, 4294901760
        %7243 = vmatpush1.msra.mxu0 %v7242
        %v7244 = vand.u32 %v559, 4294901760
        %v7245 = vsub.f32 %v559, %v7244
        %v7246 = vand.u32 %v7245, 4294901760
        %7247 = vmatprep.subr.mxu0 %v7246
        %v7248 = vand.u32 %v558, 4294901760
        %v7249 = vsub.f32 %v558, %v7248
        %v7250 = vand.u32 %v7249, 4294901760
        %7251 = vmatpush1.msra.mxu0 %v7250
        %v7252 = vand.u32 %v563, 4294901760
        %v7253 = vsub.f32 %v563, %v7252
        %v7254 = vand.u32 %v7253, 4294901760
        %7255 = vmatprep.subr.mxu0 %v7254
        %v7256 = vand.u32 %v562, 4294901760
        %v7257 = vsub.f32 %v562, %v7256
        %v7258 = vand.u32 %v7257, 4294901760
        %7259 = vmatpush1.msra.mxu0 %v7258
        %v7260 = vand.u32 %v567, 4294901760
        %v7261 = vsub.f32 %v567, %v7260
        %v7262 = vand.u32 %v7261, 4294901760
        %7263 = vmatprep.subr.mxu0 %v7262
        %v7264 = vand.u32 %v566, 4294901760
        %v7265 = vsub.f32 %v566, %v7264
        %v7266 = vand.u32 %v7265, 4294901760
        %7267 = vmatpush1.msra.mxu0 %v7266
        %v7268 = vand.u32 %v571, 4294901760
        %v7269 = vsub.f32 %v571, %v7268
        %v7270 = vand.u32 %v7269, 4294901760
        %7271 = vmatprep.subr.mxu0 %v7270
        %v7272 = vand.u32 %v570, 4294901760
        %v7273 = vsub.f32 %v570, %v7272
        %v7274 = vand.u32 %v7273, 4294901760
        %7275 = vmatpush1.msra.mxu0 %v7274
        %v7276 = vand.u32 %v575, 4294901760
        %v7277 = vsub.f32 %v575, %v7276
        %v7278 = vand.u32 %v7277, 4294901760
        %7279 = vmatprep.subr.mxu0 %v7278
        %v7280 = vand.u32 %v574, 4294901760
        %v7281 = vsub.f32 %v574, %v7280
        %v7282 = vand.u32 %v7281, 4294901760
        %7283 = vmatpush1.msra.mxu0 %v7282
        %v7284 = vand.u32 %v579, 4294901760
        %v7285 = vsub.f32 %v579, %v7284
        %v7286 = vand.u32 %v7285, 4294901760
        %7287 = vmatprep.subr.mxu0 %v7286
        %v7288 = vand.u32 %v578, 4294901760
        %v7289 = vsub.f32 %v578, %v7288
        %v7290 = vand.u32 %v7289, 4294901760
        %7291 = vmatpush1.msra.mxu0 %v7290
        %v7292 = vand.u32 %v583, 4294901760
        %v7293 = vsub.f32 %v583, %v7292
        %v7294 = vand.u32 %v7293, 4294901760
        %7295 = vmatprep.subr.mxu0 %v7294
        %v7296 = vand.u32 %v582, 4294901760
        %v7297 = vsub.f32 %v582, %v7296
        %v7298 = vand.u32 %v7297, 4294901760
        %7299 = vmatpush1.msra.mxu0 %v7298
        %v7300 = vand.u32 %v587, 4294901760
        %v7301 = vsub.f32 %v587, %v7300
        %v7302 = vand.u32 %v7301, 4294901760
        %7303 = vmatprep.subr.mxu0 %v7302
        %v7304 = vand.u32 %v586, 4294901760
        %v7305 = vsub.f32 %v586, %v7304
        %v7306 = vand.u32 %v7305, 4294901760
        %7307 = vmatpush1.msra.mxu0 %v7306
        %v7308 = vand.u32 %v591, 4294901760
        %v7309 = vsub.f32 %v591, %v7308
        %v7310 = vand.u32 %v7309, 4294901760
        %7311 = vmatprep.subr.mxu0 %v7310
        %v7312 = vand.u32 %v590, 4294901760
        %v7313 = vsub.f32 %v590, %v7312
        %v7314 = vand.u32 %v7313, 4294901760
        %7315 = vmatpush1.msra.mxu0 %v7314
        %v7316 = vand.u32 %v595, 4294901760
        %v7317 = vsub.f32 %v595, %v7316
        %v7318 = vand.u32 %v7317, 4294901760
        %7319 = vmatprep.subr.mxu0 %v7318
        %v7320 = vand.u32 %v594, 4294901760
        %v7321 = vsub.f32 %v594, %v7320
        %v7322 = vand.u32 %v7321, 4294901760
        %7323 = vmatpush1.msra.mxu0 %v7322
        %v7324 = vand.u32 %v599, 4294901760
        %v7325 = vsub.f32 %v599, %v7324
        %v7326 = vand.u32 %v7325, 4294901760
        %7327 = vmatprep.subr.mxu0 %v7326
        %v7328 = vand.u32 %v598, 4294901760
        %v7329 = vsub.f32 %v598, %v7328
        %v7330 = vand.u32 %v7329, 4294901760
        %7331 = vmatpush1.msra.mxu0 %v7330
        %v7332 = vand.u32 %v603, 4294901760
        %v7333 = vsub.f32 %v603, %v7332
        %v7334 = vand.u32 %v7333, 4294901760
        %7335 = vmatprep.subr.mxu0 %v7334
        %v7336 = vand.u32 %v602, 4294901760
        %v7337 = vsub.f32 %v602, %v7336
        %v7338 = vand.u32 %v7337, 4294901760
        %7339 = vmatpush1.msra.mxu0 %v7338
        %v7340 = vand.u32 %v607, 4294901760
        %v7341 = vsub.f32 %v607, %v7340
        %v7342 = vand.u32 %v7341, 4294901760
        %7343 = vmatprep.subr.mxu0 %v7342
        %v7344 = vand.u32 %v606, 4294901760
        %v7345 = vsub.f32 %v606, %v7344
        %v7346 = vand.u32 %v7345, 4294901760
        %7347 = vmatpush1.msra.mxu0 %v7346
        %v7348 = vand.u32 %v611, 4294901760
        %v7349 = vsub.f32 %v611, %v7348
        %v7350 = vand.u32 %v7349, 4294901760
        %7351 = vmatprep.subr.mxu0 %v7350
        %v7352 = vand.u32 %v610, 4294901760
        %v7353 = vsub.f32 %v610, %v7352
        %v7354 = vand.u32 %v7353, 4294901760
        %7355 = vmatpush1.msra.mxu0 %v7354
        %v7356 = vand.u32 %v615, 4294901760
        %v7357 = vsub.f32 %v615, %v7356
        %v7358 = vand.u32 %v7357, 4294901760
        %7359 = vmatprep.subr.mxu0 %v7358
        %v7360 = vand.u32 %v614, 4294901760
        %v7361 = vsub.f32 %v614, %v7360
        %v7362 = vand.u32 %v7361, 4294901760
        %7363 = vmatpush1.msra.mxu0 %v7362
        %v7364 = vand.u32 %v619, 4294901760
        %v7365 = vsub.f32 %v619, %v7364
        %v7366 = vand.u32 %v7365, 4294901760
        %7367 = vmatprep.subr.mxu0 %v7366
        %v7368 = vand.u32 %v618, 4294901760
        %v7369 = vsub.f32 %v618, %v7368
        %v7370 = vand.u32 %v7369, 4294901760
        %7371 = vmatpush1.msra.mxu0 %v7370
        %v7372 = vand.u32 %v623, 4294901760
        %v7373 = vsub.f32 %v623, %v7372
        %v7374 = vand.u32 %v7373, 4294901760
        %7375 = vmatprep.subr.mxu0 %v7374
        %v7376 = vand.u32 %v622, 4294901760
        %v7377 = vsub.f32 %v622, %v7376
        %v7378 = vand.u32 %v7377, 4294901760
        %7379 = vmatpush1.msra.mxu0 %v7378
        %v7380 = vand.u32 %v627, 4294901760
        %v7381 = vsub.f32 %v627, %v7380
        %v7382 = vand.u32 %v7381, 4294901760
        %7383 = vmatprep.subr.mxu0 %v7382
        %v7384 = vand.u32 %v626, 4294901760
        %v7385 = vsub.f32 %v626, %v7384
        %v7386 = vand.u32 %v7385, 4294901760
        %7387 = vmatpush1.msra.mxu0 %v7386
        %v7388 = vand.u32 %v631, 4294901760
        %v7389 = vsub.f32 %v631, %v7388
        %v7390 = vand.u32 %v7389, 4294901760
        %7391 = vmatprep.subr.mxu0 %v7390
        %v7392 = vand.u32 %v630, 4294901760
        %v7393 = vsub.f32 %v630, %v7392
        %v7394 = vand.u32 %v7393, 4294901760
        %7395 = vmatpush1.msra.mxu0 %v7394
        %v7396 = vand.u32 %v375, 4294901760
        %7397 = vmatprep.mubr.f32.mxu0 %v7396
        %v7398 = vand.u32 %v374, 4294901760
        %7399 = vmatmul.mubr.f32.gmra.mrb[0].mxu0 %v7398
        %v7400 = vpop.f32.mrb[0].mxu0
        %v7401 = vadd.f32 %v7136, %v7400
        %v7402 = vpop.f32.mrb[0].mxu0
        %v7403 = vadd.f32 %v7138, %v7402
        %7404 = vdwg.mxu0
        %v7405 = vand.u32 %v507, 4294901760
        %7406 = vmatprep.subr.mxu0 %v7405
        %v7407 = vand.u32 %v506, 4294901760
        %7408 = vmatpush1.msra.mxu0 %v7407
        %v7409 = vand.u32 %v511, 4294901760
        %7410 = vmatprep.subr.mxu0 %v7409
        %v7411 = vand.u32 %v510, 4294901760
        %7412 = vmatpush1.msra.mxu0 %v7411
        %v7413 = vand.u32 %v515, 4294901760
        %7414 = vmatprep.subr.mxu0 %v7413
        %v7415 = vand.u32 %v514, 4294901760
        %7416 = vmatpush1.msra.mxu0 %v7415
        %v7417 = vand.u32 %v519, 4294901760
        %7418 = vmatprep.subr.mxu0 %v7417
        %v7419 = vand.u32 %v518, 4294901760
        %7420 = vmatpush1.msra.mxu0 %v7419
        %v7421 = vand.u32 %v523, 4294901760
        %7422 = vmatprep.subr.mxu0 %v7421
        %v7423 = vand.u32 %v522, 4294901760
        %7424 = vmatpush1.msra.mxu0 %v7423
        %v7425 = vand.u32 %v527, 4294901760
        %7426 = vmatprep.subr.mxu0 %v7425
        %v7427 = vand.u32 %v526, 4294901760
        %7428 = vmatpush1.msra.mxu0 %v7427
        %v7429 = vand.u32 %v531, 4294901760
        %7430 = vmatprep.subr.mxu0 %v7429
        %v7431 = vand.u32 %v530, 4294901760
        %7432 = vmatpush1.msra.mxu0 %v7431
        %v7433 = vand.u32 %v535, 4294901760
        %7434 = vmatprep.subr.mxu0 %v7433
        %v7435 = vand.u32 %v534, 4294901760
        %7436 = vmatpush1.msra.mxu0 %v7435
        %v7437 = vand.u32 %v539, 4294901760
        %7438 = vmatprep.subr.mxu0 %v7437
        %v7439 = vand.u32 %v538, 4294901760
        %7440 = vmatpush1.msra.mxu0 %v7439
        %v7441 = vand.u32 %v543, 4294901760
        %7442 = vmatprep.subr.mxu0 %v7441
        %v7443 = vand.u32 %v542, 4294901760
        %7444 = vmatpush1.msra.mxu0 %v7443
        %v7445 = vand.u32 %v547, 4294901760
        %7446 = vmatprep.subr.mxu0 %v7445
        %v7447 = vand.u32 %v546, 4294901760
        %7448 = vmatpush1.msra.mxu0 %v7447
        %v7449 = vand.u32 %v551, 4294901760
        %7450 = vmatprep.subr.mxu0 %v7449
        %v7451 = vand.u32 %v550, 4294901760
        %7452 = vmatpush1.msra.mxu0 %v7451
        %v7453 = vand.u32 %v555, 4294901760
        %7454 = vmatprep.subr.mxu0 %v7453
        %v7455 = vand.u32 %v554, 4294901760
        %7456 = vmatpush1.msra.mxu0 %v7455
        %v7457 = vand.u32 %v559, 4294901760
        %7458 = vmatprep.subr.mxu0 %v7457
        %v7459 = vand.u32 %v558, 4294901760
        %7460 = vmatpush1.msra.mxu0 %v7459
        %v7461 = vand.u32 %v563, 4294901760
        %7462 = vmatprep.subr.mxu0 %v7461
        %v7463 = vand.u32 %v562, 4294901760
        %7464 = vmatpush1.msra.mxu0 %v7463
        %v7465 = vand.u32 %v567, 4294901760
        %7466 = vmatprep.subr.mxu0 %v7465
        %v7467 = vand.u32 %v566, 4294901760
        %7468 = vmatpush1.msra.mxu0 %v7467
        %v7469 = vand.u32 %v571, 4294901760
        %7470 = vmatprep.subr.mxu0 %v7469
        %v7471 = vand.u32 %v570, 4294901760
        %7472 = vmatpush1.msra.mxu0 %v7471
        %v7473 = vand.u32 %v575, 4294901760
        %7474 = vmatprep.subr.mxu0 %v7473
        %v7475 = vand.u32 %v574, 4294901760
        %7476 = vmatpush1.msra.mxu0 %v7475
        %v7477 = vand.u32 %v579, 4294901760
        %7478 = vmatprep.subr.mxu0 %v7477
        %v7479 = vand.u32 %v578, 4294901760
        %7480 = vmatpush1.msra.mxu0 %v7479
        %v7481 = vand.u32 %v583, 4294901760
        %7482 = vmatprep.subr.mxu0 %v7481
        %v7483 = vand.u32 %v582, 4294901760
        %7484 = vmatpush1.msra.mxu0 %v7483
        %v7485 = vand.u32 %v587, 4294901760
        %7486 = vmatprep.subr.mxu0 %v7485
        %v7487 = vand.u32 %v586, 4294901760
        %7488 = vmatpush1.msra.mxu0 %v7487
        %v7489 = vand.u32 %v591, 4294901760
        %7490 = vmatprep.subr.mxu0 %v7489
        %v7491 = vand.u32 %v590, 4294901760
        %7492 = vmatpush1.msra.mxu0 %v7491
        %v7493 = vand.u32 %v595, 4294901760
        %7494 = vmatprep.subr.mxu0 %v7493
        %v7495 = vand.u32 %v594, 4294901760
        %7496 = vmatpush1.msra.mxu0 %v7495
        %v7497 = vand.u32 %v599, 4294901760
        %7498 = vmatprep.subr.mxu0 %v7497
        %v7499 = vand.u32 %v598, 4294901760
        %7500 = vmatpush1.msra.mxu0 %v7499
        %v7501 = vand.u32 %v603, 4294901760
        %7502 = vmatprep.subr.mxu0 %v7501
        %v7503 = vand.u32 %v602, 4294901760
        %7504 = vmatpush1.msra.mxu0 %v7503
        %v7505 = vand.u32 %v607, 4294901760
        %7506 = vmatprep.subr.mxu0 %v7505
        %v7507 = vand.u32 %v606, 4294901760
        %7508 = vmatpush1.msra.mxu0 %v7507
        %v7509 = vand.u32 %v611, 4294901760
        %7510 = vmatprep.subr.mxu0 %v7509
        %v7511 = vand.u32 %v610, 4294901760
        %7512 = vmatpush1.msra.mxu0 %v7511
        %v7513 = vand.u32 %v615, 4294901760
        %7514 = vmatprep.subr.mxu0 %v7513
        %v7515 = vand.u32 %v614, 4294901760
        %7516 = vmatpush1.msra.mxu0 %v7515
        %v7517 = vand.u32 %v619, 4294901760
        %7518 = vmatprep.subr.mxu0 %v7517
        %v7519 = vand.u32 %v618, 4294901760
        %7520 = vmatpush1.msra.mxu0 %v7519
        %v7521 = vand.u32 %v623, 4294901760
        %7522 = vmatprep.subr.mxu0 %v7521
        %v7523 = vand.u32 %v622, 4294901760
        %7524 = vmatpush1.msra.mxu0 %v7523
        %v7525 = vand.u32 %v627, 4294901760
        %7526 = vmatprep.subr.mxu0 %v7525
        %v7527 = vand.u32 %v626, 4294901760
        %7528 = vmatpush1.msra.mxu0 %v7527
        %v7529 = vand.u32 %v631, 4294901760
        %7530 = vmatprep.subr.mxu0 %v7529
        %v7531 = vand.u32 %v630, 4294901760
        %7532 = vmatpush1.msra.mxu0 %v7531
        %v7533 = vand.u32 %v375, 4294901760
        %7534 = vmatprep.mubr.f32.mxu0 %v7533
        %v7535 = vand.u32 %v374, 4294901760
        %7536 = vmatmul.mubr.f32.gmra.mrb[0].mxu0 %v7535
        %v7537 = vpop.f32.mrb[0].mxu0
        %v7538 = vadd.f32 %v7401, %v7537
        %v7539 = vpop.f32.mrb[0].mxu0
        %v7540 = vadd.f32 %v7403, %v7539
        %7541 = vdwg.mxu0
        %v7542 = vld [vmem:[#allocation2 + $0xa00] sm:$0xff]
        %v7543 = vld [vmem:[#allocation2 + $0xa08] sm:$0xff]
        %v7544 = vld [vmem:[#allocation2 + $0xa10] sm:$0xff]
        %v7545 = vld [vmem:[#allocation2 + $0xa18] sm:$0xff]
        %v7546 = vld [vmem:[#allocation2 + $0xa20] sm:$0xff]
        %v7547 = vld [vmem:[#allocation2 + $0xa28] sm:$0xff]
        %v7548 = vld [vmem:[#allocation2 + $0xa30] sm:$0xff]
        %v7549 = vld [vmem:[#allocation2 + $0xa38] sm:$0xff]
        %v7550 = vld [vmem:[#allocation2 + $0xa40] sm:$0xff]
        %v7551 = vld [vmem:[#allocation2 + $0xa48] sm:$0xff]
        %v7552 = vld [vmem:[#allocation2 + $0xa50] sm:$0xff]
        %v7553 = vld [vmem:[#allocation2 + $0xa58] sm:$0xff]
        %v7554 = vld [vmem:[#allocation2 + $0xa60] sm:$0xff]
        %v7555 = vld [vmem:[#allocation2 + $0xa68] sm:$0xff]
        %v7556 = vld [vmem:[#allocation2 + $0xa70] sm:$0xff]
        %v7557 = vld [vmem:[#allocation2 + $0xa78] sm:$0xff]
        %v7558 = vld [vmem:[#allocation2 + $0xa80] sm:$0xff]
        %v7559 = vld [vmem:[#allocation2 + $0xa88] sm:$0xff]
        %v7560 = vld [vmem:[#allocation2 + $0xa90] sm:$0xff]
        %v7561 = vld [vmem:[#allocation2 + $0xa98] sm:$0xff]
        %v7562 = vld [vmem:[#allocation2 + $0xaa0] sm:$0xff]
        %v7563 = vld [vmem:[#allocation2 + $0xaa8] sm:$0xff]
        %v7564 = vld [vmem:[#allocation2 + $0xab0] sm:$0xff]
        %v7565 = vld [vmem:[#allocation2 + $0xab8] sm:$0xff]
        %v7566 = vld [vmem:[#allocation2 + $0xac0] sm:$0xff]
        %v7567 = vld [vmem:[#allocation2 + $0xac8] sm:$0xff]
        %v7568 = vld [vmem:[#allocation2 + $0xad0] sm:$0xff]
        %v7569 = vld [vmem:[#allocation2 + $0xad8] sm:$0xff]
        %v7570 = vld [vmem:[#allocation2 + $0xae0] sm:$0xff]
        %v7571 = vld [vmem:[#allocation2 + $0xae8] sm:$0xff]
        %v7572 = vld [vmem:[#allocation2 + $0xaf0] sm:$0xff]
        %v7573 = vld [vmem:[#allocation2 + $0xaf8] sm:$0xff]
        %v7574 = vld [vmem:[#allocation2 + $0xb00] sm:$0xff]
        %v7575 = vld [vmem:[#allocation2 + $0xb08] sm:$0xff]
        %v7576 = vld [vmem:[#allocation2 + $0xb10] sm:$0xff]
        %v7577 = vld [vmem:[#allocation2 + $0xb18] sm:$0xff]
        %v7578 = vld [vmem:[#allocation2 + $0xb20] sm:$0xff]
        %v7579 = vld [vmem:[#allocation2 + $0xb28] sm:$0xff]
        %v7580 = vld [vmem:[#allocation2 + $0xb30] sm:$0xff]
        %v7581 = vld [vmem:[#allocation2 + $0xb38] sm:$0xff]
        %v7582 = vld [vmem:[#allocation2 + $0xb40] sm:$0xff]
        %v7583 = vld [vmem:[#allocation2 + $0xb48] sm:$0xff]
        %v7584 = vld [vmem:[#allocation2 + $0xb50] sm:$0xff]
        %v7585 = vld [vmem:[#allocation2 + $0xb58] sm:$0xff]
        %v7586 = vld [vmem:[#allocation2 + $0xb60] sm:$0xff]
        %v7587 = vld [vmem:[#allocation2 + $0xb68] sm:$0xff]
        %v7588 = vld [vmem:[#allocation2 + $0xb70] sm:$0xff]
        %v7589 = vld [vmem:[#allocation2 + $0xb78] sm:$0xff]
        %v7590 = vld [vmem:[#allocation2 + $0xb80] sm:$0xff]
        %v7591 = vld [vmem:[#allocation2 + $0xb88] sm:$0xff]
        %v7592 = vld [vmem:[#allocation2 + $0xb90] sm:$0xff]
        %v7593 = vld [vmem:[#allocation2 + $0xb98] sm:$0xff]
        %v7594 = vld [vmem:[#allocation2 + $0xba0] sm:$0xff]
        %v7595 = vld [vmem:[#allocation2 + $0xba8] sm:$0xff]
        %v7596 = vld [vmem:[#allocation2 + $0xbb0] sm:$0xff]
        %v7597 = vld [vmem:[#allocation2 + $0xbb8] sm:$0xff]
        %v7598 = vld [vmem:[#allocation2 + $0xbc0] sm:$0xff]
        %v7599 = vld [vmem:[#allocation2 + $0xbc8] sm:$0xff]
        %v7600 = vld [vmem:[#allocation2 + $0xbd0] sm:$0xff]
        %v7601 = vld [vmem:[#allocation2 + $0xbd8] sm:$0xff]
        %v7602 = vld [vmem:[#allocation2 + $0xbe0] sm:$0xff]
        %v7603 = vld [vmem:[#allocation2 + $0xbe8] sm:$0xff]
        %v7604 = vld [vmem:[#allocation2 + $0xbf0] sm:$0xff]
        %v7605 = vld [vmem:[#allocation2 + $0xbf8] sm:$0xff]
        %v7606 = vand.u32 %v7543, 4294901760
        %7607 = vmatprep.subr.mxu0 %v7606
        %v7608 = vand.u32 %v7542, 4294901760
        %7609 = vmatpush1.msra.mxu0 %v7608
        %v7610 = vand.u32 %v7547, 4294901760
        %7611 = vmatprep.subr.mxu0 %v7610
        %v7612 = vand.u32 %v7546, 4294901760
        %7613 = vmatpush1.msra.mxu0 %v7612
        %v7614 = vand.u32 %v7551, 4294901760
        %7615 = vmatprep.subr.mxu0 %v7614
        %v7616 = vand.u32 %v7550, 4294901760
        %7617 = vmatpush1.msra.mxu0 %v7616
        %v7618 = vand.u32 %v7555, 4294901760
        %7619 = vmatprep.subr.mxu0 %v7618
        %v7620 = vand.u32 %v7554, 4294901760
        %7621 = vmatpush1.msra.mxu0 %v7620
        %v7622 = vand.u32 %v7559, 4294901760
        %7623 = vmatprep.subr.mxu0 %v7622
        %v7624 = vand.u32 %v7558, 4294901760
        %7625 = vmatpush1.msra.mxu0 %v7624
        %v7626 = vand.u32 %v7563, 4294901760
        %7627 = vmatprep.subr.mxu0 %v7626
        %v7628 = vand.u32 %v7562, 4294901760
        %7629 = vmatpush1.msra.mxu0 %v7628
        %v7630 = vand.u32 %v7567, 4294901760
        %7631 = vmatprep.subr.mxu0 %v7630
        %v7632 = vand.u32 %v7566, 4294901760
        %7633 = vmatpush1.msra.mxu0 %v7632
        %v7634 = vand.u32 %v7571, 4294901760
        %7635 = vmatprep.subr.mxu0 %v7634
        %v7636 = vand.u32 %v7570, 4294901760
        %7637 = vmatpush1.msra.mxu0 %v7636
        %v7638 = vand.u32 %v7575, 4294901760
        %7639 = vmatprep.subr.mxu0 %v7638
        %v7640 = vand.u32 %v7574, 4294901760
        %7641 = vmatpush1.msra.mxu0 %v7640
        %v7642 = vand.u32 %v7579, 4294901760
        %7643 = vmatprep.subr.mxu0 %v7642
        %v7644 = vand.u32 %v7578, 4294901760
        %7645 = vmatpush1.msra.mxu0 %v7644
        %v7646 = vand.u32 %v7583, 4294901760
        %7647 = vmatprep.subr.mxu0 %v7646
        %v7648 = vand.u32 %v7582, 4294901760
        %7649 = vmatpush1.msra.mxu0 %v7648
        %v7650 = vand.u32 %v7587, 4294901760
        %7651 = vmatprep.subr.mxu0 %v7650
        %v7652 = vand.u32 %v7586, 4294901760
        %7653 = vmatpush1.msra.mxu0 %v7652
        %v7654 = vand.u32 %v7591, 4294901760
        %7655 = vmatprep.subr.mxu0 %v7654
        %v7656 = vand.u32 %v7590, 4294901760
        %7657 = vmatpush1.msra.mxu0 %v7656
        %v7658 = vand.u32 %v7595, 4294901760
        %7659 = vmatprep.subr.mxu0 %v7658
        %v7660 = vand.u32 %v7594, 4294901760
        %7661 = vmatpush1.msra.mxu0 %v7660
        %v7662 = vand.u32 %v7599, 4294901760
        %7663 = vmatprep.subr.mxu0 %v7662
        %v7664 = vand.u32 %v7598, 4294901760
        %7665 = vmatpush1.msra.mxu0 %v7664
        %v7666 = vand.u32 %v7603, 4294901760
        %7667 = vmatprep.subr.mxu0 %v7666
        %v7668 = vand.u32 %v7602, 4294901760
        %7669 = vmatpush1.msra.mxu0 %v7668
        %7670 = vmatprep.subr.mxu0 0.0
        %7671 = vmatpush1.msra.mxu0 0.0
        %7672 = vmatprep.subr.mxu0 0.0
        %7673 = vmatpush1.msra.mxu0 0.0
        %7674 = vmatprep.subr.mxu0 0.0
        %7675 = vmatpush1.msra.mxu0 0.0
        %7676 = vmatprep.subr.mxu0 0.0
        %7677 = vmatpush1.msra.mxu0 0.0
        %7678 = vmatprep.subr.mxu0 0.0
        %7679 = vmatpush1.msra.mxu0 0.0
        %7680 = vmatprep.subr.mxu0 0.0
        %7681 = vmatpush1.msra.mxu0 0.0
        %7682 = vmatprep.subr.mxu0 0.0
        %7683 = vmatpush1.msra.mxu0 0.0
        %7684 = vmatprep.subr.mxu0 0.0
        %7685 = vmatpush1.msra.mxu0 0.0
        %7686 = vmatprep.subr.mxu0 0.0
        %7687 = vmatpush1.msra.mxu0 0.0
        %7688 = vmatprep.subr.mxu0 0.0
        %7689 = vmatpush1.msra.mxu0 0.0
        %7690 = vmatprep.subr.mxu0 0.0
        %7691 = vmatpush1.msra.mxu0 0.0
        %7692 = vmatprep.subr.mxu0 0.0
        %7693 = vmatpush1.msra.mxu0 0.0
        %7694 = vmatprep.subr.mxu0 0.0
        %7695 = vmatpush1.msra.mxu0 0.0
        %7696 = vmatprep.subr.mxu0 0.0
        %7697 = vmatpush1.msra.mxu0 0.0
        %7698 = vmatprep.subr.mxu0 0.0
        %7699 = vmatpush1.msra.mxu0 0.0
        %7700 = vmatprep.subr.mxu0 0.0
        %7701 = vmatpush1.msra.mxu0 0.0
        %7702 = vmatprep.mubr.f32.mxu0 0.0
        %v7703 = vand.u32 %v371, 4294901760
        %v7704 = vsub.f32 %v371, %v7703
        %v7705 = vand.u32 %v7704, 4294901760
        %v7706 = vsub.f32 %v7704, %v7705
        %v7707 = vand.u32 %v7706, 4294901760
        %7708 = vmatmul.mubr.f32.gmra.mrb[0].mxu0 %v7707
        %v7709 = vpop.f32.mrb[0].mxu0
        %v7710 = vadd.f32 0.0, %v7709
        %v7711 = vpop.f32.mrb[0].mxu0
        %v7712 = vadd.f32 0.0, %v7711
        %7713 = vdwg.mxu0
        %v7714 = vand.u32 %v7543, 4294901760
        %v7715 = vsub.f32 %v7543, %v7714
        %v7716 = vand.u32 %v7715, 4294901760
        %v7717 = vsub.f32 %v7715, %v7716
        %v7718 = vand.u32 %v7717, 4294901760
        %7719 = vmatprep.subr.mxu0 %v7718
        %v7720 = vand.u32 %v7542, 4294901760
        %v7721 = vsub.f32 %v7542, %v7720
        %v7722 = vand.u32 %v7721, 4294901760
        %v7723 = vsub.f32 %v7721, %v7722
        %v7724 = vand.u32 %v7723, 4294901760
        %7725 = vmatpush1.msra.mxu0 %v7724
        %v7726 = vand.u32 %v7547, 4294901760
        %v7727 = vsub.f32 %v7547, %v7726
        %v7728 = vand.u32 %v7727, 4294901760
        %v7729 = vsub.f32 %v7727, %v7728
        %v7730 = vand.u32 %v7729, 4294901760
        %7731 = vmatprep.subr.mxu0 %v7730
        %v7732 = vand.u32 %v7546, 4294901760
        %v7733 = vsub.f32 %v7546, %v7732
        %v7734 = vand.u32 %v7733, 4294901760
        %v7735 = vsub.f32 %v7733, %v7734
        %v7736 = vand.u32 %v7735, 4294901760
        %7737 = vmatpush1.msra.mxu0 %v7736
        %v7738 = vand.u32 %v7551, 4294901760
        %v7739 = vsub.f32 %v7551, %v7738
        %v7740 = vand.u32 %v7739, 4294901760
        %v7741 = vsub.f32 %v7739, %v7740
        %v7742 = vand.u32 %v7741, 4294901760
        %7743 = vmatprep.subr.mxu0 %v7742
        %v7744 = vand.u32 %v7550, 4294901760
        %v7745 = vsub.f32 %v7550, %v7744
        %v7746 = vand.u32 %v7745, 4294901760
        %v7747 = vsub.f32 %v7745, %v7746
        %v7748 = vand.u32 %v7747, 4294901760
        %7749 = vmatpush1.msra.mxu0 %v7748
        %v7750 = vand.u32 %v7555, 4294901760
        %v7751 = vsub.f32 %v7555, %v7750
        %v7752 = vand.u32 %v7751, 4294901760
        %v7753 = vsub.f32 %v7751, %v7752
        %v7754 = vand.u32 %v7753, 4294901760
        %7755 = vmatprep.subr.mxu0 %v7754
        %v7756 = vand.u32 %v7554, 4294901760
        %v7757 = vsub.f32 %v7554, %v7756
        %v7758 = vand.u32 %v7757, 4294901760
        %v7759 = vsub.f32 %v7757, %v7758
        %v7760 = vand.u32 %v7759, 4294901760
        %7761 = vmatpush1.msra.mxu0 %v7760
        %v7762 = vand.u32 %v7559, 4294901760
        %v7763 = vsub.f32 %v7559, %v7762
        %v7764 = vand.u32 %v7763, 4294901760
        %v7765 = vsub.f32 %v7763, %v7764
        %v7766 = vand.u32 %v7765, 4294901760
        %7767 = vmatprep.subr.mxu0 %v7766
        %v7768 = vand.u32 %v7558, 4294901760
        %v7769 = vsub.f32 %v7558, %v7768
        %v7770 = vand.u32 %v7769, 4294901760
        %v7771 = vsub.f32 %v7769, %v7770
        %v7772 = vand.u32 %v7771, 4294901760
        %7773 = vmatpush1.msra.mxu0 %v7772
        %v7774 = vand.u32 %v7563, 4294901760
        %v7775 = vsub.f32 %v7563, %v7774
        %v7776 = vand.u32 %v7775, 4294901760
        %v7777 = vsub.f32 %v7775, %v7776
        %v7778 = vand.u32 %v7777, 4294901760
        %7779 = vmatprep.subr.mxu0 %v7778
        %v7780 = vand.u32 %v7562, 4294901760
        %v7781 = vsub.f32 %v7562, %v7780
        %v7782 = vand.u32 %v7781, 4294901760
        %v7783 = vsub.f32 %v7781, %v7782
        %v7784 = vand.u32 %v7783, 4294901760
        %7785 = vmatpush1.msra.mxu0 %v7784
        %v7786 = vand.u32 %v7567, 4294901760
        %v7787 = vsub.f32 %v7567, %v7786
        %v7788 = vand.u32 %v7787, 4294901760
        %v7789 = vsub.f32 %v7787, %v7788
        %v7790 = vand.u32 %v7789, 4294901760
        %7791 = vmatprep.subr.mxu0 %v7790
        %v7792 = vand.u32 %v7566, 4294901760
        %v7793 = vsub.f32 %v7566, %v7792
        %v7794 = vand.u32 %v7793, 4294901760
        %v7795 = vsub.f32 %v7793, %v7794
        %v7796 = vand.u32 %v7795, 4294901760
        %7797 = vmatpush1.msra.mxu0 %v7796
        %v7798 = vand.u32 %v7571, 4294901760
        %v7799 = vsub.f32 %v7571, %v7798
        %v7800 = vand.u32 %v7799, 4294901760
        %v7801 = vsub.f32 %v7799, %v7800
        %v7802 = vand.u32 %v7801, 4294901760
        %7803 = vmatprep.subr.mxu0 %v7802
        %v7804 = vand.u32 %v7570, 4294901760
        %v7805 = vsub.f32 %v7570, %v7804
        %v7806 = vand.u32 %v7805, 4294901760
        %v7807 = vsub.f32 %v7805, %v7806
        %v7808 = vand.u32 %v7807, 4294901760
        %7809 = vmatpush1.msra.mxu0 %v7808
        %v7810 = vand.u32 %v7575, 4294901760
        %v7811 = vsub.f32 %v7575, %v7810
        %v7812 = vand.u32 %v7811, 4294901760
        %v7813 = vsub.f32 %v7811, %v7812
        %v7814 = vand.u32 %v7813, 4294901760
        %7815 = vmatprep.subr.mxu0 %v7814
        %v7816 = vand.u32 %v7574, 4294901760
        %v7817 = vsub.f32 %v7574, %v7816
        %v7818 = vand.u32 %v7817, 4294901760
        %v7819 = vsub.f32 %v7817, %v7818
        %v7820 = vand.u32 %v7819, 4294901760
        %7821 = vmatpush1.msra.mxu0 %v7820
        %v7822 = vand.u32 %v7579, 4294901760
        %v7823 = vsub.f32 %v7579, %v7822
        %v7824 = vand.u32 %v7823, 4294901760
        %v7825 = vsub.f32 %v7823, %v7824
        %v7826 = vand.u32 %v7825, 4294901760
        %7827 = vmatprep.subr.mxu0 %v7826
        %v7828 = vand.u32 %v7578, 4294901760
        %v7829 = vsub.f32 %v7578, %v7828
        %v7830 = vand.u32 %v7829, 4294901760
        %v7831 = vsub.f32 %v7829, %v7830
        %v7832 = vand.u32 %v7831, 4294901760
        %7833 = vmatpush1.msra.mxu0 %v7832
        %v7834 = vand.u32 %v7583, 4294901760
        %v7835 = vsub.f32 %v7583, %v7834
        %v7836 = vand.u32 %v7835, 4294901760
        %v7837 = vsub.f32 %v7835, %v7836
        %v7838 = vand.u32 %v7837, 4294901760
        %7839 = vmatprep.subr.mxu0 %v7838
        %v7840 = vand.u32 %v7582, 4294901760
        %v7841 = vsub.f32 %v7582, %v7840
        %v7842 = vand.u32 %v7841, 4294901760
        %v7843 = vsub.f32 %v7841, %v7842
        %v7844 = vand.u32 %v7843, 4294901760
        %7845 = vmatpush1.msra.mxu0 %v7844
        %v7846 = vand.u32 %v7587, 4294901760
        %v7847 = vsub.f32 %v7587, %v7846
        %v7848 = vand.u32 %v7847, 4294901760
        %v7849 = vsub.f32 %v7847, %v7848
        %v7850 = vand.u32 %v7849, 4294901760
        %7851 = vmatprep.subr.mxu0 %v7850
        %v7852 = vand.u32 %v7586, 4294901760
        %v7853 = vsub.f32 %v7586, %v7852
        %v7854 = vand.u32 %v7853, 4294901760
        %v7855 = vsub.f32 %v7853, %v7854
        %v7856 = vand.u32 %v7855, 4294901760
        %7857 = vmatpush1.msra.mxu0 %v7856
        %v7858 = vand.u32 %v7591, 4294901760
        %v7859 = vsub.f32 %v7591, %v7858
        %v7860 = vand.u32 %v7859, 4294901760
        %v7861 = vsub.f32 %v7859, %v7860
        %v7862 = vand.u32 %v7861, 4294901760
        %7863 = vmatprep.subr.mxu0 %v7862
        %v7864 = vand.u32 %v7590, 4294901760
        %v7865 = vsub.f32 %v7590, %v7864
        %v7866 = vand.u32 %v7865, 4294901760
        %v7867 = vsub.f32 %v7865, %v7866
        %v7868 = vand.u32 %v7867, 4294901760
        %7869 = vmatpush1.msra.mxu0 %v7868
        %v7870 = vand.u32 %v7595, 4294901760
        %v7871 = vsub.f32 %v7595, %v7870
        %v7872 = vand.u32 %v7871, 4294901760
        %v7873 = vsub.f32 %v7871, %v7872
        %v7874 = vand.u32 %v7873, 4294901760
        %7875 = vmatprep.subr.mxu0 %v7874
        %v7876 = vand.u32 %v7594, 4294901760
        %v7877 = vsub.f32 %v7594, %v7876
        %v7878 = vand.u32 %v7877, 4294901760
        %v7879 = vsub.f32 %v7877, %v7878
        %v7880 = vand.u32 %v7879, 4294901760
        %7881 = vmatpush1.msra.mxu0 %v7880
        %v7882 = vand.u32 %v7599, 4294901760
        %v7883 = vsub.f32 %v7599, %v7882
        %v7884 = vand.u32 %v7883, 4294901760
        %v7885 = vsub.f32 %v7883, %v7884
        %v7886 = vand.u32 %v7885, 4294901760
        %7887 = vmatprep.subr.mxu0 %v7886
        %v7888 = vand.u32 %v7598, 4294901760
        %v7889 = vsub.f32 %v7598, %v7888
        %v7890 = vand.u32 %v7889, 4294901760
        %v7891 = vsub.f32 %v7889, %v7890
        %v7892 = vand.u32 %v7891, 4294901760
        %7893 = vmatpush1.msra.mxu0 %v7892
        %v7894 = vand.u32 %v7603, 4294901760
        %v7895 = vsub.f32 %v7603, %v7894
        %v7896 = vand.u32 %v7895, 4294901760
        %v7897 = vsub.f32 %v7895, %v7896
        %v7898 = vand.u32 %v7897, 4294901760
        %7899 = vmatprep.subr.mxu0 %v7898
        %v7900 = vand.u32 %v7602, 4294901760
        %v7901 = vsub.f32 %v7602, %v7900
        %v7902 = vand.u32 %v7901, 4294901760
        %v7903 = vsub.f32 %v7901, %v7902
        %v7904 = vand.u32 %v7903, 4294901760
        %7905 = vmatpush1.msra.mxu0 %v7904
        %7906 = vmatprep.subr.mxu0 0.0
        %7907 = vmatpush1.msra.mxu0 0.0
        %7908 = vmatprep.subr.mxu0 0.0
        %7909 = vmatpush1.msra.mxu0 0.0
        %7910 = vmatprep.subr.mxu0 0.0
        %7911 = vmatpush1.msra.mxu0 0.0
        %7912 = vmatprep.subr.mxu0 0.0
        %7913 = vmatpush1.msra.mxu0 0.0
        %7914 = vmatprep.subr.mxu0 0.0
        %7915 = vmatpush1.msra.mxu0 0.0
        %7916 = vmatprep.subr.mxu0 0.0
        %7917 = vmatpush1.msra.mxu0 0.0
        %7918 = vmatprep.subr.mxu0 0.0
        %7919 = vmatpush1.msra.mxu0 0.0
        %7920 = vmatprep.subr.mxu0 0.0
        %7921 = vmatpush1.msra.mxu0 0.0
        %7922 = vmatprep.subr.mxu0 0.0
        %7923 = vmatpush1.msra.mxu0 0.0
        %7924 = vmatprep.subr.mxu0 0.0
        %7925 = vmatpush1.msra.mxu0 0.0
        %7926 = vmatprep.subr.mxu0 0.0
        %7927 = vmatpush1.msra.mxu0 0.0
        %7928 = vmatprep.subr.mxu0 0.0
        %7929 = vmatpush1.msra.mxu0 0.0
        %7930 = vmatprep.subr.mxu0 0.0
        %7931 = vmatpush1.msra.mxu0 0.0
        %7932 = vmatprep.subr.mxu0 0.0
        %7933 = vmatpush1.msra.mxu0 0.0
        %7934 = vmatprep.subr.mxu0 0.0
        %7935 = vmatpush1.msra.mxu0 0.0
        %7936 = vmatprep.subr.mxu0 0.0
        %7937 = vmatpush1.msra.mxu0 0.0
        %7938 = vmatprep.mubr.f32.mxu0 0.0
        %v7939 = vand.u32 %v371, 4294901760
        %7940 = vmatmul.mubr.f32.gmra.mrb[0].mxu0 %v7939
        %v7941 = vpop.f32.mrb[0].mxu0
        %v7942 = vadd.f32 %v7710, %v7941
        %v7943 = vpop.f32.mrb[0].mxu0
        %v7944 = vadd.f32 %v7712, %v7943
        %7945 = vdwg.mxu0
        %v7946 = vand.u32 %v7543, 4294901760
        %v7947 = vsub.f32 %v7543, %v7946
        %7948 = vmatprep.subr.mxu0 %v7947
        %v7949 = vand.u32 %v7542, 4294901760
        %v7950 = vsub.f32 %v7542, %v7949
        %7951 = vmatpush1.msra.mxu0 %v7950
        %v7952 = vand.u32 %v7547, 4294901760
        %v7953 = vsub.f32 %v7547, %v7952
        %7954 = vmatprep.subr.mxu0 %v7953
        %v7955 = vand.u32 %v7546, 4294901760
        %v7956 = vsub.f32 %v7546, %v7955
        %7957 = vmatpush1.msra.mxu0 %v7956
        %v7958 = vand.u32 %v7551, 4294901760
        %v7959 = vsub.f32 %v7551, %v7958
        %7960 = vmatprep.subr.mxu0 %v7959
        %v7961 = vand.u32 %v7550, 4294901760
        %v7962 = vsub.f32 %v7550, %v7961
        %7963 = vmatpush1.msra.mxu0 %v7962
        %v7964 = vand.u32 %v7555, 4294901760
        %v7965 = vsub.f32 %v7555, %v7964
        %7966 = vmatprep.subr.mxu0 %v7965
        %v7967 = vand.u32 %v7554, 4294901760
        %v7968 = vsub.f32 %v7554, %v7967
        %7969 = vmatpush1.msra.mxu0 %v7968
        %v7970 = vand.u32 %v7559, 4294901760
        %v7971 = vsub.f32 %v7559, %v7970
        %7972 = vmatprep.subr.mxu0 %v7971
        %v7973 = vand.u32 %v7558, 4294901760
        %v7974 = vsub.f32 %v7558, %v7973
        %7975 = vmatpush1.msra.mxu0 %v7974
        %v7976 = vand.u32 %v7563, 4294901760
        %v7977 = vsub.f32 %v7563, %v7976
        %7978 = vmatprep.subr.mxu0 %v7977
        %v7979 = vand.u32 %v7562, 4294901760
        %v7980 = vsub.f32 %v7562, %v7979
        %7981 = vmatpush1.msra.mxu0 %v7980
        %v7982 = vand.u32 %v7567, 4294901760
        %v7983 = vsub.f32 %v7567, %v7982
        %7984 = vmatprep.subr.mxu0 %v7983
        %v7985 = vand.u32 %v7566, 4294901760
        %v7986 = vsub.f32 %v7566, %v7985
        %7987 = vmatpush1.msra.mxu0 %v7986
        %v7988 = vand.u32 %v7571, 4294901760
        %v7989 = vsub.f32 %v7571, %v7988
        %7990 = vmatprep.subr.mxu0 %v7989
        %v7991 = vand.u32 %v7570, 4294901760
        %v7992 = vsub.f32 %v7570, %v7991
        %7993 = vmatpush1.msra.mxu0 %v7992
        %v7994 = vand.u32 %v7575, 4294901760
        %v7995 = vsub.f32 %v7575, %v7994
        %7996 = vmatprep.subr.mxu0 %v7995
        %v7997 = vand.u32 %v7574, 4294901760
        %v7998 = vsub.f32 %v7574, %v7997
        %7999 = vmatpush1.msra.mxu0 %v7998
        %v8000 = vand.u32 %v7579, 4294901760
        %v8001 = vsub.f32 %v7579, %v8000
        %8002 = vmatprep.subr.mxu0 %v8001
        %v8003 = vand.u32 %v7578, 4294901760
        %v8004 = vsub.f32 %v7578, %v8003
        %8005 = vmatpush1.msra.mxu0 %v8004
        %v8006 = vand.u32 %v7583, 4294901760
        %v8007 = vsub.f32 %v7583, %v8006
        %8008 = vmatprep.subr.mxu0 %v8007
        %v8009 = vand.u32 %v7582, 4294901760
        %v8010 = vsub.f32 %v7582, %v8009
        %8011 = vmatpush1.msra.mxu0 %v8010
        %v8012 = vand.u32 %v7587, 4294901760
        %v8013 = vsub.f32 %v7587, %v8012
        %8014 = vmatprep.subr.mxu0 %v8013
        %v8015 = vand.u32 %v7586, 4294901760
        %v8016 = vsub.f32 %v7586, %v8015
        %8017 = vmatpush1.msra.mxu0 %v8016
        %v8018 = vand.u32 %v7591, 4294901760
        %v8019 = vsub.f32 %v7591, %v8018
        %8020 = vmatprep.subr.mxu0 %v8019
        %v8021 = vand.u32 %v7590, 4294901760
        %v8022 = vsub.f32 %v7590, %v8021
        %8023 = vmatpush1.msra.mxu0 %v8022
        %v8024 = vand.u32 %v7595, 4294901760
        %v8025 = vsub.f32 %v7595, %v8024
        %8026 = vmatprep.subr.mxu0 %v8025
        %v8027 = vand.u32 %v7594, 4294901760
        %v8028 = vsub.f32 %v7594, %v8027
        %8029 = vmatpush1.msra.mxu0 %v8028
        %v8030 = vand.u32 %v7599, 4294901760
        %v8031 = vsub.f32 %v7599, %v8030
        %8032 = vmatprep.subr.mxu0 %v8031
        %v8033 = vand.u32 %v7598, 4294901760
        %v8034 = vsub.f32 %v7598, %v8033
        %8035 = vmatpush1.msra.mxu0 %v8034
        %v8036 = vand.u32 %v7603, 4294901760
        %v8037 = vsub.f32 %v7603, %v8036
        %8038 = vmatprep.subr.mxu0 %v8037
        %v8039 = vand.u32 %v7602, 4294901760
        %v8040 = vsub.f32 %v7602, %v8039
        %8041 = vmatpush1.msra.mxu0 %v8040
        %8042 = vmatprep.subr.mxu0 0.0
        %8043 = vmatpush1.msra.mxu0 0.0
        %8044 = vmatprep.subr.mxu0 0.0
        %8045 = vmatpush1.msra.mxu0 0.0
        %8046 = vmatprep.subr.mxu0 0.0
        %8047 = vmatpush1.msra.mxu0 0.0
        %8048 = vmatprep.subr.mxu0 0.0
        %8049 = vmatpush1.msra.mxu0 0.0
        %8050 = vmatprep.subr.mxu0 0.0
        %8051 = vmatpush1.msra.mxu0 0.0
        %8052 = vmatprep.subr.mxu0 0.0
        %8053 = vmatpush1.msra.mxu0 0.0
        %8054 = vmatprep.subr.mxu0 0.0
        %8055 = vmatpush1.msra.mxu0 0.0
        %8056 = vmatprep.subr.mxu0 0.0
        %8057 = vmatpush1.msra.mxu0 0.0
        %8058 = vmatprep.subr.mxu0 0.0
        %8059 = vmatpush1.msra.mxu0 0.0
        %8060 = vmatprep.subr.mxu0 0.0
        %8061 = vmatpush1.msra.mxu0 0.0
        %8062 = vmatprep.subr.mxu0 0.0
        %8063 = vmatpush1.msra.mxu0 0.0
        %8064 = vmatprep.subr.mxu0 0.0
        %8065 = vmatpush1.msra.mxu0 0.0
        %8066 = vmatprep.subr.mxu0 0.0
        %8067 = vmatpush1.msra.mxu0 0.0
        %8068 = vmatprep.subr.mxu0 0.0
        %8069 = vmatpush1.msra.mxu0 0.0
        %8070 = vmatprep.subr.mxu0 0.0
        %8071 = vmatpush1.msra.mxu0 0.0
        %8072 = vmatprep.subr.mxu0 0.0
        %8073 = vmatpush1.msra.mxu0 0.0
        %8074 = vmatprep.mubr.f32.mxu0 0.0
        %v8075 = vand.u32 %v371, 4294901760
        %v8076 = vsub.f32 %v371, %v8075
        %8077 = vmatmul.mubr.f32.gmra.mrb[0].mxu0 %v8076
        %v8078 = vpop.f32.mrb[0].mxu0
        %v8079 = vadd.f32 %v7942, %v8078
        %v8080 = vpop.f32.mrb[0].mxu0
        %v8081 = vadd.f32 %v7944, %v8080
        %8082 = vdwg.mxu0
        %v8083 = vand.u32 %v7543, 4294901760
        %8084 = vmatprep.subr.mxu0 %v8083
        %v8085 = vand.u32 %v7542, 4294901760
        %8086 = vmatpush1.msra.mxu0 %v8085
        %v8087 = vand.u32 %v7547, 4294901760
        %8088 = vmatprep.subr.mxu0 %v8087
        %v8089 = vand.u32 %v7546, 4294901760
        %8090 = vmatpush1.msra.mxu0 %v8089
        %v8091 = vand.u32 %v7551, 4294901760
        %8092 = vmatprep.subr.mxu0 %v8091
        %v8093 = vand.u32 %v7550, 4294901760
        %8094 = vmatpush1.msra.mxu0 %v8093
        %v8095 = vand.u32 %v7555, 4294901760
        %8096 = vmatprep.subr.mxu0 %v8095
        %v8097 = vand.u32 %v7554, 4294901760
        %8098 = vmatpush1.msra.mxu0 %v8097
        %v8099 = vand.u32 %v7559, 4294901760
        %8100 = vmatprep.subr.mxu0 %v8099
        %v8101 = vand.u32 %v7558, 4294901760
        %8102 = vmatpush1.msra.mxu0 %v8101
        %v8103 = vand.u32 %v7563, 4294901760
        %8104 = vmatprep.subr.mxu0 %v8103
        %v8105 = vand.u32 %v7562, 4294901760
        %8106 = vmatpush1.msra.mxu0 %v8105
        %v8107 = vand.u32 %v7567, 4294901760
        %8108 = vmatprep.subr.mxu0 %v8107
        %v8109 = vand.u32 %v7566, 4294901760
        %8110 = vmatpush1.msra.mxu0 %v8109
        %v8111 = vand.u32 %v7571, 4294901760
        %8112 = vmatprep.subr.mxu0 %v8111
        %v8113 = vand.u32 %v7570, 4294901760
        %8114 = vmatpush1.msra.mxu0 %v8113
        %v8115 = vand.u32 %v7575, 4294901760
        %8116 = vmatprep.subr.mxu0 %v8115
        %v8117 = vand.u32 %v7574, 4294901760
        %8118 = vmatpush1.msra.mxu0 %v8117
        %v8119 = vand.u32 %v7579, 4294901760
        %8120 = vmatprep.subr.mxu0 %v8119
        %v8121 = vand.u32 %v7578, 4294901760
        %8122 = vmatpush1.msra.mxu0 %v8121
        %v8123 = vand.u32 %v7583, 4294901760
        %8124 = vmatprep.subr.mxu0 %v8123
        %v8125 = vand.u32 %v7582, 4294901760
        %8126 = vmatpush1.msra.mxu0 %v8125
        %v8127 = vand.u32 %v7587, 4294901760
        %8128 = vmatprep.subr.mxu0 %v8127
        %v8129 = vand.u32 %v7586, 4294901760
        %8130 = vmatpush1.msra.mxu0 %v8129
        %v8131 = vand.u32 %v7591, 4294901760
        %8132 = vmatprep.subr.mxu0 %v8131
        %v8133 = vand.u32 %v7590, 4294901760
        %8134 = vmatpush1.msra.mxu0 %v8133
        %v8135 = vand.u32 %v7595, 4294901760
        %8136 = vmatprep.subr.mxu0 %v8135
        %v8137 = vand.u32 %v7594, 4294901760
        %8138 = vmatpush1.msra.mxu0 %v8137
        %v8139 = vand.u32 %v7599, 4294901760
        %8140 = vmatprep.subr.mxu0 %v8139
        %v8141 = vand.u32 %v7598, 4294901760
        %8142 = vmatpush1.msra.mxu0 %v8141
        %v8143 = vand.u32 %v7603, 4294901760
        %8144 = vmatprep.subr.mxu0 %v8143
        %v8145 = vand.u32 %v7602, 4294901760
        %8146 = vmatpush1.msra.mxu0 %v8145
        %8147 = vmatprep.subr.mxu0 0.0
        %8148 = vmatpush1.msra.mxu0 0.0
        %8149 = vmatprep.subr.mxu0 0.0
        %8150 = vmatpush1.msra.mxu0 0.0
        %8151 = vmatprep.subr.mxu0 0.0
        %8152 = vmatpush1.msra.mxu0 0.0
        %8153 = vmatprep.subr.mxu0 0.0
        %8154 = vmatpush1.msra.mxu0 0.0
        %8155 = vmatprep.subr.mxu0 0.0
        %8156 = vmatpush1.msra.mxu0 0.0
        %8157 = vmatprep.subr.mxu0 0.0
        %8158 = vmatpush1.msra.mxu0 0.0
        %8159 = vmatprep.subr.mxu0 0.0
        %8160 = vmatpush1.msra.mxu0 0.0
        %8161 = vmatprep.subr.mxu0 0.0
        %8162 = vmatpush1.msra.mxu0 0.0
        %8163 = vmatprep.subr.mxu0 0.0
        %8164 = vmatpush1.msra.mxu0 0.0
        %8165 = vmatprep.subr.mxu0 0.0
        %8166 = vmatpush1.msra.mxu0 0.0
        %8167 = vmatprep.subr.mxu0 0.0
        %8168 = vmatpush1.msra.mxu0 0.0
        %8169 = vmatprep.subr.mxu0 0.0
        %8170 = vmatpush1.msra.mxu0 0.0
        %8171 = vmatprep.subr.mxu0 0.0
        %8172 = vmatpush1.msra.mxu0 0.0
        %8173 = vmatprep.subr.mxu0 0.0
        %8174 = vmatpush1.msra.mxu0 0.0
        %8175 = vmatprep.subr.mxu0 0.0
        %8176 = vmatpush1.msra.mxu0 0.0
        %8177 = vmatprep.subr.mxu0 0.0
        %8178 = vmatpush1.msra.mxu0 0.0
        %8179 = vmatprep.mubr.f32.mxu0 0.0
        %v8180 = vand.u32 %v371, 4294901760
        %v8181 = vsub.f32 %v371, %v8180
        %v8182 = vand.u32 %v8181, 4294901760
        %8183 = vmatmul.mubr.f32.gmra.mrb[0].mxu0 %v8182
        %v8184 = vpop.f32.mrb[0].mxu0
        %v8185 = vadd.f32 %v8079, %v8184
        %v8186 = vpop.f32.mrb[0].mxu0
        %v8187 = vadd.f32 %v8081, %v8186
        %8188 = vdwg.mxu0
        %v8189 = vand.u32 %v7543, 4294901760
        %v8190 = vsub.f32 %v7543, %v8189
        %v8191 = vand.u32 %v8190, 4294901760
        %8192 = vmatprep.subr.mxu0 %v8191
        %v8193 = vand.u32 %v7542, 4294901760
        %v8194 = vsub.f32 %v7542, %v8193
        %v8195 = vand.u32 %v8194, 4294901760
        %8196 = vmatpush1.msra.mxu0 %v8195
        %v8197 = vand.u32 %v7547, 4294901760
        %v8198 = vsub.f32 %v7547, %v8197
        %v8199 = vand.u32 %v8198, 4294901760
        %8200 = vmatprep.subr.mxu0 %v8199
        %v8201 = vand.u32 %v7546, 4294901760
        %v8202 = vsub.f32 %v7546, %v8201
        %v8203 = vand.u32 %v8202, 4294901760
        %8204 = vmatpush1.msra.mxu0 %v8203
        %v8205 = vand.u32 %v7551, 4294901760
        %v8206 = vsub.f32 %v7551, %v8205
        %v8207 = vand.u32 %v8206, 4294901760
        %8208 = vmatprep.subr.mxu0 %v8207
        %v8209 = vand.u32 %v7550, 4294901760
        %v8210 = vsub.f32 %v7550, %v8209
        %v8211 = vand.u32 %v8210, 4294901760
        %8212 = vmatpush1.msra.mxu0 %v8211
        %v8213 = vand.u32 %v7555, 4294901760
        %v8214 = vsub.f32 %v7555, %v8213
        %v8215 = vand.u32 %v8214, 4294901760
        %8216 = vmatprep.subr.mxu0 %v8215
        %v8217 = vand.u32 %v7554, 4294901760
        %v8218 = vsub.f32 %v7554, %v8217
        %v8219 = vand.u32 %v8218, 4294901760
        %8220 = vmatpush1.msra.mxu0 %v8219
        %v8221 = vand.u32 %v7559, 4294901760
        %v8222 = vsub.f32 %v7559, %v8221
        %v8223 = vand.u32 %v8222, 4294901760
        %8224 = vmatprep.subr.mxu0 %v8223
        %v8225 = vand.u32 %v7558, 4294901760
        %v8226 = vsub.f32 %v7558, %v8225
        %v8227 = vand.u32 %v8226, 4294901760
        %8228 = vmatpush1.msra.mxu0 %v8227
        %v8229 = vand.u32 %v7563, 4294901760
        %v8230 = vsub.f32 %v7563, %v8229
        %v8231 = vand.u32 %v8230, 4294901760
        %8232 = vmatprep.subr.mxu0 %v8231
        %v8233 = vand.u32 %v7562, 4294901760
        %v8234 = vsub.f32 %v7562, %v8233
        %v8235 = vand.u32 %v8234, 4294901760
        %8236 = vmatpush1.msra.mxu0 %v8235
        %v8237 = vand.u32 %v7567, 4294901760
        %v8238 = vsub.f32 %v7567, %v8237
        %v8239 = vand.u32 %v8238, 4294901760
        %8240 = vmatprep.subr.mxu0 %v8239
        %v8241 = vand.u32 %v7566, 4294901760
        %v8242 = vsub.f32 %v7566, %v8241
        %v8243 = vand.u32 %v8242, 4294901760
        %8244 = vmatpush1.msra.mxu0 %v8243
        %v8245 = vand.u32 %v7571, 4294901760
        %v8246 = vsub.f32 %v7571, %v8245
        %v8247 = vand.u32 %v8246, 4294901760
        %8248 = vmatprep.subr.mxu0 %v8247
        %v8249 = vand.u32 %v7570, 4294901760
        %v8250 = vsub.f32 %v7570, %v8249
        %v8251 = vand.u32 %v8250, 4294901760
        %8252 = vmatpush1.msra.mxu0 %v8251
        %v8253 = vand.u32 %v7575, 4294901760
        %v8254 = vsub.f32 %v7575, %v8253
        %v8255 = vand.u32 %v8254, 4294901760
        %8256 = vmatprep.subr.mxu0 %v8255
        %v8257 = vand.u32 %v7574, 4294901760
        %v8258 = vsub.f32 %v7574, %v8257
        %v8259 = vand.u32 %v8258, 4294901760
        %8260 = vmatpush1.msra.mxu0 %v8259
        %v8261 = vand.u32 %v7579, 4294901760
        %v8262 = vsub.f32 %v7579, %v8261
        %v8263 = vand.u32 %v8262, 4294901760
        %8264 = vmatprep.subr.mxu0 %v8263
        %v8265 = vand.u32 %v7578, 4294901760
        %v8266 = vsub.f32 %v7578, %v8265
        %v8267 = vand.u32 %v8266, 4294901760
        %8268 = vmatpush1.msra.mxu0 %v8267
        %v8269 = vand.u32 %v7583, 4294901760
        %v8270 = vsub.f32 %v7583, %v8269
        %v8271 = vand.u32 %v8270, 4294901760
        %8272 = vmatprep.subr.mxu0 %v8271
        %v8273 = vand.u32 %v7582, 4294901760
        %v8274 = vsub.f32 %v7582, %v8273
        %v8275 = vand.u32 %v8274, 4294901760
        %8276 = vmatpush1.msra.mxu0 %v8275
        %v8277 = vand.u32 %v7587, 4294901760
        %v8278 = vsub.f32 %v7587, %v8277
        %v8279 = vand.u32 %v8278, 4294901760
        %8280 = vmatprep.subr.mxu0 %v8279
        %v8281 = vand.u32 %v7586, 4294901760
        %v8282 = vsub.f32 %v7586, %v8281
        %v8283 = vand.u32 %v8282, 4294901760
        %8284 = vmatpush1.msra.mxu0 %v8283
        %v8285 = vand.u32 %v7591, 4294901760
        %v8286 = vsub.f32 %v7591, %v8285
        %v8287 = vand.u32 %v8286, 4294901760
        %8288 = vmatprep.subr.mxu0 %v8287
        %v8289 = vand.u32 %v7590, 4294901760
        %v8290 = vsub.f32 %v7590, %v8289
        %v8291 = vand.u32 %v8290, 4294901760
        %8292 = vmatpush1.msra.mxu0 %v8291
        %v8293 = vand.u32 %v7595, 4294901760
        %v8294 = vsub.f32 %v7595, %v8293
        %v8295 = vand.u32 %v8294, 4294901760
        %8296 = vmatprep.subr.mxu0 %v8295
        %v8297 = vand.u32 %v7594, 4294901760
        %v8298 = vsub.f32 %v7594, %v8297
        %v8299 = vand.u32 %v8298, 4294901760
        %8300 = vmatpush1.msra.mxu0 %v8299
        %v8301 = vand.u32 %v7599, 4294901760
        %v8302 = vsub.f32 %v7599, %v8301
        %v8303 = vand.u32 %v8302, 4294901760
        %8304 = vmatprep.subr.mxu0 %v8303
        %v8305 = vand.u32 %v7598, 4294901760
        %v8306 = vsub.f32 %v7598, %v8305
        %v8307 = vand.u32 %v8306, 4294901760
        %8308 = vmatpush1.msra.mxu0 %v8307
        %v8309 = vand.u32 %v7603, 4294901760
        %v8310 = vsub.f32 %v7603, %v8309
        %v8311 = vand.u32 %v8310, 4294901760
        %8312 = vmatprep.subr.mxu0 %v8311
        %v8313 = vand.u32 %v7602, 4294901760
        %v8314 = vsub.f32 %v7602, %v8313
        %v8315 = vand.u32 %v8314, 4294901760
        %8316 = vmatpush1.msra.mxu0 %v8315
        %8317 = vmatprep.subr.mxu0 0.0
        %8318 = vmatpush1.msra.mxu0 0.0
        %8319 = vmatprep.subr.mxu0 0.0
        %8320 = vmatpush1.msra.mxu0 0.0
        %8321 = vmatprep.subr.mxu0 0.0
        %8322 = vmatpush1.msra.mxu0 0.0
        %8323 = vmatprep.subr.mxu0 0.0
        %8324 = vmatpush1.msra.mxu0 0.0
        %8325 = vmatprep.subr.mxu0 0.0
        %8326 = vmatpush1.msra.mxu0 0.0
        %8327 = vmatprep.subr.mxu0 0.0
        %8328 = vmatpush1.msra.mxu0 0.0
        %8329 = vmatprep.subr.mxu0 0.0
        %8330 = vmatpush1.msra.mxu0 0.0
        %8331 = vmatprep.subr.mxu0 0.0
        %8332 = vmatpush1.msra.mxu0 0.0
        %8333 = vmatprep.subr.mxu0 0.0
        %8334 = vmatpush1.msra.mxu0 0.0
        %8335 = vmatprep.subr.mxu0 0.0
        %8336 = vmatpush1.msra.mxu0 0.0
        %8337 = vmatprep.subr.mxu0 0.0
        %8338 = vmatpush1.msra.mxu0 0.0
        %8339 = vmatprep.subr.mxu0 0.0
        %8340 = vmatpush1.msra.mxu0 0.0
        %8341 = vmatprep.subr.mxu0 0.0
        %8342 = vmatpush1.msra.mxu0 0.0
        %8343 = vmatprep.subr.mxu0 0.0
        %8344 = vmatpush1.msra.mxu0 0.0
        %8345 = vmatprep.subr.mxu0 0.0
        %8346 = vmatpush1.msra.mxu0 0.0
        %8347 = vmatprep.subr.mxu0 0.0
        %8348 = vmatpush1.msra.mxu0 0.0
        %8349 = vmatprep.mubr.f32.mxu0 0.0
        %v8350 = vand.u32 %v371, 4294901760
        %8351 = vmatmul.mubr.f32.gmra.mrb[0].mxu0 %v8350
        %v8352 = vpop.f32.mrb[0].mxu0
        %v8353 = vadd.f32 %v8185, %v8352
        %v8354 = vpop.f32.mrb[0].mxu0
        %v8355 = vadd.f32 %v8187, %v8354
        %8356 = vdwg.mxu0
        %v8357 = vand.u32 %v7543, 4294901760
        %8358 = vmatprep.subr.mxu0 %v8357
        %v8359 = vand.u32 %v7542, 4294901760
        %8360 = vmatpush1.msra.mxu0 %v8359
        %v8361 = vand.u32 %v7547, 4294901760
        %8362 = vmatprep.subr.mxu0 %v8361
        %v8363 = vand.u32 %v7546, 4294901760
        %8364 = vmatpush1.msra.mxu0 %v8363
        %v8365 = vand.u32 %v7551, 4294901760
        %8366 = vmatprep.subr.mxu0 %v8365
        %v8367 = vand.u32 %v7550, 4294901760
        %8368 = vmatpush1.msra.mxu0 %v8367
        %v8369 = vand.u32 %v7555, 4294901760
        %8370 = vmatprep.subr.mxu0 %v8369
        %v8371 = vand.u32 %v7554, 4294901760
        %8372 = vmatpush1.msra.mxu0 %v8371
        %v8373 = vand.u32 %v7559, 4294901760
        %8374 = vmatprep.subr.mxu0 %v8373
        %v8375 = vand.u32 %v7558, 4294901760
        %8376 = vmatpush1.msra.mxu0 %v8375
        %v8377 = vand.u32 %v7563, 4294901760
        %8378 = vmatprep.subr.mxu0 %v8377
        %v8379 = vand.u32 %v7562, 4294901760
        %8380 = vmatpush1.msra.mxu0 %v8379
        %v8381 = vand.u32 %v7567, 4294901760
        %8382 = vmatprep.subr.mxu0 %v8381
        %v8383 = vand.u32 %v7566, 4294901760
        %8384 = vmatpush1.msra.mxu0 %v8383
        %v8385 = vand.u32 %v7571, 4294901760
        %8386 = vmatprep.subr.mxu0 %v8385
        %v8387 = vand.u32 %v7570, 4294901760
        %8388 = vmatpush1.msra.mxu0 %v8387
        %v8389 = vand.u32 %v7575, 4294901760
        %8390 = vmatprep.subr.mxu0 %v8389
        %v8391 = vand.u32 %v7574, 4294901760
        %8392 = vmatpush1.msra.mxu0 %v8391
        %v8393 = vand.u32 %v7579, 4294901760
        %8394 = vmatprep.subr.mxu0 %v8393
        %v8395 = vand.u32 %v7578, 4294901760
        %8396 = vmatpush1.msra.mxu0 %v8395
        %v8397 = vand.u32 %v7583, 4294901760
        %8398 = vmatprep.subr.mxu0 %v8397
        %v8399 = vand.u32 %v7582, 4294901760
        %8400 = vmatpush1.msra.mxu0 %v8399
        %v8401 = vand.u32 %v7587, 4294901760
        %8402 = vmatprep.subr.mxu0 %v8401
        %v8403 = vand.u32 %v7586, 4294901760
        %8404 = vmatpush1.msra.mxu0 %v8403
        %v8405 = vand.u32 %v7591, 4294901760
        %8406 = vmatprep.subr.mxu0 %v8405
        %v8407 = vand.u32 %v7590, 4294901760
        %8408 = vmatpush1.msra.mxu0 %v8407
        %v8409 = vand.u32 %v7595, 4294901760
        %8410 = vmatprep.subr.mxu0 %v8409
        %v8411 = vand.u32 %v7594, 4294901760
        %8412 = vmatpush1.msra.mxu0 %v8411
        %v8413 = vand.u32 %v7599, 4294901760
        %8414 = vmatprep.subr.mxu0 %v8413
        %v8415 = vand.u32 %v7598, 4294901760
        %8416 = vmatpush1.msra.mxu0 %v8415
        %v8417 = vand.u32 %v7603, 4294901760
        %8418 = vmatprep.subr.mxu0 %v8417
        %v8419 = vand.u32 %v7602, 4294901760
        %8420 = vmatpush1.msra.mxu0 %v8419
        %8421 = vmatprep.subr.mxu0 0.0
        %8422 = vmatpush1.msra.mxu0 0.0
        %8423 = vmatprep.subr.mxu0 0.0
        %8424 = vmatpush1.msra.mxu0 0.0
        %8425 = vmatprep.subr.mxu0 0.0
        %8426 = vmatpush1.msra.mxu0 0.0
        %8427 = vmatprep.subr.mxu0 0.0
        %8428 = vmatpush1.msra.mxu0 0.0
        %8429 = vmatprep.subr.mxu0 0.0
        %8430 = vmatpush1.msra.mxu0 0.0
        %8431 = vmatprep.subr.mxu0 0.0
        %8432 = vmatpush1.msra.mxu0 0.0
        %8433 = vmatprep.subr.mxu0 0.0
        %8434 = vmatpush1.msra.mxu0 0.0
        %8435 = vmatprep.subr.mxu0 0.0
        %8436 = vmatpush1.msra.mxu0 0.0
        %8437 = vmatprep.subr.mxu0 0.0
        %8438 = vmatpush1.msra.mxu0 0.0
        %8439 = vmatprep.subr.mxu0 0.0
        %8440 = vmatpush1.msra.mxu0 0.0
        %8441 = vmatprep.subr.mxu0 0.0
        %8442 = vmatpush1.msra.mxu0 0.0
        %8443 = vmatprep.subr.mxu0 0.0
        %8444 = vmatpush1.msra.mxu0 0.0
        %8445 = vmatprep.subr.mxu0 0.0
        %8446 = vmatpush1.msra.mxu0 0.0
        %8447 = vmatprep.subr.mxu0 0.0
        %8448 = vmatpush1.msra.mxu0 0.0
        %8449 = vmatprep.subr.mxu0 0.0
        %8450 = vmatpush1.msra.mxu0 0.0
        %8451 = vmatprep.subr.mxu0 0.0
        %8452 = vmatpush1.msra.mxu0 0.0
        %8453 = vmatprep.mubr.f32.mxu0 0.0
        %v8454 = vand.u32 %v371, 4294901760
        %8455 = vmatmul.mubr.f32.gmra.mrb[0].mxu0 %v8454
        %v8456 = vpop.f32.mrb[0].mxu0
        %v8457 = vadd.f32 %v8353, %v8456
        %v8458 = vpop.f32.mrb[0].mxu0
        %v8459 = vadd.f32 %v8355, %v8458
        %8460 = vdwg.mxu0
        %v8461 = vand.u32 %v7545, 4294901760
        %8462 = vmatprep.subr.mxu0 %v8461
        %v8463 = vand.u32 %v7544, 4294901760
        %8464 = vmatpush1.msra.mxu0 %v8463
        %v8465 = vand.u32 %v7549, 4294901760
        %8466 = vmatprep.subr.mxu0 %v8465
        %v8467 = vand.u32 %v7548, 4294901760
        %8468 = vmatpush1.msra.mxu0 %v8467
        %v8469 = vand.u32 %v7553, 4294901760
        %8470 = vmatprep.subr.mxu0 %v8469
        %v8471 = vand.u32 %v7552, 4294901760
        %8472 = vmatpush1.msra.mxu0 %v8471
        %v8473 = vand.u32 %v7557, 4294901760
        %8474 = vmatprep.subr.mxu0 %v8473
        %v8475 = vand.u32 %v7556, 4294901760
        %8476 = vmatpush1.msra.mxu0 %v8475
        %v8477 = vand.u32 %v7561, 4294901760
        %8478 = vmatprep.subr.mxu0 %v8477
        %v8479 = vand.u32 %v7560, 4294901760
        %8480 = vmatpush1.msra.mxu0 %v8479
        %v8481 = vand.u32 %v7565, 4294901760
        %8482 = vmatprep.subr.mxu0 %v8481
        %v8483 = vand.u32 %v7564, 4294901760
        %8484 = vmatpush1.msra.mxu0 %v8483
        %v8485 = vand.u32 %v7569, 4294901760
        %8486 = vmatprep.subr.mxu0 %v8485
        %v8487 = vand.u32 %v7568, 4294901760
        %8488 = vmatpush1.msra.mxu0 %v8487
        %v8489 = vand.u32 %v7573, 4294901760
        %8490 = vmatprep.subr.mxu0 %v8489
        %v8491 = vand.u32 %v7572, 4294901760
        %8492 = vmatpush1.msra.mxu0 %v8491
        %v8493 = vand.u32 %v7577, 4294901760
        %8494 = vmatprep.subr.mxu0 %v8493
        %v8495 = vand.u32 %v7576, 4294901760
        %8496 = vmatpush1.msra.mxu0 %v8495
        %v8497 = vand.u32 %v7581, 4294901760
        %8498 = vmatprep.subr.mxu0 %v8497
        %v8499 = vand.u32 %v7580, 4294901760
        %8500 = vmatpush1.msra.mxu0 %v8499
        %v8501 = vand.u32 %v7585, 4294901760
        %8502 = vmatprep.subr.mxu0 %v8501
        %v8503 = vand.u32 %v7584, 4294901760
        %8504 = vmatpush1.msra.mxu0 %v8503
        %v8505 = vand.u32 %v7589, 4294901760
        %8506 = vmatprep.subr.mxu0 %v8505
        %v8507 = vand.u32 %v7588, 4294901760
        %8508 = vmatpush1.msra.mxu0 %v8507
        %v8509 = vand.u32 %v7593, 4294901760
        %8510 = vmatprep.subr.mxu0 %v8509
        %v8511 = vand.u32 %v7592, 4294901760
        %8512 = vmatpush1.msra.mxu0 %v8511
        %v8513 = vand.u32 %v7597, 4294901760
        %8514 = vmatprep.subr.mxu0 %v8513
        %v8515 = vand.u32 %v7596, 4294901760
        %8516 = vmatpush1.msra.mxu0 %v8515
        %v8517 = vand.u32 %v7601, 4294901760
        %8518 = vmatprep.subr.mxu0 %v8517
        %v8519 = vand.u32 %v7600, 4294901760
        %8520 = vmatpush1.msra.mxu0 %v8519
        %v8521 = vand.u32 %v7605, 4294901760
        %8522 = vmatprep.subr.mxu0 %v8521
        %v8523 = vand.u32 %v7604, 4294901760
        %8524 = vmatpush1.msra.mxu0 %v8523
        %8525 = vmatprep.subr.mxu0 0.0
        %8526 = vmatpush1.msra.mxu0 0.0
        %8527 = vmatprep.subr.mxu0 0.0
        %8528 = vmatpush1.msra.mxu0 0.0
        %8529 = vmatprep.subr.mxu0 0.0
        %8530 = vmatpush1.msra.mxu0 0.0
        %8531 = vmatprep.subr.mxu0 0.0
        %8532 = vmatpush1.msra.mxu0 0.0
        %8533 = vmatprep.subr.mxu0 0.0
        %8534 = vmatpush1.msra.mxu0 0.0
        %8535 = vmatprep.subr.mxu0 0.0
        %8536 = vmatpush1.msra.mxu0 0.0
        %8537 = vmatprep.subr.mxu0 0.0
        %8538 = vmatpush1.msra.mxu0 0.0
        %8539 = vmatprep.subr.mxu0 0.0
        %8540 = vmatpush1.msra.mxu0 0.0
        %8541 = vmatprep.subr.mxu0 0.0
        %8542 = vmatpush1.msra.mxu0 0.0
        %8543 = vmatprep.subr.mxu0 0.0
        %8544 = vmatpush1.msra.mxu0 0.0
        %8545 = vmatprep.subr.mxu0 0.0
        %8546 = vmatpush1.msra.mxu0 0.0
        %8547 = vmatprep.subr.mxu0 0.0
        %8548 = vmatpush1.msra.mxu0 0.0
        %8549 = vmatprep.subr.mxu0 0.0
        %8550 = vmatpush1.msra.mxu0 0.0
        %8551 = vmatprep.subr.mxu0 0.0
        %8552 = vmatpush1.msra.mxu0 0.0
        %8553 = vmatprep.subr.mxu0 0.0
        %8554 = vmatpush1.msra.mxu0 0.0
        %8555 = vmatprep.subr.mxu0 0.0
        %8556 = vmatpush1.msra.mxu0 0.0
        %8557 = vmatprep.mubr.f32.mxu0 0.0
        %v8558 = vand.u32 %v371, 4294901760
        %v8559 = vsub.f32 %v371, %v8558
        %v8560 = vand.u32 %v8559, 4294901760
        %v8561 = vsub.f32 %v8559, %v8560
        %v8562 = vand.u32 %v8561, 4294901760
        %8563 = vmatmul.mubr.f32.gmra.mrb[0].mxu0 %v8562
        %v8564 = vpop.f32.mrb[0].mxu0
        %v8565 = vadd.f32 0.0, %v8564
        %v8566 = vpop.f32.mrb[0].mxu0
        %v8567 = vadd.f32 0.0, %v8566
        %8568 = vdwg.mxu0
        %v8569 = vand.u32 %v7545, 4294901760
        %v8570 = vsub.f32 %v7545, %v8569
        %v8571 = vand.u32 %v8570, 4294901760
        %v8572 = vsub.f32 %v8570, %v8571
        %v8573 = vand.u32 %v8572, 4294901760
        %8574 = vmatprep.subr.mxu0 %v8573
        %v8575 = vand.u32 %v7544, 4294901760
        %v8576 = vsub.f32 %v7544, %v8575
        %v8577 = vand.u32 %v8576, 4294901760
        %v8578 = vsub.f32 %v8576, %v8577
        %v8579 = vand.u32 %v8578, 4294901760
        %8580 = vmatpush1.msra.mxu0 %v8579
        %v8581 = vand.u32 %v7549, 4294901760
        %v8582 = vsub.f32 %v7549, %v8581
        %v8583 = vand.u32 %v8582, 4294901760
        %v8584 = vsub.f32 %v8582, %v8583
        %v8585 = vand.u32 %v8584, 4294901760
        %8586 = vmatprep.subr.mxu0 %v8585
        %v8587 = vand.u32 %v7548, 4294901760
        %v8588 = vsub.f32 %v7548, %v8587
        %v8589 = vand.u32 %v8588, 4294901760
        %v8590 = vsub.f32 %v8588, %v8589
        %v8591 = vand.u32 %v8590, 4294901760
        %8592 = vmatpush1.msra.mxu0 %v8591
        %v8593 = vand.u32 %v7553, 4294901760
        %v8594 = vsub.f32 %v7553, %v8593
        %v8595 = vand.u32 %v8594, 4294901760
        %v8596 = vsub.f32 %v8594, %v8595
        %v8597 = vand.u32 %v8596, 4294901760
        %8598 = vmatprep.subr.mxu0 %v8597
        %v8599 = vand.u32 %v7552, 4294901760
        %v8600 = vsub.f32 %v7552, %v8599
        %v8601 = vand.u32 %v8600, 4294901760
        %v8602 = vsub.f32 %v8600, %v8601
        %v8603 = vand.u32 %v8602, 4294901760
        %8604 = vmatpush1.msra.mxu0 %v8603
        %v8605 = vand.u32 %v7557, 4294901760
        %v8606 = vsub.f32 %v7557, %v8605
        %v8607 = vand.u32 %v8606, 4294901760
        %v8608 = vsub.f32 %v8606, %v8607
        %v8609 = vand.u32 %v8608, 4294901760
        %8610 = vmatprep.subr.mxu0 %v8609
        %v8611 = vand.u32 %v7556, 4294901760
        %v8612 = vsub.f32 %v7556, %v8611
        %v8613 = vand.u32 %v8612, 4294901760
        %v8614 = vsub.f32 %v8612, %v8613
        %v8615 = vand.u32 %v8614, 4294901760
        %8616 = vmatpush1.msra.mxu0 %v8615
        %v8617 = vand.u32 %v7561, 4294901760
        %v8618 = vsub.f32 %v7561, %v8617
        %v8619 = vand.u32 %v8618, 4294901760
        %v8620 = vsub.f32 %v8618, %v8619
        %v8621 = vand.u32 %v8620, 4294901760
        %8622 = vmatprep.subr.mxu0 %v8621
        %v8623 = vand.u32 %v7560, 4294901760
        %v8624 = vsub.f32 %v7560, %v8623
        %v8625 = vand.u32 %v8624, 4294901760
        %v8626 = vsub.f32 %v8624, %v8625
        %v8627 = vand.u32 %v8626, 4294901760
        %8628 = vmatpush1.msra.mxu0 %v8627
        %v8629 = vand.u32 %v7565, 4294901760
        %v8630 = vsub.f32 %v7565, %v8629
        %v8631 = vand.u32 %v8630, 4294901760
        %v8632 = vsub.f32 %v8630, %v8631
        %v8633 = vand.u32 %v8632, 4294901760
        %8634 = vmatprep.subr.mxu0 %v8633
        %v8635 = vand.u32 %v7564, 4294901760
        %v8636 = vsub.f32 %v7564, %v8635
        %v8637 = vand.u32 %v8636, 4294901760
        %v8638 = vsub.f32 %v8636, %v8637
        %v8639 = vand.u32 %v8638, 4294901760
        %8640 = vmatpush1.msra.mxu0 %v8639
        %v8641 = vand.u32 %v7569, 4294901760
        %v8642 = vsub.f32 %v7569, %v8641
        %v8643 = vand.u32 %v8642, 4294901760
        %v8644 = vsub.f32 %v8642, %v8643
        %v8645 = vand.u32 %v8644, 4294901760
        %8646 = vmatprep.subr.mxu0 %v8645
        %v8647 = vand.u32 %v7568, 4294901760
        %v8648 = vsub.f32 %v7568, %v8647
        %v8649 = vand.u32 %v8648, 4294901760
        %v8650 = vsub.f32 %v8648, %v8649
        %v8651 = vand.u32 %v8650, 4294901760
        %8652 = vmatpush1.msra.mxu0 %v8651
        %v8653 = vand.u32 %v7573, 4294901760
        %v8654 = vsub.f32 %v7573, %v8653
        %v8655 = vand.u32 %v8654, 4294901760
        %v8656 = vsub.f32 %v8654, %v8655
        %v8657 = vand.u32 %v8656, 4294901760
        %8658 = vmatprep.subr.mxu0 %v8657
        %v8659 = vand.u32 %v7572, 4294901760
        %v8660 = vsub.f32 %v7572, %v8659
        %v8661 = vand.u32 %v8660, 4294901760
        %v8662 = vsub.f32 %v8660, %v8661
        %v8663 = vand.u32 %v8662, 4294901760
        %8664 = vmatpush1.msra.mxu0 %v8663
        %v8665 = vand.u32 %v7577, 4294901760
        %v8666 = vsub.f32 %v7577, %v8665
        %v8667 = vand.u32 %v8666, 4294901760
        %v8668 = vsub.f32 %v8666, %v8667
        %v8669 = vand.u32 %v8668, 4294901760
        %8670 = vmatprep.subr.mxu0 %v8669
        %v8671 = vand.u32 %v7576, 4294901760
        %v8672 = vsub.f32 %v7576, %v8671
        %v8673 = vand.u32 %v8672, 4294901760
        %v8674 = vsub.f32 %v8672, %v8673
        %v8675 = vand.u32 %v8674, 4294901760
        %8676 = vmatpush1.msra.mxu0 %v8675
        %v8677 = vand.u32 %v7581, 4294901760
        %v8678 = vsub.f32 %v7581, %v8677
        %v8679 = vand.u32 %v8678, 4294901760
        %v8680 = vsub.f32 %v8678, %v8679
        %v8681 = vand.u32 %v8680, 4294901760
        %8682 = vmatprep.subr.mxu0 %v8681
        %v8683 = vand.u32 %v7580, 4294901760
        %v8684 = vsub.f32 %v7580, %v8683
        %v8685 = vand.u32 %v8684, 4294901760
        %v8686 = vsub.f32 %v8684, %v8685
        %v8687 = vand.u32 %v8686, 4294901760
        %8688 = vmatpush1.msra.mxu0 %v8687
        %v8689 = vand.u32 %v7585, 4294901760
        %v8690 = vsub.f32 %v7585, %v8689
        %v8691 = vand.u32 %v8690, 4294901760
        %v8692 = vsub.f32 %v8690, %v8691
        %v8693 = vand.u32 %v8692, 4294901760
        %8694 = vmatprep.subr.mxu0 %v8693
        %v8695 = vand.u32 %v7584, 4294901760
        %v8696 = vsub.f32 %v7584, %v8695
        %v8697 = vand.u32 %v8696, 4294901760
        %v8698 = vsub.f32 %v8696, %v8697
        %v8699 = vand.u32 %v8698, 4294901760
        %8700 = vmatpush1.msra.mxu0 %v8699
        %v8701 = vand.u32 %v7589, 4294901760
        %v8702 = vsub.f32 %v7589, %v8701
        %v8703 = vand.u32 %v8702, 4294901760
        %v8704 = vsub.f32 %v8702, %v8703
        %v8705 = vand.u32 %v8704, 4294901760
        %8706 = vmatprep.subr.mxu0 %v8705
        %v8707 = vand.u32 %v7588, 4294901760
        %v8708 = vsub.f32 %v7588, %v8707
        %v8709 = vand.u32 %v8708, 4294901760
        %v8710 = vsub.f32 %v8708, %v8709
        %v8711 = vand.u32 %v8710, 4294901760
        %8712 = vmatpush1.msra.mxu0 %v8711
        %v8713 = vand.u32 %v7593, 4294901760
        %v8714 = vsub.f32 %v7593, %v8713
        %v8715 = vand.u32 %v8714, 4294901760
        %v8716 = vsub.f32 %v8714, %v8715
        %v8717 = vand.u32 %v8716, 4294901760
        %8718 = vmatprep.subr.mxu0 %v8717
        %v8719 = vand.u32 %v7592, 4294901760
        %v8720 = vsub.f32 %v7592, %v8719
        %v8721 = vand.u32 %v8720, 4294901760
        %v8722 = vsub.f32 %v8720, %v8721
        %v8723 = vand.u32 %v8722, 4294901760
        %8724 = vmatpush1.msra.mxu0 %v8723
        %v8725 = vand.u32 %v7597, 4294901760
        %v8726 = vsub.f32 %v7597, %v8725
        %v8727 = vand.u32 %v8726, 4294901760
        %v8728 = vsub.f32 %v8726, %v8727
        %v8729 = vand.u32 %v8728, 4294901760
        %8730 = vmatprep.subr.mxu0 %v8729
        %v8731 = vand.u32 %v7596, 4294901760
        %v8732 = vsub.f32 %v7596, %v8731
        %v8733 = vand.u32 %v8732, 4294901760
        %v8734 = vsub.f32 %v8732, %v8733
        %v8735 = vand.u32 %v8734, 4294901760
        %8736 = vmatpush1.msra.mxu0 %v8735
        %v8737 = vand.u32 %v7601, 4294901760
        %v8738 = vsub.f32 %v7601, %v8737
        %v8739 = vand.u32 %v8738, 4294901760
        %v8740 = vsub.f32 %v8738, %v8739
        %v8741 = vand.u32 %v8740, 4294901760
        %8742 = vmatprep.subr.mxu0 %v8741
        %v8743 = vand.u32 %v7600, 4294901760
        %v8744 = vsub.f32 %v7600, %v8743
        %v8745 = vand.u32 %v8744, 4294901760
        %v8746 = vsub.f32 %v8744, %v8745
        %v8747 = vand.u32 %v8746, 4294901760
        %8748 = vmatpush1.msra.mxu0 %v8747
        %v8749 = vand.u32 %v7605, 4294901760
        %v8750 = vsub.f32 %v7605, %v8749
        %v8751 = vand.u32 %v8750, 4294901760
        %v8752 = vsub.f32 %v8750, %v8751
        %v8753 = vand.u32 %v8752, 4294901760
        %8754 = vmatprep.subr.mxu0 %v8753
        %v8755 = vand.u32 %v7604, 4294901760
        %v8756 = vsub.f32 %v7604, %v8755
        %v8757 = vand.u32 %v8756, 4294901760
        %v8758 = vsub.f32 %v8756, %v8757
        %v8759 = vand.u32 %v8758, 4294901760
        %8760 = vmatpush1.msra.mxu0 %v8759
        %8761 = vmatprep.subr.mxu0 0.0
        %8762 = vmatpush1.msra.mxu0 0.0
        %8763 = vmatprep.subr.mxu0 0.0
        %8764 = vmatpush1.msra.mxu0 0.0
        %8765 = vmatprep.subr.mxu0 0.0
        %8766 = vmatpush1.msra.mxu0 0.0
        %8767 = vmatprep.subr.mxu0 0.0
        %8768 = vmatpush1.msra.mxu0 0.0
        %8769 = vmatprep.subr.mxu0 0.0
        %8770 = vmatpush1.msra.mxu0 0.0
        %8771 = vmatprep.subr.mxu0 0.0
        %8772 = vmatpush1.msra.mxu0 0.0
        %8773 = vmatprep.subr.mxu0 0.0
        %8774 = vmatpush1.msra.mxu0 0.0
        %8775 = vmatprep.subr.mxu0 0.0
        %8776 = vmatpush1.msra.mxu0 0.0
        %8777 = vmatprep.subr.mxu0 0.0
        %8778 = vmatpush1.msra.mxu0 0.0
        %8779 = vmatprep.subr.mxu0 0.0
        %8780 = vmatpush1.msra.mxu0 0.0
        %8781 = vmatprep.subr.mxu0 0.0
        %8782 = vmatpush1.msra.mxu0 0.0
        %8783 = vmatprep.subr.mxu0 0.0
        %8784 = vmatpush1.msra.mxu0 0.0
        %8785 = vmatprep.subr.mxu0 0.0
        %8786 = vmatpush1.msra.mxu0 0.0
        %8787 = vmatprep.subr.mxu0 0.0
        %8788 = vmatpush1.msra.mxu0 0.0
        %8789 = vmatprep.subr.mxu0 0.0
        %8790 = vmatpush1.msra.mxu0 0.0
        %8791 = vmatprep.subr.mxu0 0.0
        %8792 = vmatpush1.msra.mxu0 0.0
        %8793 = vmatprep.mubr.f32.mxu0 0.0
        %v8794 = vand.u32 %v371, 4294901760
        %8795 = vmatmul.mubr.f32.gmra.mrb[0].mxu0 %v8794
        %v8796 = vpop.f32.mrb[0].mxu0
        %v8797 = vadd.f32 %v8565, %v8796
        %v8798 = vpop.f32.mrb[0].mxu0
        %v8799 = vadd.f32 %v8567, %v8798
        %8800 = vdwg.mxu0
        %v8801 = vand.u32 %v7545, 4294901760
        %v8802 = vsub.f32 %v7545, %v8801
        %8803 = vmatprep.subr.mxu0 %v8802
        %v8804 = vand.u32 %v7544, 4294901760
        %v8805 = vsub.f32 %v7544, %v8804
        %8806 = vmatpush1.msra.mxu0 %v8805
        %v8807 = vand.u32 %v7549, 4294901760
        %v8808 = vsub.f32 %v7549, %v8807
        %8809 = vmatprep.subr.mxu0 %v8808
        %v8810 = vand.u32 %v7548, 4294901760
        %v8811 = vsub.f32 %v7548, %v8810
        %8812 = vmatpush1.msra.mxu0 %v8811
        %v8813 = vand.u32 %v7553, 4294901760
        %v8814 = vsub.f32 %v7553, %v8813
        %8815 = vmatprep.subr.mxu0 %v8814
        %v8816 = vand.u32 %v7552, 4294901760
        %v8817 = vsub.f32 %v7552, %v8816
        %8818 = vmatpush1.msra.mxu0 %v8817
        %v8819 = vand.u32 %v7557, 4294901760
        %v8820 = vsub.f32 %v7557, %v8819
        %8821 = vmatprep.subr.mxu0 %v8820
        %v8822 = vand.u32 %v7556, 4294901760
        %v8823 = vsub.f32 %v7556, %v8822
        %8824 = vmatpush1.msra.mxu0 %v8823
        %v8825 = vand.u32 %v7561, 4294901760
        %v8826 = vsub.f32 %v7561, %v8825
        %8827 = vmatprep.subr.mxu0 %v8826
        %v8828 = vand.u32 %v7560, 4294901760
        %v8829 = vsub.f32 %v7560, %v8828
        %8830 = vmatpush1.msra.mxu0 %v8829
        %v8831 = vand.u32 %v7565, 4294901760
        %v8832 = vsub.f32 %v7565, %v8831
        %8833 = vmatprep.subr.mxu0 %v8832
        %v8834 = vand.u32 %v7564, 4294901760
        %v8835 = vsub.f32 %v7564, %v8834
        %8836 = vmatpush1.msra.mxu0 %v8835
        %v8837 = vand.u32 %v7569, 4294901760
        %v8838 = vsub.f32 %v7569, %v8837
        %8839 = vmatprep.subr.mxu0 %v8838
        %v8840 = vand.u32 %v7568, 4294901760
        %v8841 = vsub.f32 %v7568, %v8840
        %8842 = vmatpush1.msra.mxu0 %v8841
        %v8843 = vand.u32 %v7573, 4294901760
        %v8844 = vsub.f32 %v7573, %v8843
        %8845 = vmatprep.subr.mxu0 %v8844
        %v8846 = vand.u32 %v7572, 4294901760
        %v8847 = vsub.f32 %v7572, %v8846
        %8848 = vmatpush1.msra.mxu0 %v8847
        %v8849 = vand.u32 %v7577, 4294901760
        %v8850 = vsub.f32 %v7577, %v8849
        %8851 = vmatprep.subr.mxu0 %v8850
        %v8852 = vand.u32 %v7576, 4294901760
        %v8853 = vsub.f32 %v7576, %v8852
        %8854 = vmatpush1.msra.mxu0 %v8853
        %v8855 = vand.u32 %v7581, 4294901760
        %v8856 = vsub.f32 %v7581, %v8855
        %8857 = vmatprep.subr.mxu0 %v8856
        %v8858 = vand.u32 %v7580, 4294901760
        %v8859 = vsub.f32 %v7580, %v8858
        %8860 = vmatpush1.msra.mxu0 %v8859
        %v8861 = vand.u32 %v7585, 4294901760
        %v8862 = vsub.f32 %v7585, %v8861
        %8863 = vmatprep.subr.mxu0 %v8862
        %v8864 = vand.u32 %v7584, 4294901760
        %v8865 = vsub.f32 %v7584, %v8864
        %8866 = vmatpush1.msra.mxu0 %v8865
        %v8867 = vand.u32 %v7589, 4294901760
        %v8868 = vsub.f32 %v7589, %v8867
        %8869 = vmatprep.subr.mxu0 %v8868
        %v8870 = vand.u32 %v7588, 4294901760
        %v8871 = vsub.f32 %v7588, %v8870
        %8872 = vmatpush1.msra.mxu0 %v8871
        %v8873 = vand.u32 %v7593, 4294901760
        %v8874 = vsub.f32 %v7593, %v8873
        %8875 = vmatprep.subr.mxu0 %v8874
        %v8876 = vand.u32 %v7592, 4294901760
        %v8877 = vsub.f32 %v7592, %v8876
        %8878 = vmatpush1.msra.mxu0 %v8877
        %v8879 = vand.u32 %v7597, 4294901760
        %v8880 = vsub.f32 %v7597, %v8879
        %8881 = vmatprep.subr.mxu0 %v8880
        %v8882 = vand.u32 %v7596, 4294901760
        %v8883 = vsub.f32 %v7596, %v8882
        %8884 = vmatpush1.msra.mxu0 %v8883
        %v8885 = vand.u32 %v7601, 4294901760
        %v8886 = vsub.f32 %v7601, %v8885
        %8887 = vmatprep.subr.mxu0 %v8886
        %v8888 = vand.u32 %v7600, 4294901760
        %v8889 = vsub.f32 %v7600, %v8888
        %8890 = vmatpush1.msra.mxu0 %v8889
        %v8891 = vand.u32 %v7605, 4294901760
        %v8892 = vsub.f32 %v7605, %v8891
        %8893 = vmatprep.subr.mxu0 %v8892
        %v8894 = vand.u32 %v7604, 4294901760
        %v8895 = vsub.f32 %v7604, %v8894
        %8896 = vmatpush1.msra.mxu0 %v8895
        %8897 = vmatprep.subr.mxu0 0.0
        %8898 = vmatpush1.msra.mxu0 0.0
        %8899 = vmatprep.subr.mxu0 0.0
        %8900 = vmatpush1.msra.mxu0 0.0
        %8901 = vmatprep.subr.mxu0 0.0
        %8902 = vmatpush1.msra.mxu0 0.0
        %8903 = vmatprep.subr.mxu0 0.0
        %8904 = vmatpush1.msra.mxu0 0.0
        %8905 = vmatprep.subr.mxu0 0.0
        %8906 = vmatpush1.msra.mxu0 0.0
        %8907 = vmatprep.subr.mxu0 0.0
        %8908 = vmatpush1.msra.mxu0 0.0
        %8909 = vmatprep.subr.mxu0 0.0
        %8910 = vmatpush1.msra.mxu0 0.0
        %8911 = vmatprep.subr.mxu0 0.0
        %8912 = vmatpush1.msra.mxu0 0.0
        %8913 = vmatprep.subr.mxu0 0.0
        %8914 = vmatpush1.msra.mxu0 0.0
        %8915 = vmatprep.subr.mxu0 0.0
        %8916 = vmatpush1.msra.mxu0 0.0
        %8917 = vmatprep.subr.mxu0 0.0
        %8918 = vmatpush1.msra.mxu0 0.0
        %8919 = vmatprep.subr.mxu0 0.0
        %8920 = vmatpush1.msra.mxu0 0.0
        %8921 = vmatprep.subr.mxu0 0.0
        %8922 = vmatpush1.msra.mxu0 0.0
        %8923 = vmatprep.subr.mxu0 0.0
        %8924 = vmatpush1.msra.mxu0 0.0
        %8925 = vmatprep.subr.mxu0 0.0
        %8926 = vmatpush1.msra.mxu0 0.0
        %8927 = vmatprep.subr.mxu0 0.0
        %8928 = vmatpush1.msra.mxu0 0.0
        %8929 = vmatprep.mubr.f32.mxu0 0.0
        %v8930 = vand.u32 %v371, 4294901760
        %v8931 = vsub.f32 %v371, %v8930
        %8932 = vmatmul.mubr.f32.gmra.mrb[0].mxu0 %v8931
        %v8933 = vpop.f32.mrb[0].mxu0
        %v8934 = vadd.f32 %v8797, %v8933
        %v8935 = vpop.f32.mrb[0].mxu0
        %v8936 = vadd.f32 %v8799, %v8935
        %8937 = vdwg.mxu0
        %v8938 = vand.u32 %v7545, 4294901760
        %8939 = vmatprep.subr.mxu0 %v8938
        %v8940 = vand.u32 %v7544, 4294901760
        %8941 = vmatpush1.msra.mxu0 %v8940
        %v8942 = vand.u32 %v7549, 4294901760
        %8943 = vmatprep.subr.mxu0 %v8942
        %v8944 = vand.u32 %v7548, 4294901760
        %8945 = vmatpush1.msra.mxu0 %v8944
        %v8946 = vand.u32 %v7553, 4294901760
        %8947 = vmatprep.subr.mxu0 %v8946
        %v8948 = vand.u32 %v7552, 4294901760
        %8949 = vmatpush1.msra.mxu0 %v8948
        %v8950 = vand.u32 %v7557, 4294901760
        %8951 = vmatprep.subr.mxu0 %v8950
        %v8952 = vand.u32 %v7556, 4294901760
        %8953 = vmatpush1.msra.mxu0 %v8952
        %v8954 = vand.u32 %v7561, 4294901760
        %8955 = vmatprep.subr.mxu0 %v8954
        %v8956 = vand.u32 %v7560, 4294901760
        %8957 = vmatpush1.msra.mxu0 %v8956
        %v8958 = vand.u32 %v7565, 4294901760
        %8959 = vmatprep.subr.mxu0 %v8958
        %v8960 = vand.u32 %v7564, 4294901760
        %8961 = vmatpush1.msra.mxu0 %v8960
        %v8962 = vand.u32 %v7569, 4294901760
        %8963 = vmatprep.subr.mxu0 %v8962
        %v8964 = vand.u32 %v7568, 4294901760
        %8965 = vmatpush1.msra.mxu0 %v8964
        %v8966 = vand.u32 %v7573, 4294901760
        %8967 = vmatprep.subr.mxu0 %v8966
        %v8968 = vand.u32 %v7572, 4294901760
        %8969 = vmatpush1.msra.mxu0 %v8968
        %v8970 = vand.u32 %v7577, 4294901760
        %8971 = vmatprep.subr.mxu0 %v8970
        %v8972 = vand.u32 %v7576, 4294901760
        %8973 = vmatpush1.msra.mxu0 %v8972
        %v8974 = vand.u32 %v7581, 4294901760
        %8975 = vmatprep.subr.mxu0 %v8974
        %v8976 = vand.u32 %v7580, 4294901760
        %8977 = vmatpush1.msra.mxu0 %v8976
        %v8978 = vand.u32 %v7585, 4294901760
        %8979 = vmatprep.subr.mxu0 %v8978
        %v8980 = vand.u32 %v7584, 4294901760
        %8981 = vmatpush1.msra.mxu0 %v8980
        %v8982 = vand.u32 %v7589, 4294901760
        %8983 = vmatprep.subr.mxu0 %v8982
        %v8984 = vand.u32 %v7588, 4294901760
        %8985 = vmatpush1.msra.mxu0 %v8984
        %v8986 = vand.u32 %v7593, 4294901760
        %8987 = vmatprep.subr.mxu0 %v8986
        %v8988 = vand.u32 %v7592, 4294901760
        %8989 = vmatpush1.msra.mxu0 %v8988
        %v8990 = vand.u32 %v7597, 4294901760
        %8991 = vmatprep.subr.mxu0 %v8990
        %v8992 = vand.u32 %v7596, 4294901760
        %8993 = vmatpush1.msra.mxu0 %v8992
        %v8994 = vand.u32 %v7601, 4294901760
        %8995 = vmatprep.subr.mxu0 %v8994
        %v8996 = vand.u32 %v7600, 4294901760
        %8997 = vmatpush1.msra.mxu0 %v8996
        %v8998 = vand.u32 %v7605, 4294901760
        %8999 = vmatprep.subr.mxu0 %v8998
        %v9000 = vand.u32 %v7604, 4294901760
        %9001 = vmatpush1.msra.mxu0 %v9000
        %9002 = vmatprep.subr.mxu0 0.0
        %9003 = vmatpush1.msra.mxu0 0.0
        %9004 = vmatprep.subr.mxu0 0.0
        %9005 = vmatpush1.msra.mxu0 0.0
        %9006 = vmatprep.subr.mxu0 0.0
        %9007 = vmatpush1.msra.mxu0 0.0
        %9008 = vmatprep.subr.mxu0 0.0
        %9009 = vmatpush1.msra.mxu0 0.0
        %9010 = vmatprep.subr.mxu0 0.0
        %9011 = vmatpush1.msra.mxu0 0.0
        %9012 = vmatprep.subr.mxu0 0.0
        %9013 = vmatpush1.msra.mxu0 0.0
        %9014 = vmatprep.subr.mxu0 0.0
        %9015 = vmatpush1.msra.mxu0 0.0
        %9016 = vmatprep.subr.mxu0 0.0
        %9017 = vmatpush1.msra.mxu0 0.0
        %9018 = vmatprep.subr.mxu0 0.0
        %9019 = vmatpush1.msra.mxu0 0.0
        %9020 = vmatprep.subr.mxu0 0.0
        %9021 = vmatpush1.msra.mxu0 0.0
        %9022 = vmatprep.subr.mxu0 0.0
        %9023 = vmatpush1.msra.mxu0 0.0
        %9024 = vmatprep.subr.mxu0 0.0
        %9025 = vmatpush1.msra.mxu0 0.0
        %9026 = vmatprep.subr.mxu0 0.0
        %9027 = vmatpush1.msra.mxu0 0.0
        %9028 = vmatprep.subr.mxu0 0.0
        %9029 = vmatpush1.msra.mxu0 0.0
        %9030 = vmatprep.subr.mxu0 0.0
        %9031 = vmatpush1.msra.mxu0 0.0
        %9032 = vmatprep.subr.mxu0 0.0
        %9033 = vmatpush1.msra.mxu0 0.0
        %9034 = vmatprep.mubr.f32.mxu0 0.0
        %v9035 = vand.u32 %v371, 4294901760
        %v9036 = vsub.f32 %v371, %v9035
        %v9037 = vand.u32 %v9036, 4294901760
        %9038 = vmatmul.mubr.f32.gmra.mrb[0].mxu0 %v9037
        %v9039 = vpop.f32.mrb[0].mxu0
        %v9040 = vadd.f32 %v8934, %v9039
        %v9041 = vpop.f32.mrb[0].mxu0
        %v9042 = vadd.f32 %v8936, %v9041
        %9043 = vdwg.mxu0
        %v9044 = vand.u32 %v7545, 4294901760
        %v9045 = vsub.f32 %v7545, %v9044
        %v9046 = vand.u32 %v9045, 4294901760
        %9047 = vmatprep.subr.mxu0 %v9046
        %v9048 = vand.u32 %v7544, 4294901760
        %v9049 = vsub.f32 %v7544, %v9048
        %v9050 = vand.u32 %v9049, 4294901760
        %9051 = vmatpush1.msra.mxu0 %v9050
        %v9052 = vand.u32 %v7549, 4294901760
        %v9053 = vsub.f32 %v7549, %v9052
        %v9054 = vand.u32 %v9053, 4294901760
        %9055 = vmatprep.subr.mxu0 %v9054
        %v9056 = vand.u32 %v7548, 4294901760
        %v9057 = vsub.f32 %v7548, %v9056
        %v9058 = vand.u32 %v9057, 4294901760
        %9059 = vmatpush1.msra.mxu0 %v9058
        %v9060 = vand.u32 %v7553, 4294901760
        %v9061 = vsub.f32 %v7553, %v9060
        %v9062 = vand.u32 %v9061, 4294901760
        %9063 = vmatprep.subr.mxu0 %v9062
        %v9064 = vand.u32 %v7552, 4294901760
        %v9065 = vsub.f32 %v7552, %v9064
        %v9066 = vand.u32 %v9065, 4294901760
        %9067 = vmatpush1.msra.mxu0 %v9066
        %v9068 = vand.u32 %v7557, 4294901760
        %v9069 = vsub.f32 %v7557, %v9068
        %v9070 = vand.u32 %v9069, 4294901760
        %9071 = vmatprep.subr.mxu0 %v9070
        %v9072 = vand.u32 %v7556, 4294901760
        %v9073 = vsub.f32 %v7556, %v9072
        %v9074 = vand.u32 %v9073, 4294901760
        %9075 = vmatpush1.msra.mxu0 %v9074
        %v9076 = vand.u32 %v7561, 4294901760
        %v9077 = vsub.f32 %v7561, %v9076
        %v9078 = vand.u32 %v9077, 4294901760
        %9079 = vmatprep.subr.mxu0 %v9078
        %v9080 = vand.u32 %v7560, 4294901760
        %v9081 = vsub.f32 %v7560, %v9080
        %v9082 = vand.u32 %v9081, 4294901760
        %9083 = vmatpush1.msra.mxu0 %v9082
        %v9084 = vand.u32 %v7565, 4294901760
        %v9085 = vsub.f32 %v7565, %v9084
        %v9086 = vand.u32 %v9085, 4294901760
        %9087 = vmatprep.subr.mxu0 %v9086
        %v9088 = vand.u32 %v7564, 4294901760
        %v9089 = vsub.f32 %v7564, %v9088
        %v9090 = vand.u32 %v9089, 4294901760
        %9091 = vmatpush1.msra.mxu0 %v9090
        %v9092 = vand.u32 %v7569, 4294901760
        %v9093 = vsub.f32 %v7569, %v9092
        %v9094 = vand.u32 %v9093, 4294901760
        %9095 = vmatprep.subr.mxu0 %v9094
        %v9096 = vand.u32 %v7568, 4294901760
        %v9097 = vsub.f32 %v7568, %v9096
        %v9098 = vand.u32 %v9097, 4294901760
        %9099 = vmatpush1.msra.mxu0 %v9098
        %v9100 = vand.u32 %v7573, 4294901760
        %v9101 = vsub.f32 %v7573, %v9100
        %v9102 = vand.u32 %v9101, 4294901760
        %9103 = vmatprep.subr.mxu0 %v9102
        %v9104 = vand.u32 %v7572, 4294901760
        %v9105 = vsub.f32 %v7572, %v9104
        %v9106 = vand.u32 %v9105, 4294901760
        %9107 = vmatpush1.msra.mxu0 %v9106
        %v9108 = vand.u32 %v7577, 4294901760
        %v9109 = vsub.f32 %v7577, %v9108
        %v9110 = vand.u32 %v9109, 4294901760
        %9111 = vmatprep.subr.mxu0 %v9110
        %v9112 = vand.u32 %v7576, 4294901760
        %v9113 = vsub.f32 %v7576, %v9112
        %v9114 = vand.u32 %v9113, 4294901760
        %9115 = vmatpush1.msra.mxu0 %v9114
        %v9116 = vand.u32 %v7581, 4294901760
        %v9117 = vsub.f32 %v7581, %v9116
        %v9118 = vand.u32 %v9117, 4294901760
        %9119 = vmatprep.subr.mxu0 %v9118
        %v9120 = vand.u32 %v7580, 4294901760
        %v9121 = vsub.f32 %v7580, %v9120
        %v9122 = vand.u32 %v9121, 4294901760
        %9123 = vmatpush1.msra.mxu0 %v9122
        %v9124 = vand.u32 %v7585, 4294901760
        %v9125 = vsub.f32 %v7585, %v9124
        %v9126 = vand.u32 %v9125, 4294901760
        %9127 = vmatprep.subr.mxu0 %v9126
        %v9128 = vand.u32 %v7584, 4294901760
        %v9129 = vsub.f32 %v7584, %v9128
        %v9130 = vand.u32 %v9129, 4294901760
        %9131 = vmatpush1.msra.mxu0 %v9130
        %v9132 = vand.u32 %v7589, 4294901760
        %v9133 = vsub.f32 %v7589, %v9132
        %v9134 = vand.u32 %v9133, 4294901760
        %9135 = vmatprep.subr.mxu0 %v9134
        %v9136 = vand.u32 %v7588, 4294901760
        %v9137 = vsub.f32 %v7588, %v9136
        %v9138 = vand.u32 %v9137, 4294901760
        %9139 = vmatpush1.msra.mxu0 %v9138
        %v9140 = vand.u32 %v7593, 4294901760
        %v9141 = vsub.f32 %v7593, %v9140
        %v9142 = vand.u32 %v9141, 4294901760
        %9143 = vmatprep.subr.mxu0 %v9142
        %v9144 = vand.u32 %v7592, 4294901760
        %v9145 = vsub.f32 %v7592, %v9144
        %v9146 = vand.u32 %v9145, 4294901760
        %9147 = vmatpush1.msra.mxu0 %v9146
        %v9148 = vand.u32 %v7597, 4294901760
        %v9149 = vsub.f32 %v7597, %v9148
        %v9150 = vand.u32 %v9149, 4294901760
        %9151 = vmatprep.subr.mxu0 %v9150
        %v9152 = vand.u32 %v7596, 4294901760
        %v9153 = vsub.f32 %v7596, %v9152
        %v9154 = vand.u32 %v9153, 4294901760
        %9155 = vmatpush1.msra.mxu0 %v9154
        %v9156 = vand.u32 %v7601, 4294901760
        %v9157 = vsub.f32 %v7601, %v9156
        %v9158 = vand.u32 %v9157, 4294901760
        %9159 = vmatprep.subr.mxu0 %v9158
        %v9160 = vand.u32 %v7600, 4294901760
        %v9161 = vsub.f32 %v7600, %v9160
        %v9162 = vand.u32 %v9161, 4294901760
        %9163 = vmatpush1.msra.mxu0 %v9162
        %v9164 = vand.u32 %v7605, 4294901760
        %v9165 = vsub.f32 %v7605, %v9164
        %v9166 = vand.u32 %v9165, 4294901760
        %9167 = vmatprep.subr.mxu0 %v9166
        %v9168 = vand.u32 %v7604, 4294901760
        %v9169 = vsub.f32 %v7604, %v9168
        %v9170 = vand.u32 %v9169, 4294901760
        %9171 = vmatpush1.msra.mxu0 %v9170
        %9172 = vmatprep.subr.mxu0 0.0
        %9173 = vmatpush1.msra.mxu0 0.0
        %9174 = vmatprep.subr.mxu0 0.0
        %9175 = vmatpush1.msra.mxu0 0.0
        %9176 = vmatprep.subr.mxu0 0.0
        %9177 = vmatpush1.msra.mxu0 0.0
        %9178 = vmatprep.subr.mxu0 0.0
        %9179 = vmatpush1.msra.mxu0 0.0
        %9180 = vmatprep.subr.mxu0 0.0
        %9181 = vmatpush1.msra.mxu0 0.0
        %9182 = vmatprep.subr.mxu0 0.0
        %9183 = vmatpush1.msra.mxu0 0.0
        %9184 = vmatprep.subr.mxu0 0.0
        %9185 = vmatpush1.msra.mxu0 0.0
        %9186 = vmatprep.subr.mxu0 0.0
        %9187 = vmatpush1.msra.mxu0 0.0
        %9188 = vmatprep.subr.mxu0 0.0
        %9189 = vmatpush1.msra.mxu0 0.0
        %9190 = vmatprep.subr.mxu0 0.0
        %9191 = vmatpush1.msra.mxu0 0.0
        %9192 = vmatprep.subr.mxu0 0.0
        %9193 = vmatpush1.msra.mxu0 0.0
        %9194 = vmatprep.subr.mxu0 0.0
        %9195 = vmatpush1.msra.mxu0 0.0
        %9196 = vmatprep.subr.mxu0 0.0
        %9197 = vmatpush1.msra.mxu0 0.0
        %9198 = vmatprep.subr.mxu0 0.0
        %9199 = vmatpush1.msra.mxu0 0.0
        %9200 = vmatprep.subr.mxu0 0.0
        %9201 = vmatpush1.msra.mxu0 0.0
        %9202 = vmatprep.subr.mxu0 0.0
        %9203 = vmatpush1.msra.mxu0 0.0
        %9204 = vmatprep.mubr.f32.mxu0 0.0
        %v9205 = vand.u32 %v371, 4294901760
        %9206 = vmatmul.mubr.f32.gmra.mrb[0].mxu0 %v9205
        %v9207 = vpop.f32.mrb[0].mxu0
        %v9208 = vadd.f32 %v9040, %v9207
        %v9209 = vpop.f32.mrb[0].mxu0
        %v9210 = vadd.f32 %v9042, %v9209
        %9211 = vdwg.mxu0
        %v9212 = vand.u32 %v7545, 4294901760
        %9213 = vmatprep.subr.mxu0 %v9212
        %v9214 = vand.u32 %v7544, 4294901760
        %9215 = vmatpush1.msra.mxu0 %v9214
        %v9216 = vand.u32 %v7549, 4294901760
        %9217 = vmatprep.subr.mxu0 %v9216
        %v9218 = vand.u32 %v7548, 4294901760
        %9219 = vmatpush1.msra.mxu0 %v9218
        %v9220 = vand.u32 %v7553, 4294901760
        %9221 = vmatprep.subr.mxu0 %v9220
        %v9222 = vand.u32 %v7552, 4294901760
        %9223 = vmatpush1.msra.mxu0 %v9222
        %v9224 = vand.u32 %v7557, 4294901760
        %9225 = vmatprep.subr.mxu0 %v9224
        %v9226 = vand.u32 %v7556, 4294901760
        %9227 = vmatpush1.msra.mxu0 %v9226
        %v9228 = vand.u32 %v7561, 4294901760
        %9229 = vmatprep.subr.mxu0 %v9228
        %v9230 = vand.u32 %v7560, 4294901760
        %9231 = vmatpush1.msra.mxu0 %v9230
        %v9232 = vand.u32 %v7565, 4294901760
        %9233 = vmatprep.subr.mxu0 %v9232
        %v9234 = vand.u32 %v7564, 4294901760
        %9235 = vmatpush1.msra.mxu0 %v9234
        %v9236 = vand.u32 %v7569, 4294901760
        %9237 = vmatprep.subr.mxu0 %v9236
        %v9238 = vand.u32 %v7568, 4294901760
        %9239 = vmatpush1.msra.mxu0 %v9238
        %v9240 = vand.u32 %v7573, 4294901760
        %9241 = vmatprep.subr.mxu0 %v9240
        %v9242 = vand.u32 %v7572, 4294901760
        %9243 = vmatpush1.msra.mxu0 %v9242
        %v9244 = vand.u32 %v7577, 4294901760
        %9245 = vmatprep.subr.mxu0 %v9244
        %v9246 = vand.u32 %v7576, 4294901760
        %9247 = vmatpush1.msra.mxu0 %v9246
        %v9248 = vand.u32 %v7581, 4294901760
        %9249 = vmatprep.subr.mxu0 %v9248
        %v9250 = vand.u32 %v7580, 4294901760
        %9251 = vmatpush1.msra.mxu0 %v9250
        %v9252 = vand.u32 %v7585, 4294901760
        %9253 = vmatprep.subr.mxu0 %v9252
        %v9254 = vand.u32 %v7584, 4294901760
        %9255 = vmatpush1.msra.mxu0 %v9254
        %v9256 = vand.u32 %v7589, 4294901760
        %9257 = vmatprep.subr.mxu0 %v9256
        %v9258 = vand.u32 %v7588, 4294901760
        %9259 = vmatpush1.msra.mxu0 %v9258
        %v9260 = vand.u32 %v7593, 4294901760
        %9261 = vmatprep.subr.mxu0 %v9260
        %v9262 = vand.u32 %v7592, 4294901760
        %9263 = vmatpush1.msra.mxu0 %v9262
        %v9264 = vand.u32 %v7597, 4294901760
        %9265 = vmatprep.subr.mxu0 %v9264
        %v9266 = vand.u32 %v7596, 4294901760
        %9267 = vmatpush1.msra.mxu0 %v9266
        %v9268 = vand.u32 %v7601, 4294901760
        %9269 = vmatprep.subr.mxu0 %v9268
        %v9270 = vand.u32 %v7600, 4294901760
        %9271 = vmatpush1.msra.mxu0 %v9270
        %v9272 = vand.u32 %v7605, 4294901760
        %9273 = vmatprep.subr.mxu0 %v9272
        %v9274 = vand.u32 %v7604, 4294901760
        %9275 = vmatpush1.msra.mxu0 %v9274
        %9276 = vmatprep.subr.mxu0 0.0
        %9277 = vmatpush1.msra.mxu0 0.0
        %9278 = vmatprep.subr.mxu0 0.0
        %9279 = vmatpush1.msra.mxu0 0.0
        %9280 = vmatprep.subr.mxu0 0.0
        %9281 = vmatpush1.msra.mxu0 0.0
        %9282 = vmatprep.subr.mxu0 0.0
        %9283 = vmatpush1.msra.mxu0 0.0
        %9284 = vmatprep.subr.mxu0 0.0
        %9285 = vmatpush1.msra.mxu0 0.0
        %9286 = vmatprep.subr.mxu0 0.0
        %9287 = vmatpush1.msra.mxu0 0.0
        %9288 = vmatprep.subr.mxu0 0.0
        %9289 = vmatpush1.msra.mxu0 0.0
        %9290 = vmatprep.subr.mxu0 0.0
        %9291 = vmatpush1.msra.mxu0 0.0
        %9292 = vmatprep.subr.mxu0 0.0
        %9293 = vmatpush1.msra.mxu0 0.0
        %9294 = vmatprep.subr.mxu0 0.0
        %9295 = vmatpush1.msra.mxu0 0.0
        %9296 = vmatprep.subr.mxu0 0.0
        %9297 = vmatpush1.msra.mxu0 0.0
        %9298 = vmatprep.subr.mxu0 0.0
        %9299 = vmatpush1.msra.mxu0 0.0
        %9300 = vmatprep.subr.mxu0 0.0
        %9301 = vmatpush1.msra.mxu0 0.0
        %9302 = vmatprep.subr.mxu0 0.0
        %9303 = vmatpush1.msra.mxu0 0.0
        %9304 = vmatprep.subr.mxu0 0.0
        %9305 = vmatpush1.msra.mxu0 0.0
        %9306 = vmatprep.subr.mxu0 0.0
        %9307 = vmatpush1.msra.mxu0 0.0
        %9308 = vmatprep.mubr.f32.mxu0 0.0
        %v9309 = vand.u32 %v371, 4294901760
        %9310 = vmatmul.mubr.f32.gmra.mrb[0].mxu0 %v9309
        %v9311 = vpop.f32.mrb[0].mxu0
        %v9312 = vadd.f32 %v9208, %v9311
        %v9313 = vpop.f32.mrb[0].mxu0
        %v9314 = vadd.f32 %v9210, %v9313
        %9315 = vdwg.mxu0
        %v9316 = vadd.f32 %v4970, %v8457
        %v9317 = vadd.f32 %v4972, %v8459
        %v9318 = vadd.f32 %v7538, %v9312
        %v9319 = vadd.f32 %v7540, %v9314
        %9320 = vst [vmem:[%s349] sm:$0xff] %v9316
        %9321 = vst [vmem:[%s349 + $0x8] sm:$0xff] %v9317
        %9322 = vst [vmem:[%s349 + $0x10] sm:$0xff] %v9318
        %9323 = vst [vmem:[%s349 + $0x18] sm:$0xff] %v9319
        %s9324 = sand.u32 %s168, 1
        %s9325 = scalar_lea.sflag [#allocation4], %s9324
        %s9326 = sand.u32 %s168, 1
        %s9327 = smul.addr %s9326, 32
        %s9328 = scalar_lea.vmem [#allocation10], %s9327
        // Predicated region
        $region53: #{tpu_custom_call.1} parent=35 // pred_check
          %p9329 = pneg %p178
        $region54: #{tpu_custom_call.1} parent=35 // pred_check_branch
          %9331 = sbr.rel (%p9329) target = $region56
        $region55: #{tpu_custom_call.1} parent=35 // pred_region
          %s9332 = smul.u32 4, %s30
          %s9334 = ssub.s32 512, 512
          %9335 = vsyncadd %s9325, %s9334
          %s9336 = smul.addr %s29, 16
          %s9337 = sadd.s32 %s9332, %s9336
          %s9338 = smul.addr %s9337, 128
          %s9339 = scalar_lea.hbm %s4, %s9338
          %s9341 = sshll.u32 %s9328, 4
          %s9342 = int_to_ptr.vmem [resolvable:$true] %s9341
          %9344 = dma.vmem_to_hbm [thread:$0]  %s9342, 512, %s9339, %s9325
        $region56: #{tpu_custom_call.1} parent=35 // pred_fallthru
          _
      $region36: #{tpu_custom_call.1} parent=5 // pred_fallthru
        _
      %p9345 = scmp.le.s32.totalorder 2, %s20
      // Predicated region
      $region57: #{tpu_custom_call.1} parent=5 // pred_check
        %p9346 = pneg %p9345
      $region58: #{tpu_custom_call.1} parent=5 // pred_check_branch
        %9348 = sbr.rel (%p9346) target = $region60
      $region59: #{tpu_custom_call.1} parent=5 // pred_region
        %s9349 = ssub.s32 %s20, 2
        // Predicated region
        $region61: #{tpu_custom_call.1} parent=59 // pred_check
          %p9350 = pneg %p184
        $region62: #{tpu_custom_call.1} parent=59 // pred_check_branch
          %9352 = sbr.rel (%p9350) target = $region64
        $region63: #{tpu_custom_call.1} parent=59 // pred_region
          %s9353 = sand.u32 %s169, 1
          %s9354 = scalar_lea.sflag [#allocation4], %s9353
          %s9355 = sand.u32 %s169, 1
          %s9356 = smul.addr %s9355, 32
          %s9357 = scalar_lea.vmem [#allocation10], %s9356
          %9358 = dma.done %s9354, 512
        $region64: #{tpu_custom_call.1} parent=59 // pred_fallthru
          _
      $region60: #{tpu_custom_call.1} parent=5 // pred_fallthru
        _
    $region6: #{tpu_custom_call.1} parent=1 // loop_footer
      %s24 = sadd.s32 1, %s20
    $region7: #{tpu_custom_call.1} parent=1 // loop_footer_branch
      %19 = sbr.rel target = $region3
    $region8: #{tpu_custom_call.1} parent=1 // loop_exit
      _
    %9359 = vsyncpa [#allocation3], 1
    %s9360 = scalar_lea.sflag [#allocation3], 1
    %9361 = vsyncpa %s9360, 1
    %9362 = vsyncpa [#allocation6], 1
    %s9363 = scalar_lea.sflag [#allocation6], 1
    %9364 = vsyncpa %s9363, 1
    %9365 = vsyncpa [#allocation9], 1
    %s9366 = scalar_lea.sflag [#allocation9], 1
    %9367 = vsyncpa %s9366, 1
    %9368 = vsyncpa [#allocation4], 1
    %s9369 = scalar_lea.sflag [#allocation4], 1
    %9370 = vsyncpa %s9369, 1

</llo_original>
